<compile_context>
chip_gen: v5e
topology: v5e:2x2
jax: 0.10.0
libtpu: 0.0.40
codegen_flags: <defaults>
</compile_context>

<pallas_src>
import jax
import jax.numpy as jnp
import numpy as np
from jax.experimental import pallas as pl
from jax.experimental.pallas import tpu as pltpu


def segnet_down3_kernel(x_ref, w1_ref, b1_ref, w2_ref, b2_ref, w3_ref, b3_ref,
                        out_ref, idx_ref):
    # x_ref: (N, H, W, Cin) NHWC.  w*_ref: (9*Ci, Co) BN-folded im2col weights.  b*_ref: (1, Co).
    # out_ref: (N*Hp*Wp, Cout) pooled values.  idx_ref: (N*Hp*Wp, Cout) int32 argmax indices
    # (PyTorch convention: flattened h*W + w within each H x W plane).
    x = x_ref[...]
    N, H, W, _ = x.shape
    HW, NHW = H * W, N * H * W
    Hp, Wp = H // 2, W // 2

    def conv3x3_bn_relu(h, w_mat, b_row):
        # 'same' 3x3 conv + (folded) BN + ReLU as a single im2col MXU matmul.
        n, hh, ww, ci = h.shape
        zr = jnp.zeros((n, 1, ww, ci), h.dtype)
        padded = jnp.concatenate([zr, h, zr], axis=1)              # pad H by 1
        zc = jnp.zeros((n, hh + 2, 1, ci), padded.dtype)
        padded = jnp.concatenate([zc, padded, zc], axis=2)         # pad W by 1
        taps = [padded[:, kh:kh + hh, kw:kw + ww, :]
                for kh in range(3) for kw in range(3)]
        patches = jnp.concatenate(taps, axis=-1)                   # (n, hh, ww, 9*ci)
        patches = patches.reshape(n * hh * ww, 9 * ci)             # batch folded into M
        y = jnp.dot(patches, w_mat, preferred_element_type=jnp.float32) + b_row
        return jnp.maximum(y, 0.0)                                 # (n*hh*ww, Co)

    y1 = conv3x3_bn_relu(x, w1_ref[...], b1_ref[...]).reshape(N, H, W, -1)
    y2 = conv3x3_bn_relu(y1, w2_ref[...], b2_ref[...]).reshape(N, H, W, -1)
    a = conv3x3_bn_relu(y2, w3_ref[...], b3_ref[...])              # (NHW, Cout), rows = (n,h,w)
    C = a.shape[-1]

    # ---- MaxPool2d(2, 2) with argmax (PyTorch first-max tie-break order) ----
    def shift_rows(v, k):                                          # v'[r] = v[r + k] (circular)
        return jnp.concatenate([v[k:], v[:k]], axis=0)

    # per-row flattened plane position h*W + w
    pos = jax.lax.broadcasted_iota(jnp.int32, (N, HW, C), 1).reshape(NHW, C)

    a_r = shift_rows(a, 1)                                         # right neighbour (w+1)
    keep_l = a >= a_r                                              # ties -> earlier index
    row_max = jnp.where(keep_l, a, a_r)
    row_idx = jnp.where(keep_l, pos, pos + 1)

    b_d = shift_rows(row_max, W)                                   # row pair one line below
    i_d = shift_rows(row_idx, W)
    keep_t = row_max >= b_d                                        # ties -> top row
    win_max = jnp.where(keep_t, row_max, b_d)                      # valid at (h even, w even)
    win_idx = jnp.where(keep_t, row_idx, i_d)

    # Compact the (h even, w even) rows to (N*Hp*Wp, C) with a 0/1 selector matmul:
    # sel[k, r] = 1 iff r is the source row of pooled row k = (n, hp, wp).
    n_i = jax.lax.broadcasted_iota(jnp.int32, (N, Hp, Wp, NHW), 0)
    h_i = jax.lax.broadcasted_iota(jnp.int32, (N, Hp, Wp, NHW), 1)
    w_i = jax.lax.broadcasted_iota(jnp.int32, (N, Hp, Wp, NHW), 2)
    r_i = jax.lax.broadcasted_iota(jnp.int32, (N, Hp, Wp, NHW), 3)
    src_row = n_i * HW + h_i * (2 * W) + w_i * 2
    sel = (r_i == src_row).astype(jnp.float32).reshape(N * Hp * Wp, NHW)

    pooled = jnp.dot(sel, win_max, preferred_element_type=jnp.float32)
    idx_f = jnp.dot(sel, win_idx.astype(jnp.float32),
                    preferred_element_type=jnp.float32)            # exact (0/1 x small ints)

    out_ref[...] = pooled.astype(out_ref.dtype)
    idx_ref[...] = (idx_f + 0.5).astype(jnp.int32)


def prepare_params(params, eps=1e-5):
    """One-time (per model) weight prep: fold inference-mode BN into each conv and
    reshape OIHW weights to im2col form (9*Ci, Co).  Hoisted out of the call path."""
    def fold(p):
        w, b, gamma, beta, mean, var = p                 # w: OIHW (Co, Ci, 3, 3)
        s = gamma / jnp.sqrt(var + eps)                  # (Co,)
        w_f = w * s[:, None, None, None]
        b_f = (b - mean) * s + beta
        co, ci, kh, kw = w.shape
        w_mat = jnp.transpose(w_f, (2, 3, 1, 0)).reshape(kh * kw * ci, co)
        return w_mat, b_f.reshape(1, co)
    w1m, b1 = fold(params["conv1"])
    w2m, b2 = fold(params["conv2"])
    w3m, b3 = fold(params["conv3"])
    return (w1m, b1, w2m, b2, w3m, b3)


def segnet_down3_forward(x_nchw, prepared):
    """x_nchw: (N, Cin, H, W) float32.  Returns (pooled NCHW, indices NCHW int32, unpooled_shape)."""
    w1m, b1, w2m, b2, w3m, b3 = prepared
    N, Cin, H, W = x_nchw.shape
    Cout = w3m.shape[1]
    assert H % 2 == 0 and W % 2 == 0, "MaxPool2d(2,2) requires even spatial dims"
    Hp, Wp = H // 2, W // 2

    x = jnp.transpose(x_nchw, (0, 2, 3, 1))              # NCHW -> NHWC (boundary glue only)

    out_flat, idx_flat = pl.pallas_call(
        segnet_down3_kernel,
        out_shape=(
            jax.ShapeDtypeStruct((N * Hp * Wp, Cout), jnp.float32),
            jax.ShapeDtypeStruct((N * Hp * Wp, Cout), jnp.int32),
        ),
        grid=(1,),                                       # single step: whole batch in VMEM
        in_specs=[
            pl.BlockSpec((N, H, W, Cin), lambda i: (0, 0, 0, 0)),
            pl.BlockSpec(w1m.shape, lambda i: (0, 0)),
            pl.BlockSpec(b1.shape, lambda i: (0, 0)),
            pl.BlockSpec(w2m.shape, lambda i: (0, 0)),
            pl.BlockSpec(b2.shape, lambda i: (0, 0)),
            pl.BlockSpec(w3m.shape, lambda i: (0, 0)),
            pl.BlockSpec(b3.shape, lambda i: (0, 0)),
        ],
        out_specs=(
            pl.BlockSpec((N * Hp * Wp, Cout), lambda i: (0, 0)),
            pl.BlockSpec((N * Hp * Wp, Cout), lambda i: (0, 0)),
        ),
        compiler_params=pltpu.CompilerParams(dimension_semantics=("arbitrary",)),
    )(x, w1m, b1, w2m, b2, w3m, b3)

    out = jnp.transpose(out_flat.reshape(N, Hp, Wp, Cout), (0, 3, 1, 2))
    idx = jnp.transpose(idx_flat.reshape(N, Hp, Wp, Cout), (0, 3, 1, 2))
    unpooled_shape = (N, Cout, H, W)
    return out, idx, unpooled_shape


def ref_forward(x_nchw, params, eps=1e-5):
    """Pure-JAX reference mirroring the PyTorch module (BatchNorm in eval mode)."""
    dn = ("NCHW", "OIHW", "NCHW")
    h = x_nchw
    for name in ("conv1", "conv2", "conv3"):
        w, b, gamma, beta, mean, var = params[name]
        h = jax.lax.conv_general_dilated(h, w, (1, 1), [(1, 1), (1, 1)],
                                         dimension_numbers=dn)
        h = h + b.reshape(1, -1, 1, 1)
        h = (h - mean.reshape(1, -1, 1, 1)) * (
            gamma.reshape(1, -1, 1, 1) / jnp.sqrt(var.reshape(1, -1, 1, 1) + eps)
        ) + beta.reshape(1, -1, 1, 1)
        h = jnp.maximum(h, 0.0)
    unpooled_shape = h.shape
    N, C, H, W = h.shape
    Hp, Wp = H // 2, W // 2
    hw = h.reshape(N, C, Hp, 2, Wp, 2)
    v00 = hw[:, :, :, 0, :, 0]
    v01 = hw[:, :, :, 0, :, 1]
    v10 = hw[:, :, :, 1, :, 0]
    v11 = hw[:, :, :, 1, :, 1]
    m = jnp.maximum(jnp.maximum(v00, v01), jnp.maximum(v10, v11))
    ph = jnp.arange(Hp, dtype=jnp.int32).reshape(1, 1, Hp, 1)
    pw = jnp.arange(Wp, dtype=jnp.int32).reshape(1, 1, 1, Wp)
    i00 = (2 * ph) * W + 2 * pw
    idx = jnp.where(v00 == m, i00,
          jnp.where(v01 == m, i00 + 1,
          jnp.where(v10 == m, i00 + W, i00 + W + 1)))
    return m, idx, unpooled_shape, h


if __name__ == "__main__":
    key = jax.random.PRNGKey(0)
    k_x, k1, k2, k3 = jax.random.split(key, 4)

    N, Cin, Cout, H, W = 2, 4, 8, 16, 16
    Hp, Wp = H // 2, W // 2
    eps = 1e-5

    x = jax.random.normal(k_x, (N, Cin, H, W), dtype=jnp.float32)

    def make_conv_bn(k, ci, co):
        kw_, kb_, kg_, kbe_, km_, kv_ = jax.random.split(k, 6)
        w = jax.random.normal(kw_, (co, ci, 3, 3), jnp.float32) / np.sqrt(9.0 * ci)
        b = 0.1 * jax.random.normal(kb_, (co,), jnp.float32)
        gamma = 1.0 + 0.1 * jax.random.normal(kg_, (co,), jnp.float32)
        beta = 0.1 * jax.random.normal(kbe_, (co,), jnp.float32)
        mean = 0.1 * jax.random.normal(km_, (co,), jnp.float32)
        var = 0.5 + jax.random.uniform(kv_, (co,), jnp.float32)
        return (w, b, gamma, beta, mean, var)

    params = {
        "conv1": make_conv_bn(k1, Cin, Cout),
        "conv2": make_conv_bn(k2, Cout, Cout),
        "conv3": make_conv_bn(k3, Cout, Cout),
    }

    prepared = prepare_params(params, eps=eps)          # hoisted one-time weight prep

    out, idx, unpooled_shape = segnet_down3_forward(x, prepared)
    out = jax.block_until_ready(out)
    idx = jax.block_until_ready(idx)

    ref_out, ref_idx, ref_shape, ref_pre = ref_forward(x, params, eps=eps)
    ref_out = jax.block_until_ready(ref_out)

    assert out.shape == (N, Cout, Hp, Wp)
    assert idx.shape == (N, Cout, Hp, Wp)
    assert tuple(unpooled_shape) == tuple(ref_shape)

    np.testing.assert_allclose(np.asarray(out), np.asarray(ref_out),
                               rtol=1e-4, atol=1e-4)

    # Indices must point at the window maxima of the pre-pool feature map.
    pre = np.asarray(ref_pre).reshape(N, Cout, H * W)
    gathered = np.take_along_axis(pre, np.asarray(idx).reshape(N, Cout, Hp * Wp), axis=2)
    np.testing.assert_allclose(gathered.reshape(N, Cout, Hp, Wp), np.asarray(ref_out),
                               rtol=1e-4, atol=1e-4)
    # Exact argmax agreement except (possibly) at floating-point near-ties.
    assert np.mean(np.asarray(idx) == np.asarray(ref_idx)) > 0.999

    print("KERNEL_OK")
</pallas_src>

<mosaic_0001>
module attributes {stable_mosaic.version = 11 : i64} {
  func.func @segnet_down3_kernel(%arg0: i32, %arg1: memref<2x16x16x4xf32, #tpu.memory_space<vmem>>, %arg2: memref<36x8xf32, #tpu.memory_space<vmem>>, %arg3: memref<1x8xf32, #tpu.memory_space<vmem>>, %arg4: memref<72x8xf32, #tpu.memory_space<vmem>>, %arg5: memref<1x8xf32, #tpu.memory_space<vmem>>, %arg6: memref<72x8xf32, #tpu.memory_space<vmem>>, %arg7: memref<1x8xf32, #tpu.memory_space<vmem>>, %arg8: memref<128x8xf32, #tpu.memory_space<vmem>>, %arg9: memref<128x8xi32, #tpu.memory_space<vmem>>) attributes {dimension_semantics = [#tpu.dimension_semantics<arbitrary>], iteration_bounds = array<i64: 1>, scalar_prefetch = 0 : i64, scratch_operands = 0 : i64, tpu.core_type = #tpu.core_type<tc>, window_params = [{pipeline_mode = #tpu.pipeline_mode<synchronous>, transform_indices = @transform_0, window_bounds = array<i64: 2, 16, 16, 4>}, {pipeline_mode = #tpu.pipeline_mode<synchronous>, transform_indices = @transform_1, window_bounds = array<i64: 36, 8>}, {pipeline_mode = #tpu.pipeline_mode<synchronous>, transform_indices = @transform_2, window_bounds = array<i64: 1, 8>}, {pipeline_mode = #tpu.pipeline_mode<synchronous>, transform_indices = @transform_3, window_bounds = array<i64: 72, 8>}, {pipeline_mode = #tpu.pipeline_mode<synchronous>, transform_indices = @transform_4, window_bounds = array<i64: 1, 8>}, {pipeline_mode = #tpu.pipeline_mode<synchronous>, transform_indices = @transform_5, window_bounds = array<i64: 72, 8>}, {pipeline_mode = #tpu.pipeline_mode<synchronous>, transform_indices = @transform_6, window_bounds = array<i64: 1, 8>}, {pipeline_mode = #tpu.pipeline_mode<synchronous>, transform_indices = @transform_7, window_bounds = array<i64: 128, 8>}, {pipeline_mode = #tpu.pipeline_mode<synchronous>, transform_indices = @transform_8, window_bounds = array<i64: 128, 8>}]} {
    %c0 = arith.constant 0 : index
    %c0_0 = arith.constant 0 : index
    %c0_1 = arith.constant 0 : index
    %c0_2 = arith.constant 0 : index
    %0 = vector.load %arg1[%c0, %c0_0, %c0_1, %c0_2] : memref<2x16x16x4xf32, #tpu.memory_space<vmem>>, vector<2x16x16x4xf32>
    %c0_3 = arith.constant 0 : index
    %c0_4 = arith.constant 0 : index
    %1 = vector.load %arg2[%c0_3, %c0_4] : memref<36x8xf32, #tpu.memory_space<vmem>>, vector<36x8xf32>
    %c0_5 = arith.constant 0 : index
    %c0_6 = arith.constant 0 : index
    %2 = vector.load %arg3[%c0_5, %c0_6] : memref<1x8xf32, #tpu.memory_space<vmem>>, vector<1x8xf32>
    %cst = arith.constant 0.000000e+00 : f32
    %3 = vector.broadcast %cst : f32 to vector<2x1x16x4xf32>
    %4 = tpu.concatenate %3, %0, %3 in 1 : vector<2x1x16x4xf32>, vector<2x16x16x4xf32>, vector<2x1x16x4xf32> -> vector<2x18x16x4xf32>
    %cst_7 = arith.constant 0.000000e+00 : f32
    %5 = vector.broadcast %cst_7 : f32 to vector<2x18x1x4xf32>
    %6 = tpu.concatenate %5, %4, %5 in 2 : vector<2x18x1x4xf32>, vector<2x18x16x4xf32>, vector<2x18x1x4xf32> -> vector<2x18x18x4xf32>
    %7 = vector.extract_strided_slice %6 {offsets = [0, 0, 0, 0], sizes = [2, 16, 16, 4], strides = [1, 1, 1, 1]} : vector<2x18x18x4xf32> to vector<2x16x16x4xf32>
    %8 = vector.extract_strided_slice %6 {offsets = [0, 0, 1, 0], sizes = [2, 16, 16, 4], strides = [1, 1, 1, 1]} : vector<2x18x18x4xf32> to vector<2x16x16x4xf32>
    %9 = vector.extract_strided_slice %6 {offsets = [0, 0, 2, 0], sizes = [2, 16, 16, 4], strides = [1, 1, 1, 1]} : vector<2x18x18x4xf32> to vector<2x16x16x4xf32>
    %10 = vector.extract_strided_slice %6 {offsets = [0, 1, 0, 0], sizes = [2, 16, 16, 4], strides = [1, 1, 1, 1]} : vector<2x18x18x4xf32> to vector<2x16x16x4xf32>
    %11 = vector.extract_strided_slice %6 {offsets = [0, 1, 1, 0], sizes = [2, 16, 16, 4], strides = [1, 1, 1, 1]} : vector<2x18x18x4xf32> to vector<2x16x16x4xf32>
    %12 = vector.extract_strided_slice %6 {offsets = [0, 1, 2, 0], sizes = [2, 16, 16, 4], strides = [1, 1, 1, 1]} : vector<2x18x18x4xf32> to vector<2x16x16x4xf32>
    %13 = vector.extract_strided_slice %6 {offsets = [0, 2, 0, 0], sizes = [2, 16, 16, 4], strides = [1, 1, 1, 1]} : vector<2x18x18x4xf32> to vector<2x16x16x4xf32>
    %14 = vector.extract_strided_slice %6 {offsets = [0, 2, 1, 0], sizes = [2, 16, 16, 4], strides = [1, 1, 1, 1]} : vector<2x18x18x4xf32> to vector<2x16x16x4xf32>
    %15 = vector.extract_strided_slice %6 {offsets = [0, 2, 2, 0], sizes = [2, 16, 16, 4], strides = [1, 1, 1, 1]} : vector<2x18x18x4xf32> to vector<2x16x16x4xf32>
    %16 = tpu.concatenate %7, %8, %9, %10, %11, %12, %13, %14, %15 in 3 : vector<2x16x16x4xf32>, vector<2x16x16x4xf32>, vector<2x16x16x4xf32>, vector<2x16x16x4xf32>, vector<2x16x16x4xf32>, vector<2x16x16x4xf32>, vector<2x16x16x4xf32>, vector<2x16x16x4xf32>, vector<2x16x16x4xf32> -> vector<2x16x16x36xf32>
    %17 = vector.shape_cast %16 : vector<2x16x16x36xf32> to vector<512x36xf32>
    %cst_8 = arith.constant dense<0.000000e+00> : vector<512x8xf32>
    %18 = tpu.matmul %17, %1, %cst_8 {dimension_numbers = #tpu.dot_dimension_numbers<[1], [0], [0], [1], [0, 0, 1, 1], [], []>} : vector<512x36xf32>, vector<36x8xf32>, vector<512x8xf32> -> vector<512x8xf32>
    %19 = vector.broadcast %2 : vector<1x8xf32> to vector<512x8xf32>
    %20 = arith.addf %18, %19 : vector<512x8xf32>
    %cst_9 = arith.constant 0.000000e+00 : f32
    %21 = vector.broadcast %cst_9 : f32 to vector<512x8xf32>
    %22 = arith.maximumf %20, %21 : vector<512x8xf32>
    %23 = vector.shape_cast %22 : vector<512x8xf32> to vector<2x16x16x8xf32>
    %c0_10 = arith.constant 0 : index
    %c0_11 = arith.constant 0 : index
    %24 = vector.load %arg4[%c0_10, %c0_11] : memref<72x8xf32, #tpu.memory_space<vmem>>, vector<72x8xf32>
    %c0_12 = arith.constant 0 : index
    %c0_13 = arith.constant 0 : index
    %25 = vector.load %arg5[%c0_12, %c0_13] : memref<1x8xf32, #tpu.memory_space<vmem>>, vector<1x8xf32>
    %cst_14 = arith.constant 0.000000e+00 : f32
    %26 = vector.broadcast %cst_14 : f32 to vector<2x1x16x8xf32>
    %27 = tpu.concatenate %26, %23, %26 in 1 : vector<2x1x16x8xf32>, vector<2x16x16x8xf32>, vector<2x1x16x8xf32> -> vector<2x18x16x8xf32>
    %cst_15 = arith.constant 0.000000e+00 : f32
    %28 = vector.broadcast %cst_15 : f32 to vector<2x18x1x8xf32>
    %29 = tpu.concatenate %28, %27, %28 in 2 : vector<2x18x1x8xf32>, vector<2x18x16x8xf32>, vector<2x18x1x8xf32> -> vector<2x18x18x8xf32>
    %30 = vector.extract_strided_slice %29 {offsets = [0, 0, 0, 0], sizes = [2, 16, 16, 8], strides = [1, 1, 1, 1]} : vector<2x18x18x8xf32> to vector<2x16x16x8xf32>
    %31 = vector.extract_strided_slice %29 {offsets = [0, 0, 1, 0], sizes = [2, 16, 16, 8], strides = [1, 1, 1, 1]} : vector<2x18x18x8xf32> to vector<2x16x16x8xf32>
    %32 = vector.extract_strided_slice %29 {offsets = [0, 0, 2, 0], sizes = [2, 16, 16, 8], strides = [1, 1, 1, 1]} : vector<2x18x18x8xf32> to vector<2x16x16x8xf32>
    %33 = vector.extract_strided_slice %29 {offsets = [0, 1, 0, 0], sizes = [2, 16, 16, 8], strides = [1, 1, 1, 1]} : vector<2x18x18x8xf32> to vector<2x16x16x8xf32>
    %34 = vector.extract_strided_slice %29 {offsets = [0, 1, 1, 0], sizes = [2, 16, 16, 8], strides = [1, 1, 1, 1]} : vector<2x18x18x8xf32> to vector<2x16x16x8xf32>
    %35 = vector.extract_strided_slice %29 {offsets = [0, 1, 2, 0], sizes = [2, 16, 16, 8], strides = [1, 1, 1, 1]} : vector<2x18x18x8xf32> to vector<2x16x16x8xf32>
    %36 = vector.extract_strided_slice %29 {offsets = [0, 2, 0, 0], sizes = [2, 16, 16, 8], strides = [1, 1, 1, 1]} : vector<2x18x18x8xf32> to vector<2x16x16x8xf32>
    %37 = vector.extract_strided_slice %29 {offsets = [0, 2, 1, 0], sizes = [2, 16, 16, 8], strides = [1, 1, 1, 1]} : vector<2x18x18x8xf32> to vector<2x16x16x8xf32>
    %38 = vector.extract_strided_slice %29 {offsets = [0, 2, 2, 0], sizes = [2, 16, 16, 8], strides = [1, 1, 1, 1]} : vector<2x18x18x8xf32> to vector<2x16x16x8xf32>
    %39 = tpu.concatenate %30, %31, %32, %33, %34, %35, %36, %37, %38 in 3 : vector<2x16x16x8xf32>, vector<2x16x16x8xf32>, vector<2x16x16x8xf32>, vector<2x16x16x8xf32>, vector<2x16x16x8xf32>, vector<2x16x16x8xf32>, vector<2x16x16x8xf32>, vector<2x16x16x8xf32>, vector<2x16x16x8xf32> -> vector<2x16x16x72xf32>
    %40 = vector.shape_cast %39 : vector<2x16x16x72xf32> to vector<512x72xf32>
    %cst_16 = arith.constant dense<0.000000e+00> : vector<512x8xf32>
    %41 = tpu.matmul %40, %24, %cst_16 {dimension_numbers = #tpu.dot_dimension_numbers<[1], [0], [0], [1], [0, 0, 1, 1], [], []>} : vector<512x72xf32>, vector<72x8xf32>, vector<512x8xf32> -> vector<512x8xf32>
    %42 = vector.broadcast %25 : vector<1x8xf32> to vector<512x8xf32>
    %43 = arith.addf %41, %42 : vector<512x8xf32>
    %cst_17 = arith.constant 0.000000e+00 : f32
    %44 = vector.broadcast %cst_17 : f32 to vector<512x8xf32>
    %45 = arith.maximumf %43, %44 : vector<512x8xf32>
    %46 = vector.shape_cast %45 : vector<512x8xf32> to vector<2x16x16x8xf32>
    %c0_18 = arith.constant 0 : index
    %c0_19 = arith.constant 0 : index
    %47 = vector.load %arg6[%c0_18, %c0_19] : memref<72x8xf32, #tpu.memory_space<vmem>>, vector<72x8xf32>
    %c0_20 = arith.constant 0 : index
    %c0_21 = arith.constant 0 : index
    %48 = vector.load %arg7[%c0_20, %c0_21] : memref<1x8xf32, #tpu.memory_space<vmem>>, vector<1x8xf32>
    %cst_22 = arith.constant 0.000000e+00 : f32
    %49 = vector.broadcast %cst_22 : f32 to vector<2x1x16x8xf32>
    %50 = tpu.concatenate %49, %46, %49 in 1 : vector<2x1x16x8xf32>, vector<2x16x16x8xf32>, vector<2x1x16x8xf32> -> vector<2x18x16x8xf32>
    %cst_23 = arith.constant 0.000000e+00 : f32
    %51 = vector.broadcast %cst_23 : f32 to vector<2x18x1x8xf32>
    %52 = tpu.concatenate %51, %50, %51 in 2 : vector<2x18x1x8xf32>, vector<2x18x16x8xf32>, vector<2x18x1x8xf32> -> vector<2x18x18x8xf32>
    %53 = vector.extract_strided_slice %52 {offsets = [0, 0, 0, 0], sizes = [2, 16, 16, 8], strides = [1, 1, 1, 1]} : vector<2x18x18x8xf32> to vector<2x16x16x8xf32>
    %54 = vector.extract_strided_slice %52 {offsets = [0, 0, 1, 0], sizes = [2, 16, 16, 8], strides = [1, 1, 1, 1]} : vector<2x18x18x8xf32> to vector<2x16x16x8xf32>
    %55 = vector.extract_strided_slice %52 {offsets = [0, 0, 2, 0], sizes = [2, 16, 16, 8], strides = [1, 1, 1, 1]} : vector<2x18x18x8xf32> to vector<2x16x16x8xf32>
    %56 = vector.extract_strided_slice %52 {offsets = [0, 1, 0, 0], sizes = [2, 16, 16, 8], strides = [1, 1, 1, 1]} : vector<2x18x18x8xf32> to vector<2x16x16x8xf32>
    %57 = vector.extract_strided_slice %52 {offsets = [0, 1, 1, 0], sizes = [2, 16, 16, 8], strides = [1, 1, 1, 1]} : vector<2x18x18x8xf32> to vector<2x16x16x8xf32>
    %58 = vector.extract_strided_slice %52 {offsets = [0, 1, 2, 0], sizes = [2, 16, 16, 8], strides = [1, 1, 1, 1]} : vector<2x18x18x8xf32> to vector<2x16x16x8xf32>
    %59 = vector.extract_strided_slice %52 {offsets = [0, 2, 0, 0], sizes = [2, 16, 16, 8], strides = [1, 1, 1, 1]} : vector<2x18x18x8xf32> to vector<2x16x16x8xf32>
    %60 = vector.extract_strided_slice %52 {offsets = [0, 2, 1, 0], sizes = [2, 16, 16, 8], strides = [1, 1, 1, 1]} : vector<2x18x18x8xf32> to vector<2x16x16x8xf32>
    %61 = vector.extract_strided_slice %52 {offsets = [0, 2, 2, 0], sizes = [2, 16, 16, 8], strides = [1, 1, 1, 1]} : vector<2x18x18x8xf32> to vector<2x16x16x8xf32>
    %62 = tpu.concatenate %53, %54, %55, %56, %57, %58, %59, %60, %61 in 3 : vector<2x16x16x8xf32>, vector<2x16x16x8xf32>, vector<2x16x16x8xf32>, vector<2x16x16x8xf32>, vector<2x16x16x8xf32>, vector<2x16x16x8xf32>, vector<2x16x16x8xf32>, vector<2x16x16x8xf32>, vector<2x16x16x8xf32> -> vector<2x16x16x72xf32>
    %63 = vector.shape_cast %62 : vector<2x16x16x72xf32> to vector<512x72xf32>
    %cst_24 = arith.constant dense<0.000000e+00> : vector<512x8xf32>
    %64 = tpu.matmul %63, %47, %cst_24 {dimension_numbers = #tpu.dot_dimension_numbers<[1], [0], [0], [1], [0, 0, 1, 1], [], []>} : vector<512x72xf32>, vector<72x8xf32>, vector<512x8xf32> -> vector<512x8xf32>
    %65 = vector.broadcast %48 : vector<1x8xf32> to vector<512x8xf32>
    %66 = arith.addf %64, %65 : vector<512x8xf32>
    %cst_25 = arith.constant 0.000000e+00 : f32
    %67 = vector.broadcast %cst_25 : f32 to vector<512x8xf32>
    %68 = arith.maximumf %66, %67 : vector<512x8xf32>
    %69 = tpu.iota {dimensions = array<i32: 1>} : vector<2x256x8xi32>
    %70 = vector.shape_cast %69 : vector<2x256x8xi32> to vector<512x8xi32>
    %71 = vector.extract_strided_slice %68 {offsets = [1, 0], sizes = [511, 8], strides = [1, 1]} : vector<512x8xf32> to vector<511x8xf32>
    %72 = vector.extract_strided_slice %68 {offsets = [0, 0], sizes = [1, 8], strides = [1, 1]} : vector<512x8xf32> to vector<1x8xf32>
    %73 = tpu.concatenate %71, %72 in 0 : vector<511x8xf32>, vector<1x8xf32> -> vector<512x8xf32>
    %74 = arith.cmpf oge, %68, %73 : vector<512x8xf32>
    %75 = arith.select %74, %68, %73 : vector<512x8xi1>, vector<512x8xf32>
    %c1_i32 = arith.constant 1 : i32
    %76 = vector.broadcast %c1_i32 : i32 to vector<512x8xi32>
    %77 = arith.addi %70, %76 : vector<512x8xi32>
    %78 = arith.select %74, %70, %77 : vector<512x8xi1>, vector<512x8xi32>
    %79 = vector.extract_strided_slice %75 {offsets = [16, 0], sizes = [496, 8], strides = [1, 1]} : vector<512x8xf32> to vector<496x8xf32>
    %80 = vector.extract_strided_slice %75 {offsets = [0, 0], sizes = [16, 8], strides = [1, 1]} : vector<512x8xf32> to vector<16x8xf32>
    %81 = tpu.concatenate %79, %80 in 0 : vector<496x8xf32>, vector<16x8xf32> -> vector<512x8xf32>
    %82 = vector.extract_strided_slice %78 {offsets = [16, 0], sizes = [496, 8], strides = [1, 1]} : vector<512x8xi32> to vector<496x8xi32>
    %83 = vector.extract_strided_slice %78 {offsets = [0, 0], sizes = [16, 8], strides = [1, 1]} : vector<512x8xi32> to vector<16x8xi32>
    %84 = tpu.concatenate %82, %83 in 0 : vector<496x8xi32>, vector<16x8xi32> -> vector<512x8xi32>
    %85 = arith.cmpf oge, %75, %81 : vector<512x8xf32>
    %86 = arith.select %85, %75, %81 : vector<512x8xi1>, vector<512x8xf32>
    %87 = arith.select %85, %78, %84 : vector<512x8xi1>, vector<512x8xi32>
    %88 = tpu.iota {dimensions = array<i32: 0>} : vector<2x8x8x512xi32>
    %89 = tpu.iota {dimensions = array<i32: 1>} : vector<2x8x8x512xi32>
    %90 = tpu.iota {dimensions = array<i32: 2>} : vector<2x8x8x512xi32>
    %91 = tpu.iota {dimensions = array<i32: 3>} : vector<2x8x8x512xi32>
    %c256_i32 = arith.constant 256 : i32
    %92 = vector.broadcast %c256_i32 : i32 to vector<2x8x8x512xi32>
    %93 = arith.muli %88, %92 : vector<2x8x8x512xi32>
    %c32_i32 = arith.constant 32 : i32
    %94 = vector.broadcast %c32_i32 : i32 to vector<2x8x8x512xi32>
    %95 = arith.muli %89, %94 : vector<2x8x8x512xi32>
    %96 = arith.addi %93, %95 : vector<2x8x8x512xi32>
    %c2_i32 = arith.constant 2 : i32
    %97 = vector.broadcast %c2_i32 : i32 to vector<2x8x8x512xi32>
    %98 = arith.muli %90, %97 : vector<2x8x8x512xi32>
    %99 = arith.addi %96, %98 : vector<2x8x8x512xi32>
    %100 = arith.cmpi eq, %91, %99 : vector<2x8x8x512xi32>
    %101 = arith.extui %100 : vector<2x8x8x512xi1> to vector<2x8x8x512xi32>
    %102 = arith.sitofp %101 : vector<2x8x8x512xi32> to vector<2x8x8x512xf32>
    %103 = vector.shape_cast %102 : vector<2x8x8x512xf32> to vector<128x512xf32>
    %cst_26 = arith.constant dense<0.000000e+00> : vector<128x8xf32>
    %104 = tpu.matmul %103, %86, %cst_26 {dimension_numbers = #tpu.dot_dimension_numbers<[1], [0], [0], [1], [0, 0, 1, 1], [], []>} : vector<128x512xf32>, vector<512x8xf32>, vector<128x8xf32> -> vector<128x8xf32>
    %105 = arith.sitofp %87 : vector<512x8xi32> to vector<512x8xf32>
    %cst_27 = arith.constant dense<0.000000e+00> : vector<128x8xf32>
    %106 = tpu.matmul %103, %105, %cst_27 {dimension_numbers = #tpu.dot_dimension_numbers<[1], [0], [0], [1], [0, 0, 1, 1], [], []>} : vector<128x512xf32>, vector<512x8xf32>, vector<128x8xf32> -> vector<128x8xf32>
    %c0_28 = arith.constant 0 : index
    %c0_29 = arith.constant 0 : index
    %107 = vector.load %arg8[%c0_28, %c0_29] : memref<128x8xf32, #tpu.memory_space<vmem>>, vector<128x8xf32>
    tpu.vector_store %arg8[%c0_28, %c0_29], %104 {strides = array<i32>} : memref<128x8xf32, #tpu.memory_space<vmem>>, vector<128x8xf32>,
    %cst_30 = arith.constant 5.000000e-01 : f32
    %108 = vector.broadcast %cst_30 : f32 to vector<128x8xf32>
    %109 = arith.addf %106, %108 : vector<128x8xf32>
    %110 = arith.fptosi %109 : vector<128x8xf32> to vector<128x8xi32>
    %c0_31 = arith.constant 0 : index
    %c0_32 = arith.constant 0 : index
    %111 = vector.load %arg9[%c0_31, %c0_32] : memref<128x8xi32, #tpu.memory_space<vmem>>, vector<128x8xi32>
    tpu.vector_store %arg9[%c0_31, %c0_32], %110 {strides = array<i32>} : memref<128x8xi32, #tpu.memory_space<vmem>>, vector<128x8xi32>,
    return
  }
  func.func @transform_0(%arg0: i32) -> (i32, i32, i32, i32) {
    %c0_i32 = arith.constant 0 : i32
    %c0_i32_0 = arith.constant 0 : i32
    %c0_i32_1 = arith.constant 0 : i32
    %c0_i32_2 = arith.constant 0 : i32
    %c0_i32_3 = arith.constant 0 : i32
    return %c0_i32, %c0_i32_0, %c0_i32_1, %c0_i32_2 : i32, i32, i32, i32
  }
  func.func @transform_1(%arg0: i32) -> (i32, i32) {
    %c0_i32 = arith.constant 0 : i32
    %c0_i32_0 = arith.constant 0 : i32
    %c0_i32_1 = arith.constant 0 : i32
    return %c0_i32, %c0_i32_0 : i32, i32
  }
  func.func @transform_2(%arg0: i32) -> (i32, i32) {
    %c0_i32 = arith.constant 0 : i32
    %c0_i32_0 = arith.constant 0 : i32
    %c0_i32_1 = arith.constant 0 : i32
    return %c0_i32, %c0_i32_0 : i32, i32
  }
  func.func @transform_3(%arg0: i32) -> (i32, i32) {
    %c0_i32 = arith.constant 0 : i32
    %c0_i32_0 = arith.constant 0 : i32
    %c0_i32_1 = arith.constant 0 : i32
    return %c0_i32, %c0_i32_0 : i32, i32
  }
  func.func @transform_4(%arg0: i32) -> (i32, i32) {
    %c0_i32 = arith.constant 0 : i32
    %c0_i32_0 = arith.constant 0 : i32
    %c0_i32_1 = arith.constant 0 : i32
    return %c0_i32, %c0_i32_0 : i32, i32
  }
  func.func @transform_5(%arg0: i32) -> (i32, i32) {
    %c0_i32 = arith.constant 0 : i32
    %c0_i32_0 = arith.constant 0 : i32
    %c0_i32_1 = arith.constant 0 : i32
    return %c0_i32, %c0_i32_0 : i32, i32
  }
  func.func @transform_6(%arg0: i32) -> (i32, i32) {
    %c0_i32 = arith.constant 0 : i32
    %c0_i32_0 = arith.constant 0 : i32
    %c0_i32_1 = arith.constant 0 : i32
    return %c0_i32, %c0_i32_0 : i32, i32
  }
  func.func @transform_7(%arg0: i32) -> (i32, i32) {
    %c0_i32 = arith.constant 0 : i32
    %c0_i32_0 = arith.constant 0 : i32
    %c0_i32_1 = arith.constant 0 : i32
    return %c0_i32, %c0_i32_0 : i32, i32
  }
  func.func @transform_8(%arg0: i32) -> (i32, i32) {
    %c0_i32 = arith.constant 0 : i32
    %c0_i32_0 = arith.constant 0 : i32
    %c0_i32_1 = arith.constant 0 : i32
    return %c0_i32, %c0_i32_0 : i32, i32
  }
}

</mosaic_0001>

<llo_original>
// kernel: tpu_custom_call.1
$region0: #{tpu_custom_call.1}
  #allocation0 [shape = 'u32[]', space=smem, size = 0x4, offset = 0x4, fixed_abs, tag = 'smem constant byte address 0x4 - core index']
  #allocation1 [shape = 'u32[72,128]{1,0:T(1,128)}', space=vmem, size = 0x9000, scoped, tag = 'internal scratch']
  %s0 = inlined_call_operand.vmem [shape: f32[2,16,16,4], index: 0, kind: input, shape index: {}]
  %s1 = inlined_call_operand.vmem [shape: f32[36,8], index: 1, kind: input, shape index: {}]
  %s2 = inlined_call_operand.vmem [shape: f32[1,8], index: 2, kind: input, shape index: {}]
  %s3 = inlined_call_operand.vmem [shape: f32[72,8], index: 3, kind: input, shape index: {}]
  %s4 = inlined_call_operand.vmem [shape: f32[1,8], index: 4, kind: input, shape index: {}]
  %s5 = inlined_call_operand.vmem [shape: f32[72,8], index: 5, kind: input, shape index: {}]
  %s6 = inlined_call_operand.vmem [shape: f32[1,8], index: 6, kind: input, shape index: {}]
  %s7 = inlined_call_operand.vmem [shape: f32[128,8], index: 7, kind: output, shape index: {0}]
  %s8 = inlined_call_operand.vmem [shape: s32[128,8], index: 8, kind: output, shape index: {1}]
  %9 = xla_tuple %s7, %s8
  %s10 = sld [smem:[#allocation0]]
  $region46: #{tpu_custom_call.1} parent=0
    _
  %s12 = ssub.s32 1, %s10
  %s13 = scalar_select 0, %s12, %s10
  // Predicated region
  $region2: #{tpu_custom_call.1} parent=0 // pred_check
    _
  $region3: #{tpu_custom_call.1} parent=0 // pred_check_branch
    %15 = sbr.rel (0) target = $region5
  $region4: #{tpu_custom_call.1} parent=0 // pred_region
    _
  $region5: #{tpu_custom_call.1} parent=0 // pred_fallthru
    _
  // Predicated region
  $region6: #{tpu_custom_call.1} parent=0 // pred_check
    _
  $region7: #{tpu_custom_call.1} parent=0 // pred_check_branch
    %17 = sbr.rel (0) target = $region9
  $region8: #{tpu_custom_call.1} parent=0 // pred_region
    _
  $region9: #{tpu_custom_call.1} parent=0 // pred_fallthru
    _
  // Predicated region
  $region10: #{tpu_custom_call.1} parent=0 // pred_check
    _
  $region11: #{tpu_custom_call.1} parent=0 // pred_check_branch
    %19 = sbr.rel (0) target = $region13
  $region12: #{tpu_custom_call.1} parent=0 // pred_region
    _
  $region13: #{tpu_custom_call.1} parent=0 // pred_fallthru
    _
  // Predicated region
  $region14: #{tpu_custom_call.1} parent=0 // pred_check
    _
  $region15: #{tpu_custom_call.1} parent=0 // pred_check_branch
    %21 = sbr.rel (0) target = $region17
  $region16: #{tpu_custom_call.1} parent=0 // pred_region
    _
  $region17: #{tpu_custom_call.1} parent=0 // pred_fallthru
    _
  // Predicated region
  $region18: #{tpu_custom_call.1} parent=0 // pred_check
    _
  $region19: #{tpu_custom_call.1} parent=0 // pred_check_branch
    %23 = sbr.rel (0) target = $region21
  $region20: #{tpu_custom_call.1} parent=0 // pred_region
    _
  $region21: #{tpu_custom_call.1} parent=0 // pred_fallthru
    _
  // Predicated region
  $region22: #{tpu_custom_call.1} parent=0 // pred_check
    _
  $region23: #{tpu_custom_call.1} parent=0 // pred_check_branch
    %25 = sbr.rel (0) target = $region25
  $region24: #{tpu_custom_call.1} parent=0 // pred_region
    _
  $region25: #{tpu_custom_call.1} parent=0 // pred_fallthru
    _
  // Predicated region
  $region26: #{tpu_custom_call.1} parent=0 // pred_check
    _
  $region27: #{tpu_custom_call.1} parent=0 // pred_check_branch
    %27 = sbr.rel (0) target = $region29
  $region28: #{tpu_custom_call.1} parent=0 // pred_region
    _
  $region29: #{tpu_custom_call.1} parent=0 // pred_fallthru
    _
  %v28 = vld [vmem:[%s0] sm:$0xff]
  %v29 = vld [vmem:[%s0 + $0x8] sm:$0xff]
  %v30 = vld [vmem:[%s0 + $0x10] sm:$0xff]
  %v31 = vld [vmem:[%s0 + $0x18] sm:$0xff]
  %v32 = vld [vmem:[%s0 + $0x20] sm:$0xff]
  %v33 = vld [vmem:[%s0 + $0x28] sm:$0xff]
  %v34 = vld [vmem:[%s0 + $0x30] sm:$0xff]
  %v35 = vld [vmem:[%s0 + $0x38] sm:$0xff]
  %v36 = vld [vmem:[%s0 + $0x40] sm:$0xff]
  %v37 = vld [vmem:[%s0 + $0x48] sm:$0xff]
  %v38 = vld [vmem:[%s0 + $0x50] sm:$0xff]
  %v39 = vld [vmem:[%s0 + $0x58] sm:$0xff]
  %v40 = vld [vmem:[%s0 + $0x60] sm:$0xff]
  %v41 = vld [vmem:[%s0 + $0x68] sm:$0xff]
  %v42 = vld [vmem:[%s0 + $0x70] sm:$0xff]
  %v43 = vld [vmem:[%s0 + $0x78] sm:$0xff]
  %v44 = vld [vmem:[%s0 + $0x80] sm:$0xff]
  %v45 = vld [vmem:[%s0 + $0x88] sm:$0xff]
  %v46 = vld [vmem:[%s0 + $0x90] sm:$0xff]
  %v47 = vld [vmem:[%s0 + $0x98] sm:$0xff]
  %v48 = vld [vmem:[%s0 + $0xa0] sm:$0xff]
  %v49 = vld [vmem:[%s0 + $0xa8] sm:$0xff]
  %v50 = vld [vmem:[%s0 + $0xb0] sm:$0xff]
  %v51 = vld [vmem:[%s0 + $0xb8] sm:$0xff]
  %v52 = vld [vmem:[%s0 + $0xc0] sm:$0xff]
  %v53 = vld [vmem:[%s0 + $0xc8] sm:$0xff]
  %v54 = vld [vmem:[%s0 + $0xd0] sm:$0xff]
  %v55 = vld [vmem:[%s0 + $0xd8] sm:$0xff]
  %v56 = vld [vmem:[%s0 + $0xe0] sm:$0xff]
  %v57 = vld [vmem:[%s0 + $0xe8] sm:$0xff]
  %v58 = vld [vmem:[%s0 + $0xf0] sm:$0xff]
  %v59 = vld [vmem:[%s0 + $0xf8] sm:$0xff]
  %v60 = vld [vmem:[%s0 + $0x100] sm:$0xff]
  %v61 = vld [vmem:[%s0 + $0x108] sm:$0xff]
  %v62 = vld [vmem:[%s0 + $0x110] sm:$0xff]
  %v63 = vld [vmem:[%s0 + $0x118] sm:$0xff]
  %v64 = vld [vmem:[%s0 + $0x120] sm:$0xff]
  %v65 = vld [vmem:[%s0 + $0x128] sm:$0xff]
  %v66 = vld [vmem:[%s0 + $0x130] sm:$0xff]
  %v67 = vld [vmem:[%s0 + $0x138] sm:$0xff]
  %v68 = vld [vmem:[%s0 + $0x140] sm:$0xff]
  %v69 = vld [vmem:[%s0 + $0x148] sm:$0xff]
  %v70 = vld [vmem:[%s0 + $0x150] sm:$0xff]
  %v71 = vld [vmem:[%s0 + $0x158] sm:$0xff]
  %v72 = vld [vmem:[%s0 + $0x160] sm:$0xff]
  %v73 = vld [vmem:[%s0 + $0x168] sm:$0xff]
  %v74 = vld [vmem:[%s0 + $0x170] sm:$0xff]
  %v75 = vld [vmem:[%s0 + $0x178] sm:$0xff]
  %v76 = vld [vmem:[%s0 + $0x180] sm:$0xff]
  %v77 = vld [vmem:[%s0 + $0x188] sm:$0xff]
  %v78 = vld [vmem:[%s0 + $0x190] sm:$0xff]
  %v79 = vld [vmem:[%s0 + $0x198] sm:$0xff]
  %v80 = vld [vmem:[%s0 + $0x1a0] sm:$0xff]
  %v81 = vld [vmem:[%s0 + $0x1a8] sm:$0xff]
  %v82 = vld [vmem:[%s0 + $0x1b0] sm:$0xff]
  %v83 = vld [vmem:[%s0 + $0x1b8] sm:$0xff]
  %v84 = vld [vmem:[%s0 + $0x1c0] sm:$0xff]
  %v85 = vld [vmem:[%s0 + $0x1c8] sm:$0xff]
  %v86 = vld [vmem:[%s0 + $0x1d0] sm:$0xff]
  %v87 = vld [vmem:[%s0 + $0x1d8] sm:$0xff]
  %v88 = vld [vmem:[%s0 + $0x1e0] sm:$0xff]
  %v89 = vld [vmem:[%s0 + $0x1e8] sm:$0xff]
  %v90 = vld [vmem:[%s0 + $0x1f0] sm:$0xff]
  %v91 = vld [vmem:[%s0 + $0x1f8] sm:$0xff]
  %v92 = vld [vmem:[%s1] sm:$0xff]
  %v93 = vld [vmem:[%s1 + $0x8] sm:$0xff]
  %v94 = vld [vmem:[%s1 + $0x10] sm:$0xff]
  %v95 = vld [vmem:[%s1 + $0x18] sm:$0xff]
  %v96 = vld [vmem:[%s1 + $0x20] sm:$0xf]
  %v97 = vld [vmem:[%s2] sm:$0x1]
  %vm163 = vcmask 1040384
  %v164 = vrot.slane 0.0, 7
  %v165 = vsel %vm163, %v164, %v164
  %v166 = vrot.slane %v28, 7
  %v167 = vrot.slane %v29, 7
  %v168 = vsel %vm163, %v166, %v167
  %v169 = vrot.slane %v30, 7
  %v170 = vrot.slane %v31, 7
  %v171 = vsel %vm163, %v169, %v170
  %v172 = vrot.slane %v32, 7
  %v173 = vrot.slane %v33, 7
  %v174 = vsel %vm163, %v172, %v173
  %v175 = vrot.slane %v34, 7
  %v176 = vrot.slane %v35, 7
  %v177 = vsel %vm163, %v175, %v176
  %v178 = vrot.slane %v36, 7
  %v179 = vrot.slane %v37, 7
  %v180 = vsel %vm163, %v178, %v179
  %v181 = vrot.slane %v38, 7
  %v182 = vrot.slane %v39, 7
  %v183 = vsel %vm163, %v181, %v182
  %v184 = vrot.slane %v40, 7
  %v185 = vrot.slane %v41, 7
  %v186 = vsel %vm163, %v184, %v185
  %v187 = vrot.slane %v42, 7
  %v188 = vrot.slane %v43, 7
  %v189 = vsel %vm163, %v187, %v188
  %v190 = vrot.slane %v44, 7
  %v191 = vrot.slane %v45, 7
  %v192 = vsel %vm163, %v190, %v191
  %v193 = vrot.slane %v46, 7
  %v194 = vrot.slane %v47, 7
  %v195 = vsel %vm163, %v193, %v194
  %v196 = vrot.slane %v48, 7
  %v197 = vrot.slane %v49, 7
  %v198 = vsel %vm163, %v196, %v197
  %v199 = vrot.slane %v50, 7
  %v200 = vrot.slane %v51, 7
  %v201 = vsel %vm163, %v199, %v200
  %v202 = vrot.slane %v52, 7
  %v203 = vrot.slane %v53, 7
  %v204 = vsel %vm163, %v202, %v203
  %v205 = vrot.slane %v54, 7
  %v206 = vrot.slane %v55, 7
  %v207 = vsel %vm163, %v205, %v206
  %v208 = vrot.slane %v56, 7
  %v209 = vrot.slane %v57, 7
  %v210 = vsel %vm163, %v208, %v209
  %v211 = vrot.slane %v58, 7
  %v212 = vrot.slane %v59, 7
  %v213 = vsel %vm163, %v211, %v212
  %v214 = vrot.slane %v60, 7
  %v215 = vrot.slane %v61, 7
  %v216 = vsel %vm163, %v214, %v215
  %v217 = vrot.slane %v62, 7
  %v218 = vrot.slane %v63, 7
  %v219 = vsel %vm163, %v217, %v218
  %v220 = vrot.slane %v64, 7
  %v221 = vrot.slane %v65, 7
  %v222 = vsel %vm163, %v220, %v221
  %v223 = vrot.slane %v66, 7
  %v224 = vrot.slane %v67, 7
  %v225 = vsel %vm163, %v223, %v224
  %v226 = vrot.slane %v68, 7
  %v227 = vrot.slane %v69, 7
  %v228 = vsel %vm163, %v226, %v227
  %v229 = vrot.slane %v70, 7
  %v230 = vrot.slane %v71, 7
  %v231 = vsel %vm163, %v229, %v230
  %v232 = vrot.slane %v72, 7
  %v233 = vrot.slane %v73, 7
  %v234 = vsel %vm163, %v232, %v233
  %v235 = vrot.slane %v74, 7
  %v236 = vrot.slane %v75, 7
  %v237 = vsel %vm163, %v235, %v236
  %v238 = vrot.slane %v76, 7
  %v239 = vrot.slane %v77, 7
  %v240 = vsel %vm163, %v238, %v239
  %v241 = vrot.slane %v78, 7
  %v242 = vrot.slane %v79, 7
  %v243 = vsel %vm163, %v241, %v242
  %v244 = vrot.slane %v80, 7
  %v245 = vrot.slane %v81, 7
  %v246 = vsel %vm163, %v244, %v245
  %v247 = vrot.slane %v82, 7
  %v248 = vrot.slane %v83, 7
  %v249 = vsel %vm163, %v247, %v248
  %v250 = vrot.slane %v84, 7
  %v251 = vrot.slane %v85, 7
  %v252 = vsel %vm163, %v250, %v251
  %v253 = vrot.slane %v86, 7
  %v254 = vrot.slane %v87, 7
  %v255 = vsel %vm163, %v253, %v254
  %v256 = vrot.slane %v88, 7
  %v257 = vrot.slane %v89, 7
  %v258 = vsel %vm163, %v256, %v257
  %v259 = vrot.slane %v90, 7
  %v260 = vrot.slane %v91, 7
  %v261 = vsel %vm163, %v259, %v260
  %v358 = vsel %vm163, 0.0, %v164
  %v359 = vsel %vm163, 0.0, %v166
  %v360 = vsel %vm163, 0.0, %v169
  %v361 = vsel %vm163, 0.0, %v172
  %v362 = vsel %vm163, 0.0, %v175
  %v363 = vsel %vm163, 0.0, %v178
  %v364 = vsel %vm163, 0.0, %v181
  %v365 = vsel %vm163, 0.0, %v184
  %v366 = vsel %vm163, 0.0, %v187
  %v367 = vsel %vm163, 0.0, %v190
  %v368 = vsel %vm163, 0.0, %v193
  %v369 = vsel %vm163, 0.0, %v196
  %v370 = vsel %vm163, 0.0, %v199
  %v371 = vsel %vm163, 0.0, %v202
  %v372 = vsel %vm163, 0.0, %v205
  %v373 = vsel %vm163, 0.0, %v208
  %v374 = vsel %vm163, 0.0, %v211
  %v375 = vsel %vm163, 0.0, %v214
  %v376 = vsel %vm163, 0.0, %v217
  %v377 = vsel %vm163, 0.0, %v220
  %v378 = vsel %vm163, 0.0, %v223
  %v379 = vsel %vm163, 0.0, %v226
  %v380 = vsel %vm163, 0.0, %v229
  %v381 = vsel %vm163, 0.0, %v232
  %v382 = vsel %vm163, 0.0, %v235
  %v383 = vsel %vm163, 0.0, %v238
  %v384 = vsel %vm163, 0.0, %v241
  %v385 = vsel %vm163, 0.0, %v244
  %v386 = vsel %vm163, 0.0, %v247
  %v387 = vsel %vm163, 0.0, %v250
  %v388 = vsel %vm163, 0.0, %v253
  %v389 = vsel %vm163, 0.0, %v256
  %v390 = vsel %vm163, 0.0, %v259
  %v391 = vsel %vm163, %v164, 0.0
  %v392 = vsel %vm163, %v167, 0.0
  %v393 = vsel %vm163, %v170, 0.0
  %v394 = vsel %vm163, %v173, 0.0
  %v395 = vsel %vm163, %v176, 0.0
  %v396 = vsel %vm163, %v179, 0.0
  %v397 = vsel %vm163, %v182, 0.0
  %v398 = vsel %vm163, %v185, 0.0
  %v399 = vsel %vm163, %v188, 0.0
  %v400 = vsel %vm163, %v191, 0.0
  %v401 = vsel %vm163, %v194, 0.0
  %v402 = vsel %vm163, %v197, 0.0
  %v403 = vsel %vm163, %v200, 0.0
  %v404 = vsel %vm163, %v203, 0.0
  %v405 = vsel %vm163, %v206, 0.0
  %v406 = vsel %vm163, %v209, 0.0
  %v407 = vsel %vm163, %v212, 0.0
  %v408 = vsel %vm163, %v215, 0.0
  %v409 = vsel %vm163, %v218, 0.0
  %v410 = vsel %vm163, %v221, 0.0
  %v411 = vsel %vm163, %v224, 0.0
  %v412 = vsel %vm163, %v227, 0.0
  %v413 = vsel %vm163, %v230, 0.0
  %v414 = vsel %vm163, %v233, 0.0
  %v415 = vsel %vm163, %v236, 0.0
  %v416 = vsel %vm163, %v239, 0.0
  %v417 = vsel %vm163, %v242, 0.0
  %v418 = vsel %vm163, %v245, 0.0
  %v419 = vsel %vm163, %v248, 0.0
  %v420 = vsel %vm163, %v251, 0.0
  %v421 = vsel %vm163, %v254, 0.0
  %v422 = vsel %vm163, %v257, 0.0
  %v423 = vsel %vm163, %v260, 0.0
  %vm486 = vcmask 1046528
  %v487 = vrot.slane %v358, 1
  %v488 = vrot.slane %v165, 1
  %v489 = vsel %vm486, %v487, %v488
  %v490 = vrot.slane %v391, 1
  %v491 = vsel %vm486, %v488, %v490
  %v492 = vrot.slane %v359, 1
  %v493 = vrot.slane %v168, 1
  %v494 = vsel %vm486, %v492, %v493
  %v495 = vrot.slane %v392, 1
  %v496 = vsel %vm486, %v493, %v495
  %v497 = vrot.slane %v360, 1
  %v498 = vrot.slane %v171, 1
  %v499 = vsel %vm486, %v497, %v498
  %v500 = vrot.slane %v393, 1
  %v501 = vsel %vm486, %v498, %v500
  %v502 = vrot.slane %v361, 1
  %v503 = vrot.slane %v174, 1
  %v504 = vsel %vm486, %v502, %v503
  %v505 = vrot.slane %v394, 1
  %v506 = vsel %vm486, %v503, %v505
  %v507 = vrot.slane %v362, 1
  %v508 = vrot.slane %v177, 1
  %v509 = vsel %vm486, %v507, %v508
  %v510 = vrot.slane %v395, 1
  %v511 = vsel %vm486, %v508, %v510
  %v512 = vrot.slane %v363, 1
  %v513 = vrot.slane %v180, 1
  %v514 = vsel %vm486, %v512, %v513
  %v515 = vrot.slane %v396, 1
  %v516 = vsel %vm486, %v513, %v515
  %v517 = vrot.slane %v364, 1
  %v518 = vrot.slane %v183, 1
  %v519 = vsel %vm486, %v517, %v518
  %v520 = vrot.slane %v397, 1
  %v521 = vsel %vm486, %v518, %v520
  %v522 = vrot.slane %v365, 1
  %v523 = vrot.slane %v186, 1
  %v524 = vsel %vm486, %v522, %v523
  %v525 = vrot.slane %v398, 1
  %v526 = vsel %vm486, %v523, %v525
  %v527 = vrot.slane %v366, 1
  %v528 = vrot.slane %v189, 1
  %v529 = vsel %vm486, %v527, %v528
  %v530 = vrot.slane %v399, 1
  %v531 = vsel %vm486, %v528, %v530
  %v532 = vrot.slane %v367, 1
  %v533 = vrot.slane %v192, 1
  %v534 = vsel %vm486, %v532, %v533
  %v535 = vrot.slane %v400, 1
  %v536 = vsel %vm486, %v533, %v535
  %v537 = vrot.slane %v368, 1
  %v538 = vrot.slane %v195, 1
  %v539 = vsel %vm486, %v537, %v538
  %v540 = vrot.slane %v401, 1
  %v541 = vsel %vm486, %v538, %v540
  %v542 = vrot.slane %v369, 1
  %v543 = vrot.slane %v198, 1
  %v544 = vsel %vm486, %v542, %v543
  %v545 = vrot.slane %v402, 1
  %v546 = vsel %vm486, %v543, %v545
  %v547 = vrot.slane %v370, 1
  %v548 = vrot.slane %v201, 1
  %v549 = vsel %vm486, %v547, %v548
  %v550 = vrot.slane %v403, 1
  %v551 = vsel %vm486, %v548, %v550
  %v552 = vrot.slane %v371, 1
  %v553 = vrot.slane %v204, 1
  %v554 = vsel %vm486, %v552, %v553
  %v555 = vrot.slane %v404, 1
  %v556 = vsel %vm486, %v553, %v555
  %v557 = vrot.slane %v372, 1
  %v558 = vrot.slane %v207, 1
  %v559 = vsel %vm486, %v557, %v558
  %v560 = vrot.slane %v405, 1
  %v561 = vsel %vm486, %v558, %v560
  %v562 = vrot.slane %v373, 1
  %v563 = vrot.slane %v210, 1
  %v564 = vsel %vm486, %v562, %v563
  %v565 = vrot.slane %v406, 1
  %v566 = vsel %vm486, %v563, %v565
  %v567 = vrot.slane %v375, 1
  %v568 = vrot.slane %v216, 1
  %v569 = vsel %vm486, %v567, %v568
  %v570 = vrot.slane %v408, 1
  %v571 = vsel %vm486, %v568, %v570
  %v572 = vrot.slane %v376, 1
  %v573 = vrot.slane %v219, 1
  %v574 = vsel %vm486, %v572, %v573
  %v575 = vrot.slane %v409, 1
  %v576 = vsel %vm486, %v573, %v575
  %v577 = vrot.slane %v377, 1
  %v578 = vrot.slane %v222, 1
  %v579 = vsel %vm486, %v577, %v578
  %v580 = vrot.slane %v410, 1
  %v581 = vsel %vm486, %v578, %v580
  %v582 = vrot.slane %v378, 1
  %v583 = vrot.slane %v225, 1
  %v584 = vsel %vm486, %v582, %v583
  %v585 = vrot.slane %v411, 1
  %v586 = vsel %vm486, %v583, %v585
  %v587 = vrot.slane %v379, 1
  %v588 = vrot.slane %v228, 1
  %v589 = vsel %vm486, %v587, %v588
  %v590 = vrot.slane %v412, 1
  %v591 = vsel %vm486, %v588, %v590
  %v592 = vrot.slane %v380, 1
  %v593 = vrot.slane %v231, 1
  %v594 = vsel %vm486, %v592, %v593
  %v595 = vrot.slane %v413, 1
  %v596 = vsel %vm486, %v593, %v595
  %v597 = vrot.slane %v381, 1
  %v598 = vrot.slane %v234, 1
  %v599 = vsel %vm486, %v597, %v598
  %v600 = vrot.slane %v414, 1
  %v601 = vsel %vm486, %v598, %v600
  %v602 = vrot.slane %v382, 1
  %v603 = vrot.slane %v237, 1
  %v604 = vsel %vm486, %v602, %v603
  %v605 = vrot.slane %v415, 1
  %v606 = vsel %vm486, %v603, %v605
  %v607 = vrot.slane %v383, 1
  %v608 = vrot.slane %v240, 1
  %v609 = vsel %vm486, %v607, %v608
  %v610 = vrot.slane %v416, 1
  %v611 = vsel %vm486, %v608, %v610
  %v612 = vrot.slane %v384, 1
  %v613 = vrot.slane %v243, 1
  %v614 = vsel %vm486, %v612, %v613
  %v615 = vrot.slane %v417, 1
  %v616 = vsel %vm486, %v613, %v615
  %v617 = vrot.slane %v385, 1
  %v618 = vrot.slane %v246, 1
  %v619 = vsel %vm486, %v617, %v618
  %v620 = vrot.slane %v418, 1
  %v621 = vsel %vm486, %v618, %v620
  %v622 = vrot.slane %v386, 1
  %v623 = vrot.slane %v249, 1
  %v624 = vsel %vm486, %v622, %v623
  %v625 = vrot.slane %v419, 1
  %v626 = vsel %vm486, %v623, %v625
  %v627 = vrot.slane %v387, 1
  %v628 = vrot.slane %v252, 1
  %v629 = vsel %vm486, %v627, %v628
  %v630 = vrot.slane %v420, 1
  %v631 = vsel %vm486, %v628, %v630
  %v632 = vrot.slane %v388, 1
  %v633 = vrot.slane %v255, 1
  %v634 = vsel %vm486, %v632, %v633
  %v635 = vrot.slane %v421, 1
  %v636 = vsel %vm486, %v633, %v635
  %v637 = vrot.slane %v389, 1
  %v638 = vrot.slane %v258, 1
  %v639 = vsel %vm486, %v637, %v638
  %v640 = vrot.slane %v422, 1
  %v641 = vsel %vm486, %v638, %v640
  %642 = vrot.lane.b32.xlu0 %v489, 4
  %v643 = vpop.permute.xlu0 %642
  %644 = vrot.lane.b32.xlu0 %v491, 4
  %v645 = vpop.permute.xlu0 %644
  %646 = vrot.lane.b32.xlu0 %v494, 4
  %v647 = vpop.permute.xlu0 %646
  %648 = vrot.lane.b32.xlu0 %v496, 4
  %v649 = vpop.permute.xlu0 %648
  %650 = vrot.lane.b32.xlu0 %v499, 4
  %v651 = vpop.permute.xlu0 %650
  %652 = vrot.lane.b32.xlu0 %v501, 4
  %v653 = vpop.permute.xlu0 %652
  %654 = vrot.lane.b32.xlu0 %v504, 4
  %v655 = vpop.permute.xlu0 %654
  %656 = vrot.lane.b32.xlu0 %v506, 4
  %v657 = vpop.permute.xlu0 %656
  %658 = vrot.lane.b32.xlu0 %v509, 4
  %v659 = vpop.permute.xlu0 %658
  %660 = vrot.lane.b32.xlu0 %v511, 4
  %v661 = vpop.permute.xlu0 %660
  %662 = vrot.lane.b32.xlu0 %v514, 4
  %v663 = vpop.permute.xlu0 %662
  %664 = vrot.lane.b32.xlu0 %v516, 4
  %v665 = vpop.permute.xlu0 %664
  %666 = vrot.lane.b32.xlu0 %v519, 4
  %v667 = vpop.permute.xlu0 %666
  %668 = vrot.lane.b32.xlu0 %v521, 4
  %v669 = vpop.permute.xlu0 %668
  %670 = vrot.lane.b32.xlu0 %v524, 4
  %v671 = vpop.permute.xlu0 %670
  %672 = vrot.lane.b32.xlu0 %v526, 4
  %v673 = vpop.permute.xlu0 %672
  %674 = vrot.lane.b32.xlu0 %v529, 4
  %v675 = vpop.permute.xlu0 %674
  %676 = vrot.lane.b32.xlu0 %v531, 4
  %v677 = vpop.permute.xlu0 %676
  %678 = vrot.lane.b32.xlu0 %v534, 4
  %v679 = vpop.permute.xlu0 %678
  %680 = vrot.lane.b32.xlu0 %v536, 4
  %v681 = vpop.permute.xlu0 %680
  %682 = vrot.lane.b32.xlu0 %v539, 4
  %v683 = vpop.permute.xlu0 %682
  %684 = vrot.lane.b32.xlu0 %v541, 4
  %v685 = vpop.permute.xlu0 %684
  %686 = vrot.lane.b32.xlu0 %v544, 4
  %v687 = vpop.permute.xlu0 %686
  %688 = vrot.lane.b32.xlu0 %v546, 4
  %v689 = vpop.permute.xlu0 %688
  %690 = vrot.lane.b32.xlu0 %v549, 4
  %v691 = vpop.permute.xlu0 %690
  %692 = vrot.lane.b32.xlu0 %v551, 4
  %v693 = vpop.permute.xlu0 %692
  %694 = vrot.lane.b32.xlu0 %v554, 4
  %v695 = vpop.permute.xlu0 %694
  %696 = vrot.lane.b32.xlu0 %v556, 4
  %v697 = vpop.permute.xlu0 %696
  %698 = vrot.lane.b32.xlu0 %v559, 4
  %v699 = vpop.permute.xlu0 %698
  %700 = vrot.lane.b32.xlu0 %v561, 4
  %v701 = vpop.permute.xlu0 %700
  %702 = vrot.lane.b32.xlu0 %v564, 4
  %v703 = vpop.permute.xlu0 %702
  %704 = vrot.lane.b32.xlu0 %v566, 4
  %v705 = vpop.permute.xlu0 %704
  %706 = vrot.lane.b32.xlu0 %v569, 4
  %v707 = vpop.permute.xlu0 %706
  %708 = vrot.lane.b32.xlu0 %v571, 4
  %v709 = vpop.permute.xlu0 %708
  %710 = vrot.lane.b32.xlu0 %v574, 4
  %v711 = vpop.permute.xlu0 %710
  %712 = vrot.lane.b32.xlu0 %v576, 4
  %v713 = vpop.permute.xlu0 %712
  %714 = vrot.lane.b32.xlu0 %v579, 4
  %v715 = vpop.permute.xlu0 %714
  %716 = vrot.lane.b32.xlu0 %v581, 4
  %v717 = vpop.permute.xlu0 %716
  %718 = vrot.lane.b32.xlu0 %v584, 4
  %v719 = vpop.permute.xlu0 %718
  %720 = vrot.lane.b32.xlu0 %v586, 4
  %v721 = vpop.permute.xlu0 %720
  %722 = vrot.lane.b32.xlu0 %v589, 4
  %v723 = vpop.permute.xlu0 %722
  %724 = vrot.lane.b32.xlu0 %v591, 4
  %v725 = vpop.permute.xlu0 %724
  %726 = vrot.lane.b32.xlu0 %v594, 4
  %v727 = vpop.permute.xlu0 %726
  %728 = vrot.lane.b32.xlu0 %v596, 4
  %v729 = vpop.permute.xlu0 %728
  %730 = vrot.lane.b32.xlu0 %v599, 4
  %v731 = vpop.permute.xlu0 %730
  %732 = vrot.lane.b32.xlu0 %v601, 4
  %v733 = vpop.permute.xlu0 %732
  %734 = vrot.lane.b32.xlu0 %v604, 4
  %v735 = vpop.permute.xlu0 %734
  %736 = vrot.lane.b32.xlu0 %v606, 4
  %v737 = vpop.permute.xlu0 %736
  %738 = vrot.lane.b32.xlu0 %v609, 4
  %v739 = vpop.permute.xlu0 %738
  %740 = vrot.lane.b32.xlu0 %v611, 4
  %v741 = vpop.permute.xlu0 %740
  %742 = vrot.lane.b32.xlu0 %v614, 4
  %v743 = vpop.permute.xlu0 %742
  %744 = vrot.lane.b32.xlu0 %v616, 4
  %v745 = vpop.permute.xlu0 %744
  %746 = vrot.lane.b32.xlu0 %v619, 4
  %v747 = vpop.permute.xlu0 %746
  %748 = vrot.lane.b32.xlu0 %v621, 4
  %v749 = vpop.permute.xlu0 %748
  %750 = vrot.lane.b32.xlu0 %v624, 4
  %v751 = vpop.permute.xlu0 %750
  %752 = vrot.lane.b32.xlu0 %v626, 4
  %v753 = vpop.permute.xlu0 %752
  %754 = vrot.lane.b32.xlu0 %v629, 4
  %v755 = vpop.permute.xlu0 %754
  %756 = vrot.lane.b32.xlu0 %v631, 4
  %v757 = vpop.permute.xlu0 %756
  %758 = vrot.lane.b32.xlu0 %v634, 4
  %v759 = vpop.permute.xlu0 %758
  %760 = vrot.lane.b32.xlu0 %v636, 4
  %v761 = vpop.permute.xlu0 %760
  %762 = vrot.lane.b32.xlu0 %v639, 4
  %v763 = vpop.permute.xlu0 %762
  %764 = vrot.lane.b32.xlu0 %v641, 4
  %v765 = vpop.permute.xlu0 %764
  %vm828 = vcmask 1045504
  %v829 = vrot.slane %v358, 2
  %v830 = vrot.slane %v165, 2
  %v831 = vsel %vm828, %v829, %v830
  %v832 = vrot.slane %v391, 2
  %v833 = vsel %vm828, %v830, %v832
  %v834 = vrot.slane %v359, 2
  %v835 = vrot.slane %v168, 2
  %v836 = vsel %vm828, %v834, %v835
  %v837 = vrot.slane %v392, 2
  %v838 = vsel %vm828, %v835, %v837
  %v839 = vrot.slane %v360, 2
  %v840 = vrot.slane %v171, 2
  %v841 = vsel %vm828, %v839, %v840
  %v842 = vrot.slane %v393, 2
  %v843 = vsel %vm828, %v840, %v842
  %v844 = vrot.slane %v361, 2
  %v845 = vrot.slane %v174, 2
  %v846 = vsel %vm828, %v844, %v845
  %v847 = vrot.slane %v394, 2
  %v848 = vsel %vm828, %v845, %v847
  %v849 = vrot.slane %v362, 2
  %v850 = vrot.slane %v177, 2
  %v851 = vsel %vm828, %v849, %v850
  %v852 = vrot.slane %v395, 2
  %v853 = vsel %vm828, %v850, %v852
  %v854 = vrot.slane %v363, 2
  %v855 = vrot.slane %v180, 2
  %v856 = vsel %vm828, %v854, %v855
  %v857 = vrot.slane %v396, 2
  %v858 = vsel %vm828, %v855, %v857
  %v859 = vrot.slane %v364, 2
  %v860 = vrot.slane %v183, 2
  %v861 = vsel %vm828, %v859, %v860
  %v862 = vrot.slane %v397, 2
  %v863 = vsel %vm828, %v860, %v862
  %v864 = vrot.slane %v365, 2
  %v865 = vrot.slane %v186, 2
  %v866 = vsel %vm828, %v864, %v865
  %v867 = vrot.slane %v398, 2
  %v868 = vsel %vm828, %v865, %v867
  %v869 = vrot.slane %v366, 2
  %v870 = vrot.slane %v189, 2
  %v871 = vsel %vm828, %v869, %v870
  %v872 = vrot.slane %v399, 2
  %v873 = vsel %vm828, %v870, %v872
  %v874 = vrot.slane %v367, 2
  %v875 = vrot.slane %v192, 2
  %v876 = vsel %vm828, %v874, %v875
  %v877 = vrot.slane %v400, 2
  %v878 = vsel %vm828, %v875, %v877
  %v879 = vrot.slane %v368, 2
  %v880 = vrot.slane %v195, 2
  %v881 = vsel %vm828, %v879, %v880
  %v882 = vrot.slane %v401, 2
  %v883 = vsel %vm828, %v880, %v882
  %v884 = vrot.slane %v369, 2
  %v885 = vrot.slane %v198, 2
  %v886 = vsel %vm828, %v884, %v885
  %v887 = vrot.slane %v402, 2
  %v888 = vsel %vm828, %v885, %v887
  %v889 = vrot.slane %v370, 2
  %v890 = vrot.slane %v201, 2
  %v891 = vsel %vm828, %v889, %v890
  %v892 = vrot.slane %v403, 2
  %v893 = vsel %vm828, %v890, %v892
  %v894 = vrot.slane %v371, 2
  %v895 = vrot.slane %v204, 2
  %v896 = vsel %vm828, %v894, %v895
  %v897 = vrot.slane %v404, 2
  %v898 = vsel %vm828, %v895, %v897
  %v899 = vrot.slane %v372, 2
  %v900 = vrot.slane %v207, 2
  %v901 = vsel %vm828, %v899, %v900
  %v902 = vrot.slane %v405, 2
  %v903 = vsel %vm828, %v900, %v902
  %v904 = vrot.slane %v373, 2
  %v905 = vrot.slane %v210, 2
  %v906 = vsel %vm828, %v904, %v905
  %v907 = vrot.slane %v406, 2
  %v908 = vsel %vm828, %v905, %v907
  %v909 = vrot.slane %v375, 2
  %v910 = vrot.slane %v216, 2
  %v911 = vsel %vm828, %v909, %v910
  %v912 = vrot.slane %v408, 2
  %v913 = vsel %vm828, %v910, %v912
  %v914 = vrot.slane %v376, 2
  %v915 = vrot.slane %v219, 2
  %v916 = vsel %vm828, %v914, %v915
  %v917 = vrot.slane %v409, 2
  %v918 = vsel %vm828, %v915, %v917
  %v919 = vrot.slane %v377, 2
  %v920 = vrot.slane %v222, 2
  %v921 = vsel %vm828, %v919, %v920
  %v922 = vrot.slane %v410, 2
  %v923 = vsel %vm828, %v920, %v922
  %v924 = vrot.slane %v378, 2
  %v925 = vrot.slane %v225, 2
  %v926 = vsel %vm828, %v924, %v925
  %v927 = vrot.slane %v411, 2
  %v928 = vsel %vm828, %v925, %v927
  %v929 = vrot.slane %v379, 2
  %v930 = vrot.slane %v228, 2
  %v931 = vsel %vm828, %v929, %v930
  %v932 = vrot.slane %v412, 2
  %v933 = vsel %vm828, %v930, %v932
  %v934 = vrot.slane %v380, 2
  %v935 = vrot.slane %v231, 2
  %v936 = vsel %vm828, %v934, %v935
  %v937 = vrot.slane %v413, 2
  %v938 = vsel %vm828, %v935, %v937
  %v939 = vrot.slane %v381, 2
  %v940 = vrot.slane %v234, 2
  %v941 = vsel %vm828, %v939, %v940
  %v942 = vrot.slane %v414, 2
  %v943 = vsel %vm828, %v940, %v942
  %v944 = vrot.slane %v382, 2
  %v945 = vrot.slane %v237, 2
  %v946 = vsel %vm828, %v944, %v945
  %v947 = vrot.slane %v415, 2
  %v948 = vsel %vm828, %v945, %v947
  %v949 = vrot.slane %v383, 2
  %v950 = vrot.slane %v240, 2
  %v951 = vsel %vm828, %v949, %v950
  %v952 = vrot.slane %v416, 2
  %v953 = vsel %vm828, %v950, %v952
  %v954 = vrot.slane %v384, 2
  %v955 = vrot.slane %v243, 2
  %v956 = vsel %vm828, %v954, %v955
  %v957 = vrot.slane %v417, 2
  %v958 = vsel %vm828, %v955, %v957
  %v959 = vrot.slane %v385, 2
  %v960 = vrot.slane %v246, 2
  %v961 = vsel %vm828, %v959, %v960
  %v962 = vrot.slane %v418, 2
  %v963 = vsel %vm828, %v960, %v962
  %v964 = vrot.slane %v386, 2
  %v965 = vrot.slane %v249, 2
  %v966 = vsel %vm828, %v964, %v965
  %v967 = vrot.slane %v419, 2
  %v968 = vsel %vm828, %v965, %v967
  %v969 = vrot.slane %v387, 2
  %v970 = vrot.slane %v252, 2
  %v971 = vsel %vm828, %v969, %v970
  %v972 = vrot.slane %v420, 2
  %v973 = vsel %vm828, %v970, %v972
  %v974 = vrot.slane %v388, 2
  %v975 = vrot.slane %v255, 2
  %v976 = vsel %vm828, %v974, %v975
  %v977 = vrot.slane %v421, 2
  %v978 = vsel %vm828, %v975, %v977
  %v979 = vrot.slane %v389, 2
  %v980 = vrot.slane %v258, 2
  %v981 = vsel %vm828, %v979, %v980
  %v982 = vrot.slane %v422, 2
  %v983 = vsel %vm828, %v980, %v982
  %984 = vrot.lane.b32.xlu0 %v831, 8
  %v985 = vpop.permute.xlu0 %984
  %986 = vrot.lane.b32.xlu0 %v833, 8
  %v987 = vpop.permute.xlu0 %986
  %988 = vrot.lane.b32.xlu0 %v836, 8
  %v989 = vpop.permute.xlu0 %988
  %990 = vrot.lane.b32.xlu0 %v838, 8
  %v991 = vpop.permute.xlu0 %990
  %992 = vrot.lane.b32.xlu0 %v841, 8
  %v993 = vpop.permute.xlu0 %992
  %994 = vrot.lane.b32.xlu0 %v843, 8
  %v995 = vpop.permute.xlu0 %994
  %996 = vrot.lane.b32.xlu0 %v846, 8
  %v997 = vpop.permute.xlu0 %996
  %998 = vrot.lane.b32.xlu0 %v848, 8
  %v999 = vpop.permute.xlu0 %998
  %1000 = vrot.lane.b32.xlu0 %v851, 8
  %v1001 = vpop.permute.xlu0 %1000
  %1002 = vrot.lane.b32.xlu0 %v853, 8
  %v1003 = vpop.permute.xlu0 %1002
  %1004 = vrot.lane.b32.xlu0 %v856, 8
  %v1005 = vpop.permute.xlu0 %1004
  %1006 = vrot.lane.b32.xlu0 %v858, 8
  %v1007 = vpop.permute.xlu0 %1006
  %1008 = vrot.lane.b32.xlu0 %v861, 8
  %v1009 = vpop.permute.xlu0 %1008
  %1010 = vrot.lane.b32.xlu0 %v863, 8
  %v1011 = vpop.permute.xlu0 %1010
  %1012 = vrot.lane.b32.xlu0 %v866, 8
  %v1013 = vpop.permute.xlu0 %1012
  %1014 = vrot.lane.b32.xlu0 %v868, 8
  %v1015 = vpop.permute.xlu0 %1014
  %1016 = vrot.lane.b32.xlu0 %v871, 8
  %v1017 = vpop.permute.xlu0 %1016
  %1018 = vrot.lane.b32.xlu0 %v873, 8
  %v1019 = vpop.permute.xlu0 %1018
  %1020 = vrot.lane.b32.xlu0 %v876, 8
  %v1021 = vpop.permute.xlu0 %1020
  %1022 = vrot.lane.b32.xlu0 %v878, 8
  %v1023 = vpop.permute.xlu0 %1022
  %1024 = vrot.lane.b32.xlu0 %v881, 8
  %v1025 = vpop.permute.xlu0 %1024
  %1026 = vrot.lane.b32.xlu0 %v883, 8
  %v1027 = vpop.permute.xlu0 %1026
  %1028 = vrot.lane.b32.xlu0 %v886, 8
  %v1029 = vpop.permute.xlu0 %1028
  %1030 = vrot.lane.b32.xlu0 %v888, 8
  %v1031 = vpop.permute.xlu0 %1030
  %1032 = vrot.lane.b32.xlu0 %v891, 8
  %v1033 = vpop.permute.xlu0 %1032
  %1034 = vrot.lane.b32.xlu0 %v893, 8
  %v1035 = vpop.permute.xlu0 %1034
  %1036 = vrot.lane.b32.xlu0 %v896, 8
  %v1037 = vpop.permute.xlu0 %1036
  %1038 = vrot.lane.b32.xlu0 %v898, 8
  %v1039 = vpop.permute.xlu0 %1038
  %1040 = vrot.lane.b32.xlu0 %v901, 8
  %v1041 = vpop.permute.xlu0 %1040
  %1042 = vrot.lane.b32.xlu0 %v903, 8
  %v1043 = vpop.permute.xlu0 %1042
  %1044 = vrot.lane.b32.xlu0 %v906, 8
  %v1045 = vpop.permute.xlu0 %1044
  %1046 = vrot.lane.b32.xlu0 %v908, 8
  %v1047 = vpop.permute.xlu0 %1046
  %1048 = vrot.lane.b32.xlu0 %v911, 8
  %v1049 = vpop.permute.xlu0 %1048
  %1050 = vrot.lane.b32.xlu0 %v913, 8
  %v1051 = vpop.permute.xlu0 %1050
  %1052 = vrot.lane.b32.xlu0 %v916, 8
  %v1053 = vpop.permute.xlu0 %1052
  %1054 = vrot.lane.b32.xlu0 %v918, 8
  %v1055 = vpop.permute.xlu0 %1054
  %1056 = vrot.lane.b32.xlu0 %v921, 8
  %v1057 = vpop.permute.xlu0 %1056
  %1058 = vrot.lane.b32.xlu0 %v923, 8
  %v1059 = vpop.permute.xlu0 %1058
  %1060 = vrot.lane.b32.xlu0 %v926, 8
  %v1061 = vpop.permute.xlu0 %1060
  %1062 = vrot.lane.b32.xlu0 %v928, 8
  %v1063 = vpop.permute.xlu0 %1062
  %1064 = vrot.lane.b32.xlu0 %v931, 8
  %v1065 = vpop.permute.xlu0 %1064
  %1066 = vrot.lane.b32.xlu0 %v933, 8
  %v1067 = vpop.permute.xlu0 %1066
  %1068 = vrot.lane.b32.xlu0 %v936, 8
  %v1069 = vpop.permute.xlu0 %1068
  %1070 = vrot.lane.b32.xlu0 %v938, 8
  %v1071 = vpop.permute.xlu0 %1070
  %1072 = vrot.lane.b32.xlu0 %v941, 8
  %v1073 = vpop.permute.xlu0 %1072
  %1074 = vrot.lane.b32.xlu0 %v943, 8
  %v1075 = vpop.permute.xlu0 %1074
  %1076 = vrot.lane.b32.xlu0 %v946, 8
  %v1077 = vpop.permute.xlu0 %1076
  %1078 = vrot.lane.b32.xlu0 %v948, 8
  %v1079 = vpop.permute.xlu0 %1078
  %1080 = vrot.lane.b32.xlu0 %v951, 8
  %v1081 = vpop.permute.xlu0 %1080
  %1082 = vrot.lane.b32.xlu0 %v953, 8
  %v1083 = vpop.permute.xlu0 %1082
  %1084 = vrot.lane.b32.xlu0 %v956, 8
  %v1085 = vpop.permute.xlu0 %1084
  %1086 = vrot.lane.b32.xlu0 %v958, 8
  %v1087 = vpop.permute.xlu0 %1086
  %1088 = vrot.lane.b32.xlu0 %v961, 8
  %v1089 = vpop.permute.xlu0 %1088
  %1090 = vrot.lane.b32.xlu0 %v963, 8
  %v1091 = vpop.permute.xlu0 %1090
  %1092 = vrot.lane.b32.xlu0 %v966, 8
  %v1093 = vpop.permute.xlu0 %1092
  %1094 = vrot.lane.b32.xlu0 %v968, 8
  %v1095 = vpop.permute.xlu0 %1094
  %1096 = vrot.lane.b32.xlu0 %v971, 8
  %v1097 = vpop.permute.xlu0 %1096
  %1098 = vrot.lane.b32.xlu0 %v973, 8
  %v1099 = vpop.permute.xlu0 %1098
  %1100 = vrot.lane.b32.xlu0 %v976, 8
  %v1101 = vpop.permute.xlu0 %1100
  %1102 = vrot.lane.b32.xlu0 %v978, 8
  %v1103 = vpop.permute.xlu0 %1102
  %1104 = vrot.lane.b32.xlu0 %v981, 8
  %v1105 = vpop.permute.xlu0 %1104
  %1106 = vrot.lane.b32.xlu0 %v983, 8
  %v1107 = vpop.permute.xlu0 %1106
  %1172 = vrot.lane.b32.xlu0 %v359, 12
  %v1173 = vpop.permute.xlu0 %1172
  %1174 = vrot.lane.b32.xlu0 %v168, 12
  %v1175 = vpop.permute.xlu0 %1174
  %1176 = vrot.lane.b32.xlu0 %v360, 12
  %v1177 = vpop.permute.xlu0 %1176
  %1178 = vrot.lane.b32.xlu0 %v171, 12
  %v1179 = vpop.permute.xlu0 %1178
  %1180 = vrot.lane.b32.xlu0 %v361, 12
  %v1181 = vpop.permute.xlu0 %1180
  %1182 = vrot.lane.b32.xlu0 %v174, 12
  %v1183 = vpop.permute.xlu0 %1182
  %1184 = vrot.lane.b32.xlu0 %v362, 12
  %v1185 = vpop.permute.xlu0 %1184
  %1186 = vrot.lane.b32.xlu0 %v177, 12
  %v1187 = vpop.permute.xlu0 %1186
  %1188 = vrot.lane.b32.xlu0 %v363, 12
  %v1189 = vpop.permute.xlu0 %1188
  %1190 = vrot.lane.b32.xlu0 %v180, 12
  %v1191 = vpop.permute.xlu0 %1190
  %1192 = vrot.lane.b32.xlu0 %v364, 12
  %v1193 = vpop.permute.xlu0 %1192
  %1194 = vrot.lane.b32.xlu0 %v183, 12
  %v1195 = vpop.permute.xlu0 %1194
  %1196 = vrot.lane.b32.xlu0 %v365, 12
  %v1197 = vpop.permute.xlu0 %1196
  %1198 = vrot.lane.b32.xlu0 %v186, 12
  %v1199 = vpop.permute.xlu0 %1198
  %1200 = vrot.lane.b32.xlu0 %v366, 12
  %v1201 = vpop.permute.xlu0 %1200
  %1202 = vrot.lane.b32.xlu0 %v189, 12
  %v1203 = vpop.permute.xlu0 %1202
  %1204 = vrot.lane.b32.xlu0 %v367, 12
  %v1205 = vpop.permute.xlu0 %1204
  %1206 = vrot.lane.b32.xlu0 %v192, 12
  %v1207 = vpop.permute.xlu0 %1206
  %1208 = vrot.lane.b32.xlu0 %v368, 12
  %v1209 = vpop.permute.xlu0 %1208
  %1210 = vrot.lane.b32.xlu0 %v195, 12
  %v1211 = vpop.permute.xlu0 %1210
  %1212 = vrot.lane.b32.xlu0 %v369, 12
  %v1213 = vpop.permute.xlu0 %1212
  %1214 = vrot.lane.b32.xlu0 %v198, 12
  %v1215 = vpop.permute.xlu0 %1214
  %1216 = vrot.lane.b32.xlu0 %v370, 12
  %v1217 = vpop.permute.xlu0 %1216
  %1218 = vrot.lane.b32.xlu0 %v201, 12
  %v1219 = vpop.permute.xlu0 %1218
  %1220 = vrot.lane.b32.xlu0 %v371, 12
  %v1221 = vpop.permute.xlu0 %1220
  %1222 = vrot.lane.b32.xlu0 %v204, 12
  %v1223 = vpop.permute.xlu0 %1222
  %1224 = vrot.lane.b32.xlu0 %v372, 12
  %v1225 = vpop.permute.xlu0 %1224
  %1226 = vrot.lane.b32.xlu0 %v207, 12
  %v1227 = vpop.permute.xlu0 %1226
  %1228 = vrot.lane.b32.xlu0 %v373, 12
  %v1229 = vpop.permute.xlu0 %1228
  %1230 = vrot.lane.b32.xlu0 %v210, 12
  %v1231 = vpop.permute.xlu0 %1230
  %1232 = vrot.lane.b32.xlu0 %v374, 12
  %v1233 = vpop.permute.xlu0 %1232
  %1234 = vrot.lane.b32.xlu0 %v213, 12
  %v1235 = vpop.permute.xlu0 %1234
  %1236 = vrot.lane.b32.xlu0 %v375, 12
  %v1237 = vpop.permute.xlu0 %1236
  %1238 = vrot.lane.b32.xlu0 %v216, 12
  %v1239 = vpop.permute.xlu0 %1238
  %1240 = vrot.lane.b32.xlu0 %v376, 12
  %v1241 = vpop.permute.xlu0 %1240
  %1242 = vrot.lane.b32.xlu0 %v219, 12
  %v1243 = vpop.permute.xlu0 %1242
  %1244 = vrot.lane.b32.xlu0 %v377, 12
  %v1245 = vpop.permute.xlu0 %1244
  %1246 = vrot.lane.b32.xlu0 %v222, 12
  %v1247 = vpop.permute.xlu0 %1246
  %1248 = vrot.lane.b32.xlu0 %v378, 12
  %v1249 = vpop.permute.xlu0 %1248
  %1250 = vrot.lane.b32.xlu0 %v225, 12
  %v1251 = vpop.permute.xlu0 %1250
  %1252 = vrot.lane.b32.xlu0 %v379, 12
  %v1253 = vpop.permute.xlu0 %1252
  %1254 = vrot.lane.b32.xlu0 %v228, 12
  %v1255 = vpop.permute.xlu0 %1254
  %1256 = vrot.lane.b32.xlu0 %v380, 12
  %v1257 = vpop.permute.xlu0 %1256
  %1258 = vrot.lane.b32.xlu0 %v231, 12
  %v1259 = vpop.permute.xlu0 %1258
  %1260 = vrot.lane.b32.xlu0 %v381, 12
  %v1261 = vpop.permute.xlu0 %1260
  %1262 = vrot.lane.b32.xlu0 %v234, 12
  %v1263 = vpop.permute.xlu0 %1262
  %1264 = vrot.lane.b32.xlu0 %v382, 12
  %v1265 = vpop.permute.xlu0 %1264
  %1266 = vrot.lane.b32.xlu0 %v237, 12
  %v1267 = vpop.permute.xlu0 %1266
  %1268 = vrot.lane.b32.xlu0 %v383, 12
  %v1269 = vpop.permute.xlu0 %1268
  %1270 = vrot.lane.b32.xlu0 %v240, 12
  %v1271 = vpop.permute.xlu0 %1270
  %1272 = vrot.lane.b32.xlu0 %v384, 12
  %v1273 = vpop.permute.xlu0 %1272
  %1274 = vrot.lane.b32.xlu0 %v243, 12
  %v1275 = vpop.permute.xlu0 %1274
  %1276 = vrot.lane.b32.xlu0 %v385, 12
  %v1277 = vpop.permute.xlu0 %1276
  %1278 = vrot.lane.b32.xlu0 %v246, 12
  %v1279 = vpop.permute.xlu0 %1278
  %1280 = vrot.lane.b32.xlu0 %v386, 12
  %v1281 = vpop.permute.xlu0 %1280
  %1282 = vrot.lane.b32.xlu0 %v249, 12
  %v1283 = vpop.permute.xlu0 %1282
  %1284 = vrot.lane.b32.xlu0 %v387, 12
  %v1285 = vpop.permute.xlu0 %1284
  %1286 = vrot.lane.b32.xlu0 %v252, 12
  %v1287 = vpop.permute.xlu0 %1286
  %1288 = vrot.lane.b32.xlu0 %v388, 12
  %v1289 = vpop.permute.xlu0 %1288
  %1290 = vrot.lane.b32.xlu0 %v255, 12
  %v1291 = vpop.permute.xlu0 %1290
  %1292 = vrot.lane.b32.xlu0 %v389, 12
  %v1293 = vpop.permute.xlu0 %1292
  %1294 = vrot.lane.b32.xlu0 %v258, 12
  %v1295 = vpop.permute.xlu0 %1294
  %1296 = vrot.lane.b32.xlu0 %v390, 12
  %v1297 = vpop.permute.xlu0 %1296
  %1298 = vrot.lane.b32.xlu0 %v261, 12
  %v1299 = vpop.permute.xlu0 %1298
  %v1366 = vrot.slane %v374, 1
  %v1367 = vrot.slane %v213, 1
  %v1368 = vsel %vm486, %v1366, %v1367
  %v1369 = vrot.slane %v407, 1
  %v1370 = vsel %vm486, %v1367, %v1369
  %v1371 = vrot.slane %v390, 1
  %v1372 = vrot.slane %v261, 1
  %v1373 = vsel %vm486, %v1371, %v1372
  %v1374 = vrot.slane %v423, 1
  %v1375 = vsel %vm486, %v1372, %v1374
  %1376 = vrot.lane.b32.xlu0 %v494, 16
  %v1377 = vpop.permute.xlu0 %1376
  %1378 = vrot.lane.b32.xlu0 %v496, 16
  %v1379 = vpop.permute.xlu0 %1378
  %1380 = vrot.lane.b32.xlu0 %v499, 16
  %v1381 = vpop.permute.xlu0 %1380
  %1382 = vrot.lane.b32.xlu0 %v501, 16
  %v1383 = vpop.permute.xlu0 %1382
  %1384 = vrot.lane.b32.xlu0 %v504, 16
  %v1385 = vpop.permute.xlu0 %1384
  %1386 = vrot.lane.b32.xlu0 %v506, 16
  %v1387 = vpop.permute.xlu0 %1386
  %1388 = vrot.lane.b32.xlu0 %v509, 16
  %v1389 = vpop.permute.xlu0 %1388
  %1390 = vrot.lane.b32.xlu0 %v511, 16
  %v1391 = vpop.permute.xlu0 %1390
  %1392 = vrot.lane.b32.xlu0 %v514, 16
  %v1393 = vpop.permute.xlu0 %1392
  %1394 = vrot.lane.b32.xlu0 %v516, 16
  %v1395 = vpop.permute.xlu0 %1394
  %1396 = vrot.lane.b32.xlu0 %v519, 16
  %v1397 = vpop.permute.xlu0 %1396
  %1398 = vrot.lane.b32.xlu0 %v521, 16
  %v1399 = vpop.permute.xlu0 %1398
  %1400 = vrot.lane.b32.xlu0 %v524, 16
  %v1401 = vpop.permute.xlu0 %1400
  %1402 = vrot.lane.b32.xlu0 %v526, 16
  %v1403 = vpop.permute.xlu0 %1402
  %1404 = vrot.lane.b32.xlu0 %v529, 16
  %v1405 = vpop.permute.xlu0 %1404
  %1406 = vrot.lane.b32.xlu0 %v531, 16
  %v1407 = vpop.permute.xlu0 %1406
  %1408 = vrot.lane.b32.xlu0 %v534, 16
  %v1409 = vpop.permute.xlu0 %1408
  %1410 = vrot.lane.b32.xlu0 %v536, 16
  %v1411 = vpop.permute.xlu0 %1410
  %1412 = vrot.lane.b32.xlu0 %v539, 16
  %v1413 = vpop.permute.xlu0 %1412
  %1414 = vrot.lane.b32.xlu0 %v541, 16
  %v1415 = vpop.permute.xlu0 %1414
  %1416 = vrot.lane.b32.xlu0 %v544, 16
  %v1417 = vpop.permute.xlu0 %1416
  %1418 = vrot.lane.b32.xlu0 %v546, 16
  %v1419 = vpop.permute.xlu0 %1418
  %1420 = vrot.lane.b32.xlu0 %v549, 16
  %v1421 = vpop.permute.xlu0 %1420
  %1422 = vrot.lane.b32.xlu0 %v551, 16
  %v1423 = vpop.permute.xlu0 %1422
  %1424 = vrot.lane.b32.xlu0 %v554, 16
  %v1425 = vpop.permute.xlu0 %1424
  %1426 = vrot.lane.b32.xlu0 %v556, 16
  %v1427 = vpop.permute.xlu0 %1426
  %1428 = vrot.lane.b32.xlu0 %v559, 16
  %v1429 = vpop.permute.xlu0 %1428
  %1430 = vrot.lane.b32.xlu0 %v561, 16
  %v1431 = vpop.permute.xlu0 %1430
  %1432 = vrot.lane.b32.xlu0 %v564, 16
  %v1433 = vpop.permute.xlu0 %1432
  %1434 = vrot.lane.b32.xlu0 %v566, 16
  %v1435 = vpop.permute.xlu0 %1434
  %1436 = vrot.lane.b32.xlu0 %v1368, 16
  %v1437 = vpop.permute.xlu0 %1436
  %1438 = vrot.lane.b32.xlu0 %v1370, 16
  %v1439 = vpop.permute.xlu0 %1438
  %1440 = vrot.lane.b32.xlu0 %v569, 16
  %v1441 = vpop.permute.xlu0 %1440
  %1442 = vrot.lane.b32.xlu0 %v571, 16
  %v1443 = vpop.permute.xlu0 %1442
  %1444 = vrot.lane.b32.xlu0 %v574, 16
  %v1445 = vpop.permute.xlu0 %1444
  %1446 = vrot.lane.b32.xlu0 %v576, 16
  %v1447 = vpop.permute.xlu0 %1446
  %1448 = vrot.lane.b32.xlu0 %v579, 16
  %v1449 = vpop.permute.xlu0 %1448
  %1450 = vrot.lane.b32.xlu0 %v581, 16
  %v1451 = vpop.permute.xlu0 %1450
  %1452 = vrot.lane.b32.xlu0 %v584, 16
  %v1453 = vpop.permute.xlu0 %1452
  %1454 = vrot.lane.b32.xlu0 %v586, 16
  %v1455 = vpop.permute.xlu0 %1454
  %1456 = vrot.lane.b32.xlu0 %v589, 16
  %v1457 = vpop.permute.xlu0 %1456
  %1458 = vrot.lane.b32.xlu0 %v591, 16
  %v1459 = vpop.permute.xlu0 %1458
  %1460 = vrot.lane.b32.xlu0 %v594, 16
  %v1461 = vpop.permute.xlu0 %1460
  %1462 = vrot.lane.b32.xlu0 %v596, 16
  %v1463 = vpop.permute.xlu0 %1462
  %1464 = vrot.lane.b32.xlu0 %v599, 16
  %v1465 = vpop.permute.xlu0 %1464
  %1466 = vrot.lane.b32.xlu0 %v601, 16
  %v1467 = vpop.permute.xlu0 %1466
  %1468 = vrot.lane.b32.xlu0 %v604, 16
  %v1469 = vpop.permute.xlu0 %1468
  %1470 = vrot.lane.b32.xlu0 %v606, 16
  %v1471 = vpop.permute.xlu0 %1470
  %1472 = vrot.lane.b32.xlu0 %v609, 16
  %v1473 = vpop.permute.xlu0 %1472
  %1474 = vrot.lane.b32.xlu0 %v611, 16
  %v1475 = vpop.permute.xlu0 %1474
  %1476 = vrot.lane.b32.xlu0 %v614, 16
  %v1477 = vpop.permute.xlu0 %1476
  %1478 = vrot.lane.b32.xlu0 %v616, 16
  %v1479 = vpop.permute.xlu0 %1478
  %1480 = vrot.lane.b32.xlu0 %v619, 16
  %v1481 = vpop.permute.xlu0 %1480
  %1482 = vrot.lane.b32.xlu0 %v621, 16
  %v1483 = vpop.permute.xlu0 %1482
  %1484 = vrot.lane.b32.xlu0 %v624, 16
  %v1485 = vpop.permute.xlu0 %1484
  %1486 = vrot.lane.b32.xlu0 %v626, 16
  %v1487 = vpop.permute.xlu0 %1486
  %1488 = vrot.lane.b32.xlu0 %v629, 16
  %v1489 = vpop.permute.xlu0 %1488
  %1490 = vrot.lane.b32.xlu0 %v631, 16
  %v1491 = vpop.permute.xlu0 %1490
  %1492 = vrot.lane.b32.xlu0 %v634, 16
  %v1493 = vpop.permute.xlu0 %1492
  %1494 = vrot.lane.b32.xlu0 %v636, 16
  %v1495 = vpop.permute.xlu0 %1494
  %1496 = vrot.lane.b32.xlu0 %v639, 16
  %v1497 = vpop.permute.xlu0 %1496
  %1498 = vrot.lane.b32.xlu0 %v641, 16
  %v1499 = vpop.permute.xlu0 %1498
  %1500 = vrot.lane.b32.xlu0 %v1373, 16
  %v1501 = vpop.permute.xlu0 %1500
  %1502 = vrot.lane.b32.xlu0 %v1375, 16
  %v1503 = vpop.permute.xlu0 %1502
  %v1568 = vrot.slane %v374, 2
  %v1569 = vrot.slane %v213, 2
  %v1570 = vsel %vm828, %v1568, %v1569
  %v1571 = vrot.slane %v407, 2
  %v1572 = vsel %vm828, %v1569, %v1571
  %v1573 = vrot.slane %v390, 2
  %v1574 = vrot.slane %v261, 2
  %v1575 = vsel %vm828, %v1573, %v1574
  %v1576 = vrot.slane %v423, 2
  %v1577 = vsel %vm828, %v1574, %v1576
  %1578 = vrot.lane.b32.xlu0 %v836, 20
  %v1579 = vpop.permute.xlu0 %1578
  %1580 = vrot.lane.b32.xlu0 %v838, 20
  %v1581 = vpop.permute.xlu0 %1580
  %1582 = vrot.lane.b32.xlu0 %v841, 20
  %v1583 = vpop.permute.xlu0 %1582
  %1584 = vrot.lane.b32.xlu0 %v843, 20
  %v1585 = vpop.permute.xlu0 %1584
  %1586 = vrot.lane.b32.xlu0 %v846, 20
  %v1587 = vpop.permute.xlu0 %1586
  %1588 = vrot.lane.b32.xlu0 %v848, 20
  %v1589 = vpop.permute.xlu0 %1588
  %1590 = vrot.lane.b32.xlu0 %v851, 20
  %v1591 = vpop.permute.xlu0 %1590
  %1592 = vrot.lane.b32.xlu0 %v853, 20
  %v1593 = vpop.permute.xlu0 %1592
  %1594 = vrot.lane.b32.xlu0 %v856, 20
  %v1595 = vpop.permute.xlu0 %1594
  %1596 = vrot.lane.b32.xlu0 %v858, 20
  %v1597 = vpop.permute.xlu0 %1596
  %1598 = vrot.lane.b32.xlu0 %v861, 20
  %v1599 = vpop.permute.xlu0 %1598
  %1600 = vrot.lane.b32.xlu0 %v863, 20
  %v1601 = vpop.permute.xlu0 %1600
  %1602 = vrot.lane.b32.xlu0 %v866, 20
  %v1603 = vpop.permute.xlu0 %1602
  %1604 = vrot.lane.b32.xlu0 %v868, 20
  %v1605 = vpop.permute.xlu0 %1604
  %1606 = vrot.lane.b32.xlu0 %v871, 20
  %v1607 = vpop.permute.xlu0 %1606
  %1608 = vrot.lane.b32.xlu0 %v873, 20
  %v1609 = vpop.permute.xlu0 %1608
  %1610 = vrot.lane.b32.xlu0 %v876, 20
  %v1611 = vpop.permute.xlu0 %1610
  %1612 = vrot.lane.b32.xlu0 %v878, 20
  %v1613 = vpop.permute.xlu0 %1612
  %1614 = vrot.lane.b32.xlu0 %v881, 20
  %v1615 = vpop.permute.xlu0 %1614
  %1616 = vrot.lane.b32.xlu0 %v883, 20
  %v1617 = vpop.permute.xlu0 %1616
  %1618 = vrot.lane.b32.xlu0 %v886, 20
  %v1619 = vpop.permute.xlu0 %1618
  %1620 = vrot.lane.b32.xlu0 %v888, 20
  %v1621 = vpop.permute.xlu0 %1620
  %1622 = vrot.lane.b32.xlu0 %v891, 20
  %v1623 = vpop.permute.xlu0 %1622
  %1624 = vrot.lane.b32.xlu0 %v893, 20
  %v1625 = vpop.permute.xlu0 %1624
  %1626 = vrot.lane.b32.xlu0 %v896, 20
  %v1627 = vpop.permute.xlu0 %1626
  %1628 = vrot.lane.b32.xlu0 %v898, 20
  %v1629 = vpop.permute.xlu0 %1628
  %1630 = vrot.lane.b32.xlu0 %v901, 20
  %v1631 = vpop.permute.xlu0 %1630
  %1632 = vrot.lane.b32.xlu0 %v903, 20
  %v1633 = vpop.permute.xlu0 %1632
  %1634 = vrot.lane.b32.xlu0 %v906, 20
  %v1635 = vpop.permute.xlu0 %1634
  %1636 = vrot.lane.b32.xlu0 %v908, 20
  %v1637 = vpop.permute.xlu0 %1636
  %1638 = vrot.lane.b32.xlu0 %v1570, 20
  %v1639 = vpop.permute.xlu0 %1638
  %1640 = vrot.lane.b32.xlu0 %v1572, 20
  %v1641 = vpop.permute.xlu0 %1640
  %1642 = vrot.lane.b32.xlu0 %v911, 20
  %v1643 = vpop.permute.xlu0 %1642
  %1644 = vrot.lane.b32.xlu0 %v913, 20
  %v1645 = vpop.permute.xlu0 %1644
  %1646 = vrot.lane.b32.xlu0 %v916, 20
  %v1647 = vpop.permute.xlu0 %1646
  %1648 = vrot.lane.b32.xlu0 %v918, 20
  %v1649 = vpop.permute.xlu0 %1648
  %1650 = vrot.lane.b32.xlu0 %v921, 20
  %v1651 = vpop.permute.xlu0 %1650
  %1652 = vrot.lane.b32.xlu0 %v923, 20
  %v1653 = vpop.permute.xlu0 %1652
  %1654 = vrot.lane.b32.xlu0 %v926, 20
  %v1655 = vpop.permute.xlu0 %1654
  %1656 = vrot.lane.b32.xlu0 %v928, 20
  %v1657 = vpop.permute.xlu0 %1656
  %1658 = vrot.lane.b32.xlu0 %v931, 20
  %v1659 = vpop.permute.xlu0 %1658
  %1660 = vrot.lane.b32.xlu0 %v933, 20
  %v1661 = vpop.permute.xlu0 %1660
  %1662 = vrot.lane.b32.xlu0 %v936, 20
  %v1663 = vpop.permute.xlu0 %1662
  %1664 = vrot.lane.b32.xlu0 %v938, 20
  %v1665 = vpop.permute.xlu0 %1664
  %1666 = vrot.lane.b32.xlu0 %v941, 20
  %v1667 = vpop.permute.xlu0 %1666
  %1668 = vrot.lane.b32.xlu0 %v943, 20
  %v1669 = vpop.permute.xlu0 %1668
  %1670 = vrot.lane.b32.xlu0 %v946, 20
  %v1671 = vpop.permute.xlu0 %1670
  %1672 = vrot.lane.b32.xlu0 %v948, 20
  %v1673 = vpop.permute.xlu0 %1672
  %1674 = vrot.lane.b32.xlu0 %v951, 20
  %v1675 = vpop.permute.xlu0 %1674
  %1676 = vrot.lane.b32.xlu0 %v953, 20
  %v1677 = vpop.permute.xlu0 %1676
  %1678 = vrot.lane.b32.xlu0 %v956, 20
  %v1679 = vpop.permute.xlu0 %1678
  %1680 = vrot.lane.b32.xlu0 %v958, 20
  %v1681 = vpop.permute.xlu0 %1680
  %1682 = vrot.lane.b32.xlu0 %v961, 20
  %v1683 = vpop.permute.xlu0 %1682
  %1684 = vrot.lane.b32.xlu0 %v963, 20
  %v1685 = vpop.permute.xlu0 %1684
  %1686 = vrot.lane.b32.xlu0 %v966, 20
  %v1687 = vpop.permute.xlu0 %1686
  %1688 = vrot.lane.b32.xlu0 %v968, 20
  %v1689 = vpop.permute.xlu0 %1688
  %1690 = vrot.lane.b32.xlu0 %v971, 20
  %v1691 = vpop.permute.xlu0 %1690
  %1692 = vrot.lane.b32.xlu0 %v973, 20
  %v1693 = vpop.permute.xlu0 %1692
  %1694 = vrot.lane.b32.xlu0 %v976, 20
  %v1695 = vpop.permute.xlu0 %1694
  %1696 = vrot.lane.b32.xlu0 %v978, 20
  %v1697 = vpop.permute.xlu0 %1696
  %1698 = vrot.lane.b32.xlu0 %v981, 20
  %v1699 = vpop.permute.xlu0 %1698
  %1700 = vrot.lane.b32.xlu0 %v983, 20
  %v1701 = vpop.permute.xlu0 %1700
  %1702 = vrot.lane.b32.xlu0 %v1575, 20
  %v1703 = vpop.permute.xlu0 %1702
  %1704 = vrot.lane.b32.xlu0 %v1577, 20
  %v1705 = vpop.permute.xlu0 %1704
  %1770 = vrot.lane.b32.xlu0 %v360, 24
  %v1771 = vpop.permute.xlu0 %1770
  %1772 = vrot.lane.b32.xlu0 %v171, 24
  %v1773 = vpop.permute.xlu0 %1772
  %1774 = vrot.lane.b32.xlu0 %v361, 24
  %v1775 = vpop.permute.xlu0 %1774
  %1776 = vrot.lane.b32.xlu0 %v174, 24
  %v1777 = vpop.permute.xlu0 %1776
  %1778 = vrot.lane.b32.xlu0 %v362, 24
  %v1779 = vpop.permute.xlu0 %1778
  %1780 = vrot.lane.b32.xlu0 %v177, 24
  %v1781 = vpop.permute.xlu0 %1780
  %1782 = vrot.lane.b32.xlu0 %v363, 24
  %v1783 = vpop.permute.xlu0 %1782
  %1784 = vrot.lane.b32.xlu0 %v180, 24
  %v1785 = vpop.permute.xlu0 %1784
  %1786 = vrot.lane.b32.xlu0 %v364, 24
  %v1787 = vpop.permute.xlu0 %1786
  %1788 = vrot.lane.b32.xlu0 %v183, 24
  %v1789 = vpop.permute.xlu0 %1788
  %1790 = vrot.lane.b32.xlu0 %v365, 24
  %v1791 = vpop.permute.xlu0 %1790
  %1792 = vrot.lane.b32.xlu0 %v186, 24
  %v1793 = vpop.permute.xlu0 %1792
  %1794 = vrot.lane.b32.xlu0 %v366, 24
  %v1795 = vpop.permute.xlu0 %1794
  %1796 = vrot.lane.b32.xlu0 %v189, 24
  %v1797 = vpop.permute.xlu0 %1796
  %1798 = vrot.lane.b32.xlu0 %v367, 24
  %v1799 = vpop.permute.xlu0 %1798
  %1800 = vrot.lane.b32.xlu0 %v192, 24
  %v1801 = vpop.permute.xlu0 %1800
  %1802 = vrot.lane.b32.xlu0 %v368, 24
  %v1803 = vpop.permute.xlu0 %1802
  %1804 = vrot.lane.b32.xlu0 %v195, 24
  %v1805 = vpop.permute.xlu0 %1804
  %1806 = vrot.lane.b32.xlu0 %v369, 24
  %v1807 = vpop.permute.xlu0 %1806
  %1808 = vrot.lane.b32.xlu0 %v198, 24
  %v1809 = vpop.permute.xlu0 %1808
  %1810 = vrot.lane.b32.xlu0 %v370, 24
  %v1811 = vpop.permute.xlu0 %1810
  %1812 = vrot.lane.b32.xlu0 %v201, 24
  %v1813 = vpop.permute.xlu0 %1812
  %1814 = vrot.lane.b32.xlu0 %v371, 24
  %v1815 = vpop.permute.xlu0 %1814
  %1816 = vrot.lane.b32.xlu0 %v204, 24
  %v1817 = vpop.permute.xlu0 %1816
  %1818 = vrot.lane.b32.xlu0 %v372, 24
  %v1819 = vpop.permute.xlu0 %1818
  %1820 = vrot.lane.b32.xlu0 %v207, 24
  %v1821 = vpop.permute.xlu0 %1820
  %1822 = vrot.lane.b32.xlu0 %v373, 24
  %v1823 = vpop.permute.xlu0 %1822
  %1824 = vrot.lane.b32.xlu0 %v210, 24
  %v1825 = vpop.permute.xlu0 %1824
  %1826 = vrot.lane.b32.xlu0 %v374, 24
  %v1827 = vpop.permute.xlu0 %1826
  %1828 = vrot.lane.b32.xlu0 %v213, 24
  %v1829 = vpop.permute.xlu0 %1828
  %1830 = vrot.lane.b32.xlu0 %v358, 24
  %v1831 = vpop.permute.xlu0 %1830
  %1832 = vrot.lane.b32.xlu0 %v165, 24
  %v1833 = vpop.permute.xlu0 %1832
  %1834 = vrot.lane.b32.xlu0 %v376, 24
  %v1835 = vpop.permute.xlu0 %1834
  %1836 = vrot.lane.b32.xlu0 %v219, 24
  %v1837 = vpop.permute.xlu0 %1836
  %1838 = vrot.lane.b32.xlu0 %v377, 24
  %v1839 = vpop.permute.xlu0 %1838
  %1840 = vrot.lane.b32.xlu0 %v222, 24
  %v1841 = vpop.permute.xlu0 %1840
  %1842 = vrot.lane.b32.xlu0 %v378, 24
  %v1843 = vpop.permute.xlu0 %1842
  %1844 = vrot.lane.b32.xlu0 %v225, 24
  %v1845 = vpop.permute.xlu0 %1844
  %1846 = vrot.lane.b32.xlu0 %v379, 24
  %v1847 = vpop.permute.xlu0 %1846
  %1848 = vrot.lane.b32.xlu0 %v228, 24
  %v1849 = vpop.permute.xlu0 %1848
  %1850 = vrot.lane.b32.xlu0 %v380, 24
  %v1851 = vpop.permute.xlu0 %1850
  %1852 = vrot.lane.b32.xlu0 %v231, 24
  %v1853 = vpop.permute.xlu0 %1852
  %1854 = vrot.lane.b32.xlu0 %v381, 24
  %v1855 = vpop.permute.xlu0 %1854
  %1856 = vrot.lane.b32.xlu0 %v234, 24
  %v1857 = vpop.permute.xlu0 %1856
  %1858 = vrot.lane.b32.xlu0 %v382, 24
  %v1859 = vpop.permute.xlu0 %1858
  %1860 = vrot.lane.b32.xlu0 %v237, 24
  %v1861 = vpop.permute.xlu0 %1860
  %1862 = vrot.lane.b32.xlu0 %v383, 24
  %v1863 = vpop.permute.xlu0 %1862
  %1864 = vrot.lane.b32.xlu0 %v240, 24
  %v1865 = vpop.permute.xlu0 %1864
  %1866 = vrot.lane.b32.xlu0 %v384, 24
  %v1867 = vpop.permute.xlu0 %1866
  %1868 = vrot.lane.b32.xlu0 %v243, 24
  %v1869 = vpop.permute.xlu0 %1868
  %1870 = vrot.lane.b32.xlu0 %v385, 24
  %v1871 = vpop.permute.xlu0 %1870
  %1872 = vrot.lane.b32.xlu0 %v246, 24
  %v1873 = vpop.permute.xlu0 %1872
  %1874 = vrot.lane.b32.xlu0 %v386, 24
  %v1875 = vpop.permute.xlu0 %1874
  %1876 = vrot.lane.b32.xlu0 %v249, 24
  %v1877 = vpop.permute.xlu0 %1876
  %1878 = vrot.lane.b32.xlu0 %v387, 24
  %v1879 = vpop.permute.xlu0 %1878
  %1880 = vrot.lane.b32.xlu0 %v252, 24
  %v1881 = vpop.permute.xlu0 %1880
  %1882 = vrot.lane.b32.xlu0 %v388, 24
  %v1883 = vpop.permute.xlu0 %1882
  %1884 = vrot.lane.b32.xlu0 %v255, 24
  %v1885 = vpop.permute.xlu0 %1884
  %1886 = vrot.lane.b32.xlu0 %v389, 24
  %v1887 = vpop.permute.xlu0 %1886
  %1888 = vrot.lane.b32.xlu0 %v258, 24
  %v1889 = vpop.permute.xlu0 %1888
  %1890 = vrot.lane.b32.xlu0 %v390, 24
  %v1891 = vpop.permute.xlu0 %1890
  %1892 = vrot.lane.b32.xlu0 %v261, 24
  %v1893 = vpop.permute.xlu0 %1892
  %1956 = vrot.lane.b32.xlu0 %v499, 28
  %v1957 = vpop.permute.xlu0 %1956
  %1958 = vrot.lane.b32.xlu0 %v501, 28
  %v1959 = vpop.permute.xlu0 %1958
  %1960 = vrot.lane.b32.xlu0 %v504, 28
  %v1961 = vpop.permute.xlu0 %1960
  %1962 = vrot.lane.b32.xlu0 %v506, 28
  %v1963 = vpop.permute.xlu0 %1962
  %1964 = vrot.lane.b32.xlu0 %v509, 28
  %v1965 = vpop.permute.xlu0 %1964
  %1966 = vrot.lane.b32.xlu0 %v511, 28
  %v1967 = vpop.permute.xlu0 %1966
  %1968 = vrot.lane.b32.xlu0 %v514, 28
  %v1969 = vpop.permute.xlu0 %1968
  %1970 = vrot.lane.b32.xlu0 %v516, 28
  %v1971 = vpop.permute.xlu0 %1970
  %1972 = vrot.lane.b32.xlu0 %v519, 28
  %v1973 = vpop.permute.xlu0 %1972
  %1974 = vrot.lane.b32.xlu0 %v521, 28
  %v1975 = vpop.permute.xlu0 %1974
  %1976 = vrot.lane.b32.xlu0 %v524, 28
  %v1977 = vpop.permute.xlu0 %1976
  %1978 = vrot.lane.b32.xlu0 %v526, 28
  %v1979 = vpop.permute.xlu0 %1978
  %1980 = vrot.lane.b32.xlu0 %v529, 28
  %v1981 = vpop.permute.xlu0 %1980
  %1982 = vrot.lane.b32.xlu0 %v531, 28
  %v1983 = vpop.permute.xlu0 %1982
  %1984 = vrot.lane.b32.xlu0 %v534, 28
  %v1985 = vpop.permute.xlu0 %1984
  %1986 = vrot.lane.b32.xlu0 %v536, 28
  %v1987 = vpop.permute.xlu0 %1986
  %1988 = vrot.lane.b32.xlu0 %v539, 28
  %v1989 = vpop.permute.xlu0 %1988
  %1990 = vrot.lane.b32.xlu0 %v541, 28
  %v1991 = vpop.permute.xlu0 %1990
  %1992 = vrot.lane.b32.xlu0 %v544, 28
  %v1993 = vpop.permute.xlu0 %1992
  %1994 = vrot.lane.b32.xlu0 %v546, 28
  %v1995 = vpop.permute.xlu0 %1994
  %1996 = vrot.lane.b32.xlu0 %v549, 28
  %v1997 = vpop.permute.xlu0 %1996
  %1998 = vrot.lane.b32.xlu0 %v551, 28
  %v1999 = vpop.permute.xlu0 %1998
  %2000 = vrot.lane.b32.xlu0 %v554, 28
  %v2001 = vpop.permute.xlu0 %2000
  %2002 = vrot.lane.b32.xlu0 %v556, 28
  %v2003 = vpop.permute.xlu0 %2002
  %2004 = vrot.lane.b32.xlu0 %v559, 28
  %v2005 = vpop.permute.xlu0 %2004
  %2006 = vrot.lane.b32.xlu0 %v561, 28
  %v2007 = vpop.permute.xlu0 %2006
  %2008 = vrot.lane.b32.xlu0 %v564, 28
  %v2009 = vpop.permute.xlu0 %2008
  %2010 = vrot.lane.b32.xlu0 %v566, 28
  %v2011 = vpop.permute.xlu0 %2010
  %2012 = vrot.lane.b32.xlu0 %v1368, 28
  %v2013 = vpop.permute.xlu0 %2012
  %2014 = vrot.lane.b32.xlu0 %v1370, 28
  %v2015 = vpop.permute.xlu0 %2014
  %2016 = vrot.lane.b32.xlu0 %v489, 28
  %v2017 = vpop.permute.xlu0 %2016
  %2018 = vrot.lane.b32.xlu0 %v491, 28
  %v2019 = vpop.permute.xlu0 %2018
  %2020 = vrot.lane.b32.xlu0 %v574, 28
  %v2021 = vpop.permute.xlu0 %2020
  %2022 = vrot.lane.b32.xlu0 %v576, 28
  %v2023 = vpop.permute.xlu0 %2022
  %2024 = vrot.lane.b32.xlu0 %v579, 28
  %v2025 = vpop.permute.xlu0 %2024
  %2026 = vrot.lane.b32.xlu0 %v581, 28
  %v2027 = vpop.permute.xlu0 %2026
  %2028 = vrot.lane.b32.xlu0 %v584, 28
  %v2029 = vpop.permute.xlu0 %2028
  %2030 = vrot.lane.b32.xlu0 %v586, 28
  %v2031 = vpop.permute.xlu0 %2030
  %2032 = vrot.lane.b32.xlu0 %v589, 28
  %v2033 = vpop.permute.xlu0 %2032
  %2034 = vrot.lane.b32.xlu0 %v591, 28
  %v2035 = vpop.permute.xlu0 %2034
  %2036 = vrot.lane.b32.xlu0 %v594, 28
  %v2037 = vpop.permute.xlu0 %2036
  %2038 = vrot.lane.b32.xlu0 %v596, 28
  %v2039 = vpop.permute.xlu0 %2038
  %2040 = vrot.lane.b32.xlu0 %v599, 28
  %v2041 = vpop.permute.xlu0 %2040
  %2042 = vrot.lane.b32.xlu0 %v601, 28
  %v2043 = vpop.permute.xlu0 %2042
  %2044 = vrot.lane.b32.xlu0 %v604, 28
  %v2045 = vpop.permute.xlu0 %2044
  %2046 = vrot.lane.b32.xlu0 %v606, 28
  %v2047 = vpop.permute.xlu0 %2046
  %2048 = vrot.lane.b32.xlu0 %v609, 28
  %v2049 = vpop.permute.xlu0 %2048
  %2050 = vrot.lane.b32.xlu0 %v611, 28
  %v2051 = vpop.permute.xlu0 %2050
  %2052 = vrot.lane.b32.xlu0 %v614, 28
  %v2053 = vpop.permute.xlu0 %2052
  %2054 = vrot.lane.b32.xlu0 %v616, 28
  %v2055 = vpop.permute.xlu0 %2054
  %2056 = vrot.lane.b32.xlu0 %v619, 28
  %v2057 = vpop.permute.xlu0 %2056
  %2058 = vrot.lane.b32.xlu0 %v621, 28
  %v2059 = vpop.permute.xlu0 %2058
  %2060 = vrot.lane.b32.xlu0 %v624, 28
  %v2061 = vpop.permute.xlu0 %2060
  %2062 = vrot.lane.b32.xlu0 %v626, 28
  %v2063 = vpop.permute.xlu0 %2062
  %2064 = vrot.lane.b32.xlu0 %v629, 28
  %v2065 = vpop.permute.xlu0 %2064
  %2066 = vrot.lane.b32.xlu0 %v631, 28
  %v2067 = vpop.permute.xlu0 %2066
  %2068 = vrot.lane.b32.xlu0 %v634, 28
  %v2069 = vpop.permute.xlu0 %2068
  %2070 = vrot.lane.b32.xlu0 %v636, 28
  %v2071 = vpop.permute.xlu0 %2070
  %2072 = vrot.lane.b32.xlu0 %v639, 28
  %v2073 = vpop.permute.xlu0 %2072
  %2074 = vrot.lane.b32.xlu0 %v641, 28
  %v2075 = vpop.permute.xlu0 %2074
  %2076 = vrot.lane.b32.xlu0 %v1373, 28
  %v2077 = vpop.permute.xlu0 %2076
  %2078 = vrot.lane.b32.xlu0 %v1375, 28
  %v2079 = vpop.permute.xlu0 %2078
  %2142 = vrot.lane.b32.xlu0 %v841, 32
  %v2143 = vpop.permute.xlu0 %2142
  %2144 = vrot.lane.b32.xlu0 %v843, 32
  %v2145 = vpop.permute.xlu0 %2144
  %2146 = vrot.lane.b32.xlu0 %v846, 32
  %v2147 = vpop.permute.xlu0 %2146
  %2148 = vrot.lane.b32.xlu0 %v848, 32
  %v2149 = vpop.permute.xlu0 %2148
  %2150 = vrot.lane.b32.xlu0 %v851, 32
  %v2151 = vpop.permute.xlu0 %2150
  %2152 = vrot.lane.b32.xlu0 %v853, 32
  %v2153 = vpop.permute.xlu0 %2152
  %2154 = vrot.lane.b32.xlu0 %v856, 32
  %v2155 = vpop.permute.xlu0 %2154
  %2156 = vrot.lane.b32.xlu0 %v858, 32
  %v2157 = vpop.permute.xlu0 %2156
  %2158 = vrot.lane.b32.xlu0 %v861, 32
  %v2159 = vpop.permute.xlu0 %2158
  %2160 = vrot.lane.b32.xlu0 %v863, 32
  %v2161 = vpop.permute.xlu0 %2160
  %2162 = vrot.lane.b32.xlu0 %v866, 32
  %v2163 = vpop.permute.xlu0 %2162
  %2164 = vrot.lane.b32.xlu0 %v868, 32
  %v2165 = vpop.permute.xlu0 %2164
  %2166 = vrot.lane.b32.xlu0 %v871, 32
  %v2167 = vpop.permute.xlu0 %2166
  %2168 = vrot.lane.b32.xlu0 %v873, 32
  %v2169 = vpop.permute.xlu0 %2168
  %2170 = vrot.lane.b32.xlu0 %v876, 32
  %v2171 = vpop.permute.xlu0 %2170
  %2172 = vrot.lane.b32.xlu0 %v878, 32
  %v2173 = vpop.permute.xlu0 %2172
  %2174 = vrot.lane.b32.xlu0 %v881, 32
  %v2175 = vpop.permute.xlu0 %2174
  %2176 = vrot.lane.b32.xlu0 %v883, 32
  %v2177 = vpop.permute.xlu0 %2176
  %2178 = vrot.lane.b32.xlu0 %v886, 32
  %v2179 = vpop.permute.xlu0 %2178
  %2180 = vrot.lane.b32.xlu0 %v888, 32
  %v2181 = vpop.permute.xlu0 %2180
  %2182 = vrot.lane.b32.xlu0 %v891, 32
  %v2183 = vpop.permute.xlu0 %2182
  %2184 = vrot.lane.b32.xlu0 %v893, 32
  %v2185 = vpop.permute.xlu0 %2184
  %2186 = vrot.lane.b32.xlu0 %v896, 32
  %v2187 = vpop.permute.xlu0 %2186
  %2188 = vrot.lane.b32.xlu0 %v898, 32
  %v2189 = vpop.permute.xlu0 %2188
  %2190 = vrot.lane.b32.xlu0 %v901, 32
  %v2191 = vpop.permute.xlu0 %2190
  %2192 = vrot.lane.b32.xlu0 %v903, 32
  %v2193 = vpop.permute.xlu0 %2192
  %2194 = vrot.lane.b32.xlu0 %v906, 32
  %v2195 = vpop.permute.xlu0 %2194
  %2196 = vrot.lane.b32.xlu0 %v908, 32
  %v2197 = vpop.permute.xlu0 %2196
  %2198 = vrot.lane.b32.xlu0 %v1570, 32
  %v2199 = vpop.permute.xlu0 %2198
  %2200 = vrot.lane.b32.xlu0 %v1572, 32
  %v2201 = vpop.permute.xlu0 %2200
  %2202 = vrot.lane.b32.xlu0 %v831, 32
  %v2203 = vpop.permute.xlu0 %2202
  %2204 = vrot.lane.b32.xlu0 %v833, 32
  %v2205 = vpop.permute.xlu0 %2204
  %2206 = vrot.lane.b32.xlu0 %v916, 32
  %v2207 = vpop.permute.xlu0 %2206
  %2208 = vrot.lane.b32.xlu0 %v918, 32
  %v2209 = vpop.permute.xlu0 %2208
  %2210 = vrot.lane.b32.xlu0 %v921, 32
  %v2211 = vpop.permute.xlu0 %2210
  %2212 = vrot.lane.b32.xlu0 %v923, 32
  %v2213 = vpop.permute.xlu0 %2212
  %2214 = vrot.lane.b32.xlu0 %v926, 32
  %v2215 = vpop.permute.xlu0 %2214
  %2216 = vrot.lane.b32.xlu0 %v928, 32
  %v2217 = vpop.permute.xlu0 %2216
  %2218 = vrot.lane.b32.xlu0 %v931, 32
  %v2219 = vpop.permute.xlu0 %2218
  %2220 = vrot.lane.b32.xlu0 %v933, 32
  %v2221 = vpop.permute.xlu0 %2220
  %2222 = vrot.lane.b32.xlu0 %v936, 32
  %v2223 = vpop.permute.xlu0 %2222
  %2224 = vrot.lane.b32.xlu0 %v938, 32
  %v2225 = vpop.permute.xlu0 %2224
  %2226 = vrot.lane.b32.xlu0 %v941, 32
  %v2227 = vpop.permute.xlu0 %2226
  %2228 = vrot.lane.b32.xlu0 %v943, 32
  %v2229 = vpop.permute.xlu0 %2228
  %2230 = vrot.lane.b32.xlu0 %v946, 32
  %v2231 = vpop.permute.xlu0 %2230
  %2232 = vrot.lane.b32.xlu0 %v948, 32
  %v2233 = vpop.permute.xlu0 %2232
  %2234 = vrot.lane.b32.xlu0 %v951, 32
  %v2235 = vpop.permute.xlu0 %2234
  %2236 = vrot.lane.b32.xlu0 %v953, 32
  %v2237 = vpop.permute.xlu0 %2236
  %2238 = vrot.lane.b32.xlu0 %v956, 32
  %v2239 = vpop.permute.xlu0 %2238
  %2240 = vrot.lane.b32.xlu0 %v958, 32
  %v2241 = vpop.permute.xlu0 %2240
  %2242 = vrot.lane.b32.xlu0 %v961, 32
  %v2243 = vpop.permute.xlu0 %2242
  %2244 = vrot.lane.b32.xlu0 %v963, 32
  %v2245 = vpop.permute.xlu0 %2244
  %2246 = vrot.lane.b32.xlu0 %v966, 32
  %v2247 = vpop.permute.xlu0 %2246
  %2248 = vrot.lane.b32.xlu0 %v968, 32
  %v2249 = vpop.permute.xlu0 %2248
  %2250 = vrot.lane.b32.xlu0 %v971, 32
  %v2251 = vpop.permute.xlu0 %2250
  %2252 = vrot.lane.b32.xlu0 %v973, 32
  %v2253 = vpop.permute.xlu0 %2252
  %2254 = vrot.lane.b32.xlu0 %v976, 32
  %v2255 = vpop.permute.xlu0 %2254
  %2256 = vrot.lane.b32.xlu0 %v978, 32
  %v2257 = vpop.permute.xlu0 %2256
  %2258 = vrot.lane.b32.xlu0 %v981, 32
  %v2259 = vpop.permute.xlu0 %2258
  %2260 = vrot.lane.b32.xlu0 %v983, 32
  %v2261 = vpop.permute.xlu0 %2260
  %2262 = vrot.lane.b32.xlu0 %v1575, 32
  %v2263 = vpop.permute.xlu0 %2262
  %2264 = vrot.lane.b32.xlu0 %v1577, 32
  %v2265 = vpop.permute.xlu0 %2264
  %vm2328 = vcmask 31744
  %v2329 = vsel %vm2328, %v358, %v643
  %v2330 = vsel %vm2328, %v165, %v645
  %v2331 = vsel %vm2328, %v359, %v647
  %v2332 = vsel %vm2328, %v168, %v649
  %v2333 = vsel %vm2328, %v360, %v651
  %v2334 = vsel %vm2328, %v171, %v653
  %v2335 = vsel %vm2328, %v361, %v655
  %v2336 = vsel %vm2328, %v174, %v657
  %v2337 = vsel %vm2328, %v362, %v659
  %v2338 = vsel %vm2328, %v177, %v661
  %v2339 = vsel %vm2328, %v363, %v663
  %v2340 = vsel %vm2328, %v180, %v665
  %v2341 = vsel %vm2328, %v364, %v667
  %v2342 = vsel %vm2328, %v183, %v669
  %v2343 = vsel %vm2328, %v365, %v671
  %v2344 = vsel %vm2328, %v186, %v673
  %v2345 = vsel %vm2328, %v366, %v675
  %v2346 = vsel %vm2328, %v189, %v677
  %v2347 = vsel %vm2328, %v367, %v679
  %v2348 = vsel %vm2328, %v192, %v681
  %v2349 = vsel %vm2328, %v368, %v683
  %v2350 = vsel %vm2328, %v195, %v685
  %v2351 = vsel %vm2328, %v369, %v687
  %v2352 = vsel %vm2328, %v198, %v689
  %v2353 = vsel %vm2328, %v370, %v691
  %v2354 = vsel %vm2328, %v201, %v693
  %v2355 = vsel %vm2328, %v371, %v695
  %v2356 = vsel %vm2328, %v204, %v697
  %v2357 = vsel %vm2328, %v372, %v699
  %v2358 = vsel %vm2328, %v207, %v701
  %v2359 = vsel %vm2328, %v373, %v703
  %v2360 = vsel %vm2328, %v210, %v705
  %v2361 = vsel %vm2328, %v375, %v707
  %v2362 = vsel %vm2328, %v216, %v709
  %v2363 = vsel %vm2328, %v376, %v711
  %v2364 = vsel %vm2328, %v219, %v713
  %v2365 = vsel %vm2328, %v377, %v715
  %v2366 = vsel %vm2328, %v222, %v717
  %v2367 = vsel %vm2328, %v378, %v719
  %v2368 = vsel %vm2328, %v225, %v721
  %v2369 = vsel %vm2328, %v379, %v723
  %v2370 = vsel %vm2328, %v228, %v725
  %v2371 = vsel %vm2328, %v380, %v727
  %v2372 = vsel %vm2328, %v231, %v729
  %v2373 = vsel %vm2328, %v381, %v731
  %v2374 = vsel %vm2328, %v234, %v733
  %v2375 = vsel %vm2328, %v382, %v735
  %v2376 = vsel %vm2328, %v237, %v737
  %v2377 = vsel %vm2328, %v383, %v739
  %v2378 = vsel %vm2328, %v240, %v741
  %v2379 = vsel %vm2328, %v384, %v743
  %v2380 = vsel %vm2328, %v243, %v745
  %v2381 = vsel %vm2328, %v385, %v747
  %v2382 = vsel %vm2328, %v246, %v749
  %v2383 = vsel %vm2328, %v386, %v751
  %v2384 = vsel %vm2328, %v249, %v753
  %v2385 = vsel %vm2328, %v387, %v755
  %v2386 = vsel %vm2328, %v252, %v757
  %v2387 = vsel %vm2328, %v388, %v759
  %v2388 = vsel %vm2328, %v255, %v761
  %v2389 = vsel %vm2328, %v389, %v763
  %v2390 = vsel %vm2328, %v258, %v765
  %vm2391 = vcmask 64512
  %v2392 = vsel %vm2391, %v2329, %v985
  %v2393 = vsel %vm2391, %v2330, %v987
  %v2394 = vsel %vm2391, %v2331, %v989
  %v2395 = vsel %vm2391, %v2332, %v991
  %v2396 = vsel %vm2391, %v2333, %v993
  %v2397 = vsel %vm2391, %v2334, %v995
  %v2398 = vsel %vm2391, %v2335, %v997
  %v2399 = vsel %vm2391, %v2336, %v999
  %v2400 = vsel %vm2391, %v2337, %v1001
  %v2401 = vsel %vm2391, %v2338, %v1003
  %v2402 = vsel %vm2391, %v2339, %v1005
  %v2403 = vsel %vm2391, %v2340, %v1007
  %v2404 = vsel %vm2391, %v2341, %v1009
  %v2405 = vsel %vm2391, %v2342, %v1011
  %v2406 = vsel %vm2391, %v2343, %v1013
  %v2407 = vsel %vm2391, %v2344, %v1015
  %v2408 = vsel %vm2391, %v2345, %v1017
  %v2409 = vsel %vm2391, %v2346, %v1019
  %v2410 = vsel %vm2391, %v2347, %v1021
  %v2411 = vsel %vm2391, %v2348, %v1023
  %v2412 = vsel %vm2391, %v2349, %v1025
  %v2413 = vsel %vm2391, %v2350, %v1027
  %v2414 = vsel %vm2391, %v2351, %v1029
  %v2415 = vsel %vm2391, %v2352, %v1031
  %v2416 = vsel %vm2391, %v2353, %v1033
  %v2417 = vsel %vm2391, %v2354, %v1035
  %v2418 = vsel %vm2391, %v2355, %v1037
  %v2419 = vsel %vm2391, %v2356, %v1039
  %v2420 = vsel %vm2391, %v2357, %v1041
  %v2421 = vsel %vm2391, %v2358, %v1043
  %v2422 = vsel %vm2391, %v2359, %v1045
  %v2423 = vsel %vm2391, %v2360, %v1047
  %v2424 = vsel %vm2391, %v2361, %v1049
  %v2425 = vsel %vm2391, %v2362, %v1051
  %v2426 = vsel %vm2391, %v2363, %v1053
  %v2427 = vsel %vm2391, %v2364, %v1055
  %v2428 = vsel %vm2391, %v2365, %v1057
  %v2429 = vsel %vm2391, %v2366, %v1059
  %v2430 = vsel %vm2391, %v2367, %v1061
  %v2431 = vsel %vm2391, %v2368, %v1063
  %v2432 = vsel %vm2391, %v2369, %v1065
  %v2433 = vsel %vm2391, %v2370, %v1067
  %v2434 = vsel %vm2391, %v2371, %v1069
  %v2435 = vsel %vm2391, %v2372, %v1071
  %v2436 = vsel %vm2391, %v2373, %v1073
  %v2437 = vsel %vm2391, %v2374, %v1075
  %v2438 = vsel %vm2391, %v2375, %v1077
  %v2439 = vsel %vm2391, %v2376, %v1079
  %v2440 = vsel %vm2391, %v2377, %v1081
  %v2441 = vsel %vm2391, %v2378, %v1083
  %v2442 = vsel %vm2391, %v2379, %v1085
  %v2443 = vsel %vm2391, %v2380, %v1087
  %v2444 = vsel %vm2391, %v2381, %v1089
  %v2445 = vsel %vm2391, %v2382, %v1091
  %v2446 = vsel %vm2391, %v2383, %v1093
  %v2447 = vsel %vm2391, %v2384, %v1095
  %v2448 = vsel %vm2391, %v2385, %v1097
  %v2449 = vsel %vm2391, %v2386, %v1099
  %v2450 = vsel %vm2391, %v2387, %v1101
  %v2451 = vsel %vm2391, %v2388, %v1103
  %v2452 = vsel %vm2391, %v2389, %v1105
  %v2453 = vsel %vm2391, %v2390, %v1107
  %vm2454 = vcmask 97280
  %v2455 = vsel %vm2454, %v2392, %v1173
  %v2456 = vsel %vm2454, %v2393, %v1175
  %v2457 = vsel %vm2454, %v2394, %v1177
  %v2458 = vsel %vm2454, %v2395, %v1179
  %v2459 = vsel %vm2454, %v2396, %v1181
  %v2460 = vsel %vm2454, %v2397, %v1183
  %v2461 = vsel %vm2454, %v2398, %v1185
  %v2462 = vsel %vm2454, %v2399, %v1187
  %v2463 = vsel %vm2454, %v2400, %v1189
  %v2464 = vsel %vm2454, %v2401, %v1191
  %v2465 = vsel %vm2454, %v2402, %v1193
  %v2466 = vsel %vm2454, %v2403, %v1195
  %v2467 = vsel %vm2454, %v2404, %v1197
  %v2468 = vsel %vm2454, %v2405, %v1199
  %v2469 = vsel %vm2454, %v2406, %v1201
  %v2470 = vsel %vm2454, %v2407, %v1203
  %v2471 = vsel %vm2454, %v2408, %v1205
  %v2472 = vsel %vm2454, %v2409, %v1207
  %v2473 = vsel %vm2454, %v2410, %v1209
  %v2474 = vsel %vm2454, %v2411, %v1211
  %v2475 = vsel %vm2454, %v2412, %v1213
  %v2476 = vsel %vm2454, %v2413, %v1215
  %v2477 = vsel %vm2454, %v2414, %v1217
  %v2478 = vsel %vm2454, %v2415, %v1219
  %v2479 = vsel %vm2454, %v2416, %v1221
  %v2480 = vsel %vm2454, %v2417, %v1223
  %v2481 = vsel %vm2454, %v2418, %v1225
  %v2482 = vsel %vm2454, %v2419, %v1227
  %v2483 = vsel %vm2454, %v2420, %v1229
  %v2484 = vsel %vm2454, %v2421, %v1231
  %v2485 = vsel %vm2454, %v2422, %v1233
  %v2486 = vsel %vm2454, %v2423, %v1235
  %v2487 = vsel %vm2454, %v2392, %v1237
  %v2488 = vsel %vm2454, %v2393, %v1239
  %v2489 = vsel %vm2454, %v2424, %v1241
  %v2490 = vsel %vm2454, %v2425, %v1243
  %v2491 = vsel %vm2454, %v2426, %v1245
  %v2492 = vsel %vm2454, %v2427, %v1247
  %v2493 = vsel %vm2454, %v2428, %v1249
  %v2494 = vsel %vm2454, %v2429, %v1251
  %v2495 = vsel %vm2454, %v2430, %v1253
  %v2496 = vsel %vm2454, %v2431, %v1255
  %v2497 = vsel %vm2454, %v2432, %v1257
  %v2498 = vsel %vm2454, %v2433, %v1259
  %v2499 = vsel %vm2454, %v2434, %v1261
  %v2500 = vsel %vm2454, %v2435, %v1263
  %v2501 = vsel %vm2454, %v2436, %v1265
  %v2502 = vsel %vm2454, %v2437, %v1267
  %v2503 = vsel %vm2454, %v2438, %v1269
  %v2504 = vsel %vm2454, %v2439, %v1271
  %v2505 = vsel %vm2454, %v2440, %v1273
  %v2506 = vsel %vm2454, %v2441, %v1275
  %v2507 = vsel %vm2454, %v2442, %v1277
  %v2508 = vsel %vm2454, %v2443, %v1279
  %v2509 = vsel %vm2454, %v2444, %v1281
  %v2510 = vsel %vm2454, %v2445, %v1283
  %v2511 = vsel %vm2454, %v2446, %v1285
  %v2512 = vsel %vm2454, %v2447, %v1287
  %v2513 = vsel %vm2454, %v2448, %v1289
  %v2514 = vsel %vm2454, %v2449, %v1291
  %v2515 = vsel %vm2454, %v2450, %v1293
  %v2516 = vsel %vm2454, %v2451, %v1295
  %v2517 = vsel %vm2454, %v2452, %v1297
  %v2518 = vsel %vm2454, %v2453, %v1299
  %vm2519 = vcmask 130048
  %v2520 = vsel %vm2519, %v2455, %v1377
  %v2521 = vsel %vm2519, %v2456, %v1379
  %v2522 = vsel %vm2519, %v2457, %v1381
  %v2523 = vsel %vm2519, %v2458, %v1383
  %v2524 = vsel %vm2519, %v2459, %v1385
  %v2525 = vsel %vm2519, %v2460, %v1387
  %v2526 = vsel %vm2519, %v2461, %v1389
  %v2527 = vsel %vm2519, %v2462, %v1391
  %v2528 = vsel %vm2519, %v2463, %v1393
  %v2529 = vsel %vm2519, %v2464, %v1395
  %v2530 = vsel %vm2519, %v2465, %v1397
  %v2531 = vsel %vm2519, %v2466, %v1399
  %v2532 = vsel %vm2519, %v2467, %v1401
  %v2533 = vsel %vm2519, %v2468, %v1403
  %v2534 = vsel %vm2519, %v2469, %v1405
  %v2535 = vsel %vm2519, %v2470, %v1407
  %v2536 = vsel %vm2519, %v2471, %v1409
  %v2537 = vsel %vm2519, %v2472, %v1411
  %v2538 = vsel %vm2519, %v2473, %v1413
  %v2539 = vsel %vm2519, %v2474, %v1415
  %v2540 = vsel %vm2519, %v2475, %v1417
  %v2541 = vsel %vm2519, %v2476, %v1419
  %v2542 = vsel %vm2519, %v2477, %v1421
  %v2543 = vsel %vm2519, %v2478, %v1423
  %v2544 = vsel %vm2519, %v2479, %v1425
  %v2545 = vsel %vm2519, %v2480, %v1427
  %v2546 = vsel %vm2519, %v2481, %v1429
  %v2547 = vsel %vm2519, %v2482, %v1431
  %v2548 = vsel %vm2519, %v2483, %v1433
  %v2549 = vsel %vm2519, %v2484, %v1435
  %v2550 = vsel %vm2519, %v2485, %v1437
  %v2551 = vsel %vm2519, %v2486, %v1439
  %v2552 = vsel %vm2519, %v2487, %v1441
  %v2553 = vsel %vm2519, %v2488, %v1443
  %v2554 = vsel %vm2519, %v2489, %v1445
  %v2555 = vsel %vm2519, %v2490, %v1447
  %v2556 = vsel %vm2519, %v2491, %v1449
  %v2557 = vsel %vm2519, %v2492, %v1451
  %v2558 = vsel %vm2519, %v2493, %v1453
  %v2559 = vsel %vm2519, %v2494, %v1455
  %v2560 = vsel %vm2519, %v2495, %v1457
  %v2561 = vsel %vm2519, %v2496, %v1459
  %v2562 = vsel %vm2519, %v2497, %v1461
  %v2563 = vsel %vm2519, %v2498, %v1463
  %v2564 = vsel %vm2519, %v2499, %v1465
  %v2565 = vsel %vm2519, %v2500, %v1467
  %v2566 = vsel %vm2519, %v2501, %v1469
  %v2567 = vsel %vm2519, %v2502, %v1471
  %v2568 = vsel %vm2519, %v2503, %v1473
  %v2569 = vsel %vm2519, %v2504, %v1475
  %v2570 = vsel %vm2519, %v2505, %v1477
  %v2571 = vsel %vm2519, %v2506, %v1479
  %v2572 = vsel %vm2519, %v2507, %v1481
  %v2573 = vsel %vm2519, %v2508, %v1483
  %v2574 = vsel %vm2519, %v2509, %v1485
  %v2575 = vsel %vm2519, %v2510, %v1487
  %v2576 = vsel %vm2519, %v2511, %v1489
  %v2577 = vsel %vm2519, %v2512, %v1491
  %v2578 = vsel %vm2519, %v2513, %v1493
  %v2579 = vsel %vm2519, %v2514, %v1495
  %v2580 = vsel %vm2519, %v2515, %v1497
  %v2581 = vsel %vm2519, %v2516, %v1499
  %v2582 = vsel %vm2519, %v2517, %v1501
  %v2583 = vsel %vm2519, %v2518, %v1503
  %vm2584 = vcmask 162816
  %v2585 = vsel %vm2584, %v2520, %v1579
  %v2586 = vsel %vm2584, %v2521, %v1581
  %v2587 = vsel %vm2584, %v2522, %v1583
  %v2588 = vsel %vm2584, %v2523, %v1585
  %v2589 = vsel %vm2584, %v2524, %v1587
  %v2590 = vsel %vm2584, %v2525, %v1589
  %v2591 = vsel %vm2584, %v2526, %v1591
  %v2592 = vsel %vm2584, %v2527, %v1593
  %v2593 = vsel %vm2584, %v2528, %v1595
  %v2594 = vsel %vm2584, %v2529, %v1597
  %v2595 = vsel %vm2584, %v2530, %v1599
  %v2596 = vsel %vm2584, %v2531, %v1601
  %v2597 = vsel %vm2584, %v2532, %v1603
  %v2598 = vsel %vm2584, %v2533, %v1605
  %v2599 = vsel %vm2584, %v2534, %v1607
  %v2600 = vsel %vm2584, %v2535, %v1609
  %v2601 = vsel %vm2584, %v2536, %v1611
  %v2602 = vsel %vm2584, %v2537, %v1613
  %v2603 = vsel %vm2584, %v2538, %v1615
  %v2604 = vsel %vm2584, %v2539, %v1617
  %v2605 = vsel %vm2584, %v2540, %v1619
  %v2606 = vsel %vm2584, %v2541, %v1621
  %v2607 = vsel %vm2584, %v2542, %v1623
  %v2608 = vsel %vm2584, %v2543, %v1625
  %v2609 = vsel %vm2584, %v2544, %v1627
  %v2610 = vsel %vm2584, %v2545, %v1629
  %v2611 = vsel %vm2584, %v2546, %v1631
  %v2612 = vsel %vm2584, %v2547, %v1633
  %v2613 = vsel %vm2584, %v2548, %v1635
  %v2614 = vsel %vm2584, %v2549, %v1637
  %v2615 = vsel %vm2584, %v2550, %v1639
  %v2616 = vsel %vm2584, %v2551, %v1641
  %v2617 = vsel %vm2584, %v2552, %v1643
  %v2618 = vsel %vm2584, %v2553, %v1645
  %v2619 = vsel %vm2584, %v2554, %v1647
  %v2620 = vsel %vm2584, %v2555, %v1649
  %v2621 = vsel %vm2584, %v2556, %v1651
  %v2622 = vsel %vm2584, %v2557, %v1653
  %v2623 = vsel %vm2584, %v2558, %v1655
  %v2624 = vsel %vm2584, %v2559, %v1657
  %v2625 = vsel %vm2584, %v2560, %v1659
  %v2626 = vsel %vm2584, %v2561, %v1661
  %v2627 = vsel %vm2584, %v2562, %v1663
  %v2628 = vsel %vm2584, %v2563, %v1665
  %v2629 = vsel %vm2584, %v2564, %v1667
  %v2630 = vsel %vm2584, %v2565, %v1669
  %v2631 = vsel %vm2584, %v2566, %v1671
  %v2632 = vsel %vm2584, %v2567, %v1673
  %v2633 = vsel %vm2584, %v2568, %v1675
  %v2634 = vsel %vm2584, %v2569, %v1677
  %v2635 = vsel %vm2584, %v2570, %v1679
  %v2636 = vsel %vm2584, %v2571, %v1681
  %v2637 = vsel %vm2584, %v2572, %v1683
  %v2638 = vsel %vm2584, %v2573, %v1685
  %v2639 = vsel %vm2584, %v2574, %v1687
  %v2640 = vsel %vm2584, %v2575, %v1689
  %v2641 = vsel %vm2584, %v2576, %v1691
  %v2642 = vsel %vm2584, %v2577, %v1693
  %v2643 = vsel %vm2584, %v2578, %v1695
  %v2644 = vsel %vm2584, %v2579, %v1697
  %v2645 = vsel %vm2584, %v2580, %v1699
  %v2646 = vsel %vm2584, %v2581, %v1701
  %v2647 = vsel %vm2584, %v2582, %v1703
  %v2648 = vsel %vm2584, %v2583, %v1705
  %vm2649 = vcmask 195584
  %v2650 = vsel %vm2649, %v2585, %v1771
  %v2651 = vsel %vm2649, %v2586, %v1773
  %v2652 = vsel %vm2649, %v2587, %v1775
  %v2653 = vsel %vm2649, %v2588, %v1777
  %v2654 = vsel %vm2649, %v2589, %v1779
  %v2655 = vsel %vm2649, %v2590, %v1781
  %v2656 = vsel %vm2649, %v2591, %v1783
  %v2657 = vsel %vm2649, %v2592, %v1785
  %v2658 = vsel %vm2649, %v2593, %v1787
  %v2659 = vsel %vm2649, %v2594, %v1789
  %v2660 = vsel %vm2649, %v2595, %v1791
  %v2661 = vsel %vm2649, %v2596, %v1793
  %v2662 = vsel %vm2649, %v2597, %v1795
  %v2663 = vsel %vm2649, %v2598, %v1797
  %v2664 = vsel %vm2649, %v2599, %v1799
  %v2665 = vsel %vm2649, %v2600, %v1801
  %v2666 = vsel %vm2649, %v2601, %v1803
  %v2667 = vsel %vm2649, %v2602, %v1805
  %v2668 = vsel %vm2649, %v2603, %v1807
  %v2669 = vsel %vm2649, %v2604, %v1809
  %v2670 = vsel %vm2649, %v2605, %v1811
  %v2671 = vsel %vm2649, %v2606, %v1813
  %v2672 = vsel %vm2649, %v2607, %v1815
  %v2673 = vsel %vm2649, %v2608, %v1817
  %v2674 = vsel %vm2649, %v2609, %v1819
  %v2675 = vsel %vm2649, %v2610, %v1821
  %v2676 = vsel %vm2649, %v2611, %v1823
  %v2677 = vsel %vm2649, %v2612, %v1825
  %v2678 = vsel %vm2649, %v2613, %v1827
  %v2679 = vsel %vm2649, %v2614, %v1829
  %v2680 = vsel %vm2649, %v2615, %v1831
  %v2681 = vsel %vm2649, %v2616, %v1833
  %v2682 = vsel %vm2649, %v2617, %v1835
  %v2683 = vsel %vm2649, %v2618, %v1837
  %v2684 = vsel %vm2649, %v2619, %v1839
  %v2685 = vsel %vm2649, %v2620, %v1841
  %v2686 = vsel %vm2649, %v2621, %v1843
  %v2687 = vsel %vm2649, %v2622, %v1845
  %v2688 = vsel %vm2649, %v2623, %v1847
  %v2689 = vsel %vm2649, %v2624, %v1849
  %v2690 = vsel %vm2649, %v2625, %v1851
  %v2691 = vsel %vm2649, %v2626, %v1853
  %v2692 = vsel %vm2649, %v2627, %v1855
  %v2693 = vsel %vm2649, %v2628, %v1857
  %v2694 = vsel %vm2649, %v2629, %v1859
  %v2695 = vsel %vm2649, %v2630, %v1861
  %v2696 = vsel %vm2649, %v2631, %v1863
  %v2697 = vsel %vm2649, %v2632, %v1865
  %v2698 = vsel %vm2649, %v2633, %v1867
  %v2699 = vsel %vm2649, %v2634, %v1869
  %v2700 = vsel %vm2649, %v2635, %v1871
  %v2701 = vsel %vm2649, %v2636, %v1873
  %v2702 = vsel %vm2649, %v2637, %v1875
  %v2703 = vsel %vm2649, %v2638, %v1877
  %v2704 = vsel %vm2649, %v2639, %v1879
  %v2705 = vsel %vm2649, %v2640, %v1881
  %v2706 = vsel %vm2649, %v2641, %v1883
  %v2707 = vsel %vm2649, %v2642, %v1885
  %v2708 = vsel %vm2649, %v2643, %v1887
  %v2709 = vsel %vm2649, %v2644, %v1889
  %v2710 = vsel %vm2649, %v2645, %v1891
  %v2711 = vsel %vm2649, %v2646, %v1893
  %v2712 = vsel %vm2649, %v2647, %v1831
  %v2713 = vsel %vm2649, %v2648, %v1833
  %vm2714 = vcmask 228352
  %v2715 = vsel %vm2714, %v2650, %v1957
  %v2716 = vsel %vm2714, %v2651, %v1959
  %v2717 = vsel %vm2714, %v2652, %v1961
  %v2718 = vsel %vm2714, %v2653, %v1963
  %v2719 = vsel %vm2714, %v2654, %v1965
  %v2720 = vsel %vm2714, %v2655, %v1967
  %v2721 = vsel %vm2714, %v2656, %v1969
  %v2722 = vsel %vm2714, %v2657, %v1971
  %v2723 = vsel %vm2714, %v2658, %v1973
  %v2724 = vsel %vm2714, %v2659, %v1975
  %v2725 = vsel %vm2714, %v2660, %v1977
  %v2726 = vsel %vm2714, %v2661, %v1979
  %v2727 = vsel %vm2714, %v2662, %v1981
  %v2728 = vsel %vm2714, %v2663, %v1983
  %v2729 = vsel %vm2714, %v2664, %v1985
  %v2730 = vsel %vm2714, %v2665, %v1987
  %v2731 = vsel %vm2714, %v2666, %v1989
  %v2732 = vsel %vm2714, %v2667, %v1991
  %v2733 = vsel %vm2714, %v2668, %v1993
  %v2734 = vsel %vm2714, %v2669, %v1995
  %v2735 = vsel %vm2714, %v2670, %v1997
  %v2736 = vsel %vm2714, %v2671, %v1999
  %v2737 = vsel %vm2714, %v2672, %v2001
  %v2738 = vsel %vm2714, %v2673, %v2003
  %v2739 = vsel %vm2714, %v2674, %v2005
  %v2740 = vsel %vm2714, %v2675, %v2007
  %v2741 = vsel %vm2714, %v2676, %v2009
  %v2742 = vsel %vm2714, %v2677, %v2011
  %v2743 = vsel %vm2714, %v2678, %v2013
  %v2744 = vsel %vm2714, %v2679, %v2015
  %v2745 = vsel %vm2714, %v2680, %v2017
  %v2746 = vsel %vm2714, %v2681, %v2019
  %v2747 = vsel %vm2714, %v2682, %v2021
  %v2748 = vsel %vm2714, %v2683, %v2023
  %v2749 = vsel %vm2714, %v2684, %v2025
  %v2750 = vsel %vm2714, %v2685, %v2027
  %v2751 = vsel %vm2714, %v2686, %v2029
  %v2752 = vsel %vm2714, %v2687, %v2031
  %v2753 = vsel %vm2714, %v2688, %v2033
  %v2754 = vsel %vm2714, %v2689, %v2035
  %v2755 = vsel %vm2714, %v2690, %v2037
  %v2756 = vsel %vm2714, %v2691, %v2039
  %v2757 = vsel %vm2714, %v2692, %v2041
  %v2758 = vsel %vm2714, %v2693, %v2043
  %v2759 = vsel %vm2714, %v2694, %v2045
  %v2760 = vsel %vm2714, %v2695, %v2047
  %v2761 = vsel %vm2714, %v2696, %v2049
  %v2762 = vsel %vm2714, %v2697, %v2051
  %v2763 = vsel %vm2714, %v2698, %v2053
  %v2764 = vsel %vm2714, %v2699, %v2055
  %v2765 = vsel %vm2714, %v2700, %v2057
  %v2766 = vsel %vm2714, %v2701, %v2059
  %v2767 = vsel %vm2714, %v2702, %v2061
  %v2768 = vsel %vm2714, %v2703, %v2063
  %v2769 = vsel %vm2714, %v2704, %v2065
  %v2770 = vsel %vm2714, %v2705, %v2067
  %v2771 = vsel %vm2714, %v2706, %v2069
  %v2772 = vsel %vm2714, %v2707, %v2071
  %v2773 = vsel %vm2714, %v2708, %v2073
  %v2774 = vsel %vm2714, %v2709, %v2075
  %v2775 = vsel %vm2714, %v2710, %v2077
  %v2776 = vsel %vm2714, %v2711, %v2079
  %v2777 = vsel %vm2714, %v2712, %v2017
  %v2778 = vsel %vm2714, %v2713, %v2019
  %vm2779 = vcmask 261120
  %v2780 = vsel %vm2779, %v2715, %v2143
  %v2781 = vsel %vm2779, %v2716, %v2145
  %v2782 = vsel %vm2779, %v2717, %v2147
  %v2783 = vsel %vm2779, %v2718, %v2149
  %v2784 = vsel %vm2779, %v2719, %v2151
  %v2785 = vsel %vm2779, %v2720, %v2153
  %v2786 = vsel %vm2779, %v2721, %v2155
  %v2787 = vsel %vm2779, %v2722, %v2157
  %v2788 = vsel %vm2779, %v2723, %v2159
  %v2789 = vsel %vm2779, %v2724, %v2161
  %v2790 = vsel %vm2779, %v2725, %v2163
  %v2791 = vsel %vm2779, %v2726, %v2165
  %v2792 = vsel %vm2779, %v2727, %v2167
  %v2793 = vsel %vm2779, %v2728, %v2169
  %v2794 = vsel %vm2779, %v2729, %v2171
  %v2795 = vsel %vm2779, %v2730, %v2173
  %v2796 = vsel %vm2779, %v2731, %v2175
  %v2797 = vsel %vm2779, %v2732, %v2177
  %v2798 = vsel %vm2779, %v2733, %v2179
  %v2799 = vsel %vm2779, %v2734, %v2181
  %v2800 = vsel %vm2779, %v2735, %v2183
  %v2801 = vsel %vm2779, %v2736, %v2185
  %v2802 = vsel %vm2779, %v2737, %v2187
  %v2803 = vsel %vm2779, %v2738, %v2189
  %v2804 = vsel %vm2779, %v2739, %v2191
  %v2805 = vsel %vm2779, %v2740, %v2193
  %v2806 = vsel %vm2779, %v2741, %v2195
  %v2807 = vsel %vm2779, %v2742, %v2197
  %v2808 = vsel %vm2779, %v2743, %v2199
  %v2809 = vsel %vm2779, %v2744, %v2201
  %v2810 = vsel %vm2779, %v2745, %v2203
  %v2811 = vsel %vm2779, %v2746, %v2205
  %v2812 = vsel %vm2779, %v2747, %v2207
  %v2813 = vsel %vm2779, %v2748, %v2209
  %v2814 = vsel %vm2779, %v2749, %v2211
  %v2815 = vsel %vm2779, %v2750, %v2213
  %v2816 = vsel %vm2779, %v2751, %v2215
  %v2817 = vsel %vm2779, %v2752, %v2217
  %v2818 = vsel %vm2779, %v2753, %v2219
  %v2819 = vsel %vm2779, %v2754, %v2221
  %v2820 = vsel %vm2779, %v2755, %v2223
  %v2821 = vsel %vm2779, %v2756, %v2225
  %v2822 = vsel %vm2779, %v2757, %v2227
  %v2823 = vsel %vm2779, %v2758, %v2229
  %v2824 = vsel %vm2779, %v2759, %v2231
  %v2825 = vsel %vm2779, %v2760, %v2233
  %v2826 = vsel %vm2779, %v2761, %v2235
  %v2827 = vsel %vm2779, %v2762, %v2237
  %v2828 = vsel %vm2779, %v2763, %v2239
  %v2829 = vsel %vm2779, %v2764, %v2241
  %v2830 = vsel %vm2779, %v2765, %v2243
  %v2831 = vsel %vm2779, %v2766, %v2245
  %v2832 = vsel %vm2779, %v2767, %v2247
  %v2833 = vsel %vm2779, %v2768, %v2249
  %v2834 = vsel %vm2779, %v2769, %v2251
  %v2835 = vsel %vm2779, %v2770, %v2253
  %v2836 = vsel %vm2779, %v2771, %v2255
  %v2837 = vsel %vm2779, %v2772, %v2257
  %v2838 = vsel %vm2779, %v2773, %v2259
  %v2839 = vsel %vm2779, %v2774, %v2261
  %v2840 = vsel %vm2779, %v2775, %v2263
  %v2841 = vsel %vm2779, %v2776, %v2265
  %v2842 = vsel %vm2779, %v2777, %v2203
  %v2843 = vsel %vm2779, %v2778, %v2205
  %v2845 = vperm.slane %v97, 0
  %vm2847 = vcmask 293888
  %v2849 = vsel %vm2847, %v2780, 0
  %v2852 = vsel %vm2847, %v2781, 0
  %v2855 = vsel %vm2847, %v2782, 0
  %v2858 = vsel %vm2847, %v2783, 0
  %v2861 = vsel %vm2847, %v2784, 0
  %v2864 = vsel %vm2847, %v2785, 0
  %v2867 = vsel %vm2847, %v2786, 0
  %v2870 = vsel %vm2847, %v2787, 0
  %v2873 = vsel %vm2847, %v2788, 0
  %v2876 = vsel %vm2847, %v2789, 0
  %v2879 = vsel %vm2847, %v2790, 0
  %v2882 = vsel %vm2847, %v2791, 0
  %v2885 = vsel %vm2847, %v2792, 0
  %v2888 = vsel %vm2847, %v2793, 0
  %v2891 = vsel %vm2847, %v2794, 0
  %v2894 = vsel %vm2847, %v2795, 0
  %v2897 = vsel %vm2847, %v2796, 0
  %v2900 = vsel %vm2847, %v2797, 0
  %v2903 = vsel %vm2847, %v2798, 0
  %v2906 = vsel %vm2847, %v2799, 0
  %v2909 = vsel %vm2847, %v2800, 0
  %v2912 = vsel %vm2847, %v2801, 0
  %v2915 = vsel %vm2847, %v2802, 0
  %v2918 = vsel %vm2847, %v2803, 0
  %v2921 = vsel %vm2847, %v2804, 0
  %v2924 = vsel %vm2847, %v2805, 0
  %v2927 = vsel %vm2847, %v2806, 0
  %v2930 = vsel %vm2847, %v2807, 0
  %v2933 = vsel %vm2847, %v2808, 0
  %v2936 = vsel %vm2847, %v2809, 0
  %v2939 = vsel %vm2847, %v2810, 0
  %v2942 = vsel %vm2847, %v2811, 0
  %v2945 = vsel %vm2847, %v2812, 0
  %v2948 = vsel %vm2847, %v2813, 0
  %v2951 = vsel %vm2847, %v2814, 0
  %v2954 = vsel %vm2847, %v2815, 0
  %v2957 = vsel %vm2847, %v2816, 0
  %v2960 = vsel %vm2847, %v2817, 0
  %v2963 = vsel %vm2847, %v2818, 0
  %v2966 = vsel %vm2847, %v2819, 0
  %v2969 = vsel %vm2847, %v2820, 0
  %v2972 = vsel %vm2847, %v2821, 0
  %v2975 = vsel %vm2847, %v2822, 0
  %v2978 = vsel %vm2847, %v2823, 0
  %v2981 = vsel %vm2847, %v2824, 0
  %v2984 = vsel %vm2847, %v2825, 0
  %v2987 = vsel %vm2847, %v2826, 0
  %v2990 = vsel %vm2847, %v2827, 0
  %v2993 = vsel %vm2847, %v2828, 0
  %v2996 = vsel %vm2847, %v2829, 0
  %v2999 = vsel %vm2847, %v2830, 0
  %v3002 = vsel %vm2847, %v2831, 0
  %v3005 = vsel %vm2847, %v2832, 0
  %v3008 = vsel %vm2847, %v2833, 0
  %v3011 = vsel %vm2847, %v2834, 0
  %v3014 = vsel %vm2847, %v2835, 0
  %v3017 = vsel %vm2847, %v2836, 0
  %v3020 = vsel %vm2847, %v2837, 0
  %v3023 = vsel %vm2847, %v2838, 0
  %v3026 = vsel %vm2847, %v2839, 0
  %v3029 = vsel %vm2847, %v2840, 0
  %v3032 = vsel %vm2847, %v2841, 0
  %v3035 = vsel %vm2847, %v2842, 0
  %v3038 = vsel %vm2847, %v2843, 0
  %vm3040 = vcmask 1043456
  %v3042 = vsel %vm3040, %v96, 0
  %3044 = vmatpush.msra.mxu0 0.0
  %3045 = vmatpush.msra.mxu0 0.0
  %3046 = vmatpush.msra.mxu0 0.0
  %3047 = vmatpush.msra.mxu0 0.0
  %3048 = vmatpush.msra.mxu0 0.0
  %3049 = vmatpush.msra.mxu0 0.0
  %3050 = vmatpush.msra.mxu0 0.0
  %3051 = vmatpush.msra.mxu0 0.0
  %3052 = vmatpush.msra.mxu0 0.0
  %3053 = vmatpush.msra.mxu0 0.0
  %3054 = vmatpush.msra.mxu0 0.0
  %3055 = vmatpush.msra.mxu0 %v3042
  %3056 = vmatpush.msra.mxu0 %v95
  %3057 = vmatpush.msra.mxu0 %v94
  %3058 = vmatpush.msra.mxu0 %v93
  %3059 = vmatpush.msra.mxu0 %v92
  %3060 = vmatmul.f32.gmra.mxu0 %v2849
  %v3061 = vpop.f32.mrf.mxu0
  %v3062 = vadd.f32 %v2845, %v3061
  %3063 = vmatmul.f32.gmra.mxu0 %v2852
  %v3064 = vpop.f32.mrf.mxu0
  %v3065 = vadd.f32 %v2845, %v3064
  %3066 = vmatmul.f32.gmra.mxu0 %v2855
  %v3067 = vpop.f32.mrf.mxu0
  %v3068 = vadd.f32 %v2845, %v3067
  %3069 = vmatmul.f32.gmra.mxu0 %v2858
  %v3070 = vpop.f32.mrf.mxu0
  %v3071 = vadd.f32 %v2845, %v3070
  %3072 = vmatmul.f32.gmra.mxu0 %v2861
  %v3073 = vpop.f32.mrf.mxu0
  %v3074 = vadd.f32 %v2845, %v3073
  %3075 = vmatmul.f32.gmra.mxu0 %v2864
  %v3076 = vpop.f32.mrf.mxu0
  %v3077 = vadd.f32 %v2845, %v3076
  %3078 = vmatmul.f32.gmra.mxu0 %v2867
  %v3079 = vpop.f32.mrf.mxu0
  %v3080 = vadd.f32 %v2845, %v3079
  %3081 = vmatmul.f32.gmra.mxu0 %v2870
  %v3082 = vpop.f32.mrf.mxu0
  %v3083 = vadd.f32 %v2845, %v3082
  %3084 = vmatmul.f32.gmra.mxu0 %v2873
  %v3085 = vpop.f32.mrf.mxu0
  %v3086 = vadd.f32 %v2845, %v3085
  %3087 = vmatmul.f32.gmra.mxu0 %v2876
  %v3088 = vpop.f32.mrf.mxu0
  %v3089 = vadd.f32 %v2845, %v3088
  %3090 = vmatmul.f32.gmra.mxu0 %v2879
  %v3091 = vpop.f32.mrf.mxu0
  %v3092 = vadd.f32 %v2845, %v3091
  %3093 = vmatmul.f32.gmra.mxu0 %v2882
  %v3094 = vpop.f32.mrf.mxu0
  %v3095 = vadd.f32 %v2845, %v3094
  %3096 = vmatmul.f32.gmra.mxu0 %v2885
  %v3097 = vpop.f32.mrf.mxu0
  %v3098 = vadd.f32 %v2845, %v3097
  %3099 = vmatmul.f32.gmra.mxu0 %v2888
  %v3100 = vpop.f32.mrf.mxu0
  %v3101 = vadd.f32 %v2845, %v3100
  %3102 = vmatmul.f32.gmra.mxu0 %v2891
  %v3103 = vpop.f32.mrf.mxu0
  %v3104 = vadd.f32 %v2845, %v3103
  %3105 = vmatmul.f32.gmra.mxu0 %v2894
  %v3106 = vpop.f32.mrf.mxu0
  %v3107 = vadd.f32 %v2845, %v3106
  %3108 = vmatmul.f32.gmra.mxu0 %v2897
  %v3109 = vpop.f32.mrf.mxu0
  %v3110 = vadd.f32 %v2845, %v3109
  %3111 = vmatmul.f32.gmra.mxu0 %v2900
  %v3112 = vpop.f32.mrf.mxu0
  %v3113 = vadd.f32 %v2845, %v3112
  %3114 = vmatmul.f32.gmra.mxu0 %v2903
  %v3115 = vpop.f32.mrf.mxu0
  %v3116 = vadd.f32 %v2845, %v3115
  %3117 = vmatmul.f32.gmra.mxu0 %v2906
  %v3118 = vpop.f32.mrf.mxu0
  %v3119 = vadd.f32 %v2845, %v3118
  %3120 = vmatmul.f32.gmra.mxu0 %v2909
  %v3121 = vpop.f32.mrf.mxu0
  %v3122 = vadd.f32 %v2845, %v3121
  %3123 = vmatmul.f32.gmra.mxu0 %v2912
  %v3124 = vpop.f32.mrf.mxu0
  %v3125 = vadd.f32 %v2845, %v3124
  %3126 = vmatmul.f32.gmra.mxu0 %v2915
  %v3127 = vpop.f32.mrf.mxu0
  %v3128 = vadd.f32 %v2845, %v3127
  %3129 = vmatmul.f32.gmra.mxu0 %v2918
  %v3130 = vpop.f32.mrf.mxu0
  %v3131 = vadd.f32 %v2845, %v3130
  %3132 = vmatmul.f32.gmra.mxu0 %v2921
  %v3133 = vpop.f32.mrf.mxu0
  %v3134 = vadd.f32 %v2845, %v3133
  %3135 = vmatmul.f32.gmra.mxu0 %v2924
  %v3136 = vpop.f32.mrf.mxu0
  %v3137 = vadd.f32 %v2845, %v3136
  %3138 = vmatmul.f32.gmra.mxu0 %v2927
  %v3139 = vpop.f32.mrf.mxu0
  %v3140 = vadd.f32 %v2845, %v3139
  %3141 = vmatmul.f32.gmra.mxu0 %v2930
  %v3142 = vpop.f32.mrf.mxu0
  %v3143 = vadd.f32 %v2845, %v3142
  %3144 = vmatmul.f32.gmra.mxu0 %v2933
  %v3145 = vpop.f32.mrf.mxu0
  %v3146 = vadd.f32 %v2845, %v3145
  %3147 = vmatmul.f32.gmra.mxu0 %v2936
  %v3148 = vpop.f32.mrf.mxu0
  %v3149 = vadd.f32 %v2845, %v3148
  %3150 = vmatmul.f32.gmra.mxu0 %v2939
  %v3151 = vpop.f32.mrf.mxu0
  %v3152 = vadd.f32 %v2845, %v3151
  %3153 = vmatmul.f32.gmra.mxu0 %v2942
  %v3154 = vpop.f32.mrf.mxu0
  %v3155 = vadd.f32 %v2845, %v3154
  %3156 = vmatmul.f32.gmra.mxu0 %v2945
  %v3157 = vpop.f32.mrf.mxu0
  %v3158 = vadd.f32 %v2845, %v3157
  %3159 = vmatmul.f32.gmra.mxu0 %v2948
  %v3160 = vpop.f32.mrf.mxu0
  %v3161 = vadd.f32 %v2845, %v3160
  %3162 = vmatmul.f32.gmra.mxu0 %v2951
  %v3163 = vpop.f32.mrf.mxu0
  %v3164 = vadd.f32 %v2845, %v3163
  %3165 = vmatmul.f32.gmra.mxu0 %v2954
  %v3166 = vpop.f32.mrf.mxu0
  %v3167 = vadd.f32 %v2845, %v3166
  %3168 = vmatmul.f32.gmra.mxu0 %v2957
  %v3169 = vpop.f32.mrf.mxu0
  %v3170 = vadd.f32 %v2845, %v3169
  %3171 = vmatmul.f32.gmra.mxu0 %v2960
  %v3172 = vpop.f32.mrf.mxu0
  %v3173 = vadd.f32 %v2845, %v3172
  %3174 = vmatmul.f32.gmra.mxu0 %v2963
  %v3175 = vpop.f32.mrf.mxu0
  %v3176 = vadd.f32 %v2845, %v3175
  %3177 = vmatmul.f32.gmra.mxu0 %v2966
  %v3178 = vpop.f32.mrf.mxu0
  %v3179 = vadd.f32 %v2845, %v3178
  %3180 = vmatmul.f32.gmra.mxu0 %v2969
  %v3181 = vpop.f32.mrf.mxu0
  %v3182 = vadd.f32 %v2845, %v3181
  %3183 = vmatmul.f32.gmra.mxu0 %v2972
  %v3184 = vpop.f32.mrf.mxu0
  %v3185 = vadd.f32 %v2845, %v3184
  %3186 = vmatmul.f32.gmra.mxu0 %v2975
  %v3187 = vpop.f32.mrf.mxu0
  %v3188 = vadd.f32 %v2845, %v3187
  %3189 = vmatmul.f32.gmra.mxu0 %v2978
  %v3190 = vpop.f32.mrf.mxu0
  %v3191 = vadd.f32 %v2845, %v3190
  %3192 = vmatmul.f32.gmra.mxu0 %v2981
  %v3193 = vpop.f32.mrf.mxu0
  %v3194 = vadd.f32 %v2845, %v3193
  %3195 = vmatmul.f32.gmra.mxu0 %v2984
  %v3196 = vpop.f32.mrf.mxu0
  %v3197 = vadd.f32 %v2845, %v3196
  %3198 = vmatmul.f32.gmra.mxu0 %v2987
  %v3199 = vpop.f32.mrf.mxu0
  %v3200 = vadd.f32 %v2845, %v3199
  %3201 = vmatmul.f32.gmra.mxu0 %v2990
  %v3202 = vpop.f32.mrf.mxu0
  %v3203 = vadd.f32 %v2845, %v3202
  %3204 = vmatmul.f32.gmra.mxu0 %v2993
  %v3205 = vpop.f32.mrf.mxu0
  %v3206 = vadd.f32 %v2845, %v3205
  %3207 = vmatmul.f32.gmra.mxu0 %v2996
  %v3208 = vpop.f32.mrf.mxu0
  %v3209 = vadd.f32 %v2845, %v3208
  %3210 = vmatmul.f32.gmra.mxu0 %v2999
  %v3211 = vpop.f32.mrf.mxu0
  %v3212 = vadd.f32 %v2845, %v3211
  %3213 = vmatmul.f32.gmra.mxu0 %v3002
  %v3214 = vpop.f32.mrf.mxu0
  %v3215 = vadd.f32 %v2845, %v3214
  %3216 = vmatmul.f32.gmra.mxu0 %v3005
  %v3217 = vpop.f32.mrf.mxu0
  %v3218 = vadd.f32 %v2845, %v3217
  %3219 = vmatmul.f32.gmra.mxu0 %v3008
  %v3220 = vpop.f32.mrf.mxu0
  %v3221 = vadd.f32 %v2845, %v3220
  %3222 = vmatmul.f32.gmra.mxu0 %v3011
  %v3223 = vpop.f32.mrf.mxu0
  %v3224 = vadd.f32 %v2845, %v3223
  %3225 = vmatmul.f32.gmra.mxu0 %v3014
  %v3226 = vpop.f32.mrf.mxu0
  %v3227 = vadd.f32 %v2845, %v3226
  %3228 = vmatmul.f32.gmra.mxu0 %v3017
  %v3229 = vpop.f32.mrf.mxu0
  %v3230 = vadd.f32 %v2845, %v3229
  %3231 = vmatmul.f32.gmra.mxu0 %v3020
  %v3232 = vpop.f32.mrf.mxu0
  %v3233 = vadd.f32 %v2845, %v3232
  %3234 = vmatmul.f32.gmra.mxu0 %v3023
  %v3235 = vpop.f32.mrf.mxu0
  %v3236 = vadd.f32 %v2845, %v3235
  %3237 = vmatmul.f32.gmra.mxu0 %v3026
  %v3238 = vpop.f32.mrf.mxu0
  %v3239 = vadd.f32 %v2845, %v3238
  %3240 = vmatmul.f32.gmra.mxu0 %v3029
  %v3241 = vpop.f32.mrf.mxu0
  %v3242 = vadd.f32 %v2845, %v3241
  %3243 = vmatmul.f32.gmra.mxu0 %v3032
  %v3244 = vpop.f32.mrf.mxu0
  %v3245 = vadd.f32 %v2845, %v3244
  %3246 = vmatmul.f32.gmra.mxu0 %v3035
  %v3247 = vpop.f32.mrf.mxu0
  %v3248 = vadd.f32 %v2845, %v3247
  %3249 = vmatmul.f32.gmra.mxu0 %v3038
  %v3250 = vpop.f32.mrf.mxu0
  %v3251 = vadd.f32 %v2845, %v3250
  %3252 = vdwg.mxu0
  %v3253 = vmax.f32 %v3062, 0.0
  %v3254 = vmax.f32 %v3065, 0.0
  %v3255 = vmax.f32 %v3068, 0.0
  %v3256 = vmax.f32 %v3071, 0.0
  %v3257 = vmax.f32 %v3074, 0.0
  %v3258 = vmax.f32 %v3077, 0.0
  %v3259 = vmax.f32 %v3080, 0.0
  %v3260 = vmax.f32 %v3083, 0.0
  %v3261 = vmax.f32 %v3086, 0.0
  %v3262 = vmax.f32 %v3089, 0.0
  %v3263 = vmax.f32 %v3092, 0.0
  %v3264 = vmax.f32 %v3095, 0.0
  %v3265 = vmax.f32 %v3098, 0.0
  %v3266 = vmax.f32 %v3101, 0.0
  %v3267 = vmax.f32 %v3104, 0.0
  %v3268 = vmax.f32 %v3107, 0.0
  %v3269 = vmax.f32 %v3110, 0.0
  %v3270 = vmax.f32 %v3113, 0.0
  %v3271 = vmax.f32 %v3116, 0.0
  %v3272 = vmax.f32 %v3119, 0.0
  %v3273 = vmax.f32 %v3122, 0.0
  %v3274 = vmax.f32 %v3125, 0.0
  %v3275 = vmax.f32 %v3128, 0.0
  %v3276 = vmax.f32 %v3131, 0.0
  %v3277 = vmax.f32 %v3134, 0.0
  %v3278 = vmax.f32 %v3137, 0.0
  %v3279 = vmax.f32 %v3140, 0.0
  %v3280 = vmax.f32 %v3143, 0.0
  %v3281 = vmax.f32 %v3146, 0.0
  %v3282 = vmax.f32 %v3149, 0.0
  %v3283 = vmax.f32 %v3152, 0.0
  %v3284 = vmax.f32 %v3155, 0.0
  %v3285 = vmax.f32 %v3158, 0.0
  %v3286 = vmax.f32 %v3161, 0.0
  %v3287 = vmax.f32 %v3164, 0.0
  %v3288 = vmax.f32 %v3167, 0.0
  %v3289 = vmax.f32 %v3170, 0.0
  %v3290 = vmax.f32 %v3173, 0.0
  %v3291 = vmax.f32 %v3176, 0.0
  %v3292 = vmax.f32 %v3179, 0.0
  %v3293 = vmax.f32 %v3182, 0.0
  %v3294 = vmax.f32 %v3185, 0.0
  %v3295 = vmax.f32 %v3188, 0.0
  %v3296 = vmax.f32 %v3191, 0.0
  %v3297 = vmax.f32 %v3194, 0.0
  %v3298 = vmax.f32 %v3197, 0.0
  %v3299 = vmax.f32 %v3200, 0.0
  %v3300 = vmax.f32 %v3203, 0.0
  %v3301 = vmax.f32 %v3206, 0.0
  %v3302 = vmax.f32 %v3209, 0.0
  %v3303 = vmax.f32 %v3212, 0.0
  %v3304 = vmax.f32 %v3215, 0.0
  %v3305 = vmax.f32 %v3218, 0.0
  %v3306 = vmax.f32 %v3221, 0.0
  %v3307 = vmax.f32 %v3224, 0.0
  %v3308 = vmax.f32 %v3227, 0.0
  %v3309 = vmax.f32 %v3230, 0.0
  %v3310 = vmax.f32 %v3233, 0.0
  %v3311 = vmax.f32 %v3236, 0.0
  %v3312 = vmax.f32 %v3239, 0.0
  %v3313 = vmax.f32 %v3242, 0.0
  %v3314 = vmax.f32 %v3245, 0.0
  %v3315 = vmax.f32 %v3248, 0.0
  %v3316 = vmax.f32 %v3251, 0.0
  %v3317 = vld [vmem:[%s3] sm:$0xff]
  %v3318 = vld [vmem:[%s3 + $0x8] sm:$0xff]
  %v3319 = vld [vmem:[%s3 + $0x10] sm:$0xff]
  %v3320 = vld [vmem:[%s3 + $0x18] sm:$0xff]
  %v3321 = vld [vmem:[%s3 + $0x20] sm:$0xff]
  %v3322 = vld [vmem:[%s3 + $0x28] sm:$0xff]
  %v3323 = vld [vmem:[%s3 + $0x30] sm:$0xff]
  %v3324 = vld [vmem:[%s3 + $0x38] sm:$0xff]
  %v3325 = vld [vmem:[%s3 + $0x40] sm:$0xff]
  %v3326 = vld [vmem:[%s4] sm:$0x1]
  %v3391 = vrot.slane %v3253, 7
  %v3392 = vrot.slane %v3254, 7
  %v3393 = vsel %vm163, %v3391, %v3392
  %v3394 = vrot.slane %v3255, 7
  %v3395 = vrot.slane %v3256, 7
  %v3396 = vsel %vm163, %v3394, %v3395
  %v3397 = vrot.slane %v3257, 7
  %v3398 = vrot.slane %v3258, 7
  %v3399 = vsel %vm163, %v3397, %v3398
  %v3400 = vrot.slane %v3259, 7
  %v3401 = vrot.slane %v3260, 7
  %v3402 = vsel %vm163, %v3400, %v3401
  %v3403 = vrot.slane %v3261, 7
  %v3404 = vrot.slane %v3262, 7
  %v3405 = vsel %vm163, %v3403, %v3404
  %v3406 = vrot.slane %v3263, 7
  %v3407 = vrot.slane %v3264, 7
  %v3408 = vsel %vm163, %v3406, %v3407
  %v3409 = vrot.slane %v3265, 7
  %v3410 = vrot.slane %v3266, 7
  %v3411 = vsel %vm163, %v3409, %v3410
  %v3412 = vrot.slane %v3267, 7
  %v3413 = vrot.slane %v3268, 7
  %v3414 = vsel %vm163, %v3412, %v3413
  %v3415 = vrot.slane %v3269, 7
  %v3416 = vrot.slane %v3270, 7
  %v3417 = vsel %vm163, %v3415, %v3416
  %v3418 = vrot.slane %v3271, 7
  %v3419 = vrot.slane %v3272, 7
  %v3420 = vsel %vm163, %v3418, %v3419
  %v3421 = vrot.slane %v3273, 7
  %v3422 = vrot.slane %v3274, 7
  %v3423 = vsel %vm163, %v3421, %v3422
  %v3424 = vrot.slane %v3275, 7
  %v3425 = vrot.slane %v3276, 7
  %v3426 = vsel %vm163, %v3424, %v3425
  %v3427 = vrot.slane %v3277, 7
  %v3428 = vrot.slane %v3278, 7
  %v3429 = vsel %vm163, %v3427, %v3428
  %v3430 = vrot.slane %v3279, 7
  %v3431 = vrot.slane %v3280, 7
  %v3432 = vsel %vm163, %v3430, %v3431
  %v3433 = vrot.slane %v3281, 7
  %v3434 = vrot.slane %v3282, 7
  %v3435 = vsel %vm163, %v3433, %v3434
  %v3436 = vrot.slane %v3283, 7
  %v3437 = vrot.slane %v3284, 7
  %v3438 = vsel %vm163, %v3436, %v3437
  %v3439 = vrot.slane %v3285, 7
  %v3440 = vrot.slane %v3286, 7
  %v3441 = vsel %vm163, %v3439, %v3440
  %v3442 = vrot.slane %v3287, 7
  %v3443 = vrot.slane %v3288, 7
  %v3444 = vsel %vm163, %v3442, %v3443
  %v3445 = vrot.slane %v3289, 7
  %v3446 = vrot.slane %v3290, 7
  %v3447 = vsel %vm163, %v3445, %v3446
  %v3448 = vrot.slane %v3291, 7
  %v3449 = vrot.slane %v3292, 7
  %v3450 = vsel %vm163, %v3448, %v3449
  %v3451 = vrot.slane %v3293, 7
  %v3452 = vrot.slane %v3294, 7
  %v3453 = vsel %vm163, %v3451, %v3452
  %v3454 = vrot.slane %v3295, 7
  %v3455 = vrot.slane %v3296, 7
  %v3456 = vsel %vm163, %v3454, %v3455
  %v3457 = vrot.slane %v3297, 7
  %v3458 = vrot.slane %v3298, 7
  %v3459 = vsel %vm163, %v3457, %v3458
  %v3460 = vrot.slane %v3299, 7
  %v3461 = vrot.slane %v3300, 7
  %v3462 = vsel %vm163, %v3460, %v3461
  %v3463 = vrot.slane %v3301, 7
  %v3464 = vrot.slane %v3302, 7
  %v3465 = vsel %vm163, %v3463, %v3464
  %v3466 = vrot.slane %v3303, 7
  %v3467 = vrot.slane %v3304, 7
  %v3468 = vsel %vm163, %v3466, %v3467
  %v3469 = vrot.slane %v3305, 7
  %v3470 = vrot.slane %v3306, 7
  %v3471 = vsel %vm163, %v3469, %v3470
  %v3472 = vrot.slane %v3307, 7
  %v3473 = vrot.slane %v3308, 7
  %v3474 = vsel %vm163, %v3472, %v3473
  %v3475 = vrot.slane %v3309, 7
  %v3476 = vrot.slane %v3310, 7
  %v3477 = vsel %vm163, %v3475, %v3476
  %v3478 = vrot.slane %v3311, 7
  %v3479 = vrot.slane %v3312, 7
  %v3480 = vsel %vm163, %v3478, %v3479
  %v3481 = vrot.slane %v3313, 7
  %v3482 = vrot.slane %v3314, 7
  %v3483 = vsel %vm163, %v3481, %v3482
  %v3484 = vrot.slane %v3315, 7
  %v3485 = vrot.slane %v3316, 7
  %v3486 = vsel %vm163, %v3484, %v3485
  %v3581 = vsel %vm163, 0.0, %v3391
  %v3582 = vsel %vm163, 0.0, %v3394
  %v3583 = vsel %vm163, 0.0, %v3397
  %v3584 = vsel %vm163, 0.0, %v3400
  %v3585 = vsel %vm163, 0.0, %v3403
  %v3586 = vsel %vm163, 0.0, %v3406
  %v3587 = vsel %vm163, 0.0, %v3409
  %v3588 = vsel %vm163, 0.0, %v3412
  %v3589 = vsel %vm163, 0.0, %v3415
  %v3590 = vsel %vm163, 0.0, %v3418
  %v3591 = vsel %vm163, 0.0, %v3421
  %v3592 = vsel %vm163, 0.0, %v3424
  %v3593 = vsel %vm163, 0.0, %v3427
  %v3594 = vsel %vm163, 0.0, %v3430
  %v3595 = vsel %vm163, 0.0, %v3433
  %v3596 = vsel %vm163, 0.0, %v3436
  %v3597 = vsel %vm163, 0.0, %v3439
  %v3598 = vsel %vm163, 0.0, %v3442
  %v3599 = vsel %vm163, 0.0, %v3445
  %v3600 = vsel %vm163, 0.0, %v3448
  %v3601 = vsel %vm163, 0.0, %v3451
  %v3602 = vsel %vm163, 0.0, %v3454
  %v3603 = vsel %vm163, 0.0, %v3457
  %v3604 = vsel %vm163, 0.0, %v3460
  %v3605 = vsel %vm163, 0.0, %v3463
  %v3606 = vsel %vm163, 0.0, %v3466
  %v3607 = vsel %vm163, 0.0, %v3469
  %v3608 = vsel %vm163, 0.0, %v3472
  %v3609 = vsel %vm163, 0.0, %v3475
  %v3610 = vsel %vm163, 0.0, %v3478
  %v3611 = vsel %vm163, 0.0, %v3481
  %v3612 = vsel %vm163, 0.0, %v3484
  %v3613 = vsel %vm163, %v3392, 0.0
  %v3614 = vsel %vm163, %v3395, 0.0
  %v3615 = vsel %vm163, %v3398, 0.0
  %v3616 = vsel %vm163, %v3401, 0.0
  %v3617 = vsel %vm163, %v3404, 0.0
  %v3618 = vsel %vm163, %v3407, 0.0
  %v3619 = vsel %vm163, %v3410, 0.0
  %v3620 = vsel %vm163, %v3413, 0.0
  %v3621 = vsel %vm163, %v3416, 0.0
  %v3622 = vsel %vm163, %v3419, 0.0
  %v3623 = vsel %vm163, %v3422, 0.0
  %v3624 = vsel %vm163, %v3425, 0.0
  %v3625 = vsel %vm163, %v3428, 0.0
  %v3626 = vsel %vm163, %v3431, 0.0
  %v3627 = vsel %vm163, %v3434, 0.0
  %v3628 = vsel %vm163, %v3437, 0.0
  %v3629 = vsel %vm163, %v3440, 0.0
  %v3630 = vsel %vm163, %v3443, 0.0
  %v3631 = vsel %vm163, %v3446, 0.0
  %v3632 = vsel %vm163, %v3449, 0.0
  %v3633 = vsel %vm163, %v3452, 0.0
  %v3634 = vsel %vm163, %v3455, 0.0
  %v3635 = vsel %vm163, %v3458, 0.0
  %v3636 = vsel %vm163, %v3461, 0.0
  %v3637 = vsel %vm163, %v3464, 0.0
  %v3638 = vsel %vm163, %v3467, 0.0
  %v3639 = vsel %vm163, %v3470, 0.0
  %v3640 = vsel %vm163, %v3473, 0.0
  %v3641 = vsel %vm163, %v3476, 0.0
  %v3642 = vsel %vm163, %v3479, 0.0
  %v3643 = vsel %vm163, %v3482, 0.0
  %v3644 = vsel %vm163, %v3485, 0.0
  %v3705 = vrot.slane %v3581, 1
  %v3706 = vrot.slane %v3393, 1
  %v3707 = vsel %vm486, %v3705, %v3706
  %v3708 = vrot.slane %v3613, 1
  %v3709 = vsel %vm486, %v3706, %v3708
  %v3710 = vrot.slane %v3582, 1
  %v3711 = vrot.slane %v3396, 1
  %v3712 = vsel %vm486, %v3710, %v3711
  %v3713 = vrot.slane %v3614, 1
  %v3714 = vsel %vm486, %v3711, %v3713
  %v3715 = vrot.slane %v3583, 1
  %v3716 = vrot.slane %v3399, 1
  %v3717 = vsel %vm486, %v3715, %v3716
  %v3718 = vrot.slane %v3615, 1
  %v3719 = vsel %vm486, %v3716, %v3718
  %v3720 = vrot.slane %v3584, 1
  %v3721 = vrot.slane %v3402, 1
  %v3722 = vsel %vm486, %v3720, %v3721
  %v3723 = vrot.slane %v3616, 1
  %v3724 = vsel %vm486, %v3721, %v3723
  %v3725 = vrot.slane %v3585, 1
  %v3726 = vrot.slane %v3405, 1
  %v3727 = vsel %vm486, %v3725, %v3726
  %v3728 = vrot.slane %v3617, 1
  %v3729 = vsel %vm486, %v3726, %v3728
  %v3730 = vrot.slane %v3586, 1
  %v3731 = vrot.slane %v3408, 1
  %v3732 = vsel %vm486, %v3730, %v3731
  %v3733 = vrot.slane %v3618, 1
  %v3734 = vsel %vm486, %v3731, %v3733
  %v3735 = vrot.slane %v3587, 1
  %v3736 = vrot.slane %v3411, 1
  %v3737 = vsel %vm486, %v3735, %v3736
  %v3738 = vrot.slane %v3619, 1
  %v3739 = vsel %vm486, %v3736, %v3738
  %v3740 = vrot.slane %v3588, 1
  %v3741 = vrot.slane %v3414, 1
  %v3742 = vsel %vm486, %v3740, %v3741
  %v3743 = vrot.slane %v3620, 1
  %v3744 = vsel %vm486, %v3741, %v3743
  %v3745 = vrot.slane %v3589, 1
  %v3746 = vrot.slane %v3417, 1
  %v3747 = vsel %vm486, %v3745, %v3746
  %v3748 = vrot.slane %v3621, 1
  %v3749 = vsel %vm486, %v3746, %v3748
  %v3750 = vrot.slane %v3590, 1
  %v3751 = vrot.slane %v3420, 1
  %v3752 = vsel %vm486, %v3750, %v3751
  %v3753 = vrot.slane %v3622, 1
  %v3754 = vsel %vm486, %v3751, %v3753
  %v3755 = vrot.slane %v3591, 1
  %v3756 = vrot.slane %v3423, 1
  %v3757 = vsel %vm486, %v3755, %v3756
  %v3758 = vrot.slane %v3623, 1
  %v3759 = vsel %vm486, %v3756, %v3758
  %v3760 = vrot.slane %v3592, 1
  %v3761 = vrot.slane %v3426, 1
  %v3762 = vsel %vm486, %v3760, %v3761
  %v3763 = vrot.slane %v3624, 1
  %v3764 = vsel %vm486, %v3761, %v3763
  %v3765 = vrot.slane %v3593, 1
  %v3766 = vrot.slane %v3429, 1
  %v3767 = vsel %vm486, %v3765, %v3766
  %v3768 = vrot.slane %v3625, 1
  %v3769 = vsel %vm486, %v3766, %v3768
  %v3770 = vrot.slane %v3594, 1
  %v3771 = vrot.slane %v3432, 1
  %v3772 = vsel %vm486, %v3770, %v3771
  %v3773 = vrot.slane %v3626, 1
  %v3774 = vsel %vm486, %v3771, %v3773
  %v3775 = vrot.slane %v3595, 1
  %v3776 = vrot.slane %v3435, 1
  %v3777 = vsel %vm486, %v3775, %v3776
  %v3778 = vrot.slane %v3627, 1
  %v3779 = vsel %vm486, %v3776, %v3778
  %v3780 = vrot.slane %v3597, 1
  %v3781 = vrot.slane %v3441, 1
  %v3782 = vsel %vm486, %v3780, %v3781
  %v3783 = vrot.slane %v3629, 1
  %v3784 = vsel %vm486, %v3781, %v3783
  %v3785 = vrot.slane %v3598, 1
  %v3786 = vrot.slane %v3444, 1
  %v3787 = vsel %vm486, %v3785, %v3786
  %v3788 = vrot.slane %v3630, 1
  %v3789 = vsel %vm486, %v3786, %v3788
  %v3790 = vrot.slane %v3599, 1
  %v3791 = vrot.slane %v3447, 1
  %v3792 = vsel %vm486, %v3790, %v3791
  %v3793 = vrot.slane %v3631, 1
  %v3794 = vsel %vm486, %v3791, %v3793
  %v3795 = vrot.slane %v3600, 1
  %v3796 = vrot.slane %v3450, 1
  %v3797 = vsel %vm486, %v3795, %v3796
  %v3798 = vrot.slane %v3632, 1
  %v3799 = vsel %vm486, %v3796, %v3798
  %v3800 = vrot.slane %v3601, 1
  %v3801 = vrot.slane %v3453, 1
  %v3802 = vsel %vm486, %v3800, %v3801
  %v3803 = vrot.slane %v3633, 1
  %v3804 = vsel %vm486, %v3801, %v3803
  %v3805 = vrot.slane %v3602, 1
  %v3806 = vrot.slane %v3456, 1
  %v3807 = vsel %vm486, %v3805, %v3806
  %v3808 = vrot.slane %v3634, 1
  %v3809 = vsel %vm486, %v3806, %v3808
  %v3810 = vrot.slane %v3603, 1
  %v3811 = vrot.slane %v3459, 1
  %v3812 = vsel %vm486, %v3810, %v3811
  %v3813 = vrot.slane %v3635, 1
  %v3814 = vsel %vm486, %v3811, %v3813
  %v3815 = vrot.slane %v3604, 1
  %v3816 = vrot.slane %v3462, 1
  %v3817 = vsel %vm486, %v3815, %v3816
  %v3818 = vrot.slane %v3636, 1
  %v3819 = vsel %vm486, %v3816, %v3818
  %v3820 = vrot.slane %v3605, 1
  %v3821 = vrot.slane %v3465, 1
  %v3822 = vsel %vm486, %v3820, %v3821
  %v3823 = vrot.slane %v3637, 1
  %v3824 = vsel %vm486, %v3821, %v3823
  %v3825 = vrot.slane %v3606, 1
  %v3826 = vrot.slane %v3468, 1
  %v3827 = vsel %vm486, %v3825, %v3826
  %v3828 = vrot.slane %v3638, 1
  %v3829 = vsel %vm486, %v3826, %v3828
  %v3830 = vrot.slane %v3607, 1
  %v3831 = vrot.slane %v3471, 1
  %v3832 = vsel %vm486, %v3830, %v3831
  %v3833 = vrot.slane %v3639, 1
  %v3834 = vsel %vm486, %v3831, %v3833
  %v3835 = vrot.slane %v3608, 1
  %v3836 = vrot.slane %v3474, 1
  %v3837 = vsel %vm486, %v3835, %v3836
  %v3838 = vrot.slane %v3640, 1
  %v3839 = vsel %vm486, %v3836, %v3838
  %v3840 = vrot.slane %v3609, 1
  %v3841 = vrot.slane %v3477, 1
  %v3842 = vsel %vm486, %v3840, %v3841
  %v3843 = vrot.slane %v3641, 1
  %v3844 = vsel %vm486, %v3841, %v3843
  %v3845 = vrot.slane %v3610, 1
  %v3846 = vrot.slane %v3480, 1
  %v3847 = vsel %vm486, %v3845, %v3846
  %v3848 = vrot.slane %v3642, 1
  %v3849 = vsel %vm486, %v3846, %v3848
  %v3850 = vrot.slane %v3611, 1
  %v3851 = vrot.slane %v3483, 1
  %v3852 = vsel %vm486, %v3850, %v3851
  %v3853 = vrot.slane %v3643, 1
  %v3854 = vsel %vm486, %v3851, %v3853
  %3855 = vrot.lane.b32.xlu0 %v489, 8
  %v3856 = vpop.permute.xlu0 %3855
  %3857 = vrot.lane.b32.xlu0 %v491, 8
  %v3858 = vpop.permute.xlu0 %3857
  %3859 = vrot.lane.b32.xlu0 %v3707, 8
  %v3860 = vpop.permute.xlu0 %3859
  %3861 = vrot.lane.b32.xlu0 %v3709, 8
  %v3862 = vpop.permute.xlu0 %3861
  %3863 = vrot.lane.b32.xlu0 %v3712, 8
  %v3864 = vpop.permute.xlu0 %3863
  %3865 = vrot.lane.b32.xlu0 %v3714, 8
  %v3866 = vpop.permute.xlu0 %3865
  %3867 = vrot.lane.b32.xlu0 %v3717, 8
  %v3868 = vpop.permute.xlu0 %3867
  %3869 = vrot.lane.b32.xlu0 %v3719, 8
  %v3870 = vpop.permute.xlu0 %3869
  %3871 = vrot.lane.b32.xlu0 %v3722, 8
  %v3872 = vpop.permute.xlu0 %3871
  %3873 = vrot.lane.b32.xlu0 %v3724, 8
  %v3874 = vpop.permute.xlu0 %3873
  %3875 = vrot.lane.b32.xlu0 %v3727, 8
  %v3876 = vpop.permute.xlu0 %3875
  %3877 = vrot.lane.b32.xlu0 %v3729, 8
  %v3878 = vpop.permute.xlu0 %3877
  %3879 = vrot.lane.b32.xlu0 %v3732, 8
  %v3880 = vpop.permute.xlu0 %3879
  %3881 = vrot.lane.b32.xlu0 %v3734, 8
  %v3882 = vpop.permute.xlu0 %3881
  %3883 = vrot.lane.b32.xlu0 %v3737, 8
  %v3884 = vpop.permute.xlu0 %3883
  %3885 = vrot.lane.b32.xlu0 %v3739, 8
  %v3886 = vpop.permute.xlu0 %3885
  %3887 = vrot.lane.b32.xlu0 %v3742, 8
  %v3888 = vpop.permute.xlu0 %3887
  %3889 = vrot.lane.b32.xlu0 %v3744, 8
  %v3890 = vpop.permute.xlu0 %3889
  %3891 = vrot.lane.b32.xlu0 %v3747, 8
  %v3892 = vpop.permute.xlu0 %3891
  %3893 = vrot.lane.b32.xlu0 %v3749, 8
  %v3894 = vpop.permute.xlu0 %3893
  %3895 = vrot.lane.b32.xlu0 %v3752, 8
  %v3896 = vpop.permute.xlu0 %3895
  %3897 = vrot.lane.b32.xlu0 %v3754, 8
  %v3898 = vpop.permute.xlu0 %3897
  %3899 = vrot.lane.b32.xlu0 %v3757, 8
  %v3900 = vpop.permute.xlu0 %3899
  %3901 = vrot.lane.b32.xlu0 %v3759, 8
  %v3902 = vpop.permute.xlu0 %3901
  %3903 = vrot.lane.b32.xlu0 %v3762, 8
  %v3904 = vpop.permute.xlu0 %3903
  %3905 = vrot.lane.b32.xlu0 %v3764, 8
  %v3906 = vpop.permute.xlu0 %3905
  %3907 = vrot.lane.b32.xlu0 %v3767, 8
  %v3908 = vpop.permute.xlu0 %3907
  %3909 = vrot.lane.b32.xlu0 %v3769, 8
  %v3910 = vpop.permute.xlu0 %3909
  %3911 = vrot.lane.b32.xlu0 %v3772, 8
  %v3912 = vpop.permute.xlu0 %3911
  %3913 = vrot.lane.b32.xlu0 %v3774, 8
  %v3914 = vpop.permute.xlu0 %3913
  %3915 = vrot.lane.b32.xlu0 %v3777, 8
  %v3916 = vpop.permute.xlu0 %3915
  %3917 = vrot.lane.b32.xlu0 %v3779, 8
  %v3918 = vpop.permute.xlu0 %3917
  %3919 = vrot.lane.b32.xlu0 %v3782, 8
  %v3920 = vpop.permute.xlu0 %3919
  %3921 = vrot.lane.b32.xlu0 %v3784, 8
  %v3922 = vpop.permute.xlu0 %3921
  %3923 = vrot.lane.b32.xlu0 %v3787, 8
  %v3924 = vpop.permute.xlu0 %3923
  %3925 = vrot.lane.b32.xlu0 %v3789, 8
  %v3926 = vpop.permute.xlu0 %3925
  %3927 = vrot.lane.b32.xlu0 %v3792, 8
  %v3928 = vpop.permute.xlu0 %3927
  %3929 = vrot.lane.b32.xlu0 %v3794, 8
  %v3930 = vpop.permute.xlu0 %3929
  %3931 = vrot.lane.b32.xlu0 %v3797, 8
  %v3932 = vpop.permute.xlu0 %3931
  %3933 = vrot.lane.b32.xlu0 %v3799, 8
  %v3934 = vpop.permute.xlu0 %3933
  %3935 = vrot.lane.b32.xlu0 %v3802, 8
  %v3936 = vpop.permute.xlu0 %3935
  %3937 = vrot.lane.b32.xlu0 %v3804, 8
  %v3938 = vpop.permute.xlu0 %3937
  %3939 = vrot.lane.b32.xlu0 %v3807, 8
  %v3940 = vpop.permute.xlu0 %3939
  %3941 = vrot.lane.b32.xlu0 %v3809, 8
  %v3942 = vpop.permute.xlu0 %3941
  %3943 = vrot.lane.b32.xlu0 %v3812, 8
  %v3944 = vpop.permute.xlu0 %3943
  %3945 = vrot.lane.b32.xlu0 %v3814, 8
  %v3946 = vpop.permute.xlu0 %3945
  %3947 = vrot.lane.b32.xlu0 %v3817, 8
  %v3948 = vpop.permute.xlu0 %3947
  %3949 = vrot.lane.b32.xlu0 %v3819, 8
  %v3950 = vpop.permute.xlu0 %3949
  %3951 = vrot.lane.b32.xlu0 %v3822, 8
  %v3952 = vpop.permute.xlu0 %3951
  %3953 = vrot.lane.b32.xlu0 %v3824, 8
  %v3954 = vpop.permute.xlu0 %3953
  %3955 = vrot.lane.b32.xlu0 %v3827, 8
  %v3956 = vpop.permute.xlu0 %3955
  %3957 = vrot.lane.b32.xlu0 %v3829, 8
  %v3958 = vpop.permute.xlu0 %3957
  %3959 = vrot.lane.b32.xlu0 %v3832, 8
  %v3960 = vpop.permute.xlu0 %3959
  %3961 = vrot.lane.b32.xlu0 %v3834, 8
  %v3962 = vpop.permute.xlu0 %3961
  %3963 = vrot.lane.b32.xlu0 %v3837, 8
  %v3964 = vpop.permute.xlu0 %3963
  %3965 = vrot.lane.b32.xlu0 %v3839, 8
  %v3966 = vpop.permute.xlu0 %3965
  %3967 = vrot.lane.b32.xlu0 %v3842, 8
  %v3968 = vpop.permute.xlu0 %3967
  %3969 = vrot.lane.b32.xlu0 %v3844, 8
  %v3970 = vpop.permute.xlu0 %3969
  %3971 = vrot.lane.b32.xlu0 %v3847, 8
  %v3972 = vpop.permute.xlu0 %3971
  %3973 = vrot.lane.b32.xlu0 %v3849, 8
  %v3974 = vpop.permute.xlu0 %3973
  %3975 = vrot.lane.b32.xlu0 %v3852, 8
  %v3976 = vpop.permute.xlu0 %3975
  %3977 = vrot.lane.b32.xlu0 %v3854, 8
  %v3978 = vpop.permute.xlu0 %3977
  %v4041 = vrot.slane %v3581, 2
  %v4042 = vrot.slane %v3393, 2
  %v4043 = vsel %vm828, %v4041, %v4042
  %v4044 = vrot.slane %v3613, 2
  %v4045 = vsel %vm828, %v4042, %v4044
  %v4046 = vrot.slane %v3582, 2
  %v4047 = vrot.slane %v3396, 2
  %v4048 = vsel %vm828, %v4046, %v4047
  %v4049 = vrot.slane %v3614, 2
  %v4050 = vsel %vm828, %v4047, %v4049
  %v4051 = vrot.slane %v3583, 2
  %v4052 = vrot.slane %v3399, 2
  %v4053 = vsel %vm828, %v4051, %v4052
  %v4054 = vrot.slane %v3615, 2
  %v4055 = vsel %vm828, %v4052, %v4054
  %v4056 = vrot.slane %v3584, 2
  %v4057 = vrot.slane %v3402, 2
  %v4058 = vsel %vm828, %v4056, %v4057
  %v4059 = vrot.slane %v3616, 2
  %v4060 = vsel %vm828, %v4057, %v4059
  %v4061 = vrot.slane %v3585, 2
  %v4062 = vrot.slane %v3405, 2
  %v4063 = vsel %vm828, %v4061, %v4062
  %v4064 = vrot.slane %v3617, 2
  %v4065 = vsel %vm828, %v4062, %v4064
  %v4066 = vrot.slane %v3586, 2
  %v4067 = vrot.slane %v3408, 2
  %v4068 = vsel %vm828, %v4066, %v4067
  %v4069 = vrot.slane %v3618, 2
  %v4070 = vsel %vm828, %v4067, %v4069
  %v4071 = vrot.slane %v3587, 2
  %v4072 = vrot.slane %v3411, 2
  %v4073 = vsel %vm828, %v4071, %v4072
  %v4074 = vrot.slane %v3619, 2
  %v4075 = vsel %vm828, %v4072, %v4074
  %v4076 = vrot.slane %v3588, 2
  %v4077 = vrot.slane %v3414, 2
  %v4078 = vsel %vm828, %v4076, %v4077
  %v4079 = vrot.slane %v3620, 2
  %v4080 = vsel %vm828, %v4077, %v4079
  %v4081 = vrot.slane %v3589, 2
  %v4082 = vrot.slane %v3417, 2
  %v4083 = vsel %vm828, %v4081, %v4082
  %v4084 = vrot.slane %v3621, 2
  %v4085 = vsel %vm828, %v4082, %v4084
  %v4086 = vrot.slane %v3590, 2
  %v4087 = vrot.slane %v3420, 2
  %v4088 = vsel %vm828, %v4086, %v4087
  %v4089 = vrot.slane %v3622, 2
  %v4090 = vsel %vm828, %v4087, %v4089
  %v4091 = vrot.slane %v3591, 2
  %v4092 = vrot.slane %v3423, 2
  %v4093 = vsel %vm828, %v4091, %v4092
  %v4094 = vrot.slane %v3623, 2
  %v4095 = vsel %vm828, %v4092, %v4094
  %v4096 = vrot.slane %v3592, 2
  %v4097 = vrot.slane %v3426, 2
  %v4098 = vsel %vm828, %v4096, %v4097
  %v4099 = vrot.slane %v3624, 2
  %v4100 = vsel %vm828, %v4097, %v4099
  %v4101 = vrot.slane %v3593, 2
  %v4102 = vrot.slane %v3429, 2
  %v4103 = vsel %vm828, %v4101, %v4102
  %v4104 = vrot.slane %v3625, 2
  %v4105 = vsel %vm828, %v4102, %v4104
  %v4106 = vrot.slane %v3594, 2
  %v4107 = vrot.slane %v3432, 2
  %v4108 = vsel %vm828, %v4106, %v4107
  %v4109 = vrot.slane %v3626, 2
  %v4110 = vsel %vm828, %v4107, %v4109
  %v4111 = vrot.slane %v3595, 2
  %v4112 = vrot.slane %v3435, 2
  %v4113 = vsel %vm828, %v4111, %v4112
  %v4114 = vrot.slane %v3627, 2
  %v4115 = vsel %vm828, %v4112, %v4114
  %v4116 = vrot.slane %v3597, 2
  %v4117 = vrot.slane %v3441, 2
  %v4118 = vsel %vm828, %v4116, %v4117
  %v4119 = vrot.slane %v3629, 2
  %v4120 = vsel %vm828, %v4117, %v4119
  %v4121 = vrot.slane %v3598, 2
  %v4122 = vrot.slane %v3444, 2
  %v4123 = vsel %vm828, %v4121, %v4122
  %v4124 = vrot.slane %v3630, 2
  %v4125 = vsel %vm828, %v4122, %v4124
  %v4126 = vrot.slane %v3599, 2
  %v4127 = vrot.slane %v3447, 2
  %v4128 = vsel %vm828, %v4126, %v4127
  %v4129 = vrot.slane %v3631, 2
  %v4130 = vsel %vm828, %v4127, %v4129
  %v4131 = vrot.slane %v3600, 2
  %v4132 = vrot.slane %v3450, 2
  %v4133 = vsel %vm828, %v4131, %v4132
  %v4134 = vrot.slane %v3632, 2
  %v4135 = vsel %vm828, %v4132, %v4134
  %v4136 = vrot.slane %v3601, 2
  %v4137 = vrot.slane %v3453, 2
  %v4138 = vsel %vm828, %v4136, %v4137
  %v4139 = vrot.slane %v3633, 2
  %v4140 = vsel %vm828, %v4137, %v4139
  %v4141 = vrot.slane %v3602, 2
  %v4142 = vrot.slane %v3456, 2
  %v4143 = vsel %vm828, %v4141, %v4142
  %v4144 = vrot.slane %v3634, 2
  %v4145 = vsel %vm828, %v4142, %v4144
  %v4146 = vrot.slane %v3603, 2
  %v4147 = vrot.slane %v3459, 2
  %v4148 = vsel %vm828, %v4146, %v4147
  %v4149 = vrot.slane %v3635, 2
  %v4150 = vsel %vm828, %v4147, %v4149
  %v4151 = vrot.slane %v3604, 2
  %v4152 = vrot.slane %v3462, 2
  %v4153 = vsel %vm828, %v4151, %v4152
  %v4154 = vrot.slane %v3636, 2
  %v4155 = vsel %vm828, %v4152, %v4154
  %v4156 = vrot.slane %v3605, 2
  %v4157 = vrot.slane %v3465, 2
  %v4158 = vsel %vm828, %v4156, %v4157
  %v4159 = vrot.slane %v3637, 2
  %v4160 = vsel %vm828, %v4157, %v4159
  %v4161 = vrot.slane %v3606, 2
  %v4162 = vrot.slane %v3468, 2
  %v4163 = vsel %vm828, %v4161, %v4162
  %v4164 = vrot.slane %v3638, 2
  %v4165 = vsel %vm828, %v4162, %v4164
  %v4166 = vrot.slane %v3607, 2
  %v4167 = vrot.slane %v3471, 2
  %v4168 = vsel %vm828, %v4166, %v4167
  %v4169 = vrot.slane %v3639, 2
  %v4170 = vsel %vm828, %v4167, %v4169
  %v4171 = vrot.slane %v3608, 2
  %v4172 = vrot.slane %v3474, 2
  %v4173 = vsel %vm828, %v4171, %v4172
  %v4174 = vrot.slane %v3640, 2
  %v4175 = vsel %vm828, %v4172, %v4174
  %v4176 = vrot.slane %v3609, 2
  %v4177 = vrot.slane %v3477, 2
  %v4178 = vsel %vm828, %v4176, %v4177
  %v4179 = vrot.slane %v3641, 2
  %v4180 = vsel %vm828, %v4177, %v4179
  %v4181 = vrot.slane %v3610, 2
  %v4182 = vrot.slane %v3480, 2
  %v4183 = vsel %vm828, %v4181, %v4182
  %v4184 = vrot.slane %v3642, 2
  %v4185 = vsel %vm828, %v4182, %v4184
  %v4186 = vrot.slane %v3611, 2
  %v4187 = vrot.slane %v3483, 2
  %v4188 = vsel %vm828, %v4186, %v4187
  %v4189 = vrot.slane %v3643, 2
  %v4190 = vsel %vm828, %v4187, %v4189
  %4191 = vrot.lane.b32.xlu0 %v831, 16
  %v4192 = vpop.permute.xlu0 %4191
  %4193 = vrot.lane.b32.xlu0 %v833, 16
  %v4194 = vpop.permute.xlu0 %4193
  %4195 = vrot.lane.b32.xlu0 %v4043, 16
  %v4196 = vpop.permute.xlu0 %4195
  %4197 = vrot.lane.b32.xlu0 %v4045, 16
  %v4198 = vpop.permute.xlu0 %4197
  %4199 = vrot.lane.b32.xlu0 %v4048, 16
  %v4200 = vpop.permute.xlu0 %4199
  %4201 = vrot.lane.b32.xlu0 %v4050, 16
  %v4202 = vpop.permute.xlu0 %4201
  %4203 = vrot.lane.b32.xlu0 %v4053, 16
  %v4204 = vpop.permute.xlu0 %4203
  %4205 = vrot.lane.b32.xlu0 %v4055, 16
  %v4206 = vpop.permute.xlu0 %4205
  %4207 = vrot.lane.b32.xlu0 %v4058, 16
  %v4208 = vpop.permute.xlu0 %4207
  %4209 = vrot.lane.b32.xlu0 %v4060, 16
  %v4210 = vpop.permute.xlu0 %4209
  %4211 = vrot.lane.b32.xlu0 %v4063, 16
  %v4212 = vpop.permute.xlu0 %4211
  %4213 = vrot.lane.b32.xlu0 %v4065, 16
  %v4214 = vpop.permute.xlu0 %4213
  %4215 = vrot.lane.b32.xlu0 %v4068, 16
  %v4216 = vpop.permute.xlu0 %4215
  %4217 = vrot.lane.b32.xlu0 %v4070, 16
  %v4218 = vpop.permute.xlu0 %4217
  %4219 = vrot.lane.b32.xlu0 %v4073, 16
  %v4220 = vpop.permute.xlu0 %4219
  %4221 = vrot.lane.b32.xlu0 %v4075, 16
  %v4222 = vpop.permute.xlu0 %4221
  %4223 = vrot.lane.b32.xlu0 %v4078, 16
  %v4224 = vpop.permute.xlu0 %4223
  %4225 = vrot.lane.b32.xlu0 %v4080, 16
  %v4226 = vpop.permute.xlu0 %4225
  %4227 = vrot.lane.b32.xlu0 %v4083, 16
  %v4228 = vpop.permute.xlu0 %4227
  %4229 = vrot.lane.b32.xlu0 %v4085, 16
  %v4230 = vpop.permute.xlu0 %4229
  %4231 = vrot.lane.b32.xlu0 %v4088, 16
  %v4232 = vpop.permute.xlu0 %4231
  %4233 = vrot.lane.b32.xlu0 %v4090, 16
  %v4234 = vpop.permute.xlu0 %4233
  %4235 = vrot.lane.b32.xlu0 %v4093, 16
  %v4236 = vpop.permute.xlu0 %4235
  %4237 = vrot.lane.b32.xlu0 %v4095, 16
  %v4238 = vpop.permute.xlu0 %4237
  %4239 = vrot.lane.b32.xlu0 %v4098, 16
  %v4240 = vpop.permute.xlu0 %4239
  %4241 = vrot.lane.b32.xlu0 %v4100, 16
  %v4242 = vpop.permute.xlu0 %4241
  %4243 = vrot.lane.b32.xlu0 %v4103, 16
  %v4244 = vpop.permute.xlu0 %4243
  %4245 = vrot.lane.b32.xlu0 %v4105, 16
  %v4246 = vpop.permute.xlu0 %4245
  %4247 = vrot.lane.b32.xlu0 %v4108, 16
  %v4248 = vpop.permute.xlu0 %4247
  %4249 = vrot.lane.b32.xlu0 %v4110, 16
  %v4250 = vpop.permute.xlu0 %4249
  %4251 = vrot.lane.b32.xlu0 %v4113, 16
  %v4252 = vpop.permute.xlu0 %4251
  %4253 = vrot.lane.b32.xlu0 %v4115, 16
  %v4254 = vpop.permute.xlu0 %4253
  %4255 = vrot.lane.b32.xlu0 %v4118, 16
  %v4256 = vpop.permute.xlu0 %4255
  %4257 = vrot.lane.b32.xlu0 %v4120, 16
  %v4258 = vpop.permute.xlu0 %4257
  %4259 = vrot.lane.b32.xlu0 %v4123, 16
  %v4260 = vpop.permute.xlu0 %4259
  %4261 = vrot.lane.b32.xlu0 %v4125, 16
  %v4262 = vpop.permute.xlu0 %4261
  %4263 = vrot.lane.b32.xlu0 %v4128, 16
  %v4264 = vpop.permute.xlu0 %4263
  %4265 = vrot.lane.b32.xlu0 %v4130, 16
  %v4266 = vpop.permute.xlu0 %4265
  %4267 = vrot.lane.b32.xlu0 %v4133, 16
  %v4268 = vpop.permute.xlu0 %4267
  %4269 = vrot.lane.b32.xlu0 %v4135, 16
  %v4270 = vpop.permute.xlu0 %4269
  %4271 = vrot.lane.b32.xlu0 %v4138, 16
  %v4272 = vpop.permute.xlu0 %4271
  %4273 = vrot.lane.b32.xlu0 %v4140, 16
  %v4274 = vpop.permute.xlu0 %4273
  %4275 = vrot.lane.b32.xlu0 %v4143, 16
  %v4276 = vpop.permute.xlu0 %4275
  %4277 = vrot.lane.b32.xlu0 %v4145, 16
  %v4278 = vpop.permute.xlu0 %4277
  %4279 = vrot.lane.b32.xlu0 %v4148, 16
  %v4280 = vpop.permute.xlu0 %4279
  %4281 = vrot.lane.b32.xlu0 %v4150, 16
  %v4282 = vpop.permute.xlu0 %4281
  %4283 = vrot.lane.b32.xlu0 %v4153, 16
  %v4284 = vpop.permute.xlu0 %4283
  %4285 = vrot.lane.b32.xlu0 %v4155, 16
  %v4286 = vpop.permute.xlu0 %4285
  %4287 = vrot.lane.b32.xlu0 %v4158, 16
  %v4288 = vpop.permute.xlu0 %4287
  %4289 = vrot.lane.b32.xlu0 %v4160, 16
  %v4290 = vpop.permute.xlu0 %4289
  %4291 = vrot.lane.b32.xlu0 %v4163, 16
  %v4292 = vpop.permute.xlu0 %4291
  %4293 = vrot.lane.b32.xlu0 %v4165, 16
  %v4294 = vpop.permute.xlu0 %4293
  %4295 = vrot.lane.b32.xlu0 %v4168, 16
  %v4296 = vpop.permute.xlu0 %4295
  %4297 = vrot.lane.b32.xlu0 %v4170, 16
  %v4298 = vpop.permute.xlu0 %4297
  %4299 = vrot.lane.b32.xlu0 %v4173, 16
  %v4300 = vpop.permute.xlu0 %4299
  %4301 = vrot.lane.b32.xlu0 %v4175, 16
  %v4302 = vpop.permute.xlu0 %4301
  %4303 = vrot.lane.b32.xlu0 %v4178, 16
  %v4304 = vpop.permute.xlu0 %4303
  %4305 = vrot.lane.b32.xlu0 %v4180, 16
  %v4306 = vpop.permute.xlu0 %4305
  %4307 = vrot.lane.b32.xlu0 %v4183, 16
  %v4308 = vpop.permute.xlu0 %4307
  %4309 = vrot.lane.b32.xlu0 %v4185, 16
  %v4310 = vpop.permute.xlu0 %4309
  %4311 = vrot.lane.b32.xlu0 %v4188, 16
  %v4312 = vpop.permute.xlu0 %4311
  %4313 = vrot.lane.b32.xlu0 %v4190, 16
  %v4314 = vpop.permute.xlu0 %4313
  %4379 = vrot.lane.b32.xlu0 %v3581, 24
  %v4380 = vpop.permute.xlu0 %4379
  %4381 = vrot.lane.b32.xlu0 %v3393, 24
  %v4382 = vpop.permute.xlu0 %4381
  %4383 = vrot.lane.b32.xlu0 %v3582, 24
  %v4384 = vpop.permute.xlu0 %4383
  %4385 = vrot.lane.b32.xlu0 %v3396, 24
  %v4386 = vpop.permute.xlu0 %4385
  %4387 = vrot.lane.b32.xlu0 %v3583, 24
  %v4388 = vpop.permute.xlu0 %4387
  %4389 = vrot.lane.b32.xlu0 %v3399, 24
  %v4390 = vpop.permute.xlu0 %4389
  %4391 = vrot.lane.b32.xlu0 %v3584, 24
  %v4392 = vpop.permute.xlu0 %4391
  %4393 = vrot.lane.b32.xlu0 %v3402, 24
  %v4394 = vpop.permute.xlu0 %4393
  %4395 = vrot.lane.b32.xlu0 %v3585, 24
  %v4396 = vpop.permute.xlu0 %4395
  %4397 = vrot.lane.b32.xlu0 %v3405, 24
  %v4398 = vpop.permute.xlu0 %4397
  %4399 = vrot.lane.b32.xlu0 %v3586, 24
  %v4400 = vpop.permute.xlu0 %4399
  %4401 = vrot.lane.b32.xlu0 %v3408, 24
  %v4402 = vpop.permute.xlu0 %4401
  %4403 = vrot.lane.b32.xlu0 %v3587, 24
  %v4404 = vpop.permute.xlu0 %4403
  %4405 = vrot.lane.b32.xlu0 %v3411, 24
  %v4406 = vpop.permute.xlu0 %4405
  %4407 = vrot.lane.b32.xlu0 %v3588, 24
  %v4408 = vpop.permute.xlu0 %4407
  %4409 = vrot.lane.b32.xlu0 %v3414, 24
  %v4410 = vpop.permute.xlu0 %4409
  %4411 = vrot.lane.b32.xlu0 %v3589, 24
  %v4412 = vpop.permute.xlu0 %4411
  %4413 = vrot.lane.b32.xlu0 %v3417, 24
  %v4414 = vpop.permute.xlu0 %4413
  %4415 = vrot.lane.b32.xlu0 %v3590, 24
  %v4416 = vpop.permute.xlu0 %4415
  %4417 = vrot.lane.b32.xlu0 %v3420, 24
  %v4418 = vpop.permute.xlu0 %4417
  %4419 = vrot.lane.b32.xlu0 %v3591, 24
  %v4420 = vpop.permute.xlu0 %4419
  %4421 = vrot.lane.b32.xlu0 %v3423, 24
  %v4422 = vpop.permute.xlu0 %4421
  %4423 = vrot.lane.b32.xlu0 %v3592, 24
  %v4424 = vpop.permute.xlu0 %4423
  %4425 = vrot.lane.b32.xlu0 %v3426, 24
  %v4426 = vpop.permute.xlu0 %4425
  %4427 = vrot.lane.b32.xlu0 %v3593, 24
  %v4428 = vpop.permute.xlu0 %4427
  %4429 = vrot.lane.b32.xlu0 %v3429, 24
  %v4430 = vpop.permute.xlu0 %4429
  %4431 = vrot.lane.b32.xlu0 %v3594, 24
  %v4432 = vpop.permute.xlu0 %4431
  %4433 = vrot.lane.b32.xlu0 %v3432, 24
  %v4434 = vpop.permute.xlu0 %4433
  %4435 = vrot.lane.b32.xlu0 %v3595, 24
  %v4436 = vpop.permute.xlu0 %4435
  %4437 = vrot.lane.b32.xlu0 %v3435, 24
  %v4438 = vpop.permute.xlu0 %4437
  %4439 = vrot.lane.b32.xlu0 %v3596, 24
  %v4440 = vpop.permute.xlu0 %4439
  %4441 = vrot.lane.b32.xlu0 %v3438, 24
  %v4442 = vpop.permute.xlu0 %4441
  %4443 = vrot.lane.b32.xlu0 %v3597, 24
  %v4444 = vpop.permute.xlu0 %4443
  %4445 = vrot.lane.b32.xlu0 %v3441, 24
  %v4446 = vpop.permute.xlu0 %4445
  %4447 = vrot.lane.b32.xlu0 %v3598, 24
  %v4448 = vpop.permute.xlu0 %4447
  %4449 = vrot.lane.b32.xlu0 %v3444, 24
  %v4450 = vpop.permute.xlu0 %4449
  %4451 = vrot.lane.b32.xlu0 %v3599, 24
  %v4452 = vpop.permute.xlu0 %4451
  %4453 = vrot.lane.b32.xlu0 %v3447, 24
  %v4454 = vpop.permute.xlu0 %4453
  %4455 = vrot.lane.b32.xlu0 %v3600, 24
  %v4456 = vpop.permute.xlu0 %4455
  %4457 = vrot.lane.b32.xlu0 %v3450, 24
  %v4458 = vpop.permute.xlu0 %4457
  %4459 = vrot.lane.b32.xlu0 %v3601, 24
  %v4460 = vpop.permute.xlu0 %4459
  %4461 = vrot.lane.b32.xlu0 %v3453, 24
  %v4462 = vpop.permute.xlu0 %4461
  %4463 = vrot.lane.b32.xlu0 %v3602, 24
  %v4464 = vpop.permute.xlu0 %4463
  %4465 = vrot.lane.b32.xlu0 %v3456, 24
  %v4466 = vpop.permute.xlu0 %4465
  %4467 = vrot.lane.b32.xlu0 %v3603, 24
  %v4468 = vpop.permute.xlu0 %4467
  %4469 = vrot.lane.b32.xlu0 %v3459, 24
  %v4470 = vpop.permute.xlu0 %4469
  %4471 = vrot.lane.b32.xlu0 %v3604, 24
  %v4472 = vpop.permute.xlu0 %4471
  %4473 = vrot.lane.b32.xlu0 %v3462, 24
  %v4474 = vpop.permute.xlu0 %4473
  %4475 = vrot.lane.b32.xlu0 %v3605, 24
  %v4476 = vpop.permute.xlu0 %4475
  %4477 = vrot.lane.b32.xlu0 %v3465, 24
  %v4478 = vpop.permute.xlu0 %4477
  %4479 = vrot.lane.b32.xlu0 %v3606, 24
  %v4480 = vpop.permute.xlu0 %4479
  %4481 = vrot.lane.b32.xlu0 %v3468, 24
  %v4482 = vpop.permute.xlu0 %4481
  %4483 = vrot.lane.b32.xlu0 %v3607, 24
  %v4484 = vpop.permute.xlu0 %4483
  %4485 = vrot.lane.b32.xlu0 %v3471, 24
  %v4486 = vpop.permute.xlu0 %4485
  %4487 = vrot.lane.b32.xlu0 %v3608, 24
  %v4488 = vpop.permute.xlu0 %4487
  %4489 = vrot.lane.b32.xlu0 %v3474, 24
  %v4490 = vpop.permute.xlu0 %4489
  %4491 = vrot.lane.b32.xlu0 %v3609, 24
  %v4492 = vpop.permute.xlu0 %4491
  %4493 = vrot.lane.b32.xlu0 %v3477, 24
  %v4494 = vpop.permute.xlu0 %4493
  %4495 = vrot.lane.b32.xlu0 %v3610, 24
  %v4496 = vpop.permute.xlu0 %4495
  %4497 = vrot.lane.b32.xlu0 %v3480, 24
  %v4498 = vpop.permute.xlu0 %4497
  %4499 = vrot.lane.b32.xlu0 %v3611, 24
  %v4500 = vpop.permute.xlu0 %4499
  %4501 = vrot.lane.b32.xlu0 %v3483, 24
  %v4502 = vpop.permute.xlu0 %4501
  %4503 = vrot.lane.b32.xlu0 %v3612, 24
  %v4504 = vpop.permute.xlu0 %4503
  %4505 = vrot.lane.b32.xlu0 %v3486, 24
  %v4506 = vpop.permute.xlu0 %4505
  %v4573 = vrot.slane %v3596, 1
  %v4574 = vrot.slane %v3438, 1
  %v4575 = vsel %vm486, %v4573, %v4574
  %v4576 = vrot.slane %v3628, 1
  %v4577 = vsel %vm486, %v4574, %v4576
  %v4578 = vrot.slane %v3612, 1
  %v4579 = vrot.slane %v3486, 1
  %v4580 = vsel %vm486, %v4578, %v4579
  %v4581 = vrot.slane %v3644, 1
  %v4582 = vsel %vm486, %v4579, %v4581
  %4583 = vrot.lane.b32.xlu0 %v3707, 32
  %v4584 = vpop.permute.xlu0 %4583
  %4585 = vrot.lane.b32.xlu0 %v3709, 32
  %v4586 = vpop.permute.xlu0 %4585
  %4587 = vrot.lane.b32.xlu0 %v3712, 32
  %v4588 = vpop.permute.xlu0 %4587
  %4589 = vrot.lane.b32.xlu0 %v3714, 32
  %v4590 = vpop.permute.xlu0 %4589
  %4591 = vrot.lane.b32.xlu0 %v3717, 32
  %v4592 = vpop.permute.xlu0 %4591
  %4593 = vrot.lane.b32.xlu0 %v3719, 32
  %v4594 = vpop.permute.xlu0 %4593
  %4595 = vrot.lane.b32.xlu0 %v3722, 32
  %v4596 = vpop.permute.xlu0 %4595
  %4597 = vrot.lane.b32.xlu0 %v3724, 32
  %v4598 = vpop.permute.xlu0 %4597
  %4599 = vrot.lane.b32.xlu0 %v3727, 32
  %v4600 = vpop.permute.xlu0 %4599
  %4601 = vrot.lane.b32.xlu0 %v3729, 32
  %v4602 = vpop.permute.xlu0 %4601
  %4603 = vrot.lane.b32.xlu0 %v3732, 32
  %v4604 = vpop.permute.xlu0 %4603
  %4605 = vrot.lane.b32.xlu0 %v3734, 32
  %v4606 = vpop.permute.xlu0 %4605
  %4607 = vrot.lane.b32.xlu0 %v3737, 32
  %v4608 = vpop.permute.xlu0 %4607
  %4609 = vrot.lane.b32.xlu0 %v3739, 32
  %v4610 = vpop.permute.xlu0 %4609
  %4611 = vrot.lane.b32.xlu0 %v3742, 32
  %v4612 = vpop.permute.xlu0 %4611
  %4613 = vrot.lane.b32.xlu0 %v3744, 32
  %v4614 = vpop.permute.xlu0 %4613
  %4615 = vrot.lane.b32.xlu0 %v3747, 32
  %v4616 = vpop.permute.xlu0 %4615
  %4617 = vrot.lane.b32.xlu0 %v3749, 32
  %v4618 = vpop.permute.xlu0 %4617
  %4619 = vrot.lane.b32.xlu0 %v3752, 32
  %v4620 = vpop.permute.xlu0 %4619
  %4621 = vrot.lane.b32.xlu0 %v3754, 32
  %v4622 = vpop.permute.xlu0 %4621
  %4623 = vrot.lane.b32.xlu0 %v3757, 32
  %v4624 = vpop.permute.xlu0 %4623
  %4625 = vrot.lane.b32.xlu0 %v3759, 32
  %v4626 = vpop.permute.xlu0 %4625
  %4627 = vrot.lane.b32.xlu0 %v3762, 32
  %v4628 = vpop.permute.xlu0 %4627
  %4629 = vrot.lane.b32.xlu0 %v3764, 32
  %v4630 = vpop.permute.xlu0 %4629
  %4631 = vrot.lane.b32.xlu0 %v3767, 32
  %v4632 = vpop.permute.xlu0 %4631
  %4633 = vrot.lane.b32.xlu0 %v3769, 32
  %v4634 = vpop.permute.xlu0 %4633
  %4635 = vrot.lane.b32.xlu0 %v3772, 32
  %v4636 = vpop.permute.xlu0 %4635
  %4637 = vrot.lane.b32.xlu0 %v3774, 32
  %v4638 = vpop.permute.xlu0 %4637
  %4639 = vrot.lane.b32.xlu0 %v3777, 32
  %v4640 = vpop.permute.xlu0 %4639
  %4641 = vrot.lane.b32.xlu0 %v3779, 32
  %v4642 = vpop.permute.xlu0 %4641
  %4643 = vrot.lane.b32.xlu0 %v4575, 32
  %v4644 = vpop.permute.xlu0 %4643
  %4645 = vrot.lane.b32.xlu0 %v4577, 32
  %v4646 = vpop.permute.xlu0 %4645
  %4647 = vrot.lane.b32.xlu0 %v3782, 32
  %v4648 = vpop.permute.xlu0 %4647
  %4649 = vrot.lane.b32.xlu0 %v3784, 32
  %v4650 = vpop.permute.xlu0 %4649
  %4651 = vrot.lane.b32.xlu0 %v3787, 32
  %v4652 = vpop.permute.xlu0 %4651
  %4653 = vrot.lane.b32.xlu0 %v3789, 32
  %v4654 = vpop.permute.xlu0 %4653
  %4655 = vrot.lane.b32.xlu0 %v3792, 32
  %v4656 = vpop.permute.xlu0 %4655
  %4657 = vrot.lane.b32.xlu0 %v3794, 32
  %v4658 = vpop.permute.xlu0 %4657
  %4659 = vrot.lane.b32.xlu0 %v3797, 32
  %v4660 = vpop.permute.xlu0 %4659
  %4661 = vrot.lane.b32.xlu0 %v3799, 32
  %v4662 = vpop.permute.xlu0 %4661
  %4663 = vrot.lane.b32.xlu0 %v3802, 32
  %v4664 = vpop.permute.xlu0 %4663
  %4665 = vrot.lane.b32.xlu0 %v3804, 32
  %v4666 = vpop.permute.xlu0 %4665
  %4667 = vrot.lane.b32.xlu0 %v3807, 32
  %v4668 = vpop.permute.xlu0 %4667
  %4669 = vrot.lane.b32.xlu0 %v3809, 32
  %v4670 = vpop.permute.xlu0 %4669
  %4671 = vrot.lane.b32.xlu0 %v3812, 32
  %v4672 = vpop.permute.xlu0 %4671
  %4673 = vrot.lane.b32.xlu0 %v3814, 32
  %v4674 = vpop.permute.xlu0 %4673
  %4675 = vrot.lane.b32.xlu0 %v3817, 32
  %v4676 = vpop.permute.xlu0 %4675
  %4677 = vrot.lane.b32.xlu0 %v3819, 32
  %v4678 = vpop.permute.xlu0 %4677
  %4679 = vrot.lane.b32.xlu0 %v3822, 32
  %v4680 = vpop.permute.xlu0 %4679
  %4681 = vrot.lane.b32.xlu0 %v3824, 32
  %v4682 = vpop.permute.xlu0 %4681
  %4683 = vrot.lane.b32.xlu0 %v3827, 32
  %v4684 = vpop.permute.xlu0 %4683
  %4685 = vrot.lane.b32.xlu0 %v3829, 32
  %v4686 = vpop.permute.xlu0 %4685
  %4687 = vrot.lane.b32.xlu0 %v3832, 32
  %v4688 = vpop.permute.xlu0 %4687
  %4689 = vrot.lane.b32.xlu0 %v3834, 32
  %v4690 = vpop.permute.xlu0 %4689
  %4691 = vrot.lane.b32.xlu0 %v3837, 32
  %v4692 = vpop.permute.xlu0 %4691
  %4693 = vrot.lane.b32.xlu0 %v3839, 32
  %v4694 = vpop.permute.xlu0 %4693
  %4695 = vrot.lane.b32.xlu0 %v3842, 32
  %v4696 = vpop.permute.xlu0 %4695
  %4697 = vrot.lane.b32.xlu0 %v3844, 32
  %v4698 = vpop.permute.xlu0 %4697
  %4699 = vrot.lane.b32.xlu0 %v3847, 32
  %v4700 = vpop.permute.xlu0 %4699
  %4701 = vrot.lane.b32.xlu0 %v3849, 32
  %v4702 = vpop.permute.xlu0 %4701
  %4703 = vrot.lane.b32.xlu0 %v3852, 32
  %v4704 = vpop.permute.xlu0 %4703
  %4705 = vrot.lane.b32.xlu0 %v3854, 32
  %v4706 = vpop.permute.xlu0 %4705
  %4707 = vrot.lane.b32.xlu0 %v4580, 32
  %v4708 = vpop.permute.xlu0 %4707
  %4709 = vrot.lane.b32.xlu0 %v4582, 32
  %v4710 = vpop.permute.xlu0 %4709
  %v4775 = vrot.slane %v3596, 2
  %v4776 = vrot.slane %v3438, 2
  %v4777 = vsel %vm828, %v4775, %v4776
  %v4778 = vrot.slane %v3628, 2
  %v4779 = vsel %vm828, %v4776, %v4778
  %v4780 = vrot.slane %v3612, 2
  %v4781 = vrot.slane %v3486, 2
  %v4782 = vsel %vm828, %v4780, %v4781
  %v4783 = vrot.slane %v3644, 2
  %v4784 = vsel %vm828, %v4781, %v4783
  %4785 = vrot.lane.b32.xlu0 %v4043, 40
  %v4786 = vpop.permute.xlu0 %4785
  %4787 = vrot.lane.b32.xlu0 %v4045, 40
  %v4788 = vpop.permute.xlu0 %4787
  %4789 = vrot.lane.b32.xlu0 %v4048, 40
  %v4790 = vpop.permute.xlu0 %4789
  %4791 = vrot.lane.b32.xlu0 %v4050, 40
  %v4792 = vpop.permute.xlu0 %4791
  %4793 = vrot.lane.b32.xlu0 %v4053, 40
  %v4794 = vpop.permute.xlu0 %4793
  %4795 = vrot.lane.b32.xlu0 %v4055, 40
  %v4796 = vpop.permute.xlu0 %4795
  %4797 = vrot.lane.b32.xlu0 %v4058, 40
  %v4798 = vpop.permute.xlu0 %4797
  %4799 = vrot.lane.b32.xlu0 %v4060, 40
  %v4800 = vpop.permute.xlu0 %4799
  %4801 = vrot.lane.b32.xlu0 %v4063, 40
  %v4802 = vpop.permute.xlu0 %4801
  %4803 = vrot.lane.b32.xlu0 %v4065, 40
  %v4804 = vpop.permute.xlu0 %4803
  %4805 = vrot.lane.b32.xlu0 %v4068, 40
  %v4806 = vpop.permute.xlu0 %4805
  %4807 = vrot.lane.b32.xlu0 %v4070, 40
  %v4808 = vpop.permute.xlu0 %4807
  %4809 = vrot.lane.b32.xlu0 %v4073, 40
  %v4810 = vpop.permute.xlu0 %4809
  %4811 = vrot.lane.b32.xlu0 %v4075, 40
  %v4812 = vpop.permute.xlu0 %4811
  %4813 = vrot.lane.b32.xlu0 %v4078, 40
  %v4814 = vpop.permute.xlu0 %4813
  %4815 = vrot.lane.b32.xlu0 %v4080, 40
  %v4816 = vpop.permute.xlu0 %4815
  %4817 = vrot.lane.b32.xlu0 %v4083, 40
  %v4818 = vpop.permute.xlu0 %4817
  %4819 = vrot.lane.b32.xlu0 %v4085, 40
  %v4820 = vpop.permute.xlu0 %4819
  %4821 = vrot.lane.b32.xlu0 %v4088, 40
  %v4822 = vpop.permute.xlu0 %4821
  %4823 = vrot.lane.b32.xlu0 %v4090, 40
  %v4824 = vpop.permute.xlu0 %4823
  %4825 = vrot.lane.b32.xlu0 %v4093, 40
  %v4826 = vpop.permute.xlu0 %4825
  %4827 = vrot.lane.b32.xlu0 %v4095, 40
  %v4828 = vpop.permute.xlu0 %4827
  %4829 = vrot.lane.b32.xlu0 %v4098, 40
  %v4830 = vpop.permute.xlu0 %4829
  %4831 = vrot.lane.b32.xlu0 %v4100, 40
  %v4832 = vpop.permute.xlu0 %4831
  %4833 = vrot.lane.b32.xlu0 %v4103, 40
  %v4834 = vpop.permute.xlu0 %4833
  %4835 = vrot.lane.b32.xlu0 %v4105, 40
  %v4836 = vpop.permute.xlu0 %4835
  %4837 = vrot.lane.b32.xlu0 %v4108, 40
  %v4838 = vpop.permute.xlu0 %4837
  %4839 = vrot.lane.b32.xlu0 %v4110, 40
  %v4840 = vpop.permute.xlu0 %4839
  %4841 = vrot.lane.b32.xlu0 %v4113, 40
  %v4842 = vpop.permute.xlu0 %4841
  %4843 = vrot.lane.b32.xlu0 %v4115, 40
  %v4844 = vpop.permute.xlu0 %4843
  %4845 = vrot.lane.b32.xlu0 %v4777, 40
  %v4846 = vpop.permute.xlu0 %4845
  %4847 = vrot.lane.b32.xlu0 %v4779, 40
  %v4848 = vpop.permute.xlu0 %4847
  %4849 = vrot.lane.b32.xlu0 %v4118, 40
  %v4850 = vpop.permute.xlu0 %4849
  %4851 = vrot.lane.b32.xlu0 %v4120, 40
  %v4852 = vpop.permute.xlu0 %4851
  %4853 = vrot.lane.b32.xlu0 %v4123, 40
  %v4854 = vpop.permute.xlu0 %4853
  %4855 = vrot.lane.b32.xlu0 %v4125, 40
  %v4856 = vpop.permute.xlu0 %4855
  %4857 = vrot.lane.b32.xlu0 %v4128, 40
  %v4858 = vpop.permute.xlu0 %4857
  %4859 = vrot.lane.b32.xlu0 %v4130, 40
  %v4860 = vpop.permute.xlu0 %4859
  %4861 = vrot.lane.b32.xlu0 %v4133, 40
  %v4862 = vpop.permute.xlu0 %4861
  %4863 = vrot.lane.b32.xlu0 %v4135, 40
  %v4864 = vpop.permute.xlu0 %4863
  %4865 = vrot.lane.b32.xlu0 %v4138, 40
  %v4866 = vpop.permute.xlu0 %4865
  %4867 = vrot.lane.b32.xlu0 %v4140, 40
  %v4868 = vpop.permute.xlu0 %4867
  %4869 = vrot.lane.b32.xlu0 %v4143, 40
  %v4870 = vpop.permute.xlu0 %4869
  %4871 = vrot.lane.b32.xlu0 %v4145, 40
  %v4872 = vpop.permute.xlu0 %4871
  %4873 = vrot.lane.b32.xlu0 %v4148, 40
  %v4874 = vpop.permute.xlu0 %4873
  %4875 = vrot.lane.b32.xlu0 %v4150, 40
  %v4876 = vpop.permute.xlu0 %4875
  %4877 = vrot.lane.b32.xlu0 %v4153, 40
  %v4878 = vpop.permute.xlu0 %4877
  %4879 = vrot.lane.b32.xlu0 %v4155, 40
  %v4880 = vpop.permute.xlu0 %4879
  %4881 = vrot.lane.b32.xlu0 %v4158, 40
  %v4882 = vpop.permute.xlu0 %4881
  %4883 = vrot.lane.b32.xlu0 %v4160, 40
  %v4884 = vpop.permute.xlu0 %4883
  %4885 = vrot.lane.b32.xlu0 %v4163, 40
  %v4886 = vpop.permute.xlu0 %4885
  %4887 = vrot.lane.b32.xlu0 %v4165, 40
  %v4888 = vpop.permute.xlu0 %4887
  %4889 = vrot.lane.b32.xlu0 %v4168, 40
  %v4890 = vpop.permute.xlu0 %4889
  %4891 = vrot.lane.b32.xlu0 %v4170, 40
  %v4892 = vpop.permute.xlu0 %4891
  %4893 = vrot.lane.b32.xlu0 %v4173, 40
  %v4894 = vpop.permute.xlu0 %4893
  %4895 = vrot.lane.b32.xlu0 %v4175, 40
  %v4896 = vpop.permute.xlu0 %4895
  %4897 = vrot.lane.b32.xlu0 %v4178, 40
  %v4898 = vpop.permute.xlu0 %4897
  %4899 = vrot.lane.b32.xlu0 %v4180, 40
  %v4900 = vpop.permute.xlu0 %4899
  %4901 = vrot.lane.b32.xlu0 %v4183, 40
  %v4902 = vpop.permute.xlu0 %4901
  %4903 = vrot.lane.b32.xlu0 %v4185, 40
  %v4904 = vpop.permute.xlu0 %4903
  %4905 = vrot.lane.b32.xlu0 %v4188, 40
  %v4906 = vpop.permute.xlu0 %4905
  %4907 = vrot.lane.b32.xlu0 %v4190, 40
  %v4908 = vpop.permute.xlu0 %4907
  %4909 = vrot.lane.b32.xlu0 %v4782, 40
  %v4910 = vpop.permute.xlu0 %4909
  %4911 = vrot.lane.b32.xlu0 %v4784, 40
  %v4912 = vpop.permute.xlu0 %4911
  %4977 = vrot.lane.b32.xlu0 %v3582, 48
  %v4978 = vpop.permute.xlu0 %4977
  %4979 = vrot.lane.b32.xlu0 %v3396, 48
  %v4980 = vpop.permute.xlu0 %4979
  %4981 = vrot.lane.b32.xlu0 %v3583, 48
  %v4982 = vpop.permute.xlu0 %4981
  %4983 = vrot.lane.b32.xlu0 %v3399, 48
  %v4984 = vpop.permute.xlu0 %4983
  %4985 = vrot.lane.b32.xlu0 %v3584, 48
  %v4986 = vpop.permute.xlu0 %4985
  %4987 = vrot.lane.b32.xlu0 %v3402, 48
  %v4988 = vpop.permute.xlu0 %4987
  %4989 = vrot.lane.b32.xlu0 %v3585, 48
  %v4990 = vpop.permute.xlu0 %4989
  %4991 = vrot.lane.b32.xlu0 %v3405, 48
  %v4992 = vpop.permute.xlu0 %4991
  %4993 = vrot.lane.b32.xlu0 %v3586, 48
  %v4994 = vpop.permute.xlu0 %4993
  %4995 = vrot.lane.b32.xlu0 %v3408, 48
  %v4996 = vpop.permute.xlu0 %4995
  %4997 = vrot.lane.b32.xlu0 %v3587, 48
  %v4998 = vpop.permute.xlu0 %4997
  %4999 = vrot.lane.b32.xlu0 %v3411, 48
  %v5000 = vpop.permute.xlu0 %4999
  %5001 = vrot.lane.b32.xlu0 %v3588, 48
  %v5002 = vpop.permute.xlu0 %5001
  %5003 = vrot.lane.b32.xlu0 %v3414, 48
  %v5004 = vpop.permute.xlu0 %5003
  %5005 = vrot.lane.b32.xlu0 %v3589, 48
  %v5006 = vpop.permute.xlu0 %5005
  %5007 = vrot.lane.b32.xlu0 %v3417, 48
  %v5008 = vpop.permute.xlu0 %5007
  %5009 = vrot.lane.b32.xlu0 %v3590, 48
  %v5010 = vpop.permute.xlu0 %5009
  %5011 = vrot.lane.b32.xlu0 %v3420, 48
  %v5012 = vpop.permute.xlu0 %5011
  %5013 = vrot.lane.b32.xlu0 %v3591, 48
  %v5014 = vpop.permute.xlu0 %5013
  %5015 = vrot.lane.b32.xlu0 %v3423, 48
  %v5016 = vpop.permute.xlu0 %5015
  %5017 = vrot.lane.b32.xlu0 %v3592, 48
  %v5018 = vpop.permute.xlu0 %5017
  %5019 = vrot.lane.b32.xlu0 %v3426, 48
  %v5020 = vpop.permute.xlu0 %5019
  %5021 = vrot.lane.b32.xlu0 %v3593, 48
  %v5022 = vpop.permute.xlu0 %5021
  %5023 = vrot.lane.b32.xlu0 %v3429, 48
  %v5024 = vpop.permute.xlu0 %5023
  %5025 = vrot.lane.b32.xlu0 %v3594, 48
  %v5026 = vpop.permute.xlu0 %5025
  %5027 = vrot.lane.b32.xlu0 %v3432, 48
  %v5028 = vpop.permute.xlu0 %5027
  %5029 = vrot.lane.b32.xlu0 %v3595, 48
  %v5030 = vpop.permute.xlu0 %5029
  %5031 = vrot.lane.b32.xlu0 %v3435, 48
  %v5032 = vpop.permute.xlu0 %5031
  %5033 = vrot.lane.b32.xlu0 %v3596, 48
  %v5034 = vpop.permute.xlu0 %5033
  %5035 = vrot.lane.b32.xlu0 %v3438, 48
  %v5036 = vpop.permute.xlu0 %5035
  %5037 = vrot.lane.b32.xlu0 %v358, 48
  %v5038 = vpop.permute.xlu0 %5037
  %5039 = vrot.lane.b32.xlu0 %v165, 48
  %v5040 = vpop.permute.xlu0 %5039
  %5041 = vrot.lane.b32.xlu0 %v3598, 48
  %v5042 = vpop.permute.xlu0 %5041
  %5043 = vrot.lane.b32.xlu0 %v3444, 48
  %v5044 = vpop.permute.xlu0 %5043
  %5045 = vrot.lane.b32.xlu0 %v3599, 48
  %v5046 = vpop.permute.xlu0 %5045
  %5047 = vrot.lane.b32.xlu0 %v3447, 48
  %v5048 = vpop.permute.xlu0 %5047
  %5049 = vrot.lane.b32.xlu0 %v3600, 48
  %v5050 = vpop.permute.xlu0 %5049
  %5051 = vrot.lane.b32.xlu0 %v3450, 48
  %v5052 = vpop.permute.xlu0 %5051
  %5053 = vrot.lane.b32.xlu0 %v3601, 48
  %v5054 = vpop.permute.xlu0 %5053
  %5055 = vrot.lane.b32.xlu0 %v3453, 48
  %v5056 = vpop.permute.xlu0 %5055
  %5057 = vrot.lane.b32.xlu0 %v3602, 48
  %v5058 = vpop.permute.xlu0 %5057
  %5059 = vrot.lane.b32.xlu0 %v3456, 48
  %v5060 = vpop.permute.xlu0 %5059
  %5061 = vrot.lane.b32.xlu0 %v3603, 48
  %v5062 = vpop.permute.xlu0 %5061
  %5063 = vrot.lane.b32.xlu0 %v3459, 48
  %v5064 = vpop.permute.xlu0 %5063
  %5065 = vrot.lane.b32.xlu0 %v3604, 48
  %v5066 = vpop.permute.xlu0 %5065
  %5067 = vrot.lane.b32.xlu0 %v3462, 48
  %v5068 = vpop.permute.xlu0 %5067
  %5069 = vrot.lane.b32.xlu0 %v3605, 48
  %v5070 = vpop.permute.xlu0 %5069
  %5071 = vrot.lane.b32.xlu0 %v3465, 48
  %v5072 = vpop.permute.xlu0 %5071
  %5073 = vrot.lane.b32.xlu0 %v3606, 48
  %v5074 = vpop.permute.xlu0 %5073
  %5075 = vrot.lane.b32.xlu0 %v3468, 48
  %v5076 = vpop.permute.xlu0 %5075
  %5077 = vrot.lane.b32.xlu0 %v3607, 48
  %v5078 = vpop.permute.xlu0 %5077
  %5079 = vrot.lane.b32.xlu0 %v3471, 48
  %v5080 = vpop.permute.xlu0 %5079
  %5081 = vrot.lane.b32.xlu0 %v3608, 48
  %v5082 = vpop.permute.xlu0 %5081
  %5083 = vrot.lane.b32.xlu0 %v3474, 48
  %v5084 = vpop.permute.xlu0 %5083
  %5085 = vrot.lane.b32.xlu0 %v3609, 48
  %v5086 = vpop.permute.xlu0 %5085
  %5087 = vrot.lane.b32.xlu0 %v3477, 48
  %v5088 = vpop.permute.xlu0 %5087
  %5089 = vrot.lane.b32.xlu0 %v3610, 48
  %v5090 = vpop.permute.xlu0 %5089
  %5091 = vrot.lane.b32.xlu0 %v3480, 48
  %v5092 = vpop.permute.xlu0 %5091
  %5093 = vrot.lane.b32.xlu0 %v3611, 48
  %v5094 = vpop.permute.xlu0 %5093
  %5095 = vrot.lane.b32.xlu0 %v3483, 48
  %v5096 = vpop.permute.xlu0 %5095
  %5097 = vrot.lane.b32.xlu0 %v3612, 48
  %v5098 = vpop.permute.xlu0 %5097
  %5099 = vrot.lane.b32.xlu0 %v3486, 48
  %v5100 = vpop.permute.xlu0 %5099
  %5163 = vrot.lane.b32.xlu0 %v3712, 56
  %v5164 = vpop.permute.xlu0 %5163
  %5165 = vrot.lane.b32.xlu0 %v3714, 56
  %v5166 = vpop.permute.xlu0 %5165
  %5167 = vrot.lane.b32.xlu0 %v3717, 56
  %v5168 = vpop.permute.xlu0 %5167
  %5169 = vrot.lane.b32.xlu0 %v3719, 56
  %v5170 = vpop.permute.xlu0 %5169
  %5171 = vrot.lane.b32.xlu0 %v3722, 56
  %v5172 = vpop.permute.xlu0 %5171
  %5173 = vrot.lane.b32.xlu0 %v3724, 56
  %v5174 = vpop.permute.xlu0 %5173
  %5175 = vrot.lane.b32.xlu0 %v3727, 56
  %v5176 = vpop.permute.xlu0 %5175
  %5177 = vrot.lane.b32.xlu0 %v3729, 56
  %v5178 = vpop.permute.xlu0 %5177
  %5179 = vrot.lane.b32.xlu0 %v3732, 56
  %v5180 = vpop.permute.xlu0 %5179
  %5181 = vrot.lane.b32.xlu0 %v3734, 56
  %v5182 = vpop.permute.xlu0 %5181
  %5183 = vrot.lane.b32.xlu0 %v3737, 56
  %v5184 = vpop.permute.xlu0 %5183
  %5185 = vrot.lane.b32.xlu0 %v3739, 56
  %v5186 = vpop.permute.xlu0 %5185
  %5187 = vrot.lane.b32.xlu0 %v3742, 56
  %v5188 = vpop.permute.xlu0 %5187
  %5189 = vrot.lane.b32.xlu0 %v3744, 56
  %v5190 = vpop.permute.xlu0 %5189
  %5191 = vrot.lane.b32.xlu0 %v3747, 56
  %v5192 = vpop.permute.xlu0 %5191
  %5193 = vrot.lane.b32.xlu0 %v3749, 56
  %v5194 = vpop.permute.xlu0 %5193
  %5195 = vrot.lane.b32.xlu0 %v3752, 56
  %v5196 = vpop.permute.xlu0 %5195
  %5197 = vrot.lane.b32.xlu0 %v3754, 56
  %v5198 = vpop.permute.xlu0 %5197
  %5199 = vrot.lane.b32.xlu0 %v3757, 56
  %v5200 = vpop.permute.xlu0 %5199
  %5201 = vrot.lane.b32.xlu0 %v3759, 56
  %v5202 = vpop.permute.xlu0 %5201
  %5203 = vrot.lane.b32.xlu0 %v3762, 56
  %v5204 = vpop.permute.xlu0 %5203
  %5205 = vrot.lane.b32.xlu0 %v3764, 56
  %v5206 = vpop.permute.xlu0 %5205
  %5207 = vrot.lane.b32.xlu0 %v3767, 56
  %v5208 = vpop.permute.xlu0 %5207
  %5209 = vrot.lane.b32.xlu0 %v3769, 56
  %v5210 = vpop.permute.xlu0 %5209
  %5211 = vrot.lane.b32.xlu0 %v3772, 56
  %v5212 = vpop.permute.xlu0 %5211
  %5213 = vrot.lane.b32.xlu0 %v3774, 56
  %v5214 = vpop.permute.xlu0 %5213
  %5215 = vrot.lane.b32.xlu0 %v3777, 56
  %v5216 = vpop.permute.xlu0 %5215
  %5217 = vrot.lane.b32.xlu0 %v3779, 56
  %v5218 = vpop.permute.xlu0 %5217
  %5219 = vrot.lane.b32.xlu0 %v4575, 56
  %v5220 = vpop.permute.xlu0 %5219
  %5221 = vrot.lane.b32.xlu0 %v4577, 56
  %v5222 = vpop.permute.xlu0 %5221
  %5223 = vrot.lane.b32.xlu0 %v489, 56
  %v5224 = vpop.permute.xlu0 %5223
  %5225 = vrot.lane.b32.xlu0 %v491, 56
  %v5226 = vpop.permute.xlu0 %5225
  %5227 = vrot.lane.b32.xlu0 %v3787, 56
  %v5228 = vpop.permute.xlu0 %5227
  %5229 = vrot.lane.b32.xlu0 %v3789, 56
  %v5230 = vpop.permute.xlu0 %5229
  %5231 = vrot.lane.b32.xlu0 %v3792, 56
  %v5232 = vpop.permute.xlu0 %5231
  %5233 = vrot.lane.b32.xlu0 %v3794, 56
  %v5234 = vpop.permute.xlu0 %5233
  %5235 = vrot.lane.b32.xlu0 %v3797, 56
  %v5236 = vpop.permute.xlu0 %5235
  %5237 = vrot.lane.b32.xlu0 %v3799, 56
  %v5238 = vpop.permute.xlu0 %5237
  %5239 = vrot.lane.b32.xlu0 %v3802, 56
  %v5240 = vpop.permute.xlu0 %5239
  %5241 = vrot.lane.b32.xlu0 %v3804, 56
  %v5242 = vpop.permute.xlu0 %5241
  %5243 = vrot.lane.b32.xlu0 %v3807, 56
  %v5244 = vpop.permute.xlu0 %5243
  %5245 = vrot.lane.b32.xlu0 %v3809, 56
  %v5246 = vpop.permute.xlu0 %5245
  %5247 = vrot.lane.b32.xlu0 %v3812, 56
  %v5248 = vpop.permute.xlu0 %5247
  %5249 = vrot.lane.b32.xlu0 %v3814, 56
  %v5250 = vpop.permute.xlu0 %5249
  %5251 = vrot.lane.b32.xlu0 %v3817, 56
  %v5252 = vpop.permute.xlu0 %5251
  %5253 = vrot.lane.b32.xlu0 %v3819, 56
  %v5254 = vpop.permute.xlu0 %5253
  %5255 = vrot.lane.b32.xlu0 %v3822, 56
  %v5256 = vpop.permute.xlu0 %5255
  %5257 = vrot.lane.b32.xlu0 %v3824, 56
  %v5258 = vpop.permute.xlu0 %5257
  %5259 = vrot.lane.b32.xlu0 %v3827, 56
  %v5260 = vpop.permute.xlu0 %5259
  %5261 = vrot.lane.b32.xlu0 %v3829, 56
  %v5262 = vpop.permute.xlu0 %5261
  %5263 = vrot.lane.b32.xlu0 %v3832, 56
  %v5264 = vpop.permute.xlu0 %5263
  %5265 = vrot.lane.b32.xlu0 %v3834, 56
  %v5266 = vpop.permute.xlu0 %5265
  %5267 = vrot.lane.b32.xlu0 %v3837, 56
  %v5268 = vpop.permute.xlu0 %5267
  %5269 = vrot.lane.b32.xlu0 %v3839, 56
  %v5270 = vpop.permute.xlu0 %5269
  %5271 = vrot.lane.b32.xlu0 %v3842, 56
  %v5272 = vpop.permute.xlu0 %5271
  %5273 = vrot.lane.b32.xlu0 %v3844, 56
  %v5274 = vpop.permute.xlu0 %5273
  %5275 = vrot.lane.b32.xlu0 %v3847, 56
  %v5276 = vpop.permute.xlu0 %5275
  %5277 = vrot.lane.b32.xlu0 %v3849, 56
  %v5278 = vpop.permute.xlu0 %5277
  %5279 = vrot.lane.b32.xlu0 %v3852, 56
  %v5280 = vpop.permute.xlu0 %5279
  %5281 = vrot.lane.b32.xlu0 %v3854, 56
  %v5282 = vpop.permute.xlu0 %5281
  %5283 = vrot.lane.b32.xlu0 %v4580, 56
  %v5284 = vpop.permute.xlu0 %5283
  %5285 = vrot.lane.b32.xlu0 %v4582, 56
  %v5286 = vpop.permute.xlu0 %5285
  %5349 = vrot.lane.b32.xlu0 %v4048, 64
  %v5350 = vpop.permute.xlu0 %5349
  %5351 = vrot.lane.b32.xlu0 %v4050, 64
  %v5352 = vpop.permute.xlu0 %5351
  %5353 = vrot.lane.b32.xlu0 %v4053, 64
  %v5354 = vpop.permute.xlu0 %5353
  %5355 = vrot.lane.b32.xlu0 %v4055, 64
  %v5356 = vpop.permute.xlu0 %5355
  %5357 = vrot.lane.b32.xlu0 %v4058, 64
  %v5358 = vpop.permute.xlu0 %5357
  %5359 = vrot.lane.b32.xlu0 %v4060, 64
  %v5360 = vpop.permute.xlu0 %5359
  %5361 = vrot.lane.b32.xlu0 %v4063, 64
  %v5362 = vpop.permute.xlu0 %5361
  %5363 = vrot.lane.b32.xlu0 %v4065, 64
  %v5364 = vpop.permute.xlu0 %5363
  %5365 = vrot.lane.b32.xlu0 %v4068, 64
  %v5366 = vpop.permute.xlu0 %5365
  %5367 = vrot.lane.b32.xlu0 %v4070, 64
  %v5368 = vpop.permute.xlu0 %5367
  %5369 = vrot.lane.b32.xlu0 %v4073, 64
  %v5370 = vpop.permute.xlu0 %5369
  %5371 = vrot.lane.b32.xlu0 %v4075, 64
  %v5372 = vpop.permute.xlu0 %5371
  %5373 = vrot.lane.b32.xlu0 %v4078, 64
  %v5374 = vpop.permute.xlu0 %5373
  %5375 = vrot.lane.b32.xlu0 %v4080, 64
  %v5376 = vpop.permute.xlu0 %5375
  %5377 = vrot.lane.b32.xlu0 %v4083, 64
  %v5378 = vpop.permute.xlu0 %5377
  %5379 = vrot.lane.b32.xlu0 %v4085, 64
  %v5380 = vpop.permute.xlu0 %5379
  %5381 = vrot.lane.b32.xlu0 %v4088, 64
  %v5382 = vpop.permute.xlu0 %5381
  %5383 = vrot.lane.b32.xlu0 %v4090, 64
  %v5384 = vpop.permute.xlu0 %5383
  %5385 = vrot.lane.b32.xlu0 %v4093, 64
  %v5386 = vpop.permute.xlu0 %5385
  %5387 = vrot.lane.b32.xlu0 %v4095, 64
  %v5388 = vpop.permute.xlu0 %5387
  %5389 = vrot.lane.b32.xlu0 %v4098, 64
  %v5390 = vpop.permute.xlu0 %5389
  %5391 = vrot.lane.b32.xlu0 %v4100, 64
  %v5392 = vpop.permute.xlu0 %5391
  %5393 = vrot.lane.b32.xlu0 %v4103, 64
  %v5394 = vpop.permute.xlu0 %5393
  %5395 = vrot.lane.b32.xlu0 %v4105, 64
  %v5396 = vpop.permute.xlu0 %5395
  %5397 = vrot.lane.b32.xlu0 %v4108, 64
  %v5398 = vpop.permute.xlu0 %5397
  %5399 = vrot.lane.b32.xlu0 %v4110, 64
  %v5400 = vpop.permute.xlu0 %5399
  %5401 = vrot.lane.b32.xlu0 %v4113, 64
  %v5402 = vpop.permute.xlu0 %5401
  %5403 = vrot.lane.b32.xlu0 %v4115, 64
  %v5404 = vpop.permute.xlu0 %5403
  %5405 = vrot.lane.b32.xlu0 %v4777, 64
  %v5406 = vpop.permute.xlu0 %5405
  %5407 = vrot.lane.b32.xlu0 %v4779, 64
  %v5408 = vpop.permute.xlu0 %5407
  %5409 = vrot.lane.b32.xlu0 %v831, 64
  %v5410 = vpop.permute.xlu0 %5409
  %5411 = vrot.lane.b32.xlu0 %v833, 64
  %v5412 = vpop.permute.xlu0 %5411
  %5413 = vrot.lane.b32.xlu0 %v4123, 64
  %v5414 = vpop.permute.xlu0 %5413
  %5415 = vrot.lane.b32.xlu0 %v4125, 64
  %v5416 = vpop.permute.xlu0 %5415
  %5417 = vrot.lane.b32.xlu0 %v4128, 64
  %v5418 = vpop.permute.xlu0 %5417
  %5419 = vrot.lane.b32.xlu0 %v4130, 64
  %v5420 = vpop.permute.xlu0 %5419
  %5421 = vrot.lane.b32.xlu0 %v4133, 64
  %v5422 = vpop.permute.xlu0 %5421
  %5423 = vrot.lane.b32.xlu0 %v4135, 64
  %v5424 = vpop.permute.xlu0 %5423
  %5425 = vrot.lane.b32.xlu0 %v4138, 64
  %v5426 = vpop.permute.xlu0 %5425
  %5427 = vrot.lane.b32.xlu0 %v4140, 64
  %v5428 = vpop.permute.xlu0 %5427
  %5429 = vrot.lane.b32.xlu0 %v4143, 64
  %v5430 = vpop.permute.xlu0 %5429
  %5431 = vrot.lane.b32.xlu0 %v4145, 64
  %v5432 = vpop.permute.xlu0 %5431
  %5433 = vrot.lane.b32.xlu0 %v4148, 64
  %v5434 = vpop.permute.xlu0 %5433
  %5435 = vrot.lane.b32.xlu0 %v4150, 64
  %v5436 = vpop.permute.xlu0 %5435
  %5437 = vrot.lane.b32.xlu0 %v4153, 64
  %v5438 = vpop.permute.xlu0 %5437
  %5439 = vrot.lane.b32.xlu0 %v4155, 64
  %v5440 = vpop.permute.xlu0 %5439
  %5441 = vrot.lane.b32.xlu0 %v4158, 64
  %v5442 = vpop.permute.xlu0 %5441
  %5443 = vrot.lane.b32.xlu0 %v4160, 64
  %v5444 = vpop.permute.xlu0 %5443
  %5445 = vrot.lane.b32.xlu0 %v4163, 64
  %v5446 = vpop.permute.xlu0 %5445
  %5447 = vrot.lane.b32.xlu0 %v4165, 64
  %v5448 = vpop.permute.xlu0 %5447
  %5449 = vrot.lane.b32.xlu0 %v4168, 64
  %v5450 = vpop.permute.xlu0 %5449
  %5451 = vrot.lane.b32.xlu0 %v4170, 64
  %v5452 = vpop.permute.xlu0 %5451
  %5453 = vrot.lane.b32.xlu0 %v4173, 64
  %v5454 = vpop.permute.xlu0 %5453
  %5455 = vrot.lane.b32.xlu0 %v4175, 64
  %v5456 = vpop.permute.xlu0 %5455
  %5457 = vrot.lane.b32.xlu0 %v4178, 64
  %v5458 = vpop.permute.xlu0 %5457
  %5459 = vrot.lane.b32.xlu0 %v4180, 64
  %v5460 = vpop.permute.xlu0 %5459
  %5461 = vrot.lane.b32.xlu0 %v4183, 64
  %v5462 = vpop.permute.xlu0 %5461
  %5463 = vrot.lane.b32.xlu0 %v4185, 64
  %v5464 = vpop.permute.xlu0 %5463
  %5465 = vrot.lane.b32.xlu0 %v4188, 64
  %v5466 = vpop.permute.xlu0 %5465
  %5467 = vrot.lane.b32.xlu0 %v4190, 64
  %v5468 = vpop.permute.xlu0 %5467
  %5469 = vrot.lane.b32.xlu0 %v4782, 64
  %v5470 = vpop.permute.xlu0 %5469
  %5471 = vrot.lane.b32.xlu0 %v4784, 64
  %v5472 = vpop.permute.xlu0 %5471
  %v5535 = vsel %vm2391, %v358, %v3856
  %v5536 = vsel %vm2391, %v165, %v3858
  %v5537 = vsel %vm2391, %v3581, %v3860
  %v5538 = vsel %vm2391, %v3393, %v3862
  %v5539 = vsel %vm2391, %v3582, %v3864
  %v5540 = vsel %vm2391, %v3396, %v3866
  %v5541 = vsel %vm2391, %v3583, %v3868
  %v5542 = vsel %vm2391, %v3399, %v3870
  %v5543 = vsel %vm2391, %v3584, %v3872
  %v5544 = vsel %vm2391, %v3402, %v3874
  %v5545 = vsel %vm2391, %v3585, %v3876
  %v5546 = vsel %vm2391, %v3405, %v3878
  %v5547 = vsel %vm2391, %v3586, %v3880
  %v5548 = vsel %vm2391, %v3408, %v3882
  %v5549 = vsel %vm2391, %v3587, %v3884
  %v5550 = vsel %vm2391, %v3411, %v3886
  %v5551 = vsel %vm2391, %v3588, %v3888
  %v5552 = vsel %vm2391, %v3414, %v3890
  %v5553 = vsel %vm2391, %v3589, %v3892
  %v5554 = vsel %vm2391, %v3417, %v3894
  %v5555 = vsel %vm2391, %v3590, %v3896
  %v5556 = vsel %vm2391, %v3420, %v3898
  %v5557 = vsel %vm2391, %v3591, %v3900
  %v5558 = vsel %vm2391, %v3423, %v3902
  %v5559 = vsel %vm2391, %v3592, %v3904
  %v5560 = vsel %vm2391, %v3426, %v3906
  %v5561 = vsel %vm2391, %v3593, %v3908
  %v5562 = vsel %vm2391, %v3429, %v3910
  %v5563 = vsel %vm2391, %v3594, %v3912
  %v5564 = vsel %vm2391, %v3432, %v3914
  %v5565 = vsel %vm2391, %v3595, %v3916
  %v5566 = vsel %vm2391, %v3435, %v3918
  %v5567 = vsel %vm2391, %v3597, %v3920
  %v5568 = vsel %vm2391, %v3441, %v3922
  %v5569 = vsel %vm2391, %v3598, %v3924
  %v5570 = vsel %vm2391, %v3444, %v3926
  %v5571 = vsel %vm2391, %v3599, %v3928
  %v5572 = vsel %vm2391, %v3447, %v3930
  %v5573 = vsel %vm2391, %v3600, %v3932
  %v5574 = vsel %vm2391, %v3450, %v3934
  %v5575 = vsel %vm2391, %v3601, %v3936
  %v5576 = vsel %vm2391, %v3453, %v3938
  %v5577 = vsel %vm2391, %v3602, %v3940
  %v5578 = vsel %vm2391, %v3456, %v3942
  %v5579 = vsel %vm2391, %v3603, %v3944
  %v5580 = vsel %vm2391, %v3459, %v3946
  %v5581 = vsel %vm2391, %v3604, %v3948
  %v5582 = vsel %vm2391, %v3462, %v3950
  %v5583 = vsel %vm2391, %v3605, %v3952
  %v5584 = vsel %vm2391, %v3465, %v3954
  %v5585 = vsel %vm2391, %v3606, %v3956
  %v5586 = vsel %vm2391, %v3468, %v3958
  %v5587 = vsel %vm2391, %v3607, %v3960
  %v5588 = vsel %vm2391, %v3471, %v3962
  %v5589 = vsel %vm2391, %v3608, %v3964
  %v5590 = vsel %vm2391, %v3474, %v3966
  %v5591 = vsel %vm2391, %v3609, %v3968
  %v5592 = vsel %vm2391, %v3477, %v3970
  %v5593 = vsel %vm2391, %v3610, %v3972
  %v5594 = vsel %vm2391, %v3480, %v3974
  %v5595 = vsel %vm2391, %v3611, %v3976
  %v5596 = vsel %vm2391, %v3483, %v3978
  %v5597 = vsel %vm2519, %v5535, %v4192
  %v5598 = vsel %vm2519, %v5536, %v4194
  %v5599 = vsel %vm2519, %v5537, %v4196
  %v5600 = vsel %vm2519, %v5538, %v4198
  %v5601 = vsel %vm2519, %v5539, %v4200
  %v5602 = vsel %vm2519, %v5540, %v4202
  %v5603 = vsel %vm2519, %v5541, %v4204
  %v5604 = vsel %vm2519, %v5542, %v4206
  %v5605 = vsel %vm2519, %v5543, %v4208
  %v5606 = vsel %vm2519, %v5544, %v4210
  %v5607 = vsel %vm2519, %v5545, %v4212
  %v5608 = vsel %vm2519, %v5546, %v4214
  %v5609 = vsel %vm2519, %v5547, %v4216
  %v5610 = vsel %vm2519, %v5548, %v4218
  %v5611 = vsel %vm2519, %v5549, %v4220
  %v5612 = vsel %vm2519, %v5550, %v4222
  %v5613 = vsel %vm2519, %v5551, %v4224
  %v5614 = vsel %vm2519, %v5552, %v4226
  %v5615 = vsel %vm2519, %v5553, %v4228
  %v5616 = vsel %vm2519, %v5554, %v4230
  %v5617 = vsel %vm2519, %v5555, %v4232
  %v5618 = vsel %vm2519, %v5556, %v4234
  %v5619 = vsel %vm2519, %v5557, %v4236
  %v5620 = vsel %vm2519, %v5558, %v4238
  %v5621 = vsel %vm2519, %v5559, %v4240
  %v5622 = vsel %vm2519, %v5560, %v4242
  %v5623 = vsel %vm2519, %v5561, %v4244
  %v5624 = vsel %vm2519, %v5562, %v4246
  %v5625 = vsel %vm2519, %v5563, %v4248
  %v5626 = vsel %vm2519, %v5564, %v4250
  %v5627 = vsel %vm2519, %v5565, %v4252
  %v5628 = vsel %vm2519, %v5566, %v4254
  %v5629 = vsel %vm2519, %v5567, %v4256
  %v5630 = vsel %vm2519, %v5568, %v4258
  %v5631 = vsel %vm2519, %v5569, %v4260
  %v5632 = vsel %vm2519, %v5570, %v4262
  %v5633 = vsel %vm2519, %v5571, %v4264
  %v5634 = vsel %vm2519, %v5572, %v4266
  %v5635 = vsel %vm2519, %v5573, %v4268
  %v5636 = vsel %vm2519, %v5574, %v4270
  %v5637 = vsel %vm2519, %v5575, %v4272
  %v5638 = vsel %vm2519, %v5576, %v4274
  %v5639 = vsel %vm2519, %v5577, %v4276
  %v5640 = vsel %vm2519, %v5578, %v4278
  %v5641 = vsel %vm2519, %v5579, %v4280
  %v5642 = vsel %vm2519, %v5580, %v4282
  %v5643 = vsel %vm2519, %v5581, %v4284
  %v5644 = vsel %vm2519, %v5582, %v4286
  %v5645 = vsel %vm2519, %v5583, %v4288
  %v5646 = vsel %vm2519, %v5584, %v4290
  %v5647 = vsel %vm2519, %v5585, %v4292
  %v5648 = vsel %vm2519, %v5586, %v4294
  %v5649 = vsel %vm2519, %v5587, %v4296
  %v5650 = vsel %vm2519, %v5588, %v4298
  %v5651 = vsel %vm2519, %v5589, %v4300
  %v5652 = vsel %vm2519, %v5590, %v4302
  %v5653 = vsel %vm2519, %v5591, %v4304
  %v5654 = vsel %vm2519, %v5592, %v4306
  %v5655 = vsel %vm2519, %v5593, %v4308
  %v5656 = vsel %vm2519, %v5594, %v4310
  %v5657 = vsel %vm2519, %v5595, %v4312
  %v5658 = vsel %vm2519, %v5596, %v4314
  %v5659 = vsel %vm2649, %v5597, %v4380
  %v5660 = vsel %vm2649, %v5598, %v4382
  %v5661 = vsel %vm2649, %v5599, %v4384
  %v5662 = vsel %vm2649, %v5600, %v4386
  %v5663 = vsel %vm2649, %v5601, %v4388
  %v5664 = vsel %vm2649, %v5602, %v4390
  %v5665 = vsel %vm2649, %v5603, %v4392
  %v5666 = vsel %vm2649, %v5604, %v4394
  %v5667 = vsel %vm2649, %v5605, %v4396
  %v5668 = vsel %vm2649, %v5606, %v4398
  %v5669 = vsel %vm2649, %v5607, %v4400
  %v5670 = vsel %vm2649, %v5608, %v4402
  %v5671 = vsel %vm2649, %v5609, %v4404
  %v5672 = vsel %vm2649, %v5610, %v4406
  %v5673 = vsel %vm2649, %v5611, %v4408
  %v5674 = vsel %vm2649, %v5612, %v4410
  %v5675 = vsel %vm2649, %v5613, %v4412
  %v5676 = vsel %vm2649, %v5614, %v4414
  %v5677 = vsel %vm2649, %v5615, %v4416
  %v5678 = vsel %vm2649, %v5616, %v4418
  %v5679 = vsel %vm2649, %v5617, %v4420
  %v5680 = vsel %vm2649, %v5618, %v4422
  %v5681 = vsel %vm2649, %v5619, %v4424
  %v5682 = vsel %vm2649, %v5620, %v4426
  %v5683 = vsel %vm2649, %v5621, %v4428
  %v5684 = vsel %vm2649, %v5622, %v4430
  %v5685 = vsel %vm2649, %v5623, %v4432
  %v5686 = vsel %vm2649, %v5624, %v4434
  %v5687 = vsel %vm2649, %v5625, %v4436
  %v5688 = vsel %vm2649, %v5626, %v4438
  %v5689 = vsel %vm2649, %v5627, %v4440
  %v5690 = vsel %vm2649, %v5628, %v4442
  %v5691 = vsel %vm2649, %v5597, %v4444
  %v5692 = vsel %vm2649, %v5598, %v4446
  %v5693 = vsel %vm2649, %v5629, %v4448
  %v5694 = vsel %vm2649, %v5630, %v4450
  %v5695 = vsel %vm2649, %v5631, %v4452
  %v5696 = vsel %vm2649, %v5632, %v4454
  %v5697 = vsel %vm2649, %v5633, %v4456
  %v5698 = vsel %vm2649, %v5634, %v4458
  %v5699 = vsel %vm2649, %v5635, %v4460
  %v5700 = vsel %vm2649, %v5636, %v4462
  %v5701 = vsel %vm2649, %v5637, %v4464
  %v5702 = vsel %vm2649, %v5638, %v4466
  %v5703 = vsel %vm2649, %v5639, %v4468
  %v5704 = vsel %vm2649, %v5640, %v4470
  %v5705 = vsel %vm2649, %v5641, %v4472
  %v5706 = vsel %vm2649, %v5642, %v4474
  %v5707 = vsel %vm2649, %v5643, %v4476
  %v5708 = vsel %vm2649, %v5644, %v4478
  %v5709 = vsel %vm2649, %v5645, %v4480
  %v5710 = vsel %vm2649, %v5646, %v4482
  %v5711 = vsel %vm2649, %v5647, %v4484
  %v5712 = vsel %vm2649, %v5648, %v4486
  %v5713 = vsel %vm2649, %v5649, %v4488
  %v5714 = vsel %vm2649, %v5650, %v4490
  %v5715 = vsel %vm2649, %v5651, %v4492
  %v5716 = vsel %vm2649, %v5652, %v4494
  %v5717 = vsel %vm2649, %v5653, %v4496
  %v5718 = vsel %vm2649, %v5654, %v4498
  %v5719 = vsel %vm2649, %v5655, %v4500
  %v5720 = vsel %vm2649, %v5656, %v4502
  %v5721 = vsel %vm2649, %v5657, %v4504
  %v5722 = vsel %vm2649, %v5658, %v4506
  %v5723 = vsel %vm2779, %v5659, %v4584
  %v5724 = vsel %vm2779, %v5660, %v4586
  %v5725 = vsel %vm2779, %v5661, %v4588
  %v5726 = vsel %vm2779, %v5662, %v4590
  %v5727 = vsel %vm2779, %v5663, %v4592
  %v5728 = vsel %vm2779, %v5664, %v4594
  %v5729 = vsel %vm2779, %v5665, %v4596
  %v5730 = vsel %vm2779, %v5666, %v4598
  %v5731 = vsel %vm2779, %v5667, %v4600
  %v5732 = vsel %vm2779, %v5668, %v4602
  %v5733 = vsel %vm2779, %v5669, %v4604
  %v5734 = vsel %vm2779, %v5670, %v4606
  %v5735 = vsel %vm2779, %v5671, %v4608
  %v5736 = vsel %vm2779, %v5672, %v4610
  %v5737 = vsel %vm2779, %v5673, %v4612
  %v5738 = vsel %vm2779, %v5674, %v4614
  %v5739 = vsel %vm2779, %v5675, %v4616
  %v5740 = vsel %vm2779, %v5676, %v4618
  %v5741 = vsel %vm2779, %v5677, %v4620
  %v5742 = vsel %vm2779, %v5678, %v4622
  %v5743 = vsel %vm2779, %v5679, %v4624
  %v5744 = vsel %vm2779, %v5680, %v4626
  %v5745 = vsel %vm2779, %v5681, %v4628
  %v5746 = vsel %vm2779, %v5682, %v4630
  %v5747 = vsel %vm2779, %v5683, %v4632
  %v5748 = vsel %vm2779, %v5684, %v4634
  %v5749 = vsel %vm2779, %v5685, %v4636
  %v5750 = vsel %vm2779, %v5686, %v4638
  %v5751 = vsel %vm2779, %v5687, %v4640
  %v5752 = vsel %vm2779, %v5688, %v4642
  %v5753 = vsel %vm2779, %v5689, %v4644
  %v5754 = vsel %vm2779, %v5690, %v4646
  %v5755 = vsel %vm2779, %v5691, %v4648
  %v5756 = vsel %vm2779, %v5692, %v4650
  %v5757 = vsel %vm2779, %v5693, %v4652
  %v5758 = vsel %vm2779, %v5694, %v4654
  %v5759 = vsel %vm2779, %v5695, %v4656
  %v5760 = vsel %vm2779, %v5696, %v4658
  %v5761 = vsel %vm2779, %v5697, %v4660
  %v5762 = vsel %vm2779, %v5698, %v4662
  %v5763 = vsel %vm2779, %v5699, %v4664
  %v5764 = vsel %vm2779, %v5700, %v4666
  %v5765 = vsel %vm2779, %v5701, %v4668
  %v5766 = vsel %vm2779, %v5702, %v4670
  %v5767 = vsel %vm2779, %v5703, %v4672
  %v5768 = vsel %vm2779, %v5704, %v4674
  %v5769 = vsel %vm2779, %v5705, %v4676
  %v5770 = vsel %vm2779, %v5706, %v4678
  %v5771 = vsel %vm2779, %v5707, %v4680
  %v5772 = vsel %vm2779, %v5708, %v4682
  %v5773 = vsel %vm2779, %v5709, %v4684
  %v5774 = vsel %vm2779, %v5710, %v4686
  %v5775 = vsel %vm2779, %v5711, %v4688
  %v5776 = vsel %vm2779, %v5712, %v4690
  %v5777 = vsel %vm2779, %v5713, %v4692
  %v5778 = vsel %vm2779, %v5714, %v4694
  %v5779 = vsel %vm2779, %v5715, %v4696
  %v5780 = vsel %vm2779, %v5716, %v4698
  %v5781 = vsel %vm2779, %v5717, %v4700
  %v5782 = vsel %vm2779, %v5718, %v4702
  %v5783 = vsel %vm2779, %v5719, %v4704
  %v5784 = vsel %vm2779, %v5720, %v4706
  %v5785 = vsel %vm2779, %v5721, %v4708
  %v5786 = vsel %vm2779, %v5722, %v4710
  %vm5787 = vcmask 326656
  %v5788 = vsel %vm5787, %v5723, %v4786
  %v5789 = vsel %vm5787, %v5724, %v4788
  %v5790 = vsel %vm5787, %v5725, %v4790
  %v5791 = vsel %vm5787, %v5726, %v4792
  %v5792 = vsel %vm5787, %v5727, %v4794
  %v5793 = vsel %vm5787, %v5728, %v4796
  %v5794 = vsel %vm5787, %v5729, %v4798
  %v5795 = vsel %vm5787, %v5730, %v4800
  %v5796 = vsel %vm5787, %v5731, %v4802
  %v5797 = vsel %vm5787, %v5732, %v4804
  %v5798 = vsel %vm5787, %v5733, %v4806
  %v5799 = vsel %vm5787, %v5734, %v4808
  %v5800 = vsel %vm5787, %v5735, %v4810
  %v5801 = vsel %vm5787, %v5736, %v4812
  %v5802 = vsel %vm5787, %v5737, %v4814
  %v5803 = vsel %vm5787, %v5738, %v4816
  %v5804 = vsel %vm5787, %v5739, %v4818
  %v5805 = vsel %vm5787, %v5740, %v4820
  %v5806 = vsel %vm5787, %v5741, %v4822
  %v5807 = vsel %vm5787, %v5742, %v4824
  %v5808 = vsel %vm5787, %v5743, %v4826
  %v5809 = vsel %vm5787, %v5744, %v4828
  %v5810 = vsel %vm5787, %v5745, %v4830
  %v5811 = vsel %vm5787, %v5746, %v4832
  %v5812 = vsel %vm5787, %v5747, %v4834
  %v5813 = vsel %vm5787, %v5748, %v4836
  %v5814 = vsel %vm5787, %v5749, %v4838
  %v5815 = vsel %vm5787, %v5750, %v4840
  %v5816 = vsel %vm5787, %v5751, %v4842
  %v5817 = vsel %vm5787, %v5752, %v4844
  %v5818 = vsel %vm5787, %v5753, %v4846
  %v5819 = vsel %vm5787, %v5754, %v4848
  %v5820 = vsel %vm5787, %v5755, %v4850
  %v5821 = vsel %vm5787, %v5756, %v4852
  %v5822 = vsel %vm5787, %v5757, %v4854
  %v5823 = vsel %vm5787, %v5758, %v4856
  %v5824 = vsel %vm5787, %v5759, %v4858
  %v5825 = vsel %vm5787, %v5760, %v4860
  %v5826 = vsel %vm5787, %v5761, %v4862
  %v5827 = vsel %vm5787, %v5762, %v4864
  %v5828 = vsel %vm5787, %v5763, %v4866
  %v5829 = vsel %vm5787, %v5764, %v4868
  %v5830 = vsel %vm5787, %v5765, %v4870
  %v5831 = vsel %vm5787, %v5766, %v4872
  %v5832 = vsel %vm5787, %v5767, %v4874
  %v5833 = vsel %vm5787, %v5768, %v4876
  %v5834 = vsel %vm5787, %v5769, %v4878
  %v5835 = vsel %vm5787, %v5770, %v4880
  %v5836 = vsel %vm5787, %v5771, %v4882
  %v5837 = vsel %vm5787, %v5772, %v4884
  %v5838 = vsel %vm5787, %v5773, %v4886
  %v5839 = vsel %vm5787, %v5774, %v4888
  %v5840 = vsel %vm5787, %v5775, %v4890
  %v5841 = vsel %vm5787, %v5776, %v4892
  %v5842 = vsel %vm5787, %v5777, %v4894
  %v5843 = vsel %vm5787, %v5778, %v4896
  %v5844 = vsel %vm5787, %v5779, %v4898
  %v5845 = vsel %vm5787, %v5780, %v4900
  %v5846 = vsel %vm5787, %v5781, %v4902
  %v5847 = vsel %vm5787, %v5782, %v4904
  %v5848 = vsel %vm5787, %v5783, %v4906
  %v5849 = vsel %vm5787, %v5784, %v4908
  %v5850 = vsel %vm5787, %v5785, %v4910
  %v5851 = vsel %vm5787, %v5786, %v4912
  %vm5852 = vcmask 392192
  %v5853 = vsel %vm5852, %v5788, %v4978
  %v5854 = vsel %vm5852, %v5789, %v4980
  %v5855 = vsel %vm5852, %v5790, %v4982
  %v5856 = vsel %vm5852, %v5791, %v4984
  %v5857 = vsel %vm5852, %v5792, %v4986
  %v5858 = vsel %vm5852, %v5793, %v4988
  %v5859 = vsel %vm5852, %v5794, %v4990
  %v5860 = vsel %vm5852, %v5795, %v4992
  %v5861 = vsel %vm5852, %v5796, %v4994
  %v5862 = vsel %vm5852, %v5797, %v4996
  %v5863 = vsel %vm5852, %v5798, %v4998
  %v5864 = vsel %vm5852, %v5799, %v5000
  %v5865 = vsel %vm5852, %v5800, %v5002
  %v5866 = vsel %vm5852, %v5801, %v5004
  %v5867 = vsel %vm5852, %v5802, %v5006
  %v5868 = vsel %vm5852, %v5803, %v5008
  %v5869 = vsel %vm5852, %v5804, %v5010
  %v5870 = vsel %vm5852, %v5805, %v5012
  %v5871 = vsel %vm5852, %v5806, %v5014
  %v5872 = vsel %vm5852, %v5807, %v5016
  %v5873 = vsel %vm5852, %v5808, %v5018
  %v5874 = vsel %vm5852, %v5809, %v5020
  %v5875 = vsel %vm5852, %v5810, %v5022
  %v5876 = vsel %vm5852, %v5811, %v5024
  %v5877 = vsel %vm5852, %v5812, %v5026
  %v5878 = vsel %vm5852, %v5813, %v5028
  %v5879 = vsel %vm5852, %v5814, %v5030
  %v5880 = vsel %vm5852, %v5815, %v5032
  %v5881 = vsel %vm5852, %v5816, %v5034
  %v5882 = vsel %vm5852, %v5817, %v5036
  %v5883 = vsel %vm5852, %v5818, %v5038
  %v5884 = vsel %vm5852, %v5819, %v5040
  %v5885 = vsel %vm5852, %v5820, %v5042
  %v5886 = vsel %vm5852, %v5821, %v5044
  %v5887 = vsel %vm5852, %v5822, %v5046
  %v5888 = vsel %vm5852, %v5823, %v5048
  %v5889 = vsel %vm5852, %v5824, %v5050
  %v5890 = vsel %vm5852, %v5825, %v5052
  %v5891 = vsel %vm5852, %v5826, %v5054
  %v5892 = vsel %vm5852, %v5827, %v5056
  %v5893 = vsel %vm5852, %v5828, %v5058
  %v5894 = vsel %vm5852, %v5829, %v5060
  %v5895 = vsel %vm5852, %v5830, %v5062
  %v5896 = vsel %vm5852, %v5831, %v5064
  %v5897 = vsel %vm5852, %v5832, %v5066
  %v5898 = vsel %vm5852, %v5833, %v5068
  %v5899 = vsel %vm5852, %v5834, %v5070
  %v5900 = vsel %vm5852, %v5835, %v5072
  %v5901 = vsel %vm5852, %v5836, %v5074
  %v5902 = vsel %vm5852, %v5837, %v5076
  %v5903 = vsel %vm5852, %v5838, %v5078
  %v5904 = vsel %vm5852, %v5839, %v5080
  %v5905 = vsel %vm5852, %v5840, %v5082
  %v5906 = vsel %vm5852, %v5841, %v5084
  %v5907 = vsel %vm5852, %v5842, %v5086
  %v5908 = vsel %vm5852, %v5843, %v5088
  %v5909 = vsel %vm5852, %v5844, %v5090
  %v5910 = vsel %vm5852, %v5845, %v5092
  %v5911 = vsel %vm5852, %v5846, %v5094
  %v5912 = vsel %vm5852, %v5847, %v5096
  %v5913 = vsel %vm5852, %v5848, %v5098
  %v5914 = vsel %vm5852, %v5849, %v5100
  %v5915 = vsel %vm5852, %v5850, %v5038
  %v5916 = vsel %vm5852, %v5851, %v5040
  %vm5917 = vcmask 457728
  %v5918 = vsel %vm5917, %v5853, %v5164
  %v5919 = vsel %vm5917, %v5854, %v5166
  %v5920 = vsel %vm5917, %v5855, %v5168
  %v5921 = vsel %vm5917, %v5856, %v5170
  %v5922 = vsel %vm5917, %v5857, %v5172
  %v5923 = vsel %vm5917, %v5858, %v5174
  %v5924 = vsel %vm5917, %v5859, %v5176
  %v5925 = vsel %vm5917, %v5860, %v5178
  %v5926 = vsel %vm5917, %v5861, %v5180
  %v5927 = vsel %vm5917, %v5862, %v5182
  %v5928 = vsel %vm5917, %v5863, %v5184
  %v5929 = vsel %vm5917, %v5864, %v5186
  %v5930 = vsel %vm5917, %v5865, %v5188
  %v5931 = vsel %vm5917, %v5866, %v5190
  %v5932 = vsel %vm5917, %v5867, %v5192
  %v5933 = vsel %vm5917, %v5868, %v5194
  %v5934 = vsel %vm5917, %v5869, %v5196
  %v5935 = vsel %vm5917, %v5870, %v5198
  %v5936 = vsel %vm5917, %v5871, %v5200
  %v5937 = vsel %vm5917, %v5872, %v5202
  %v5938 = vsel %vm5917, %v5873, %v5204
  %v5939 = vsel %vm5917, %v5874, %v5206
  %v5940 = vsel %vm5917, %v5875, %v5208
  %v5941 = vsel %vm5917, %v5876, %v5210
  %v5942 = vsel %vm5917, %v5877, %v5212
  %v5943 = vsel %vm5917, %v5878, %v5214
  %v5944 = vsel %vm5917, %v5879, %v5216
  %v5945 = vsel %vm5917, %v5880, %v5218
  %v5946 = vsel %vm5917, %v5881, %v5220
  %v5947 = vsel %vm5917, %v5882, %v5222
  %v5948 = vsel %vm5917, %v5883, %v5224
  %v5949 = vsel %vm5917, %v5884, %v5226
  %v5950 = vsel %vm5917, %v5885, %v5228
  %v5951 = vsel %vm5917, %v5886, %v5230
  %v5952 = vsel %vm5917, %v5887, %v5232
  %v5953 = vsel %vm5917, %v5888, %v5234
  %v5954 = vsel %vm5917, %v5889, %v5236
  %v5955 = vsel %vm5917, %v5890, %v5238
  %v5956 = vsel %vm5917, %v5891, %v5240
  %v5957 = vsel %vm5917, %v5892, %v5242
  %v5958 = vsel %vm5917, %v5893, %v5244
  %v5959 = vsel %vm5917, %v5894, %v5246
  %v5960 = vsel %vm5917, %v5895, %v5248
  %v5961 = vsel %vm5917, %v5896, %v5250
  %v5962 = vsel %vm5917, %v5897, %v5252
  %v5963 = vsel %vm5917, %v5898, %v5254
  %v5964 = vsel %vm5917, %v5899, %v5256
  %v5965 = vsel %vm5917, %v5900, %v5258
  %v5966 = vsel %vm5917, %v5901, %v5260
  %v5967 = vsel %vm5917, %v5902, %v5262
  %v5968 = vsel %vm5917, %v5903, %v5264
  %v5969 = vsel %vm5917, %v5904, %v5266
  %v5970 = vsel %vm5917, %v5905, %v5268
  %v5971 = vsel %vm5917, %v5906, %v5270
  %v5972 = vsel %vm5917, %v5907, %v5272
  %v5973 = vsel %vm5917, %v5908, %v5274
  %v5974 = vsel %vm5917, %v5909, %v5276
  %v5975 = vsel %vm5917, %v5910, %v5278
  %v5976 = vsel %vm5917, %v5911, %v5280
  %v5977 = vsel %vm5917, %v5912, %v5282
  %v5978 = vsel %vm5917, %v5913, %v5284
  %v5979 = vsel %vm5917, %v5914, %v5286
  %v5980 = vsel %vm5917, %v5915, %v5224
  %v5981 = vsel %vm5917, %v5916, %v5226
  %vm5982 = vcmask 523264
  %v5983 = vsel %vm5982, %v5918, %v5350
  %v5984 = vsel %vm5982, %v5919, %v5352
  %v5985 = vsel %vm5982, %v5920, %v5354
  %v5986 = vsel %vm5982, %v5921, %v5356
  %v5987 = vsel %vm5982, %v5922, %v5358
  %v5988 = vsel %vm5982, %v5923, %v5360
  %v5989 = vsel %vm5982, %v5924, %v5362
  %v5990 = vsel %vm5982, %v5925, %v5364
  %v5991 = vsel %vm5982, %v5926, %v5366
  %v5992 = vsel %vm5982, %v5927, %v5368
  %v5993 = vsel %vm5982, %v5928, %v5370
  %v5994 = vsel %vm5982, %v5929, %v5372
  %v5995 = vsel %vm5982, %v5930, %v5374
  %v5996 = vsel %vm5982, %v5931, %v5376
  %v5997 = vsel %vm5982, %v5932, %v5378
  %v5998 = vsel %vm5982, %v5933, %v5380
  %v5999 = vsel %vm5982, %v5934, %v5382
  %v6000 = vsel %vm5982, %v5935, %v5384
  %v6001 = vsel %vm5982, %v5936, %v5386
  %v6002 = vsel %vm5982, %v5937, %v5388
  %v6003 = vsel %vm5982, %v5938, %v5390
  %v6004 = vsel %vm5982, %v5939, %v5392
  %v6005 = vsel %vm5982, %v5940, %v5394
  %v6006 = vsel %vm5982, %v5941, %v5396
  %v6007 = vsel %vm5982, %v5942, %v5398
  %v6008 = vsel %vm5982, %v5943, %v5400
  %v6009 = vsel %vm5982, %v5944, %v5402
  %v6010 = vsel %vm5982, %v5945, %v5404
  %v6011 = vsel %vm5982, %v5946, %v5406
  %v6012 = vsel %vm5982, %v5947, %v5408
  %v6013 = vsel %vm5982, %v5948, %v5410
  %v6014 = vsel %vm5982, %v5949, %v5412
  %v6015 = vsel %vm5982, %v5950, %v5414
  %v6016 = vsel %vm5982, %v5951, %v5416
  %v6017 = vsel %vm5982, %v5952, %v5418
  %v6018 = vsel %vm5982, %v5953, %v5420
  %v6019 = vsel %vm5982, %v5954, %v5422
  %v6020 = vsel %vm5982, %v5955, %v5424
  %v6021 = vsel %vm5982, %v5956, %v5426
  %v6022 = vsel %vm5982, %v5957, %v5428
  %v6023 = vsel %vm5982, %v5958, %v5430
  %v6024 = vsel %vm5982, %v5959, %v5432
  %v6025 = vsel %vm5982, %v5960, %v5434
  %v6026 = vsel %vm5982, %v5961, %v5436
  %v6027 = vsel %vm5982, %v5962, %v5438
  %v6028 = vsel %vm5982, %v5963, %v5440
  %v6029 = vsel %vm5982, %v5964, %v5442
  %v6030 = vsel %vm5982, %v5965, %v5444
  %v6031 = vsel %vm5982, %v5966, %v5446
  %v6032 = vsel %vm5982, %v5967, %v5448
  %v6033 = vsel %vm5982, %v5968, %v5450
  %v6034 = vsel %vm5982, %v5969, %v5452
  %v6035 = vsel %vm5982, %v5970, %v5454
  %v6036 = vsel %vm5982, %v5971, %v5456
  %v6037 = vsel %vm5982, %v5972, %v5458
  %v6038 = vsel %vm5982, %v5973, %v5460
  %v6039 = vsel %vm5982, %v5974, %v5462
  %v6040 = vsel %vm5982, %v5975, %v5464
  %v6041 = vsel %vm5982, %v5976, %v5466
  %v6042 = vsel %vm5982, %v5977, %v5468
  %v6043 = vsel %vm5982, %v5978, %v5470
  %v6044 = vsel %vm5982, %v5979, %v5472
  %v6045 = vsel %vm5982, %v5980, %v5410
  %v6046 = vsel %vm5982, %v5981, %v5412
  %v6048 = vperm.slane %v3326, 0
  %vm6050 = vcmask 588800
  %v6052 = vsel %vm6050, %v5983, 0
  %v6055 = vsel %vm6050, %v5984, 0
  %v6058 = vsel %vm6050, %v5985, 0
  %v6061 = vsel %vm6050, %v5986, 0
  %v6064 = vsel %vm6050, %v5987, 0
  %v6067 = vsel %vm6050, %v5988, 0
  %v6070 = vsel %vm6050, %v5989, 0
  %v6073 = vsel %vm6050, %v5990, 0
  %v6076 = vsel %vm6050, %v5991, 0
  %v6079 = vsel %vm6050, %v5992, 0
  %v6082 = vsel %vm6050, %v5993, 0
  %v6085 = vsel %vm6050, %v5994, 0
  %v6088 = vsel %vm6050, %v5995, 0
  %v6091 = vsel %vm6050, %v5996, 0
  %v6094 = vsel %vm6050, %v5997, 0
  %v6097 = vsel %vm6050, %v5998, 0
  %v6100 = vsel %vm6050, %v5999, 0
  %v6103 = vsel %vm6050, %v6000, 0
  %v6106 = vsel %vm6050, %v6001, 0
  %v6109 = vsel %vm6050, %v6002, 0
  %v6112 = vsel %vm6050, %v6003, 0
  %v6115 = vsel %vm6050, %v6004, 0
  %v6118 = vsel %vm6050, %v6005, 0
  %v6121 = vsel %vm6050, %v6006, 0
  %v6124 = vsel %vm6050, %v6007, 0
  %v6127 = vsel %vm6050, %v6008, 0
  %v6130 = vsel %vm6050, %v6009, 0
  %v6133 = vsel %vm6050, %v6010, 0
  %v6136 = vsel %vm6050, %v6011, 0
  %v6139 = vsel %vm6050, %v6012, 0
  %v6142 = vsel %vm6050, %v6013, 0
  %v6145 = vsel %vm6050, %v6014, 0
  %v6148 = vsel %vm6050, %v6015, 0
  %v6151 = vsel %vm6050, %v6016, 0
  %v6154 = vsel %vm6050, %v6017, 0
  %v6157 = vsel %vm6050, %v6018, 0
  %v6160 = vsel %vm6050, %v6019, 0
  %v6163 = vsel %vm6050, %v6020, 0
  %v6166 = vsel %vm6050, %v6021, 0
  %v6169 = vsel %vm6050, %v6022, 0
  %v6172 = vsel %vm6050, %v6023, 0
  %v6175 = vsel %vm6050, %v6024, 0
  %v6178 = vsel %vm6050, %v6025, 0
  %v6181 = vsel %vm6050, %v6026, 0
  %v6184 = vsel %vm6050, %v6027, 0
  %v6187 = vsel %vm6050, %v6028, 0
  %v6190 = vsel %vm6050, %v6029, 0
  %v6193 = vsel %vm6050, %v6030, 0
  %v6196 = vsel %vm6050, %v6031, 0
  %v6199 = vsel %vm6050, %v6032, 0
  %v6202 = vsel %vm6050, %v6033, 0
  %v6205 = vsel %vm6050, %v6034, 0
  %v6208 = vsel %vm6050, %v6035, 0
  %v6211 = vsel %vm6050, %v6036, 0
  %v6214 = vsel %vm6050, %v6037, 0
  %v6217 = vsel %vm6050, %v6038, 0
  %v6220 = vsel %vm6050, %v6039, 0
  %v6223 = vsel %vm6050, %v6040, 0
  %v6226 = vsel %vm6050, %v6041, 0
  %v6229 = vsel %vm6050, %v6042, 0
  %v6232 = vsel %vm6050, %v6043, 0
  %v6235 = vsel %vm6050, %v6044, 0
  %v6238 = vsel %vm6050, %v6045, 0
  %v6241 = vsel %vm6050, %v6046, 0
  %6243 = vmatpush.msra.mxu0 0.0
  %6244 = vmatpush.msra.mxu0 0.0
  %6245 = vmatpush.msra.mxu0 0.0
  %6246 = vmatpush.msra.mxu0 0.0
  %6247 = vmatpush.msra.mxu0 0.0
  %6248 = vmatpush.msra.mxu0 0.0
  %6249 = vmatpush.msra.mxu0 0.0
  %6250 = vmatpush.msra.mxu0 %v3325
  %6251 = vmatpush.msra.mxu0 %v3324
  %6252 = vmatpush.msra.mxu0 %v3323
  %6253 = vmatpush.msra.mxu0 %v3322
  %6254 = vmatpush.msra.mxu0 %v3321
  %6255 = vmatpush.msra.mxu0 %v3320
  %6256 = vmatpush.msra.mxu0 %v3319
  %6257 = vmatpush.msra.mxu0 %v3318
  %6258 = vmatpush.msra.mxu0 %v3317
  %6259 = vmatmul.f32.gmra.mxu0 %v6052
  %v6260 = vpop.f32.mrf.mxu0
  %v6261 = vadd.f32 %v6048, %v6260
  %6262 = vmatmul.f32.gmra.mxu0 %v6055
  %v6263 = vpop.f32.mrf.mxu0
  %v6264 = vadd.f32 %v6048, %v6263
  %6265 = vmatmul.f32.gmra.mxu0 %v6058
  %v6266 = vpop.f32.mrf.mxu0
  %v6267 = vadd.f32 %v6048, %v6266
  %6268 = vmatmul.f32.gmra.mxu0 %v6061
  %v6269 = vpop.f32.mrf.mxu0
  %v6270 = vadd.f32 %v6048, %v6269
  %6271 = vmatmul.f32.gmra.mxu0 %v6064
  %v6272 = vpop.f32.mrf.mxu0
  %v6273 = vadd.f32 %v6048, %v6272
  %6274 = vmatmul.f32.gmra.mxu0 %v6067
  %v6275 = vpop.f32.mrf.mxu0
  %v6276 = vadd.f32 %v6048, %v6275
  %6277 = vmatmul.f32.gmra.mxu0 %v6070
  %v6278 = vpop.f32.mrf.mxu0
  %v6279 = vadd.f32 %v6048, %v6278
  %6280 = vmatmul.f32.gmra.mxu0 %v6073
  %v6281 = vpop.f32.mrf.mxu0
  %v6282 = vadd.f32 %v6048, %v6281
  %6283 = vmatmul.f32.gmra.mxu0 %v6076
  %v6284 = vpop.f32.mrf.mxu0
  %v6285 = vadd.f32 %v6048, %v6284
  %6286 = vmatmul.f32.gmra.mxu0 %v6079
  %v6287 = vpop.f32.mrf.mxu0
  %v6288 = vadd.f32 %v6048, %v6287
  %6289 = vmatmul.f32.gmra.mxu0 %v6082
  %v6290 = vpop.f32.mrf.mxu0
  %v6291 = vadd.f32 %v6048, %v6290
  %6292 = vmatmul.f32.gmra.mxu0 %v6085
  %v6293 = vpop.f32.mrf.mxu0
  %v6294 = vadd.f32 %v6048, %v6293
  %6295 = vmatmul.f32.gmra.mxu0 %v6088
  %v6296 = vpop.f32.mrf.mxu0
  %v6297 = vadd.f32 %v6048, %v6296
  %6298 = vmatmul.f32.gmra.mxu0 %v6091
  %v6299 = vpop.f32.mrf.mxu0
  %v6300 = vadd.f32 %v6048, %v6299
  %6301 = vmatmul.f32.gmra.mxu0 %v6094
  %v6302 = vpop.f32.mrf.mxu0
  %v6303 = vadd.f32 %v6048, %v6302
  %6304 = vmatmul.f32.gmra.mxu0 %v6097
  %v6305 = vpop.f32.mrf.mxu0
  %v6306 = vadd.f32 %v6048, %v6305
  %6307 = vmatmul.f32.gmra.mxu0 %v6100
  %v6308 = vpop.f32.mrf.mxu0
  %v6309 = vadd.f32 %v6048, %v6308
  %6310 = vmatmul.f32.gmra.mxu0 %v6103
  %v6311 = vpop.f32.mrf.mxu0
  %v6312 = vadd.f32 %v6048, %v6311
  %6313 = vmatmul.f32.gmra.mxu0 %v6106
  %v6314 = vpop.f32.mrf.mxu0
  %v6315 = vadd.f32 %v6048, %v6314
  %6316 = vmatmul.f32.gmra.mxu0 %v6109
  %v6317 = vpop.f32.mrf.mxu0
  %v6318 = vadd.f32 %v6048, %v6317
  %6319 = vmatmul.f32.gmra.mxu0 %v6112
  %v6320 = vpop.f32.mrf.mxu0
  %v6321 = vadd.f32 %v6048, %v6320
  %6322 = vmatmul.f32.gmra.mxu0 %v6115
  %v6323 = vpop.f32.mrf.mxu0
  %v6324 = vadd.f32 %v6048, %v6323
  %6325 = vmatmul.f32.gmra.mxu0 %v6118
  %v6326 = vpop.f32.mrf.mxu0
  %v6327 = vadd.f32 %v6048, %v6326
  %6328 = vmatmul.f32.gmra.mxu0 %v6121
  %v6329 = vpop.f32.mrf.mxu0
  %v6330 = vadd.f32 %v6048, %v6329
  %6331 = vmatmul.f32.gmra.mxu0 %v6124
  %v6332 = vpop.f32.mrf.mxu0
  %v6333 = vadd.f32 %v6048, %v6332
  %6334 = vmatmul.f32.gmra.mxu0 %v6127
  %v6335 = vpop.f32.mrf.mxu0
  %v6336 = vadd.f32 %v6048, %v6335
  %6337 = vmatmul.f32.gmra.mxu0 %v6130
  %v6338 = vpop.f32.mrf.mxu0
  %v6339 = vadd.f32 %v6048, %v6338
  %6340 = vmatmul.f32.gmra.mxu0 %v6133
  %v6341 = vpop.f32.mrf.mxu0
  %v6342 = vadd.f32 %v6048, %v6341
  %6343 = vmatmul.f32.gmra.mxu0 %v6136
  %v6344 = vpop.f32.mrf.mxu0
  %v6345 = vadd.f32 %v6048, %v6344
  %6346 = vmatmul.f32.gmra.mxu0 %v6139
  %v6347 = vpop.f32.mrf.mxu0
  %v6348 = vadd.f32 %v6048, %v6347
  %6349 = vmatmul.f32.gmra.mxu0 %v6142
  %v6350 = vpop.f32.mrf.mxu0
  %v6351 = vadd.f32 %v6048, %v6350
  %6352 = vmatmul.f32.gmra.mxu0 %v6145
  %v6353 = vpop.f32.mrf.mxu0
  %v6354 = vadd.f32 %v6048, %v6353
  %6355 = vmatmul.f32.gmra.mxu0 %v6148
  %v6356 = vpop.f32.mrf.mxu0
  %v6357 = vadd.f32 %v6048, %v6356
  %6358 = vmatmul.f32.gmra.mxu0 %v6151
  %v6359 = vpop.f32.mrf.mxu0
  %v6360 = vadd.f32 %v6048, %v6359
  %6361 = vmatmul.f32.gmra.mxu0 %v6154
  %v6362 = vpop.f32.mrf.mxu0
  %v6363 = vadd.f32 %v6048, %v6362
  %6364 = vmatmul.f32.gmra.mxu0 %v6157
  %v6365 = vpop.f32.mrf.mxu0
  %v6366 = vadd.f32 %v6048, %v6365
  %6367 = vmatmul.f32.gmra.mxu0 %v6160
  %v6368 = vpop.f32.mrf.mxu0
  %v6369 = vadd.f32 %v6048, %v6368
  %6370 = vmatmul.f32.gmra.mxu0 %v6163
  %v6371 = vpop.f32.mrf.mxu0
  %v6372 = vadd.f32 %v6048, %v6371
  %6373 = vmatmul.f32.gmra.mxu0 %v6166
  %v6374 = vpop.f32.mrf.mxu0
  %v6375 = vadd.f32 %v6048, %v6374
  %6376 = vmatmul.f32.gmra.mxu0 %v6169
  %v6377 = vpop.f32.mrf.mxu0
  %v6378 = vadd.f32 %v6048, %v6377
  %6379 = vmatmul.f32.gmra.mxu0 %v6172
  %v6380 = vpop.f32.mrf.mxu0
  %v6381 = vadd.f32 %v6048, %v6380
  %6382 = vmatmul.f32.gmra.mxu0 %v6175
  %v6383 = vpop.f32.mrf.mxu0
  %v6384 = vadd.f32 %v6048, %v6383
  %6385 = vmatmul.f32.gmra.mxu0 %v6178
  %v6386 = vpop.f32.mrf.mxu0
  %v6387 = vadd.f32 %v6048, %v6386
  %6388 = vmatmul.f32.gmra.mxu0 %v6181
  %v6389 = vpop.f32.mrf.mxu0
  %v6390 = vadd.f32 %v6048, %v6389
  %6391 = vmatmul.f32.gmra.mxu0 %v6184
  %v6392 = vpop.f32.mrf.mxu0
  %v6393 = vadd.f32 %v6048, %v6392
  %6394 = vmatmul.f32.gmra.mxu0 %v6187
  %v6395 = vpop.f32.mrf.mxu0
  %v6396 = vadd.f32 %v6048, %v6395
  %6397 = vmatmul.f32.gmra.mxu0 %v6190
  %v6398 = vpop.f32.mrf.mxu0
  %v6399 = vadd.f32 %v6048, %v6398
  %6400 = vmatmul.f32.gmra.mxu0 %v6193
  %v6401 = vpop.f32.mrf.mxu0
  %v6402 = vadd.f32 %v6048, %v6401
  %6403 = vmatmul.f32.gmra.mxu0 %v6196
  %v6404 = vpop.f32.mrf.mxu0
  %v6405 = vadd.f32 %v6048, %v6404
  %6406 = vmatmul.f32.gmra.mxu0 %v6199
  %v6407 = vpop.f32.mrf.mxu0
  %v6408 = vadd.f32 %v6048, %v6407
  %6409 = vmatmul.f32.gmra.mxu0 %v6202
  %v6410 = vpop.f32.mrf.mxu0
  %v6411 = vadd.f32 %v6048, %v6410
  %6412 = vmatmul.f32.gmra.mxu0 %v6205
  %v6413 = vpop.f32.mrf.mxu0
  %v6414 = vadd.f32 %v6048, %v6413
  %6415 = vmatmul.f32.gmra.mxu0 %v6208
  %v6416 = vpop.f32.mrf.mxu0
  %v6417 = vadd.f32 %v6048, %v6416
  %6418 = vmatmul.f32.gmra.mxu0 %v6211
  %v6419 = vpop.f32.mrf.mxu0
  %v6420 = vadd.f32 %v6048, %v6419
  %6421 = vmatmul.f32.gmra.mxu0 %v6214
  %v6422 = vpop.f32.mrf.mxu0
  %v6423 = vadd.f32 %v6048, %v6422
  %6424 = vmatmul.f32.gmra.mxu0 %v6217
  %v6425 = vpop.f32.mrf.mxu0
  %v6426 = vadd.f32 %v6048, %v6425
  %6427 = vmatmul.f32.gmra.mxu0 %v6220
  %v6428 = vpop.f32.mrf.mxu0
  %v6429 = vadd.f32 %v6048, %v6428
  %6430 = vmatmul.f32.gmra.mxu0 %v6223
  %v6431 = vpop.f32.mrf.mxu0
  %v6432 = vadd.f32 %v6048, %v6431
  %6433 = vmatmul.f32.gmra.mxu0 %v6226
  %v6434 = vpop.f32.mrf.mxu0
  %v6435 = vadd.f32 %v6048, %v6434
  %6436 = vmatmul.f32.gmra.mxu0 %v6229
  %v6437 = vpop.f32.mrf.mxu0
  %v6438 = vadd.f32 %v6048, %v6437
  %6439 = vmatmul.f32.gmra.mxu0 %v6232
  %v6440 = vpop.f32.mrf.mxu0
  %v6441 = vadd.f32 %v6048, %v6440
  %6442 = vmatmul.f32.gmra.mxu0 %v6235
  %v6443 = vpop.f32.mrf.mxu0
  %v6444 = vadd.f32 %v6048, %v6443
  %6445 = vmatmul.f32.gmra.mxu0 %v6238
  %v6446 = vpop.f32.mrf.mxu0
  %v6447 = vadd.f32 %v6048, %v6446
  %6448 = vmatmul.f32.gmra.mxu0 %v6241
  %v6449 = vpop.f32.mrf.mxu0
  %v6450 = vadd.f32 %v6048, %v6449
  %6451 = vdwg.mxu0
  %v6452 = vmax.f32 %v6261, 0.0
  %v6453 = vmax.f32 %v6264, 0.0
  %v6454 = vmax.f32 %v6267, 0.0
  %v6455 = vmax.f32 %v6270, 0.0
  %v6456 = vmax.f32 %v6273, 0.0
  %v6457 = vmax.f32 %v6276, 0.0
  %v6458 = vmax.f32 %v6279, 0.0
  %v6459 = vmax.f32 %v6282, 0.0
  %v6460 = vmax.f32 %v6285, 0.0
  %v6461 = vmax.f32 %v6288, 0.0
  %v6462 = vmax.f32 %v6291, 0.0
  %v6463 = vmax.f32 %v6294, 0.0
  %v6464 = vmax.f32 %v6297, 0.0
  %v6465 = vmax.f32 %v6300, 0.0
  %v6466 = vmax.f32 %v6303, 0.0
  %v6467 = vmax.f32 %v6306, 0.0
  %v6468 = vmax.f32 %v6309, 0.0
  %v6469 = vmax.f32 %v6312, 0.0
  %v6470 = vmax.f32 %v6315, 0.0
  %v6471 = vmax.f32 %v6318, 0.0
  %v6472 = vmax.f32 %v6321, 0.0
  %v6473 = vmax.f32 %v6324, 0.0
  %v6474 = vmax.f32 %v6327, 0.0
  %v6475 = vmax.f32 %v6330, 0.0
  %v6476 = vmax.f32 %v6333, 0.0
  %v6477 = vmax.f32 %v6336, 0.0
  %v6478 = vmax.f32 %v6339, 0.0
  %v6479 = vmax.f32 %v6342, 0.0
  %v6480 = vmax.f32 %v6345, 0.0
  %v6481 = vmax.f32 %v6348, 0.0
  %v6482 = vmax.f32 %v6351, 0.0
  %v6483 = vmax.f32 %v6354, 0.0
  %v6484 = vmax.f32 %v6357, 0.0
  %v6485 = vmax.f32 %v6360, 0.0
  %v6486 = vmax.f32 %v6363, 0.0
  %v6487 = vmax.f32 %v6366, 0.0
  %v6488 = vmax.f32 %v6369, 0.0
  %v6489 = vmax.f32 %v6372, 0.0
  %v6490 = vmax.f32 %v6375, 0.0
  %v6491 = vmax.f32 %v6378, 0.0
  %v6492 = vmax.f32 %v6381, 0.0
  %v6493 = vmax.f32 %v6384, 0.0
  %v6494 = vmax.f32 %v6387, 0.0
  %v6495 = vmax.f32 %v6390, 0.0
  %v6496 = vmax.f32 %v6393, 0.0
  %v6497 = vmax.f32 %v6396, 0.0
  %v6498 = vmax.f32 %v6399, 0.0
  %v6499 = vmax.f32 %v6402, 0.0
  %v6500 = vmax.f32 %v6405, 0.0
  %v6501 = vmax.f32 %v6408, 0.0
  %v6502 = vmax.f32 %v6411, 0.0
  %v6503 = vmax.f32 %v6414, 0.0
  %v6504 = vmax.f32 %v6417, 0.0
  %v6505 = vmax.f32 %v6420, 0.0
  %v6506 = vmax.f32 %v6423, 0.0
  %v6507 = vmax.f32 %v6426, 0.0
  %v6508 = vmax.f32 %v6429, 0.0
  %v6509 = vmax.f32 %v6432, 0.0
  %v6510 = vmax.f32 %v6435, 0.0
  %v6511 = vmax.f32 %v6438, 0.0
  %v6512 = vmax.f32 %v6441, 0.0
  %v6513 = vmax.f32 %v6444, 0.0
  %v6514 = vmax.f32 %v6447, 0.0
  %v6515 = vmax.f32 %v6450, 0.0
  %v6516 = vld [vmem:[%s5] sm:$0xff]
  %v6517 = vld [vmem:[%s5 + $0x8] sm:$0xff]
  %v6518 = vld [vmem:[%s5 + $0x10] sm:$0xff]
  %v6519 = vld [vmem:[%s5 + $0x18] sm:$0xff]
  %v6520 = vld [vmem:[%s5 + $0x20] sm:$0xff]
  %v6521 = vld [vmem:[%s5 + $0x28] sm:$0xff]
  %v6522 = vld [vmem:[%s5 + $0x30] sm:$0xff]
  %v6523 = vld [vmem:[%s5 + $0x38] sm:$0xff]
  %v6524 = vld [vmem:[%s5 + $0x40] sm:$0xff]
  %v6525 = vld [vmem:[%s6] sm:$0x1]
  %v6590 = vrot.slane %v6452, 7
  %v6591 = vrot.slane %v6453, 7
  %v6592 = vsel %vm163, %v6590, %v6591
  %v6593 = vrot.slane %v6454, 7
  %v6594 = vrot.slane %v6455, 7
  %v6595 = vsel %vm163, %v6593, %v6594
  %v6596 = vrot.slane %v6456, 7
  %v6597 = vrot.slane %v6457, 7
  %v6598 = vsel %vm163, %v6596, %v6597
  %v6599 = vrot.slane %v6458, 7
  %v6600 = vrot.slane %v6459, 7
  %v6601 = vsel %vm163, %v6599, %v6600
  %v6602 = vrot.slane %v6460, 7
  %v6603 = vrot.slane %v6461, 7
  %v6604 = vsel %vm163, %v6602, %v6603
  %v6605 = vrot.slane %v6462, 7
  %v6606 = vrot.slane %v6463, 7
  %v6607 = vsel %vm163, %v6605, %v6606
  %v6608 = vrot.slane %v6464, 7
  %v6609 = vrot.slane %v6465, 7
  %v6610 = vsel %vm163, %v6608, %v6609
  %v6611 = vrot.slane %v6466, 7
  %v6612 = vrot.slane %v6467, 7
  %v6613 = vsel %vm163, %v6611, %v6612
  %v6614 = vrot.slane %v6468, 7
  %v6615 = vrot.slane %v6469, 7
  %v6616 = vsel %vm163, %v6614, %v6615
  %v6617 = vrot.slane %v6470, 7
  %v6618 = vrot.slane %v6471, 7
  %v6619 = vsel %vm163, %v6617, %v6618
  %v6620 = vrot.slane %v6472, 7
  %v6621 = vrot.slane %v6473, 7
  %v6622 = vsel %vm163, %v6620, %v6621
  %v6623 = vrot.slane %v6474, 7
  %v6624 = vrot.slane %v6475, 7
  %v6625 = vsel %vm163, %v6623, %v6624
  %v6626 = vrot.slane %v6476, 7
  %v6627 = vrot.slane %v6477, 7
  %v6628 = vsel %vm163, %v6626, %v6627
  %v6629 = vrot.slane %v6478, 7
  %v6630 = vrot.slane %v6479, 7
  %v6631 = vsel %vm163, %v6629, %v6630
  %v6632 = vrot.slane %v6480, 7
  %v6633 = vrot.slane %v6481, 7
  %v6634 = vsel %vm163, %v6632, %v6633
  %v6635 = vrot.slane %v6482, 7
  %v6636 = vrot.slane %v6483, 7
  %v6637 = vsel %vm163, %v6635, %v6636
  %v6638 = vrot.slane %v6484, 7
  %v6639 = vrot.slane %v6485, 7
  %v6640 = vsel %vm163, %v6638, %v6639
  %v6641 = vrot.slane %v6486, 7
  %v6642 = vrot.slane %v6487, 7
  %v6643 = vsel %vm163, %v6641, %v6642
  %v6644 = vrot.slane %v6488, 7
  %v6645 = vrot.slane %v6489, 7
  %v6646 = vsel %vm163, %v6644, %v6645
  %v6647 = vrot.slane %v6490, 7
  %v6648 = vrot.slane %v6491, 7
  %v6649 = vsel %vm163, %v6647, %v6648
  %v6650 = vrot.slane %v6492, 7
  %v6651 = vrot.slane %v6493, 7
  %v6652 = vsel %vm163, %v6650, %v6651
  %v6653 = vrot.slane %v6494, 7
  %v6654 = vrot.slane %v6495, 7
  %v6655 = vsel %vm163, %v6653, %v6654
  %v6656 = vrot.slane %v6496, 7
  %v6657 = vrot.slane %v6497, 7
  %v6658 = vsel %vm163, %v6656, %v6657
  %v6659 = vrot.slane %v6498, 7
  %v6660 = vrot.slane %v6499, 7
  %v6661 = vsel %vm163, %v6659, %v6660
  %v6662 = vrot.slane %v6500, 7
  %v6663 = vrot.slane %v6501, 7
  %v6664 = vsel %vm163, %v6662, %v6663
  %v6665 = vrot.slane %v6502, 7
  %v6666 = vrot.slane %v6503, 7
  %v6667 = vsel %vm163, %v6665, %v6666
  %v6668 = vrot.slane %v6504, 7
  %v6669 = vrot.slane %v6505, 7
  %v6670 = vsel %vm163, %v6668, %v6669
  %v6671 = vrot.slane %v6506, 7
  %v6672 = vrot.slane %v6507, 7
  %v6673 = vsel %vm163, %v6671, %v6672
  %v6674 = vrot.slane %v6508, 7
  %v6675 = vrot.slane %v6509, 7
  %v6676 = vsel %vm163, %v6674, %v6675
  %v6677 = vrot.slane %v6510, 7
  %v6678 = vrot.slane %v6511, 7
  %v6679 = vsel %vm163, %v6677, %v6678
  %v6680 = vrot.slane %v6512, 7
  %v6681 = vrot.slane %v6513, 7
  %v6682 = vsel %vm163, %v6680, %v6681
  %v6683 = vrot.slane %v6514, 7
  %v6684 = vrot.slane %v6515, 7
  %v6685 = vsel %vm163, %v6683, %v6684
  %v6780 = vsel %vm163, 0.0, %v6590
  %v6781 = vsel %vm163, 0.0, %v6593
  %v6782 = vsel %vm163, 0.0, %v6596
  %v6783 = vsel %vm163, 0.0, %v6599
  %v6784 = vsel %vm163, 0.0, %v6602
  %v6785 = vsel %vm163, 0.0, %v6605
  %v6786 = vsel %vm163, 0.0, %v6608
  %v6787 = vsel %vm163, 0.0, %v6611
  %v6788 = vsel %vm163, 0.0, %v6614
  %v6789 = vsel %vm163, 0.0, %v6617
  %v6790 = vsel %vm163, 0.0, %v6620
  %v6791 = vsel %vm163, 0.0, %v6623
  %v6792 = vsel %vm163, 0.0, %v6626
  %v6793 = vsel %vm163, 0.0, %v6629
  %v6794 = vsel %vm163, 0.0, %v6632
  %v6795 = vsel %vm163, 0.0, %v6635
  %v6796 = vsel %vm163, 0.0, %v6638
  %v6797 = vsel %vm163, 0.0, %v6641
  %v6798 = vsel %vm163, 0.0, %v6644
  %v6799 = vsel %vm163, 0.0, %v6647
  %v6800 = vsel %vm163, 0.0, %v6650
  %v6801 = vsel %vm163, 0.0, %v6653
  %v6802 = vsel %vm163, 0.0, %v6656
  %v6803 = vsel %vm163, 0.0, %v6659
  %v6804 = vsel %vm163, 0.0, %v6662
  %v6805 = vsel %vm163, 0.0, %v6665
  %v6806 = vsel %vm163, 0.0, %v6668
  %v6807 = vsel %vm163, 0.0, %v6671
  %v6808 = vsel %vm163, 0.0, %v6674
  %v6809 = vsel %vm163, 0.0, %v6677
  %v6810 = vsel %vm163, 0.0, %v6680
  %v6811 = vsel %vm163, 0.0, %v6683
  %v6812 = vsel %vm163, %v6591, 0.0
  %v6813 = vsel %vm163, %v6594, 0.0
  %v6814 = vsel %vm163, %v6597, 0.0
  %v6815 = vsel %vm163, %v6600, 0.0
  %v6816 = vsel %vm163, %v6603, 0.0
  %v6817 = vsel %vm163, %v6606, 0.0
  %v6818 = vsel %vm163, %v6609, 0.0
  %v6819 = vsel %vm163, %v6612, 0.0
  %v6820 = vsel %vm163, %v6615, 0.0
  %v6821 = vsel %vm163, %v6618, 0.0
  %v6822 = vsel %vm163, %v6621, 0.0
  %v6823 = vsel %vm163, %v6624, 0.0
  %v6824 = vsel %vm163, %v6627, 0.0
  %v6825 = vsel %vm163, %v6630, 0.0
  %v6826 = vsel %vm163, %v6633, 0.0
  %v6827 = vsel %vm163, %v6636, 0.0
  %v6828 = vsel %vm163, %v6639, 0.0
  %v6829 = vsel %vm163, %v6642, 0.0
  %v6830 = vsel %vm163, %v6645, 0.0
  %v6831 = vsel %vm163, %v6648, 0.0
  %v6832 = vsel %vm163, %v6651, 0.0
  %v6833 = vsel %vm163, %v6654, 0.0
  %v6834 = vsel %vm163, %v6657, 0.0
  %v6835 = vsel %vm163, %v6660, 0.0
  %v6836 = vsel %vm163, %v6663, 0.0
  %v6837 = vsel %vm163, %v6666, 0.0
  %v6838 = vsel %vm163, %v6669, 0.0
  %v6839 = vsel %vm163, %v6672, 0.0
  %v6840 = vsel %vm163, %v6675, 0.0
  %v6841 = vsel %vm163, %v6678, 0.0
  %v6842 = vsel %vm163, %v6681, 0.0
  %v6843 = vsel %vm163, %v6684, 0.0
  %v6904 = vrot.slane %v6780, 1
  %v6905 = vrot.slane %v6592, 1
  %v6906 = vsel %vm486, %v6904, %v6905
  %v6907 = vrot.slane %v6812, 1
  %v6908 = vsel %vm486, %v6905, %v6907
  %v6909 = vrot.slane %v6781, 1
  %v6910 = vrot.slane %v6595, 1
  %v6911 = vsel %vm486, %v6909, %v6910
  %v6912 = vrot.slane %v6813, 1
  %v6913 = vsel %vm486, %v6910, %v6912
  %v6914 = vrot.slane %v6782, 1
  %v6915 = vrot.slane %v6598, 1
  %v6916 = vsel %vm486, %v6914, %v6915
  %v6917 = vrot.slane %v6814, 1
  %v6918 = vsel %vm486, %v6915, %v6917
  %v6919 = vrot.slane %v6783, 1
  %v6920 = vrot.slane %v6601, 1
  %v6921 = vsel %vm486, %v6919, %v6920
  %v6922 = vrot.slane %v6815, 1
  %v6923 = vsel %vm486, %v6920, %v6922
  %v6924 = vrot.slane %v6784, 1
  %v6925 = vrot.slane %v6604, 1
  %v6926 = vsel %vm486, %v6924, %v6925
  %v6927 = vrot.slane %v6816, 1
  %v6928 = vsel %vm486, %v6925, %v6927
  %v6929 = vrot.slane %v6785, 1
  %v6930 = vrot.slane %v6607, 1
  %v6931 = vsel %vm486, %v6929, %v6930
  %v6932 = vrot.slane %v6817, 1
  %v6933 = vsel %vm486, %v6930, %v6932
  %v6934 = vrot.slane %v6786, 1
  %v6935 = vrot.slane %v6610, 1
  %v6936 = vsel %vm486, %v6934, %v6935
  %v6937 = vrot.slane %v6818, 1
  %v6938 = vsel %vm486, %v6935, %v6937
  %v6939 = vrot.slane %v6787, 1
  %v6940 = vrot.slane %v6613, 1
  %v6941 = vsel %vm486, %v6939, %v6940
  %v6942 = vrot.slane %v6819, 1
  %v6943 = vsel %vm486, %v6940, %v6942
  %v6944 = vrot.slane %v6788, 1
  %v6945 = vrot.slane %v6616, 1
  %v6946 = vsel %vm486, %v6944, %v6945
  %v6947 = vrot.slane %v6820, 1
  %v6948 = vsel %vm486, %v6945, %v6947
  %v6949 = vrot.slane %v6789, 1
  %v6950 = vrot.slane %v6619, 1
  %v6951 = vsel %vm486, %v6949, %v6950
  %v6952 = vrot.slane %v6821, 1
  %v6953 = vsel %vm486, %v6950, %v6952
  %v6954 = vrot.slane %v6790, 1
  %v6955 = vrot.slane %v6622, 1
  %v6956 = vsel %vm486, %v6954, %v6955
  %v6957 = vrot.slane %v6822, 1
  %v6958 = vsel %vm486, %v6955, %v6957
  %v6959 = vrot.slane %v6791, 1
  %v6960 = vrot.slane %v6625, 1
  %v6961 = vsel %vm486, %v6959, %v6960
  %v6962 = vrot.slane %v6823, 1
  %v6963 = vsel %vm486, %v6960, %v6962
  %v6964 = vrot.slane %v6792, 1
  %v6965 = vrot.slane %v6628, 1
  %v6966 = vsel %vm486, %v6964, %v6965
  %v6967 = vrot.slane %v6824, 1
  %v6968 = vsel %vm486, %v6965, %v6967
  %v6969 = vrot.slane %v6793, 1
  %v6970 = vrot.slane %v6631, 1
  %v6971 = vsel %vm486, %v6969, %v6970
  %v6972 = vrot.slane %v6825, 1
  %v6973 = vsel %vm486, %v6970, %v6972
  %v6974 = vrot.slane %v6794, 1
  %v6975 = vrot.slane %v6634, 1
  %v6976 = vsel %vm486, %v6974, %v6975
  %v6977 = vrot.slane %v6826, 1
  %v6978 = vsel %vm486, %v6975, %v6977
  %v6979 = vrot.slane %v6796, 1
  %v6980 = vrot.slane %v6640, 1
  %v6981 = vsel %vm486, %v6979, %v6980
  %v6982 = vrot.slane %v6828, 1
  %v6983 = vsel %vm486, %v6980, %v6982
  %v6984 = vrot.slane %v6797, 1
  %v6985 = vrot.slane %v6643, 1
  %v6986 = vsel %vm486, %v6984, %v6985
  %v6987 = vrot.slane %v6829, 1
  %v6988 = vsel %vm486, %v6985, %v6987
  %v6989 = vrot.slane %v6798, 1
  %v6990 = vrot.slane %v6646, 1
  %v6991 = vsel %vm486, %v6989, %v6990
  %v6992 = vrot.slane %v6830, 1
  %v6993 = vsel %vm486, %v6990, %v6992
  %v6994 = vrot.slane %v6799, 1
  %v6995 = vrot.slane %v6649, 1
  %v6996 = vsel %vm486, %v6994, %v6995
  %v6997 = vrot.slane %v6831, 1
  %v6998 = vsel %vm486, %v6995, %v6997
  %v6999 = vrot.slane %v6800, 1
  %v7000 = vrot.slane %v6652, 1
  %v7001 = vsel %vm486, %v6999, %v7000
  %v7002 = vrot.slane %v6832, 1
  %v7003 = vsel %vm486, %v7000, %v7002
  %v7004 = vrot.slane %v6801, 1
  %v7005 = vrot.slane %v6655, 1
  %v7006 = vsel %vm486, %v7004, %v7005
  %v7007 = vrot.slane %v6833, 1
  %v7008 = vsel %vm486, %v7005, %v7007
  %v7009 = vrot.slane %v6802, 1
  %v7010 = vrot.slane %v6658, 1
  %v7011 = vsel %vm486, %v7009, %v7010
  %v7012 = vrot.slane %v6834, 1
  %v7013 = vsel %vm486, %v7010, %v7012
  %v7014 = vrot.slane %v6803, 1
  %v7015 = vrot.slane %v6661, 1
  %v7016 = vsel %vm486, %v7014, %v7015
  %v7017 = vrot.slane %v6835, 1
  %v7018 = vsel %vm486, %v7015, %v7017
  %v7019 = vrot.slane %v6804, 1
  %v7020 = vrot.slane %v6664, 1
  %v7021 = vsel %vm486, %v7019, %v7020
  %v7022 = vrot.slane %v6836, 1
  %v7023 = vsel %vm486, %v7020, %v7022
  %v7024 = vrot.slane %v6805, 1
  %v7025 = vrot.slane %v6667, 1
  %v7026 = vsel %vm486, %v7024, %v7025
  %v7027 = vrot.slane %v6837, 1
  %v7028 = vsel %vm486, %v7025, %v7027
  %v7029 = vrot.slane %v6806, 1
  %v7030 = vrot.slane %v6670, 1
  %v7031 = vsel %vm486, %v7029, %v7030
  %v7032 = vrot.slane %v6838, 1
  %v7033 = vsel %vm486, %v7030, %v7032
  %v7034 = vrot.slane %v6807, 1
  %v7035 = vrot.slane %v6673, 1
  %v7036 = vsel %vm486, %v7034, %v7035
  %v7037 = vrot.slane %v6839, 1
  %v7038 = vsel %vm486, %v7035, %v7037
  %v7039 = vrot.slane %v6808, 1
  %v7040 = vrot.slane %v6676, 1
  %v7041 = vsel %vm486, %v7039, %v7040
  %v7042 = vrot.slane %v6840, 1
  %v7043 = vsel %vm486, %v7040, %v7042
  %v7044 = vrot.slane %v6809, 1
  %v7045 = vrot.slane %v6679, 1
  %v7046 = vsel %vm486, %v7044, %v7045
  %v7047 = vrot.slane %v6841, 1
  %v7048 = vsel %vm486, %v7045, %v7047
  %v7049 = vrot.slane %v6810, 1
  %v7050 = vrot.slane %v6682, 1
  %v7051 = vsel %vm486, %v7049, %v7050
  %v7052 = vrot.slane %v6842, 1
  %v7053 = vsel %vm486, %v7050, %v7052
  %7054 = vrot.lane.b32.xlu0 %v6906, 8
  %v7055 = vpop.permute.xlu0 %7054
  %7056 = vrot.lane.b32.xlu0 %v6908, 8
  %v7057 = vpop.permute.xlu0 %7056
  %7058 = vrot.lane.b32.xlu0 %v6911, 8
  %v7059 = vpop.permute.xlu0 %7058
  %7060 = vrot.lane.b32.xlu0 %v6913, 8
  %v7061 = vpop.permute.xlu0 %7060
  %7062 = vrot.lane.b32.xlu0 %v6916, 8
  %v7063 = vpop.permute.xlu0 %7062
  %7064 = vrot.lane.b32.xlu0 %v6918, 8
  %v7065 = vpop.permute.xlu0 %7064
  %7066 = vrot.lane.b32.xlu0 %v6921, 8
  %v7067 = vpop.permute.xlu0 %7066
  %7068 = vrot.lane.b32.xlu0 %v6923, 8
  %v7069 = vpop.permute.xlu0 %7068
  %7070 = vrot.lane.b32.xlu0 %v6926, 8
  %v7071 = vpop.permute.xlu0 %7070
  %7072 = vrot.lane.b32.xlu0 %v6928, 8
  %v7073 = vpop.permute.xlu0 %7072
  %7074 = vrot.lane.b32.xlu0 %v6931, 8
  %v7075 = vpop.permute.xlu0 %7074
  %7076 = vrot.lane.b32.xlu0 %v6933, 8
  %v7077 = vpop.permute.xlu0 %7076
  %7078 = vrot.lane.b32.xlu0 %v6936, 8
  %v7079 = vpop.permute.xlu0 %7078
  %7080 = vrot.lane.b32.xlu0 %v6938, 8
  %v7081 = vpop.permute.xlu0 %7080
  %7082 = vrot.lane.b32.xlu0 %v6941, 8
  %v7083 = vpop.permute.xlu0 %7082
  %7084 = vrot.lane.b32.xlu0 %v6943, 8
  %v7085 = vpop.permute.xlu0 %7084
  %7086 = vrot.lane.b32.xlu0 %v6946, 8
  %v7087 = vpop.permute.xlu0 %7086
  %7088 = vrot.lane.b32.xlu0 %v6948, 8
  %v7089 = vpop.permute.xlu0 %7088
  %7090 = vrot.lane.b32.xlu0 %v6951, 8
  %v7091 = vpop.permute.xlu0 %7090
  %7092 = vrot.lane.b32.xlu0 %v6953, 8
  %v7093 = vpop.permute.xlu0 %7092
  %7094 = vrot.lane.b32.xlu0 %v6956, 8
  %v7095 = vpop.permute.xlu0 %7094
  %7096 = vrot.lane.b32.xlu0 %v6958, 8
  %v7097 = vpop.permute.xlu0 %7096
  %7098 = vrot.lane.b32.xlu0 %v6961, 8
  %v7099 = vpop.permute.xlu0 %7098
  %7100 = vrot.lane.b32.xlu0 %v6963, 8
  %v7101 = vpop.permute.xlu0 %7100
  %7102 = vrot.lane.b32.xlu0 %v6966, 8
  %v7103 = vpop.permute.xlu0 %7102
  %7104 = vrot.lane.b32.xlu0 %v6968, 8
  %v7105 = vpop.permute.xlu0 %7104
  %7106 = vrot.lane.b32.xlu0 %v6971, 8
  %v7107 = vpop.permute.xlu0 %7106
  %7108 = vrot.lane.b32.xlu0 %v6973, 8
  %v7109 = vpop.permute.xlu0 %7108
  %7110 = vrot.lane.b32.xlu0 %v6976, 8
  %v7111 = vpop.permute.xlu0 %7110
  %7112 = vrot.lane.b32.xlu0 %v6978, 8
  %v7113 = vpop.permute.xlu0 %7112
  %7114 = vrot.lane.b32.xlu0 %v6981, 8
  %v7115 = vpop.permute.xlu0 %7114
  %7116 = vrot.lane.b32.xlu0 %v6983, 8
  %v7117 = vpop.permute.xlu0 %7116
  %7118 = vrot.lane.b32.xlu0 %v6986, 8
  %v7119 = vpop.permute.xlu0 %7118
  %7120 = vrot.lane.b32.xlu0 %v6988, 8
  %v7121 = vpop.permute.xlu0 %7120
  %7122 = vrot.lane.b32.xlu0 %v6991, 8
  %v7123 = vpop.permute.xlu0 %7122
  %7124 = vrot.lane.b32.xlu0 %v6993, 8
  %v7125 = vpop.permute.xlu0 %7124
  %7126 = vrot.lane.b32.xlu0 %v6996, 8
  %v7127 = vpop.permute.xlu0 %7126
  %7128 = vrot.lane.b32.xlu0 %v6998, 8
  %v7129 = vpop.permute.xlu0 %7128
  %7130 = vrot.lane.b32.xlu0 %v7001, 8
  %v7131 = vpop.permute.xlu0 %7130
  %7132 = vrot.lane.b32.xlu0 %v7003, 8
  %v7133 = vpop.permute.xlu0 %7132
  %7134 = vrot.lane.b32.xlu0 %v7006, 8
  %v7135 = vpop.permute.xlu0 %7134
  %7136 = vrot.lane.b32.xlu0 %v7008, 8
  %v7137 = vpop.permute.xlu0 %7136
  %7138 = vrot.lane.b32.xlu0 %v7011, 8
  %v7139 = vpop.permute.xlu0 %7138
  %7140 = vrot.lane.b32.xlu0 %v7013, 8
  %v7141 = vpop.permute.xlu0 %7140
  %7142 = vrot.lane.b32.xlu0 %v7016, 8
  %v7143 = vpop.permute.xlu0 %7142
  %7144 = vrot.lane.b32.xlu0 %v7018, 8
  %v7145 = vpop.permute.xlu0 %7144
  %7146 = vrot.lane.b32.xlu0 %v7021, 8
  %v7147 = vpop.permute.xlu0 %7146
  %7148 = vrot.lane.b32.xlu0 %v7023, 8
  %v7149 = vpop.permute.xlu0 %7148
  %7150 = vrot.lane.b32.xlu0 %v7026, 8
  %v7151 = vpop.permute.xlu0 %7150
  %7152 = vrot.lane.b32.xlu0 %v7028, 8
  %v7153 = vpop.permute.xlu0 %7152
  %7154 = vrot.lane.b32.xlu0 %v7031, 8
  %v7155 = vpop.permute.xlu0 %7154
  %7156 = vrot.lane.b32.xlu0 %v7033, 8
  %v7157 = vpop.permute.xlu0 %7156
  %7158 = vrot.lane.b32.xlu0 %v7036, 8
  %v7159 = vpop.permute.xlu0 %7158
  %7160 = vrot.lane.b32.xlu0 %v7038, 8
  %v7161 = vpop.permute.xlu0 %7160
  %7162 = vrot.lane.b32.xlu0 %v7041, 8
  %v7163 = vpop.permute.xlu0 %7162
  %7164 = vrot.lane.b32.xlu0 %v7043, 8
  %v7165 = vpop.permute.xlu0 %7164
  %7166 = vrot.lane.b32.xlu0 %v7046, 8
  %v7167 = vpop.permute.xlu0 %7166
  %7168 = vrot.lane.b32.xlu0 %v7048, 8
  %v7169 = vpop.permute.xlu0 %7168
  %7170 = vrot.lane.b32.xlu0 %v7051, 8
  %v7171 = vpop.permute.xlu0 %7170
  %7172 = vrot.lane.b32.xlu0 %v7053, 8
  %v7173 = vpop.permute.xlu0 %7172
  %v7234 = vrot.slane %v6780, 2
  %v7235 = vrot.slane %v6592, 2
  %v7236 = vsel %vm828, %v7234, %v7235
  %v7237 = vrot.slane %v6812, 2
  %v7238 = vsel %vm828, %v7235, %v7237
  %v7239 = vrot.slane %v6781, 2
  %v7240 = vrot.slane %v6595, 2
  %v7241 = vsel %vm828, %v7239, %v7240
  %v7242 = vrot.slane %v6813, 2
  %v7243 = vsel %vm828, %v7240, %v7242
  %v7244 = vrot.slane %v6782, 2
  %v7245 = vrot.slane %v6598, 2
  %v7246 = vsel %vm828, %v7244, %v7245
  %v7247 = vrot.slane %v6814, 2
  %v7248 = vsel %vm828, %v7245, %v7247
  %v7249 = vrot.slane %v6783, 2
  %v7250 = vrot.slane %v6601, 2
  %v7251 = vsel %vm828, %v7249, %v7250
  %v7252 = vrot.slane %v6815, 2
  %v7253 = vsel %vm828, %v7250, %v7252
  %v7254 = vrot.slane %v6784, 2
  %v7255 = vrot.slane %v6604, 2
  %v7256 = vsel %vm828, %v7254, %v7255
  %v7257 = vrot.slane %v6816, 2
  %v7258 = vsel %vm828, %v7255, %v7257
  %v7259 = vrot.slane %v6785, 2
  %v7260 = vrot.slane %v6607, 2
  %v7261 = vsel %vm828, %v7259, %v7260
  %v7262 = vrot.slane %v6817, 2
  %v7263 = vsel %vm828, %v7260, %v7262
  %v7264 = vrot.slane %v6786, 2
  %v7265 = vrot.slane %v6610, 2
  %v7266 = vsel %vm828, %v7264, %v7265
  %v7267 = vrot.slane %v6818, 2
  %v7268 = vsel %vm828, %v7265, %v7267
  %v7269 = vrot.slane %v6787, 2
  %v7270 = vrot.slane %v6613, 2
  %v7271 = vsel %vm828, %v7269, %v7270
  %v7272 = vrot.slane %v6819, 2
  %v7273 = vsel %vm828, %v7270, %v7272
  %v7274 = vrot.slane %v6788, 2
  %v7275 = vrot.slane %v6616, 2
  %v7276 = vsel %vm828, %v7274, %v7275
  %v7277 = vrot.slane %v6820, 2
  %v7278 = vsel %vm828, %v7275, %v7277
  %v7279 = vrot.slane %v6789, 2
  %v7280 = vrot.slane %v6619, 2
  %v7281 = vsel %vm828, %v7279, %v7280
  %v7282 = vrot.slane %v6821, 2
  %v7283 = vsel %vm828, %v7280, %v7282
  %v7284 = vrot.slane %v6790, 2
  %v7285 = vrot.slane %v6622, 2
  %v7286 = vsel %vm828, %v7284, %v7285
  %v7287 = vrot.slane %v6822, 2
  %v7288 = vsel %vm828, %v7285, %v7287
  %v7289 = vrot.slane %v6791, 2
  %v7290 = vrot.slane %v6625, 2
  %v7291 = vsel %vm828, %v7289, %v7290
  %v7292 = vrot.slane %v6823, 2
  %v7293 = vsel %vm828, %v7290, %v7292
  %v7294 = vrot.slane %v6792, 2
  %v7295 = vrot.slane %v6628, 2
  %v7296 = vsel %vm828, %v7294, %v7295
  %v7297 = vrot.slane %v6824, 2
  %v7298 = vsel %vm828, %v7295, %v7297
  %v7299 = vrot.slane %v6793, 2
  %v7300 = vrot.slane %v6631, 2
  %v7301 = vsel %vm828, %v7299, %v7300
  %v7302 = vrot.slane %v6825, 2
  %v7303 = vsel %vm828, %v7300, %v7302
  %v7304 = vrot.slane %v6794, 2
  %v7305 = vrot.slane %v6634, 2
  %v7306 = vsel %vm828, %v7304, %v7305
  %v7307 = vrot.slane %v6826, 2
  %v7308 = vsel %vm828, %v7305, %v7307
  %v7309 = vrot.slane %v6796, 2
  %v7310 = vrot.slane %v6640, 2
  %v7311 = vsel %vm828, %v7309, %v7310
  %v7312 = vrot.slane %v6828, 2
  %v7313 = vsel %vm828, %v7310, %v7312
  %v7314 = vrot.slane %v6797, 2
  %v7315 = vrot.slane %v6643, 2
  %v7316 = vsel %vm828, %v7314, %v7315
  %v7317 = vrot.slane %v6829, 2
  %v7318 = vsel %vm828, %v7315, %v7317
  %v7319 = vrot.slane %v6798, 2
  %v7320 = vrot.slane %v6646, 2
  %v7321 = vsel %vm828, %v7319, %v7320
  %v7322 = vrot.slane %v6830, 2
  %v7323 = vsel %vm828, %v7320, %v7322
  %v7324 = vrot.slane %v6799, 2
  %v7325 = vrot.slane %v6649, 2
  %v7326 = vsel %vm828, %v7324, %v7325
  %v7327 = vrot.slane %v6831, 2
  %v7328 = vsel %vm828, %v7325, %v7327
  %v7329 = vrot.slane %v6800, 2
  %v7330 = vrot.slane %v6652, 2
  %v7331 = vsel %vm828, %v7329, %v7330
  %v7332 = vrot.slane %v6832, 2
  %v7333 = vsel %vm828, %v7330, %v7332
  %v7334 = vrot.slane %v6801, 2
  %v7335 = vrot.slane %v6655, 2
  %v7336 = vsel %vm828, %v7334, %v7335
  %v7337 = vrot.slane %v6833, 2
  %v7338 = vsel %vm828, %v7335, %v7337
  %v7339 = vrot.slane %v6802, 2
  %v7340 = vrot.slane %v6658, 2
  %v7341 = vsel %vm828, %v7339, %v7340
  %v7342 = vrot.slane %v6834, 2
  %v7343 = vsel %vm828, %v7340, %v7342
  %v7344 = vrot.slane %v6803, 2
  %v7345 = vrot.slane %v6661, 2
  %v7346 = vsel %vm828, %v7344, %v7345
  %v7347 = vrot.slane %v6835, 2
  %v7348 = vsel %vm828, %v7345, %v7347
  %v7349 = vrot.slane %v6804, 2
  %v7350 = vrot.slane %v6664, 2
  %v7351 = vsel %vm828, %v7349, %v7350
  %v7352 = vrot.slane %v6836, 2
  %v7353 = vsel %vm828, %v7350, %v7352
  %v7354 = vrot.slane %v6805, 2
  %v7355 = vrot.slane %v6667, 2
  %v7356 = vsel %vm828, %v7354, %v7355
  %v7357 = vrot.slane %v6837, 2
  %v7358 = vsel %vm828, %v7355, %v7357
  %v7359 = vrot.slane %v6806, 2
  %v7360 = vrot.slane %v6670, 2
  %v7361 = vsel %vm828, %v7359, %v7360
  %v7362 = vrot.slane %v6838, 2
  %v7363 = vsel %vm828, %v7360, %v7362
  %v7364 = vrot.slane %v6807, 2
  %v7365 = vrot.slane %v6673, 2
  %v7366 = vsel %vm828, %v7364, %v7365
  %v7367 = vrot.slane %v6839, 2
  %v7368 = vsel %vm828, %v7365, %v7367
  %v7369 = vrot.slane %v6808, 2
  %v7370 = vrot.slane %v6676, 2
  %v7371 = vsel %vm828, %v7369, %v7370
  %v7372 = vrot.slane %v6840, 2
  %v7373 = vsel %vm828, %v7370, %v7372
  %v7374 = vrot.slane %v6809, 2
  %v7375 = vrot.slane %v6679, 2
  %v7376 = vsel %vm828, %v7374, %v7375
  %v7377 = vrot.slane %v6841, 2
  %v7378 = vsel %vm828, %v7375, %v7377
  %v7379 = vrot.slane %v6810, 2
  %v7380 = vrot.slane %v6682, 2
  %v7381 = vsel %vm828, %v7379, %v7380
  %v7382 = vrot.slane %v6842, 2
  %v7383 = vsel %vm828, %v7380, %v7382
  %7384 = vrot.lane.b32.xlu0 %v7236, 16
  %v7385 = vpop.permute.xlu0 %7384
  %7386 = vrot.lane.b32.xlu0 %v7238, 16
  %v7387 = vpop.permute.xlu0 %7386
  %7388 = vrot.lane.b32.xlu0 %v7241, 16
  %v7389 = vpop.permute.xlu0 %7388
  %7390 = vrot.lane.b32.xlu0 %v7243, 16
  %v7391 = vpop.permute.xlu0 %7390
  %7392 = vrot.lane.b32.xlu0 %v7246, 16
  %v7393 = vpop.permute.xlu0 %7392
  %7394 = vrot.lane.b32.xlu0 %v7248, 16
  %v7395 = vpop.permute.xlu0 %7394
  %7396 = vrot.lane.b32.xlu0 %v7251, 16
  %v7397 = vpop.permute.xlu0 %7396
  %7398 = vrot.lane.b32.xlu0 %v7253, 16
  %v7399 = vpop.permute.xlu0 %7398
  %7400 = vrot.lane.b32.xlu0 %v7256, 16
  %v7401 = vpop.permute.xlu0 %7400
  %7402 = vrot.lane.b32.xlu0 %v7258, 16
  %v7403 = vpop.permute.xlu0 %7402
  %7404 = vrot.lane.b32.xlu0 %v7261, 16
  %v7405 = vpop.permute.xlu0 %7404
  %7406 = vrot.lane.b32.xlu0 %v7263, 16
  %v7407 = vpop.permute.xlu0 %7406
  %7408 = vrot.lane.b32.xlu0 %v7266, 16
  %v7409 = vpop.permute.xlu0 %7408
  %7410 = vrot.lane.b32.xlu0 %v7268, 16
  %v7411 = vpop.permute.xlu0 %7410
  %7412 = vrot.lane.b32.xlu0 %v7271, 16
  %v7413 = vpop.permute.xlu0 %7412
  %7414 = vrot.lane.b32.xlu0 %v7273, 16
  %v7415 = vpop.permute.xlu0 %7414
  %7416 = vrot.lane.b32.xlu0 %v7276, 16
  %v7417 = vpop.permute.xlu0 %7416
  %7418 = vrot.lane.b32.xlu0 %v7278, 16
  %v7419 = vpop.permute.xlu0 %7418
  %7420 = vrot.lane.b32.xlu0 %v7281, 16
  %v7421 = vpop.permute.xlu0 %7420
  %7422 = vrot.lane.b32.xlu0 %v7283, 16
  %v7423 = vpop.permute.xlu0 %7422
  %7424 = vrot.lane.b32.xlu0 %v7286, 16
  %v7425 = vpop.permute.xlu0 %7424
  %7426 = vrot.lane.b32.xlu0 %v7288, 16
  %v7427 = vpop.permute.xlu0 %7426
  %7428 = vrot.lane.b32.xlu0 %v7291, 16
  %v7429 = vpop.permute.xlu0 %7428
  %7430 = vrot.lane.b32.xlu0 %v7293, 16
  %v7431 = vpop.permute.xlu0 %7430
  %7432 = vrot.lane.b32.xlu0 %v7296, 16
  %v7433 = vpop.permute.xlu0 %7432
  %7434 = vrot.lane.b32.xlu0 %v7298, 16
  %v7435 = vpop.permute.xlu0 %7434
  %7436 = vrot.lane.b32.xlu0 %v7301, 16
  %v7437 = vpop.permute.xlu0 %7436
  %7438 = vrot.lane.b32.xlu0 %v7303, 16
  %v7439 = vpop.permute.xlu0 %7438
  %7440 = vrot.lane.b32.xlu0 %v7306, 16
  %v7441 = vpop.permute.xlu0 %7440
  %7442 = vrot.lane.b32.xlu0 %v7308, 16
  %v7443 = vpop.permute.xlu0 %7442
  %7444 = vrot.lane.b32.xlu0 %v7311, 16
  %v7445 = vpop.permute.xlu0 %7444
  %7446 = vrot.lane.b32.xlu0 %v7313, 16
  %v7447 = vpop.permute.xlu0 %7446
  %7448 = vrot.lane.b32.xlu0 %v7316, 16
  %v7449 = vpop.permute.xlu0 %7448
  %7450 = vrot.lane.b32.xlu0 %v7318, 16
  %v7451 = vpop.permute.xlu0 %7450
  %7452 = vrot.lane.b32.xlu0 %v7321, 16
  %v7453 = vpop.permute.xlu0 %7452
  %7454 = vrot.lane.b32.xlu0 %v7323, 16
  %v7455 = vpop.permute.xlu0 %7454
  %7456 = vrot.lane.b32.xlu0 %v7326, 16
  %v7457 = vpop.permute.xlu0 %7456
  %7458 = vrot.lane.b32.xlu0 %v7328, 16
  %v7459 = vpop.permute.xlu0 %7458
  %7460 = vrot.lane.b32.xlu0 %v7331, 16
  %v7461 = vpop.permute.xlu0 %7460
  %7462 = vrot.lane.b32.xlu0 %v7333, 16
  %v7463 = vpop.permute.xlu0 %7462
  %7464 = vrot.lane.b32.xlu0 %v7336, 16
  %v7465 = vpop.permute.xlu0 %7464
  %7466 = vrot.lane.b32.xlu0 %v7338, 16
  %v7467 = vpop.permute.xlu0 %7466
  %7468 = vrot.lane.b32.xlu0 %v7341, 16
  %v7469 = vpop.permute.xlu0 %7468
  %7470 = vrot.lane.b32.xlu0 %v7343, 16
  %v7471 = vpop.permute.xlu0 %7470
  %7472 = vrot.lane.b32.xlu0 %v7346, 16
  %v7473 = vpop.permute.xlu0 %7472
  %7474 = vrot.lane.b32.xlu0 %v7348, 16
  %v7475 = vpop.permute.xlu0 %7474
  %7476 = vrot.lane.b32.xlu0 %v7351, 16
  %v7477 = vpop.permute.xlu0 %7476
  %7478 = vrot.lane.b32.xlu0 %v7353, 16
  %v7479 = vpop.permute.xlu0 %7478
  %7480 = vrot.lane.b32.xlu0 %v7356, 16
  %v7481 = vpop.permute.xlu0 %7480
  %7482 = vrot.lane.b32.xlu0 %v7358, 16
  %v7483 = vpop.permute.xlu0 %7482
  %7484 = vrot.lane.b32.xlu0 %v7361, 16
  %v7485 = vpop.permute.xlu0 %7484
  %7486 = vrot.lane.b32.xlu0 %v7363, 16
  %v7487 = vpop.permute.xlu0 %7486
  %7488 = vrot.lane.b32.xlu0 %v7366, 16
  %v7489 = vpop.permute.xlu0 %7488
  %7490 = vrot.lane.b32.xlu0 %v7368, 16
  %v7491 = vpop.permute.xlu0 %7490
  %7492 = vrot.lane.b32.xlu0 %v7371, 16
  %v7493 = vpop.permute.xlu0 %7492
  %7494 = vrot.lane.b32.xlu0 %v7373, 16
  %v7495 = vpop.permute.xlu0 %7494
  %7496 = vrot.lane.b32.xlu0 %v7376, 16
  %v7497 = vpop.permute.xlu0 %7496
  %7498 = vrot.lane.b32.xlu0 %v7378, 16
  %v7499 = vpop.permute.xlu0 %7498
  %7500 = vrot.lane.b32.xlu0 %v7381, 16
  %v7501 = vpop.permute.xlu0 %7500
  %7502 = vrot.lane.b32.xlu0 %v7383, 16
  %v7503 = vpop.permute.xlu0 %7502
  %7566 = vrot.lane.b32.xlu0 %v6780, 24
  %v7567 = vpop.permute.xlu0 %7566
  %7568 = vrot.lane.b32.xlu0 %v6592, 24
  %v7569 = vpop.permute.xlu0 %7568
  %7570 = vrot.lane.b32.xlu0 %v6781, 24
  %v7571 = vpop.permute.xlu0 %7570
  %7572 = vrot.lane.b32.xlu0 %v6595, 24
  %v7573 = vpop.permute.xlu0 %7572
  %7574 = vrot.lane.b32.xlu0 %v6782, 24
  %v7575 = vpop.permute.xlu0 %7574
  %7576 = vrot.lane.b32.xlu0 %v6598, 24
  %v7577 = vpop.permute.xlu0 %7576
  %7578 = vrot.lane.b32.xlu0 %v6783, 24
  %v7579 = vpop.permute.xlu0 %7578
  %7580 = vrot.lane.b32.xlu0 %v6601, 24
  %v7581 = vpop.permute.xlu0 %7580
  %7582 = vrot.lane.b32.xlu0 %v6784, 24
  %v7583 = vpop.permute.xlu0 %7582
  %7584 = vrot.lane.b32.xlu0 %v6604, 24
  %v7585 = vpop.permute.xlu0 %7584
  %7586 = vrot.lane.b32.xlu0 %v6785, 24
  %v7587 = vpop.permute.xlu0 %7586
  %7588 = vrot.lane.b32.xlu0 %v6607, 24
  %v7589 = vpop.permute.xlu0 %7588
  %7590 = vrot.lane.b32.xlu0 %v6786, 24
  %v7591 = vpop.permute.xlu0 %7590
  %7592 = vrot.lane.b32.xlu0 %v6610, 24
  %v7593 = vpop.permute.xlu0 %7592
  %7594 = vrot.lane.b32.xlu0 %v6787, 24
  %v7595 = vpop.permute.xlu0 %7594
  %7596 = vrot.lane.b32.xlu0 %v6613, 24
  %v7597 = vpop.permute.xlu0 %7596
  %7598 = vrot.lane.b32.xlu0 %v6788, 24
  %v7599 = vpop.permute.xlu0 %7598
  %7600 = vrot.lane.b32.xlu0 %v6616, 24
  %v7601 = vpop.permute.xlu0 %7600
  %7602 = vrot.lane.b32.xlu0 %v6789, 24
  %v7603 = vpop.permute.xlu0 %7602
  %7604 = vrot.lane.b32.xlu0 %v6619, 24
  %v7605 = vpop.permute.xlu0 %7604
  %7606 = vrot.lane.b32.xlu0 %v6790, 24
  %v7607 = vpop.permute.xlu0 %7606
  %7608 = vrot.lane.b32.xlu0 %v6622, 24
  %v7609 = vpop.permute.xlu0 %7608
  %7610 = vrot.lane.b32.xlu0 %v6791, 24
  %v7611 = vpop.permute.xlu0 %7610
  %7612 = vrot.lane.b32.xlu0 %v6625, 24
  %v7613 = vpop.permute.xlu0 %7612
  %7614 = vrot.lane.b32.xlu0 %v6792, 24
  %v7615 = vpop.permute.xlu0 %7614
  %7616 = vrot.lane.b32.xlu0 %v6628, 24
  %v7617 = vpop.permute.xlu0 %7616
  %7618 = vrot.lane.b32.xlu0 %v6793, 24
  %v7619 = vpop.permute.xlu0 %7618
  %7620 = vrot.lane.b32.xlu0 %v6631, 24
  %v7621 = vpop.permute.xlu0 %7620
  %7622 = vrot.lane.b32.xlu0 %v6794, 24
  %v7623 = vpop.permute.xlu0 %7622
  %7624 = vrot.lane.b32.xlu0 %v6634, 24
  %v7625 = vpop.permute.xlu0 %7624
  %7626 = vrot.lane.b32.xlu0 %v6795, 24
  %v7627 = vpop.permute.xlu0 %7626
  %7628 = vrot.lane.b32.xlu0 %v6637, 24
  %v7629 = vpop.permute.xlu0 %7628
  %7630 = vrot.lane.b32.xlu0 %v6796, 24
  %v7631 = vpop.permute.xlu0 %7630
  %7632 = vrot.lane.b32.xlu0 %v6640, 24
  %v7633 = vpop.permute.xlu0 %7632
  %7634 = vrot.lane.b32.xlu0 %v6797, 24
  %v7635 = vpop.permute.xlu0 %7634
  %7636 = vrot.lane.b32.xlu0 %v6643, 24
  %v7637 = vpop.permute.xlu0 %7636
  %7638 = vrot.lane.b32.xlu0 %v6798, 24
  %v7639 = vpop.permute.xlu0 %7638
  %7640 = vrot.lane.b32.xlu0 %v6646, 24
  %v7641 = vpop.permute.xlu0 %7640
  %7642 = vrot.lane.b32.xlu0 %v6799, 24
  %v7643 = vpop.permute.xlu0 %7642
  %7644 = vrot.lane.b32.xlu0 %v6649, 24
  %v7645 = vpop.permute.xlu0 %7644
  %7646 = vrot.lane.b32.xlu0 %v6800, 24
  %v7647 = vpop.permute.xlu0 %7646
  %7648 = vrot.lane.b32.xlu0 %v6652, 24
  %v7649 = vpop.permute.xlu0 %7648
  %7650 = vrot.lane.b32.xlu0 %v6801, 24
  %v7651 = vpop.permute.xlu0 %7650
  %7652 = vrot.lane.b32.xlu0 %v6655, 24
  %v7653 = vpop.permute.xlu0 %7652
  %7654 = vrot.lane.b32.xlu0 %v6802, 24
  %v7655 = vpop.permute.xlu0 %7654
  %7656 = vrot.lane.b32.xlu0 %v6658, 24
  %v7657 = vpop.permute.xlu0 %7656
  %7658 = vrot.lane.b32.xlu0 %v6803, 24
  %v7659 = vpop.permute.xlu0 %7658
  %7660 = vrot.lane.b32.xlu0 %v6661, 24
  %v7661 = vpop.permute.xlu0 %7660
  %7662 = vrot.lane.b32.xlu0 %v6804, 24
  %v7663 = vpop.permute.xlu0 %7662
  %7664 = vrot.lane.b32.xlu0 %v6664, 24
  %v7665 = vpop.permute.xlu0 %7664
  %7666 = vrot.lane.b32.xlu0 %v6805, 24
  %v7667 = vpop.permute.xlu0 %7666
  %7668 = vrot.lane.b32.xlu0 %v6667, 24
  %v7669 = vpop.permute.xlu0 %7668
  %7670 = vrot.lane.b32.xlu0 %v6806, 24
  %v7671 = vpop.permute.xlu0 %7670
  %7672 = vrot.lane.b32.xlu0 %v6670, 24
  %v7673 = vpop.permute.xlu0 %7672
  %7674 = vrot.lane.b32.xlu0 %v6807, 24
  %v7675 = vpop.permute.xlu0 %7674
  %7676 = vrot.lane.b32.xlu0 %v6673, 24
  %v7677 = vpop.permute.xlu0 %7676
  %7678 = vrot.lane.b32.xlu0 %v6808, 24
  %v7679 = vpop.permute.xlu0 %7678
  %7680 = vrot.lane.b32.xlu0 %v6676, 24
  %v7681 = vpop.permute.xlu0 %7680
  %7682 = vrot.lane.b32.xlu0 %v6809, 24
  %v7683 = vpop.permute.xlu0 %7682
  %7684 = vrot.lane.b32.xlu0 %v6679, 24
  %v7685 = vpop.permute.xlu0 %7684
  %7686 = vrot.lane.b32.xlu0 %v6810, 24
  %v7687 = vpop.permute.xlu0 %7686
  %7688 = vrot.lane.b32.xlu0 %v6682, 24
  %v7689 = vpop.permute.xlu0 %7688
  %7690 = vrot.lane.b32.xlu0 %v6811, 24
  %v7691 = vpop.permute.xlu0 %7690
  %7692 = vrot.lane.b32.xlu0 %v6685, 24
  %v7693 = vpop.permute.xlu0 %7692
  %v7760 = vrot.slane %v6795, 1
  %v7761 = vrot.slane %v6637, 1
  %v7762 = vsel %vm486, %v7760, %v7761
  %v7763 = vrot.slane %v6827, 1
  %v7764 = vsel %vm486, %v7761, %v7763
  %v7765 = vrot.slane %v6811, 1
  %v7766 = vrot.slane %v6685, 1
  %v7767 = vsel %vm486, %v7765, %v7766
  %v7768 = vrot.slane %v6843, 1
  %v7769 = vsel %vm486, %v7766, %v7768
  %7770 = vrot.lane.b32.xlu0 %v6906, 32
  %v7771 = vpop.permute.xlu0 %7770
  %7772 = vrot.lane.b32.xlu0 %v6908, 32
  %v7773 = vpop.permute.xlu0 %7772
  %7774 = vrot.lane.b32.xlu0 %v6911, 32
  %v7775 = vpop.permute.xlu0 %7774
  %7776 = vrot.lane.b32.xlu0 %v6913, 32
  %v7777 = vpop.permute.xlu0 %7776
  %7778 = vrot.lane.b32.xlu0 %v6916, 32
  %v7779 = vpop.permute.xlu0 %7778
  %7780 = vrot.lane.b32.xlu0 %v6918, 32
  %v7781 = vpop.permute.xlu0 %7780
  %7782 = vrot.lane.b32.xlu0 %v6921, 32
  %v7783 = vpop.permute.xlu0 %7782
  %7784 = vrot.lane.b32.xlu0 %v6923, 32
  %v7785 = vpop.permute.xlu0 %7784
  %7786 = vrot.lane.b32.xlu0 %v6926, 32
  %v7787 = vpop.permute.xlu0 %7786
  %7788 = vrot.lane.b32.xlu0 %v6928, 32
  %v7789 = vpop.permute.xlu0 %7788
  %7790 = vrot.lane.b32.xlu0 %v6931, 32
  %v7791 = vpop.permute.xlu0 %7790
  %7792 = vrot.lane.b32.xlu0 %v6933, 32
  %v7793 = vpop.permute.xlu0 %7792
  %7794 = vrot.lane.b32.xlu0 %v6936, 32
  %v7795 = vpop.permute.xlu0 %7794
  %7796 = vrot.lane.b32.xlu0 %v6938, 32
  %v7797 = vpop.permute.xlu0 %7796
  %7798 = vrot.lane.b32.xlu0 %v6941, 32
  %v7799 = vpop.permute.xlu0 %7798
  %7800 = vrot.lane.b32.xlu0 %v6943, 32
  %v7801 = vpop.permute.xlu0 %7800
  %7802 = vrot.lane.b32.xlu0 %v6946, 32
  %v7803 = vpop.permute.xlu0 %7802
  %7804 = vrot.lane.b32.xlu0 %v6948, 32
  %v7805 = vpop.permute.xlu0 %7804
  %7806 = vrot.lane.b32.xlu0 %v6951, 32
  %v7807 = vpop.permute.xlu0 %7806
  %7808 = vrot.lane.b32.xlu0 %v6953, 32
  %v7809 = vpop.permute.xlu0 %7808
  %7810 = vrot.lane.b32.xlu0 %v6956, 32
  %v7811 = vpop.permute.xlu0 %7810
  %7812 = vrot.lane.b32.xlu0 %v6958, 32
  %v7813 = vpop.permute.xlu0 %7812
  %7814 = vrot.lane.b32.xlu0 %v6961, 32
  %v7815 = vpop.permute.xlu0 %7814
  %7816 = vrot.lane.b32.xlu0 %v6963, 32
  %v7817 = vpop.permute.xlu0 %7816
  %7818 = vrot.lane.b32.xlu0 %v6966, 32
  %v7819 = vpop.permute.xlu0 %7818
  %7820 = vrot.lane.b32.xlu0 %v6968, 32
  %v7821 = vpop.permute.xlu0 %7820
  %7822 = vrot.lane.b32.xlu0 %v6971, 32
  %v7823 = vpop.permute.xlu0 %7822
  %7824 = vrot.lane.b32.xlu0 %v6973, 32
  %v7825 = vpop.permute.xlu0 %7824
  %7826 = vrot.lane.b32.xlu0 %v6976, 32
  %v7827 = vpop.permute.xlu0 %7826
  %7828 = vrot.lane.b32.xlu0 %v6978, 32
  %v7829 = vpop.permute.xlu0 %7828
  %7830 = vrot.lane.b32.xlu0 %v7762, 32
  %v7831 = vpop.permute.xlu0 %7830
  %7832 = vrot.lane.b32.xlu0 %v7764, 32
  %v7833 = vpop.permute.xlu0 %7832
  %7834 = vrot.lane.b32.xlu0 %v6981, 32
  %v7835 = vpop.permute.xlu0 %7834
  %7836 = vrot.lane.b32.xlu0 %v6983, 32
  %v7837 = vpop.permute.xlu0 %7836
  %7838 = vrot.lane.b32.xlu0 %v6986, 32
  %v7839 = vpop.permute.xlu0 %7838
  %7840 = vrot.lane.b32.xlu0 %v6988, 32
  %v7841 = vpop.permute.xlu0 %7840
  %7842 = vrot.lane.b32.xlu0 %v6991, 32
  %v7843 = vpop.permute.xlu0 %7842
  %7844 = vrot.lane.b32.xlu0 %v6993, 32
  %v7845 = vpop.permute.xlu0 %7844
  %7846 = vrot.lane.b32.xlu0 %v6996, 32
  %v7847 = vpop.permute.xlu0 %7846
  %7848 = vrot.lane.b32.xlu0 %v6998, 32
  %v7849 = vpop.permute.xlu0 %7848
  %7850 = vrot.lane.b32.xlu0 %v7001, 32
  %v7851 = vpop.permute.xlu0 %7850
  %7852 = vrot.lane.b32.xlu0 %v7003, 32
  %v7853 = vpop.permute.xlu0 %7852
  %7854 = vrot.lane.b32.xlu0 %v7006, 32
  %v7855 = vpop.permute.xlu0 %7854
  %7856 = vrot.lane.b32.xlu0 %v7008, 32
  %v7857 = vpop.permute.xlu0 %7856
  %7858 = vrot.lane.b32.xlu0 %v7011, 32
  %v7859 = vpop.permute.xlu0 %7858
  %7860 = vrot.lane.b32.xlu0 %v7013, 32
  %v7861 = vpop.permute.xlu0 %7860
  %7862 = vrot.lane.b32.xlu0 %v7016, 32
  %v7863 = vpop.permute.xlu0 %7862
  %7864 = vrot.lane.b32.xlu0 %v7018, 32
  %v7865 = vpop.permute.xlu0 %7864
  %7866 = vrot.lane.b32.xlu0 %v7021, 32
  %v7867 = vpop.permute.xlu0 %7866
  %7868 = vrot.lane.b32.xlu0 %v7023, 32
  %v7869 = vpop.permute.xlu0 %7868
  %7870 = vrot.lane.b32.xlu0 %v7026, 32
  %v7871 = vpop.permute.xlu0 %7870
  %7872 = vrot.lane.b32.xlu0 %v7028, 32
  %v7873 = vpop.permute.xlu0 %7872
  %7874 = vrot.lane.b32.xlu0 %v7031, 32
  %v7875 = vpop.permute.xlu0 %7874
  %7876 = vrot.lane.b32.xlu0 %v7033, 32
  %v7877 = vpop.permute.xlu0 %7876
  %7878 = vrot.lane.b32.xlu0 %v7036, 32
  %v7879 = vpop.permute.xlu0 %7878
  %7880 = vrot.lane.b32.xlu0 %v7038, 32
  %v7881 = vpop.permute.xlu0 %7880
  %7882 = vrot.lane.b32.xlu0 %v7041, 32
  %v7883 = vpop.permute.xlu0 %7882
  %7884 = vrot.lane.b32.xlu0 %v7043, 32
  %v7885 = vpop.permute.xlu0 %7884
  %7886 = vrot.lane.b32.xlu0 %v7046, 32
  %v7887 = vpop.permute.xlu0 %7886
  %7888 = vrot.lane.b32.xlu0 %v7048, 32
  %v7889 = vpop.permute.xlu0 %7888
  %7890 = vrot.lane.b32.xlu0 %v7051, 32
  %v7891 = vpop.permute.xlu0 %7890
  %7892 = vrot.lane.b32.xlu0 %v7053, 32
  %v7893 = vpop.permute.xlu0 %7892
  %7894 = vrot.lane.b32.xlu0 %v7767, 32
  %v7895 = vpop.permute.xlu0 %7894
  %7896 = vrot.lane.b32.xlu0 %v7769, 32
  %v7897 = vpop.permute.xlu0 %7896
  %v7962 = vrot.slane %v6795, 2
  %v7963 = vrot.slane %v6637, 2
  %v7964 = vsel %vm828, %v7962, %v7963
  %v7965 = vrot.slane %v6827, 2
  %v7966 = vsel %vm828, %v7963, %v7965
  %v7967 = vrot.slane %v6811, 2
  %v7968 = vrot.slane %v6685, 2
  %v7969 = vsel %vm828, %v7967, %v7968
  %v7970 = vrot.slane %v6843, 2
  %v7971 = vsel %vm828, %v7968, %v7970
  %7972 = vrot.lane.b32.xlu0 %v7236, 40
  %v7973 = vpop.permute.xlu0 %7972
  %7974 = vrot.lane.b32.xlu0 %v7238, 40
  %v7975 = vpop.permute.xlu0 %7974
  %7976 = vrot.lane.b32.xlu0 %v7241, 40
  %v7977 = vpop.permute.xlu0 %7976
  %7978 = vrot.lane.b32.xlu0 %v7243, 40
  %v7979 = vpop.permute.xlu0 %7978
  %7980 = vrot.lane.b32.xlu0 %v7246, 40
  %v7981 = vpop.permute.xlu0 %7980
  %7982 = vrot.lane.b32.xlu0 %v7248, 40
  %v7983 = vpop.permute.xlu0 %7982
  %7984 = vrot.lane.b32.xlu0 %v7251, 40
  %v7985 = vpop.permute.xlu0 %7984
  %7986 = vrot.lane.b32.xlu0 %v7253, 40
  %v7987 = vpop.permute.xlu0 %7986
  %7988 = vrot.lane.b32.xlu0 %v7256, 40
  %v7989 = vpop.permute.xlu0 %7988
  %7990 = vrot.lane.b32.xlu0 %v7258, 40
  %v7991 = vpop.permute.xlu0 %7990
  %7992 = vrot.lane.b32.xlu0 %v7261, 40
  %v7993 = vpop.permute.xlu0 %7992
  %7994 = vrot.lane.b32.xlu0 %v7263, 40
  %v7995 = vpop.permute.xlu0 %7994
  %7996 = vrot.lane.b32.xlu0 %v7266, 40
  %v7997 = vpop.permute.xlu0 %7996
  %7998 = vrot.lane.b32.xlu0 %v7268, 40
  %v7999 = vpop.permute.xlu0 %7998
  %8000 = vrot.lane.b32.xlu0 %v7271, 40
  %v8001 = vpop.permute.xlu0 %8000
  %8002 = vrot.lane.b32.xlu0 %v7273, 40
  %v8003 = vpop.permute.xlu0 %8002
  %8004 = vrot.lane.b32.xlu0 %v7276, 40
  %v8005 = vpop.permute.xlu0 %8004
  %8006 = vrot.lane.b32.xlu0 %v7278, 40
  %v8007 = vpop.permute.xlu0 %8006
  %8008 = vrot.lane.b32.xlu0 %v7281, 40
  %v8009 = vpop.permute.xlu0 %8008
  %8010 = vrot.lane.b32.xlu0 %v7283, 40
  %v8011 = vpop.permute.xlu0 %8010
  %8012 = vrot.lane.b32.xlu0 %v7286, 40
  %v8013 = vpop.permute.xlu0 %8012
  %8014 = vrot.lane.b32.xlu0 %v7288, 40
  %v8015 = vpop.permute.xlu0 %8014
  %8016 = vrot.lane.b32.xlu0 %v7291, 40
  %v8017 = vpop.permute.xlu0 %8016
  %8018 = vrot.lane.b32.xlu0 %v7293, 40
  %v8019 = vpop.permute.xlu0 %8018
  %8020 = vrot.lane.b32.xlu0 %v7296, 40
  %v8021 = vpop.permute.xlu0 %8020
  %8022 = vrot.lane.b32.xlu0 %v7298, 40
  %v8023 = vpop.permute.xlu0 %8022
  %8024 = vrot.lane.b32.xlu0 %v7301, 40
  %v8025 = vpop.permute.xlu0 %8024
  %8026 = vrot.lane.b32.xlu0 %v7303, 40
  %v8027 = vpop.permute.xlu0 %8026
  %8028 = vrot.lane.b32.xlu0 %v7306, 40
  %v8029 = vpop.permute.xlu0 %8028
  %8030 = vrot.lane.b32.xlu0 %v7308, 40
  %v8031 = vpop.permute.xlu0 %8030
  %8032 = vrot.lane.b32.xlu0 %v7964, 40
  %v8033 = vpop.permute.xlu0 %8032
  %8034 = vrot.lane.b32.xlu0 %v7966, 40
  %v8035 = vpop.permute.xlu0 %8034
  %8036 = vrot.lane.b32.xlu0 %v7311, 40
  %v8037 = vpop.permute.xlu0 %8036
  %8038 = vrot.lane.b32.xlu0 %v7313, 40
  %v8039 = vpop.permute.xlu0 %8038
  %8040 = vrot.lane.b32.xlu0 %v7316, 40
  %v8041 = vpop.permute.xlu0 %8040
  %8042 = vrot.lane.b32.xlu0 %v7318, 40
  %v8043 = vpop.permute.xlu0 %8042
  %8044 = vrot.lane.b32.xlu0 %v7321, 40
  %v8045 = vpop.permute.xlu0 %8044
  %8046 = vrot.lane.b32.xlu0 %v7323, 40
  %v8047 = vpop.permute.xlu0 %8046
  %8048 = vrot.lane.b32.xlu0 %v7326, 40
  %v8049 = vpop.permute.xlu0 %8048
  %8050 = vrot.lane.b32.xlu0 %v7328, 40
  %v8051 = vpop.permute.xlu0 %8050
  %8052 = vrot.lane.b32.xlu0 %v7331, 40
  %v8053 = vpop.permute.xlu0 %8052
  %8054 = vrot.lane.b32.xlu0 %v7333, 40
  %v8055 = vpop.permute.xlu0 %8054
  %8056 = vrot.lane.b32.xlu0 %v7336, 40
  %v8057 = vpop.permute.xlu0 %8056
  %8058 = vrot.lane.b32.xlu0 %v7338, 40
  %v8059 = vpop.permute.xlu0 %8058
  %8060 = vrot.lane.b32.xlu0 %v7341, 40
  %v8061 = vpop.permute.xlu0 %8060
  %8062 = vrot.lane.b32.xlu0 %v7343, 40
  %v8063 = vpop.permute.xlu0 %8062
  %8064 = vrot.lane.b32.xlu0 %v7346, 40
  %v8065 = vpop.permute.xlu0 %8064
  %8066 = vrot.lane.b32.xlu0 %v7348, 40
  %v8067 = vpop.permute.xlu0 %8066
  %8068 = vrot.lane.b32.xlu0 %v7351, 40
  %v8069 = vpop.permute.xlu0 %8068
  %8070 = vrot.lane.b32.xlu0 %v7353, 40
  %v8071 = vpop.permute.xlu0 %8070
  %8072 = vrot.lane.b32.xlu0 %v7356, 40
  %v8073 = vpop.permute.xlu0 %8072
  %8074 = vrot.lane.b32.xlu0 %v7358, 40
  %v8075 = vpop.permute.xlu0 %8074
  %8076 = vrot.lane.b32.xlu0 %v7361, 40
  %v8077 = vpop.permute.xlu0 %8076
  %8078 = vrot.lane.b32.xlu0 %v7363, 40
  %v8079 = vpop.permute.xlu0 %8078
  %8080 = vrot.lane.b32.xlu0 %v7366, 40
  %v8081 = vpop.permute.xlu0 %8080
  %8082 = vrot.lane.b32.xlu0 %v7368, 40
  %v8083 = vpop.permute.xlu0 %8082
  %8084 = vrot.lane.b32.xlu0 %v7371, 40
  %v8085 = vpop.permute.xlu0 %8084
  %8086 = vrot.lane.b32.xlu0 %v7373, 40
  %v8087 = vpop.permute.xlu0 %8086
  %8088 = vrot.lane.b32.xlu0 %v7376, 40
  %v8089 = vpop.permute.xlu0 %8088
  %8090 = vrot.lane.b32.xlu0 %v7378, 40
  %v8091 = vpop.permute.xlu0 %8090
  %8092 = vrot.lane.b32.xlu0 %v7381, 40
  %v8093 = vpop.permute.xlu0 %8092
  %8094 = vrot.lane.b32.xlu0 %v7383, 40
  %v8095 = vpop.permute.xlu0 %8094
  %8096 = vrot.lane.b32.xlu0 %v7969, 40
  %v8097 = vpop.permute.xlu0 %8096
  %8098 = vrot.lane.b32.xlu0 %v7971, 40
  %v8099 = vpop.permute.xlu0 %8098
  %8164 = vrot.lane.b32.xlu0 %v6781, 48
  %v8165 = vpop.permute.xlu0 %8164
  %8166 = vrot.lane.b32.xlu0 %v6595, 48
  %v8167 = vpop.permute.xlu0 %8166
  %8168 = vrot.lane.b32.xlu0 %v6782, 48
  %v8169 = vpop.permute.xlu0 %8168
  %8170 = vrot.lane.b32.xlu0 %v6598, 48
  %v8171 = vpop.permute.xlu0 %8170
  %8172 = vrot.lane.b32.xlu0 %v6783, 48
  %v8173 = vpop.permute.xlu0 %8172
  %8174 = vrot.lane.b32.xlu0 %v6601, 48
  %v8175 = vpop.permute.xlu0 %8174
  %8176 = vrot.lane.b32.xlu0 %v6784, 48
  %v8177 = vpop.permute.xlu0 %8176
  %8178 = vrot.lane.b32.xlu0 %v6604, 48
  %v8179 = vpop.permute.xlu0 %8178
  %8180 = vrot.lane.b32.xlu0 %v6785, 48
  %v8181 = vpop.permute.xlu0 %8180
  %8182 = vrot.lane.b32.xlu0 %v6607, 48
  %v8183 = vpop.permute.xlu0 %8182
  %8184 = vrot.lane.b32.xlu0 %v6786, 48
  %v8185 = vpop.permute.xlu0 %8184
  %8186 = vrot.lane.b32.xlu0 %v6610, 48
  %v8187 = vpop.permute.xlu0 %8186
  %8188 = vrot.lane.b32.xlu0 %v6787, 48
  %v8189 = vpop.permute.xlu0 %8188
  %8190 = vrot.lane.b32.xlu0 %v6613, 48
  %v8191 = vpop.permute.xlu0 %8190
  %8192 = vrot.lane.b32.xlu0 %v6788, 48
  %v8193 = vpop.permute.xlu0 %8192
  %8194 = vrot.lane.b32.xlu0 %v6616, 48
  %v8195 = vpop.permute.xlu0 %8194
  %8196 = vrot.lane.b32.xlu0 %v6789, 48
  %v8197 = vpop.permute.xlu0 %8196
  %8198 = vrot.lane.b32.xlu0 %v6619, 48
  %v8199 = vpop.permute.xlu0 %8198
  %8200 = vrot.lane.b32.xlu0 %v6790, 48
  %v8201 = vpop.permute.xlu0 %8200
  %8202 = vrot.lane.b32.xlu0 %v6622, 48
  %v8203 = vpop.permute.xlu0 %8202
  %8204 = vrot.lane.b32.xlu0 %v6791, 48
  %v8205 = vpop.permute.xlu0 %8204
  %8206 = vrot.lane.b32.xlu0 %v6625, 48
  %v8207 = vpop.permute.xlu0 %8206
  %8208 = vrot.lane.b32.xlu0 %v6792, 48
  %v8209 = vpop.permute.xlu0 %8208
  %8210 = vrot.lane.b32.xlu0 %v6628, 48
  %v8211 = vpop.permute.xlu0 %8210
  %8212 = vrot.lane.b32.xlu0 %v6793, 48
  %v8213 = vpop.permute.xlu0 %8212
  %8214 = vrot.lane.b32.xlu0 %v6631, 48
  %v8215 = vpop.permute.xlu0 %8214
  %8216 = vrot.lane.b32.xlu0 %v6794, 48
  %v8217 = vpop.permute.xlu0 %8216
  %8218 = vrot.lane.b32.xlu0 %v6634, 48
  %v8219 = vpop.permute.xlu0 %8218
  %8220 = vrot.lane.b32.xlu0 %v6795, 48
  %v8221 = vpop.permute.xlu0 %8220
  %8222 = vrot.lane.b32.xlu0 %v6637, 48
  %v8223 = vpop.permute.xlu0 %8222
  %8224 = vrot.lane.b32.xlu0 %v6797, 48
  %v8225 = vpop.permute.xlu0 %8224
  %8226 = vrot.lane.b32.xlu0 %v6643, 48
  %v8227 = vpop.permute.xlu0 %8226
  %8228 = vrot.lane.b32.xlu0 %v6798, 48
  %v8229 = vpop.permute.xlu0 %8228
  %8230 = vrot.lane.b32.xlu0 %v6646, 48
  %v8231 = vpop.permute.xlu0 %8230
  %8232 = vrot.lane.b32.xlu0 %v6799, 48
  %v8233 = vpop.permute.xlu0 %8232
  %8234 = vrot.lane.b32.xlu0 %v6649, 48
  %v8235 = vpop.permute.xlu0 %8234
  %8236 = vrot.lane.b32.xlu0 %v6800, 48
  %v8237 = vpop.permute.xlu0 %8236
  %8238 = vrot.lane.b32.xlu0 %v6652, 48
  %v8239 = vpop.permute.xlu0 %8238
  %8240 = vrot.lane.b32.xlu0 %v6801, 48
  %v8241 = vpop.permute.xlu0 %8240
  %8242 = vrot.lane.b32.xlu0 %v6655, 48
  %v8243 = vpop.permute.xlu0 %8242
  %8244 = vrot.lane.b32.xlu0 %v6802, 48
  %v8245 = vpop.permute.xlu0 %8244
  %8246 = vrot.lane.b32.xlu0 %v6658, 48
  %v8247 = vpop.permute.xlu0 %8246
  %8248 = vrot.lane.b32.xlu0 %v6803, 48
  %v8249 = vpop.permute.xlu0 %8248
  %8250 = vrot.lane.b32.xlu0 %v6661, 48
  %v8251 = vpop.permute.xlu0 %8250
  %8252 = vrot.lane.b32.xlu0 %v6804, 48
  %v8253 = vpop.permute.xlu0 %8252
  %8254 = vrot.lane.b32.xlu0 %v6664, 48
  %v8255 = vpop.permute.xlu0 %8254
  %8256 = vrot.lane.b32.xlu0 %v6805, 48
  %v8257 = vpop.permute.xlu0 %8256
  %8258 = vrot.lane.b32.xlu0 %v6667, 48
  %v8259 = vpop.permute.xlu0 %8258
  %8260 = vrot.lane.b32.xlu0 %v6806, 48
  %v8261 = vpop.permute.xlu0 %8260
  %8262 = vrot.lane.b32.xlu0 %v6670, 48
  %v8263 = vpop.permute.xlu0 %8262
  %8264 = vrot.lane.b32.xlu0 %v6807, 48
  %v8265 = vpop.permute.xlu0 %8264
  %8266 = vrot.lane.b32.xlu0 %v6673, 48
  %v8267 = vpop.permute.xlu0 %8266
  %8268 = vrot.lane.b32.xlu0 %v6808, 48
  %v8269 = vpop.permute.xlu0 %8268
  %8270 = vrot.lane.b32.xlu0 %v6676, 48
  %v8271 = vpop.permute.xlu0 %8270
  %8272 = vrot.lane.b32.xlu0 %v6809, 48
  %v8273 = vpop.permute.xlu0 %8272
  %8274 = vrot.lane.b32.xlu0 %v6679, 48
  %v8275 = vpop.permute.xlu0 %8274
  %8276 = vrot.lane.b32.xlu0 %v6810, 48
  %v8277 = vpop.permute.xlu0 %8276
  %8278 = vrot.lane.b32.xlu0 %v6682, 48
  %v8279 = vpop.permute.xlu0 %8278
  %8280 = vrot.lane.b32.xlu0 %v6811, 48
  %v8281 = vpop.permute.xlu0 %8280
  %8282 = vrot.lane.b32.xlu0 %v6685, 48
  %v8283 = vpop.permute.xlu0 %8282
  %8344 = vrot.lane.b32.xlu0 %v6911, 56
  %v8345 = vpop.permute.xlu0 %8344
  %8346 = vrot.lane.b32.xlu0 %v6913, 56
  %v8347 = vpop.permute.xlu0 %8346
  %8348 = vrot.lane.b32.xlu0 %v6916, 56
  %v8349 = vpop.permute.xlu0 %8348
  %8350 = vrot.lane.b32.xlu0 %v6918, 56
  %v8351 = vpop.permute.xlu0 %8350
  %8352 = vrot.lane.b32.xlu0 %v6921, 56
  %v8353 = vpop.permute.xlu0 %8352
  %8354 = vrot.lane.b32.xlu0 %v6923, 56
  %v8355 = vpop.permute.xlu0 %8354
  %8356 = vrot.lane.b32.xlu0 %v6926, 56
  %v8357 = vpop.permute.xlu0 %8356
  %8358 = vrot.lane.b32.xlu0 %v6928, 56
  %v8359 = vpop.permute.xlu0 %8358
  %8360 = vrot.lane.b32.xlu0 %v6931, 56
  %v8361 = vpop.permute.xlu0 %8360
  %8362 = vrot.lane.b32.xlu0 %v6933, 56
  %v8363 = vpop.permute.xlu0 %8362
  %8364 = vrot.lane.b32.xlu0 %v6936, 56
  %v8365 = vpop.permute.xlu0 %8364
  %8366 = vrot.lane.b32.xlu0 %v6938, 56
  %v8367 = vpop.permute.xlu0 %8366
  %8368 = vrot.lane.b32.xlu0 %v6941, 56
  %v8369 = vpop.permute.xlu0 %8368
  %8370 = vrot.lane.b32.xlu0 %v6943, 56
  %v8371 = vpop.permute.xlu0 %8370
  %8372 = vrot.lane.b32.xlu0 %v6946, 56
  %v8373 = vpop.permute.xlu0 %8372
  %8374 = vrot.lane.b32.xlu0 %v6948, 56
  %v8375 = vpop.permute.xlu0 %8374
  %8376 = vrot.lane.b32.xlu0 %v6951, 56
  %v8377 = vpop.permute.xlu0 %8376
  %8378 = vrot.lane.b32.xlu0 %v6953, 56
  %v8379 = vpop.permute.xlu0 %8378
  %8380 = vrot.lane.b32.xlu0 %v6956, 56
  %v8381 = vpop.permute.xlu0 %8380
  %8382 = vrot.lane.b32.xlu0 %v6958, 56
  %v8383 = vpop.permute.xlu0 %8382
  %8384 = vrot.lane.b32.xlu0 %v6961, 56
  %v8385 = vpop.permute.xlu0 %8384
  %8386 = vrot.lane.b32.xlu0 %v6963, 56
  %v8387 = vpop.permute.xlu0 %8386
  %8388 = vrot.lane.b32.xlu0 %v6966, 56
  %v8389 = vpop.permute.xlu0 %8388
  %8390 = vrot.lane.b32.xlu0 %v6968, 56
  %v8391 = vpop.permute.xlu0 %8390
  %8392 = vrot.lane.b32.xlu0 %v6971, 56
  %v8393 = vpop.permute.xlu0 %8392
  %8394 = vrot.lane.b32.xlu0 %v6973, 56
  %v8395 = vpop.permute.xlu0 %8394
  %8396 = vrot.lane.b32.xlu0 %v6976, 56
  %v8397 = vpop.permute.xlu0 %8396
  %8398 = vrot.lane.b32.xlu0 %v6978, 56
  %v8399 = vpop.permute.xlu0 %8398
  %8400 = vrot.lane.b32.xlu0 %v7762, 56
  %v8401 = vpop.permute.xlu0 %8400
  %8402 = vrot.lane.b32.xlu0 %v7764, 56
  %v8403 = vpop.permute.xlu0 %8402
  %8404 = vrot.lane.b32.xlu0 %v6986, 56
  %v8405 = vpop.permute.xlu0 %8404
  %8406 = vrot.lane.b32.xlu0 %v6988, 56
  %v8407 = vpop.permute.xlu0 %8406
  %8408 = vrot.lane.b32.xlu0 %v6991, 56
  %v8409 = vpop.permute.xlu0 %8408
  %8410 = vrot.lane.b32.xlu0 %v6993, 56
  %v8411 = vpop.permute.xlu0 %8410
  %8412 = vrot.lane.b32.xlu0 %v6996, 56
  %v8413 = vpop.permute.xlu0 %8412
  %8414 = vrot.lane.b32.xlu0 %v6998, 56
  %v8415 = vpop.permute.xlu0 %8414
  %8416 = vrot.lane.b32.xlu0 %v7001, 56
  %v8417 = vpop.permute.xlu0 %8416
  %8418 = vrot.lane.b32.xlu0 %v7003, 56
  %v8419 = vpop.permute.xlu0 %8418
  %8420 = vrot.lane.b32.xlu0 %v7006, 56
  %v8421 = vpop.permute.xlu0 %8420
  %8422 = vrot.lane.b32.xlu0 %v7008, 56
  %v8423 = vpop.permute.xlu0 %8422
  %8424 = vrot.lane.b32.xlu0 %v7011, 56
  %v8425 = vpop.permute.xlu0 %8424
  %8426 = vrot.lane.b32.xlu0 %v7013, 56
  %v8427 = vpop.permute.xlu0 %8426
  %8428 = vrot.lane.b32.xlu0 %v7016, 56
  %v8429 = vpop.permute.xlu0 %8428
  %8430 = vrot.lane.b32.xlu0 %v7018, 56
  %v8431 = vpop.permute.xlu0 %8430
  %8432 = vrot.lane.b32.xlu0 %v7021, 56
  %v8433 = vpop.permute.xlu0 %8432
  %8434 = vrot.lane.b32.xlu0 %v7023, 56
  %v8435 = vpop.permute.xlu0 %8434
  %8436 = vrot.lane.b32.xlu0 %v7026, 56
  %v8437 = vpop.permute.xlu0 %8436
  %8438 = vrot.lane.b32.xlu0 %v7028, 56
  %v8439 = vpop.permute.xlu0 %8438
  %8440 = vrot.lane.b32.xlu0 %v7031, 56
  %v8441 = vpop.permute.xlu0 %8440
  %8442 = vrot.lane.b32.xlu0 %v7033, 56
  %v8443 = vpop.permute.xlu0 %8442
  %8444 = vrot.lane.b32.xlu0 %v7036, 56
  %v8445 = vpop.permute.xlu0 %8444
  %8446 = vrot.lane.b32.xlu0 %v7038, 56
  %v8447 = vpop.permute.xlu0 %8446
  %8448 = vrot.lane.b32.xlu0 %v7041, 56
  %v8449 = vpop.permute.xlu0 %8448
  %8450 = vrot.lane.b32.xlu0 %v7043, 56
  %v8451 = vpop.permute.xlu0 %8450
  %8452 = vrot.lane.b32.xlu0 %v7046, 56
  %v8453 = vpop.permute.xlu0 %8452
  %8454 = vrot.lane.b32.xlu0 %v7048, 56
  %v8455 = vpop.permute.xlu0 %8454
  %8456 = vrot.lane.b32.xlu0 %v7051, 56
  %v8457 = vpop.permute.xlu0 %8456
  %8458 = vrot.lane.b32.xlu0 %v7053, 56
  %v8459 = vpop.permute.xlu0 %8458
  %8460 = vrot.lane.b32.xlu0 %v7767, 56
  %v8461 = vpop.permute.xlu0 %8460
  %8462 = vrot.lane.b32.xlu0 %v7769, 56
  %v8463 = vpop.permute.xlu0 %8462
  %8524 = vrot.lane.b32.xlu0 %v7241, 64
  %v8525 = vpop.permute.xlu0 %8524
  %8526 = vrot.lane.b32.xlu0 %v7243, 64
  %v8527 = vpop.permute.xlu0 %8526
  %8528 = vrot.lane.b32.xlu0 %v7246, 64
  %v8529 = vpop.permute.xlu0 %8528
  %8530 = vrot.lane.b32.xlu0 %v7248, 64
  %v8531 = vpop.permute.xlu0 %8530
  %8532 = vrot.lane.b32.xlu0 %v7251, 64
  %v8533 = vpop.permute.xlu0 %8532
  %8534 = vrot.lane.b32.xlu0 %v7253, 64
  %v8535 = vpop.permute.xlu0 %8534
  %8536 = vrot.lane.b32.xlu0 %v7256, 64
  %v8537 = vpop.permute.xlu0 %8536
  %8538 = vrot.lane.b32.xlu0 %v7258, 64
  %v8539 = vpop.permute.xlu0 %8538
  %8540 = vrot.lane.b32.xlu0 %v7261, 64
  %v8541 = vpop.permute.xlu0 %8540
  %8542 = vrot.lane.b32.xlu0 %v7263, 64
  %v8543 = vpop.permute.xlu0 %8542
  %8544 = vrot.lane.b32.xlu0 %v7266, 64
  %v8545 = vpop.permute.xlu0 %8544
  %8546 = vrot.lane.b32.xlu0 %v7268, 64
  %v8547 = vpop.permute.xlu0 %8546
  %8548 = vrot.lane.b32.xlu0 %v7271, 64
  %v8549 = vpop.permute.xlu0 %8548
  %8550 = vrot.lane.b32.xlu0 %v7273, 64
  %v8551 = vpop.permute.xlu0 %8550
  %8552 = vrot.lane.b32.xlu0 %v7276, 64
  %v8553 = vpop.permute.xlu0 %8552
  %8554 = vrot.lane.b32.xlu0 %v7278, 64
  %v8555 = vpop.permute.xlu0 %8554
  %8556 = vrot.lane.b32.xlu0 %v7281, 64
  %v8557 = vpop.permute.xlu0 %8556
  %8558 = vrot.lane.b32.xlu0 %v7283, 64
  %v8559 = vpop.permute.xlu0 %8558
  %8560 = vrot.lane.b32.xlu0 %v7286, 64
  %v8561 = vpop.permute.xlu0 %8560
  %8562 = vrot.lane.b32.xlu0 %v7288, 64
  %v8563 = vpop.permute.xlu0 %8562
  %8564 = vrot.lane.b32.xlu0 %v7291, 64
  %v8565 = vpop.permute.xlu0 %8564
  %8566 = vrot.lane.b32.xlu0 %v7293, 64
  %v8567 = vpop.permute.xlu0 %8566
  %8568 = vrot.lane.b32.xlu0 %v7296, 64
  %v8569 = vpop.permute.xlu0 %8568
  %8570 = vrot.lane.b32.xlu0 %v7298, 64
  %v8571 = vpop.permute.xlu0 %8570
  %8572 = vrot.lane.b32.xlu0 %v7301, 64
  %v8573 = vpop.permute.xlu0 %8572
  %8574 = vrot.lane.b32.xlu0 %v7303, 64
  %v8575 = vpop.permute.xlu0 %8574
  %8576 = vrot.lane.b32.xlu0 %v7306, 64
  %v8577 = vpop.permute.xlu0 %8576
  %8578 = vrot.lane.b32.xlu0 %v7308, 64
  %v8579 = vpop.permute.xlu0 %8578
  %8580 = vrot.lane.b32.xlu0 %v7964, 64
  %v8581 = vpop.permute.xlu0 %8580
  %8582 = vrot.lane.b32.xlu0 %v7966, 64
  %v8583 = vpop.permute.xlu0 %8582
  %8584 = vrot.lane.b32.xlu0 %v7316, 64
  %v8585 = vpop.permute.xlu0 %8584
  %8586 = vrot.lane.b32.xlu0 %v7318, 64
  %v8587 = vpop.permute.xlu0 %8586
  %8588 = vrot.lane.b32.xlu0 %v7321, 64
  %v8589 = vpop.permute.xlu0 %8588
  %8590 = vrot.lane.b32.xlu0 %v7323, 64
  %v8591 = vpop.permute.xlu0 %8590
  %8592 = vrot.lane.b32.xlu0 %v7326, 64
  %v8593 = vpop.permute.xlu0 %8592
  %8594 = vrot.lane.b32.xlu0 %v7328, 64
  %v8595 = vpop.permute.xlu0 %8594
  %8596 = vrot.lane.b32.xlu0 %v7331, 64
  %v8597 = vpop.permute.xlu0 %8596
  %8598 = vrot.lane.b32.xlu0 %v7333, 64
  %v8599 = vpop.permute.xlu0 %8598
  %8600 = vrot.lane.b32.xlu0 %v7336, 64
  %v8601 = vpop.permute.xlu0 %8600
  %8602 = vrot.lane.b32.xlu0 %v7338, 64
  %v8603 = vpop.permute.xlu0 %8602
  %8604 = vrot.lane.b32.xlu0 %v7341, 64
  %v8605 = vpop.permute.xlu0 %8604
  %8606 = vrot.lane.b32.xlu0 %v7343, 64
  %v8607 = vpop.permute.xlu0 %8606
  %8608 = vrot.lane.b32.xlu0 %v7346, 64
  %v8609 = vpop.permute.xlu0 %8608
  %8610 = vrot.lane.b32.xlu0 %v7348, 64
  %v8611 = vpop.permute.xlu0 %8610
  %8612 = vrot.lane.b32.xlu0 %v7351, 64
  %v8613 = vpop.permute.xlu0 %8612
  %8614 = vrot.lane.b32.xlu0 %v7353, 64
  %v8615 = vpop.permute.xlu0 %8614
  %8616 = vrot.lane.b32.xlu0 %v7356, 64
  %v8617 = vpop.permute.xlu0 %8616
  %8618 = vrot.lane.b32.xlu0 %v7358, 64
  %v8619 = vpop.permute.xlu0 %8618
  %8620 = vrot.lane.b32.xlu0 %v7361, 64
  %v8621 = vpop.permute.xlu0 %8620
  %8622 = vrot.lane.b32.xlu0 %v7363, 64
  %v8623 = vpop.permute.xlu0 %8622
  %8624 = vrot.lane.b32.xlu0 %v7366, 64
  %v8625 = vpop.permute.xlu0 %8624
  %8626 = vrot.lane.b32.xlu0 %v7368, 64
  %v8627 = vpop.permute.xlu0 %8626
  %8628 = vrot.lane.b32.xlu0 %v7371, 64
  %v8629 = vpop.permute.xlu0 %8628
  %8630 = vrot.lane.b32.xlu0 %v7373, 64
  %v8631 = vpop.permute.xlu0 %8630
  %8632 = vrot.lane.b32.xlu0 %v7376, 64
  %v8633 = vpop.permute.xlu0 %8632
  %8634 = vrot.lane.b32.xlu0 %v7378, 64
  %v8635 = vpop.permute.xlu0 %8634
  %8636 = vrot.lane.b32.xlu0 %v7381, 64
  %v8637 = vpop.permute.xlu0 %8636
  %8638 = vrot.lane.b32.xlu0 %v7383, 64
  %v8639 = vpop.permute.xlu0 %8638
  %8640 = vrot.lane.b32.xlu0 %v7969, 64
  %v8641 = vpop.permute.xlu0 %8640
  %8642 = vrot.lane.b32.xlu0 %v7971, 64
  %v8643 = vpop.permute.xlu0 %8642
  %v8704 = vsel %vm2391, %v6780, %v7055
  %v8705 = vsel %vm2391, %v6592, %v7057
  %v8706 = vsel %vm2391, %v6781, %v7059
  %v8707 = vsel %vm2391, %v6595, %v7061
  %v8708 = vsel %vm2391, %v6782, %v7063
  %v8709 = vsel %vm2391, %v6598, %v7065
  %v8710 = vsel %vm2391, %v6783, %v7067
  %v8711 = vsel %vm2391, %v6601, %v7069
  %v8712 = vsel %vm2391, %v6784, %v7071
  %v8713 = vsel %vm2391, %v6604, %v7073
  %v8714 = vsel %vm2391, %v6785, %v7075
  %v8715 = vsel %vm2391, %v6607, %v7077
  %v8716 = vsel %vm2391, %v6786, %v7079
  %v8717 = vsel %vm2391, %v6610, %v7081
  %v8718 = vsel %vm2391, %v6787, %v7083
  %v8719 = vsel %vm2391, %v6613, %v7085
  %v8720 = vsel %vm2391, %v6788, %v7087
  %v8721 = vsel %vm2391, %v6616, %v7089
  %v8722 = vsel %vm2391, %v6789, %v7091
  %v8723 = vsel %vm2391, %v6619, %v7093
  %v8724 = vsel %vm2391, %v6790, %v7095
  %v8725 = vsel %vm2391, %v6622, %v7097
  %v8726 = vsel %vm2391, %v6791, %v7099
  %v8727 = vsel %vm2391, %v6625, %v7101
  %v8728 = vsel %vm2391, %v6792, %v7103
  %v8729 = vsel %vm2391, %v6628, %v7105
  %v8730 = vsel %vm2391, %v6793, %v7107
  %v8731 = vsel %vm2391, %v6631, %v7109
  %v8732 = vsel %vm2391, %v6794, %v7111
  %v8733 = vsel %vm2391, %v6634, %v7113
  %v8734 = vsel %vm2391, %v6796, %v7115
  %v8735 = vsel %vm2391, %v6640, %v7117
  %v8736 = vsel %vm2391, %v6797, %v7119
  %v8737 = vsel %vm2391, %v6643, %v7121
  %v8738 = vsel %vm2391, %v6798, %v7123
  %v8739 = vsel %vm2391, %v6646, %v7125
  %v8740 = vsel %vm2391, %v6799, %v7127
  %v8741 = vsel %vm2391, %v6649, %v7129
  %v8742 = vsel %vm2391, %v6800, %v7131
  %v8743 = vsel %vm2391, %v6652, %v7133
  %v8744 = vsel %vm2391, %v6801, %v7135
  %v8745 = vsel %vm2391, %v6655, %v7137
  %v8746 = vsel %vm2391, %v6802, %v7139
  %v8747 = vsel %vm2391, %v6658, %v7141
  %v8748 = vsel %vm2391, %v6803, %v7143
  %v8749 = vsel %vm2391, %v6661, %v7145
  %v8750 = vsel %vm2391, %v6804, %v7147
  %v8751 = vsel %vm2391, %v6664, %v7149
  %v8752 = vsel %vm2391, %v6805, %v7151
  %v8753 = vsel %vm2391, %v6667, %v7153
  %v8754 = vsel %vm2391, %v6806, %v7155
  %v8755 = vsel %vm2391, %v6670, %v7157
  %v8756 = vsel %vm2391, %v6807, %v7159
  %v8757 = vsel %vm2391, %v6673, %v7161
  %v8758 = vsel %vm2391, %v6808, %v7163
  %v8759 = vsel %vm2391, %v6676, %v7165
  %v8760 = vsel %vm2391, %v6809, %v7167
  %v8761 = vsel %vm2391, %v6679, %v7169
  %v8762 = vsel %vm2391, %v6810, %v7171
  %v8763 = vsel %vm2391, %v6682, %v7173
  %v8764 = vsel %vm2519, %v8704, %v7385
  %v8765 = vsel %vm2519, %v8705, %v7387
  %v8766 = vsel %vm2519, %v8706, %v7389
  %v8767 = vsel %vm2519, %v8707, %v7391
  %v8768 = vsel %vm2519, %v8708, %v7393
  %v8769 = vsel %vm2519, %v8709, %v7395
  %v8770 = vsel %vm2519, %v8710, %v7397
  %v8771 = vsel %vm2519, %v8711, %v7399
  %v8772 = vsel %vm2519, %v8712, %v7401
  %v8773 = vsel %vm2519, %v8713, %v7403
  %v8774 = vsel %vm2519, %v8714, %v7405
  %v8775 = vsel %vm2519, %v8715, %v7407
  %v8776 = vsel %vm2519, %v8716, %v7409
  %v8777 = vsel %vm2519, %v8717, %v7411
  %v8778 = vsel %vm2519, %v8718, %v7413
  %v8779 = vsel %vm2519, %v8719, %v7415
  %v8780 = vsel %vm2519, %v8720, %v7417
  %v8781 = vsel %vm2519, %v8721, %v7419
  %v8782 = vsel %vm2519, %v8722, %v7421
  %v8783 = vsel %vm2519, %v8723, %v7423
  %v8784 = vsel %vm2519, %v8724, %v7425
  %v8785 = vsel %vm2519, %v8725, %v7427
  %v8786 = vsel %vm2519, %v8726, %v7429
  %v8787 = vsel %vm2519, %v8727, %v7431
  %v8788 = vsel %vm2519, %v8728, %v7433
  %v8789 = vsel %vm2519, %v8729, %v7435
  %v8790 = vsel %vm2519, %v8730, %v7437
  %v8791 = vsel %vm2519, %v8731, %v7439
  %v8792 = vsel %vm2519, %v8732, %v7441
  %v8793 = vsel %vm2519, %v8733, %v7443
  %v8794 = vsel %vm2519, %v8734, %v7445
  %v8795 = vsel %vm2519, %v8735, %v7447
  %v8796 = vsel %vm2519, %v8736, %v7449
  %v8797 = vsel %vm2519, %v8737, %v7451
  %v8798 = vsel %vm2519, %v8738, %v7453
  %v8799 = vsel %vm2519, %v8739, %v7455
  %v8800 = vsel %vm2519, %v8740, %v7457
  %v8801 = vsel %vm2519, %v8741, %v7459
  %v8802 = vsel %vm2519, %v8742, %v7461
  %v8803 = vsel %vm2519, %v8743, %v7463
  %v8804 = vsel %vm2519, %v8744, %v7465
  %v8805 = vsel %vm2519, %v8745, %v7467
  %v8806 = vsel %vm2519, %v8746, %v7469
  %v8807 = vsel %vm2519, %v8747, %v7471
  %v8808 = vsel %vm2519, %v8748, %v7473
  %v8809 = vsel %vm2519, %v8749, %v7475
  %v8810 = vsel %vm2519, %v8750, %v7477
  %v8811 = vsel %vm2519, %v8751, %v7479
  %v8812 = vsel %vm2519, %v8752, %v7481
  %v8813 = vsel %vm2519, %v8753, %v7483
  %v8814 = vsel %vm2519, %v8754, %v7485
  %v8815 = vsel %vm2519, %v8755, %v7487
  %v8816 = vsel %vm2519, %v8756, %v7489
  %v8817 = vsel %vm2519, %v8757, %v7491
  %v8818 = vsel %vm2519, %v8758, %v7493
  %v8819 = vsel %vm2519, %v8759, %v7495
  %v8820 = vsel %vm2519, %v8760, %v7497
  %v8821 = vsel %vm2519, %v8761, %v7499
  %v8822 = vsel %vm2519, %v8762, %v7501
  %v8823 = vsel %vm2519, %v8763, %v7503
  %v8824 = vsel %vm2649, %v5597, %v7567
  %v8825 = vsel %vm2649, %v5598, %v7569
  %v8826 = vsel %vm2649, %v8764, %v7571
  %v8827 = vsel %vm2649, %v8765, %v7573
  %v8828 = vsel %vm2649, %v8766, %v7575
  %v8829 = vsel %vm2649, %v8767, %v7577
  %v8830 = vsel %vm2649, %v8768, %v7579
  %v8831 = vsel %vm2649, %v8769, %v7581
  %v8832 = vsel %vm2649, %v8770, %v7583
  %v8833 = vsel %vm2649, %v8771, %v7585
  %v8834 = vsel %vm2649, %v8772, %v7587
  %v8835 = vsel %vm2649, %v8773, %v7589
  %v8836 = vsel %vm2649, %v8774, %v7591
  %v8837 = vsel %vm2649, %v8775, %v7593
  %v8838 = vsel %vm2649, %v8776, %v7595
  %v8839 = vsel %vm2649, %v8777, %v7597
  %v8840 = vsel %vm2649, %v8778, %v7599
  %v8841 = vsel %vm2649, %v8779, %v7601
  %v8842 = vsel %vm2649, %v8780, %v7603
  %v8843 = vsel %vm2649, %v8781, %v7605
  %v8844 = vsel %vm2649, %v8782, %v7607
  %v8845 = vsel %vm2649, %v8783, %v7609
  %v8846 = vsel %vm2649, %v8784, %v7611
  %v8847 = vsel %vm2649, %v8785, %v7613
  %v8848 = vsel %vm2649, %v8786, %v7615
  %v8849 = vsel %vm2649, %v8787, %v7617
  %v8850 = vsel %vm2649, %v8788, %v7619
  %v8851 = vsel %vm2649, %v8789, %v7621
  %v8852 = vsel %vm2649, %v8790, %v7623
  %v8853 = vsel %vm2649, %v8791, %v7625
  %v8854 = vsel %vm2649, %v8792, %v7627
  %v8855 = vsel %vm2649, %v8793, %v7629
  %v8856 = vsel %vm2649, %v5597, %v7631
  %v8857 = vsel %vm2649, %v5598, %v7633
  %v8858 = vsel %vm2649, %v8794, %v7635
  %v8859 = vsel %vm2649, %v8795, %v7637
  %v8860 = vsel %vm2649, %v8796, %v7639
  %v8861 = vsel %vm2649, %v8797, %v7641
  %v8862 = vsel %vm2649, %v8798, %v7643
  %v8863 = vsel %vm2649, %v8799, %v7645
  %v8864 = vsel %vm2649, %v8800, %v7647
  %v8865 = vsel %vm2649, %v8801, %v7649
  %v8866 = vsel %vm2649, %v8802, %v7651
  %v8867 = vsel %vm2649, %v8803, %v7653
  %v8868 = vsel %vm2649, %v8804, %v7655
  %v8869 = vsel %vm2649, %v8805, %v7657
  %v8870 = vsel %vm2649, %v8806, %v7659
  %v8871 = vsel %vm2649, %v8807, %v7661
  %v8872 = vsel %vm2649, %v8808, %v7663
  %v8873 = vsel %vm2649, %v8809, %v7665
  %v8874 = vsel %vm2649, %v8810, %v7667
  %v8875 = vsel %vm2649, %v8811, %v7669
  %v8876 = vsel %vm2649, %v8812, %v7671
  %v8877 = vsel %vm2649, %v8813, %v7673
  %v8878 = vsel %vm2649, %v8814, %v7675
  %v8879 = vsel %vm2649, %v8815, %v7677
  %v8880 = vsel %vm2649, %v8816, %v7679
  %v8881 = vsel %vm2649, %v8817, %v7681
  %v8882 = vsel %vm2649, %v8818, %v7683
  %v8883 = vsel %vm2649, %v8819, %v7685
  %v8884 = vsel %vm2649, %v8820, %v7687
  %v8885 = vsel %vm2649, %v8821, %v7689
  %v8886 = vsel %vm2649, %v8822, %v7691
  %v8887 = vsel %vm2649, %v8823, %v7693
  %v8888 = vsel %vm2779, %v8824, %v7771
  %v8889 = vsel %vm2779, %v8825, %v7773
  %v8890 = vsel %vm2779, %v8826, %v7775
  %v8891 = vsel %vm2779, %v8827, %v7777
  %v8892 = vsel %vm2779, %v8828, %v7779
  %v8893 = vsel %vm2779, %v8829, %v7781
  %v8894 = vsel %vm2779, %v8830, %v7783
  %v8895 = vsel %vm2779, %v8831, %v7785
  %v8896 = vsel %vm2779, %v8832, %v7787
  %v8897 = vsel %vm2779, %v8833, %v7789
  %v8898 = vsel %vm2779, %v8834, %v7791
  %v8899 = vsel %vm2779, %v8835, %v7793
  %v8900 = vsel %vm2779, %v8836, %v7795
  %v8901 = vsel %vm2779, %v8837, %v7797
  %v8902 = vsel %vm2779, %v8838, %v7799
  %v8903 = vsel %vm2779, %v8839, %v7801
  %v8904 = vsel %vm2779, %v8840, %v7803
  %v8905 = vsel %vm2779, %v8841, %v7805
  %v8906 = vsel %vm2779, %v8842, %v7807
  %v8907 = vsel %vm2779, %v8843, %v7809
  %v8908 = vsel %vm2779, %v8844, %v7811
  %v8909 = vsel %vm2779, %v8845, %v7813
  %v8910 = vsel %vm2779, %v8846, %v7815
  %v8911 = vsel %vm2779, %v8847, %v7817
  %v8912 = vsel %vm2779, %v8848, %v7819
  %v8913 = vsel %vm2779, %v8849, %v7821
  %v8914 = vsel %vm2779, %v8850, %v7823
  %v8915 = vsel %vm2779, %v8851, %v7825
  %v8916 = vsel %vm2779, %v8852, %v7827
  %v8917 = vsel %vm2779, %v8853, %v7829
  %v8918 = vsel %vm2779, %v8854, %v7831
  %v8919 = vsel %vm2779, %v8855, %v7833
  %v8920 = vsel %vm2779, %v8856, %v7835
  %v8921 = vsel %vm2779, %v8857, %v7837
  %v8922 = vsel %vm2779, %v8858, %v7839
  %v8923 = vsel %vm2779, %v8859, %v7841
  %v8924 = vsel %vm2779, %v8860, %v7843
  %v8925 = vsel %vm2779, %v8861, %v7845
  %v8926 = vsel %vm2779, %v8862, %v7847
  %v8927 = vsel %vm2779, %v8863, %v7849
  %v8928 = vsel %vm2779, %v8864, %v7851
  %v8929 = vsel %vm2779, %v8865, %v7853
  %v8930 = vsel %vm2779, %v8866, %v7855
  %v8931 = vsel %vm2779, %v8867, %v7857
  %v8932 = vsel %vm2779, %v8868, %v7859
  %v8933 = vsel %vm2779, %v8869, %v7861
  %v8934 = vsel %vm2779, %v8870, %v7863
  %v8935 = vsel %vm2779, %v8871, %v7865
  %v8936 = vsel %vm2779, %v8872, %v7867
  %v8937 = vsel %vm2779, %v8873, %v7869
  %v8938 = vsel %vm2779, %v8874, %v7871
  %v8939 = vsel %vm2779, %v8875, %v7873
  %v8940 = vsel %vm2779, %v8876, %v7875
  %v8941 = vsel %vm2779, %v8877, %v7877
  %v8942 = vsel %vm2779, %v8878, %v7879
  %v8943 = vsel %vm2779, %v8879, %v7881
  %v8944 = vsel %vm2779, %v8880, %v7883
  %v8945 = vsel %vm2779, %v8881, %v7885
  %v8946 = vsel %vm2779, %v8882, %v7887
  %v8947 = vsel %vm2779, %v8883, %v7889
  %v8948 = vsel %vm2779, %v8884, %v7891
  %v8949 = vsel %vm2779, %v8885, %v7893
  %v8950 = vsel %vm2779, %v8886, %v7895
  %v8951 = vsel %vm2779, %v8887, %v7897
  %v8952 = vsel %vm5787, %v8888, %v7973
  %v8953 = vsel %vm5787, %v8889, %v7975
  %v8954 = vsel %vm5787, %v8890, %v7977
  %v8955 = vsel %vm5787, %v8891, %v7979
  %v8956 = vsel %vm5787, %v8892, %v7981
  %v8957 = vsel %vm5787, %v8893, %v7983
  %v8958 = vsel %vm5787, %v8894, %v7985
  %v8959 = vsel %vm5787, %v8895, %v7987
  %v8960 = vsel %vm5787, %v8896, %v7989
  %v8961 = vsel %vm5787, %v8897, %v7991
  %v8962 = vsel %vm5787, %v8898, %v7993
  %v8963 = vsel %vm5787, %v8899, %v7995
  %v8964 = vsel %vm5787, %v8900, %v7997
  %v8965 = vsel %vm5787, %v8901, %v7999
  %v8966 = vsel %vm5787, %v8902, %v8001
  %v8967 = vsel %vm5787, %v8903, %v8003
  %v8968 = vsel %vm5787, %v8904, %v8005
  %v8969 = vsel %vm5787, %v8905, %v8007
  %v8970 = vsel %vm5787, %v8906, %v8009
  %v8971 = vsel %vm5787, %v8907, %v8011
  %v8972 = vsel %vm5787, %v8908, %v8013
  %v8973 = vsel %vm5787, %v8909, %v8015
  %v8974 = vsel %vm5787, %v8910, %v8017
  %v8975 = vsel %vm5787, %v8911, %v8019
  %v8976 = vsel %vm5787, %v8912, %v8021
  %v8977 = vsel %vm5787, %v8913, %v8023
  %v8978 = vsel %vm5787, %v8914, %v8025
  %v8979 = vsel %vm5787, %v8915, %v8027
  %v8980 = vsel %vm5787, %v8916, %v8029
  %v8981 = vsel %vm5787, %v8917, %v8031
  %v8982 = vsel %vm5787, %v8918, %v8033
  %v8983 = vsel %vm5787, %v8919, %v8035
  %v8984 = vsel %vm5787, %v8920, %v8037
  %v8985 = vsel %vm5787, %v8921, %v8039
  %v8986 = vsel %vm5787, %v8922, %v8041
  %v8987 = vsel %vm5787, %v8923, %v8043
  %v8988 = vsel %vm5787, %v8924, %v8045
  %v8989 = vsel %vm5787, %v8925, %v8047
  %v8990 = vsel %vm5787, %v8926, %v8049
  %v8991 = vsel %vm5787, %v8927, %v8051
  %v8992 = vsel %vm5787, %v8928, %v8053
  %v8993 = vsel %vm5787, %v8929, %v8055
  %v8994 = vsel %vm5787, %v8930, %v8057
  %v8995 = vsel %vm5787, %v8931, %v8059
  %v8996 = vsel %vm5787, %v8932, %v8061
  %v8997 = vsel %vm5787, %v8933, %v8063
  %v8998 = vsel %vm5787, %v8934, %v8065
  %v8999 = vsel %vm5787, %v8935, %v8067
  %v9000 = vsel %vm5787, %v8936, %v8069
  %v9001 = vsel %vm5787, %v8937, %v8071
  %v9002 = vsel %vm5787, %v8938, %v8073
  %v9003 = vsel %vm5787, %v8939, %v8075
  %v9004 = vsel %vm5787, %v8940, %v8077
  %v9005 = vsel %vm5787, %v8941, %v8079
  %v9006 = vsel %vm5787, %v8942, %v8081
  %v9007 = vsel %vm5787, %v8943, %v8083
  %v9008 = vsel %vm5787, %v8944, %v8085
  %v9009 = vsel %vm5787, %v8945, %v8087
  %v9010 = vsel %vm5787, %v8946, %v8089
  %v9011 = vsel %vm5787, %v8947, %v8091
  %v9012 = vsel %vm5787, %v8948, %v8093
  %v9013 = vsel %vm5787, %v8949, %v8095
  %v9014 = vsel %vm5787, %v8950, %v8097
  %v9015 = vsel %vm5787, %v8951, %v8099
  %v9016 = vsel %vm5852, %v8952, %v8165
  %v9017 = vsel %vm5852, %v8953, %v8167
  %v9018 = vsel %vm5852, %v8954, %v8169
  %v9019 = vsel %vm5852, %v8955, %v8171
  %v9020 = vsel %vm5852, %v8956, %v8173
  %v9021 = vsel %vm5852, %v8957, %v8175
  %v9022 = vsel %vm5852, %v8958, %v8177
  %v9023 = vsel %vm5852, %v8959, %v8179
  %v9024 = vsel %vm5852, %v8960, %v8181
  %v9025 = vsel %vm5852, %v8961, %v8183
  %v9026 = vsel %vm5852, %v8962, %v8185
  %v9027 = vsel %vm5852, %v8963, %v8187
  %v9028 = vsel %vm5852, %v8964, %v8189
  %v9029 = vsel %vm5852, %v8965, %v8191
  %v9030 = vsel %vm5852, %v8966, %v8193
  %v9031 = vsel %vm5852, %v8967, %v8195
  %v9032 = vsel %vm5852, %v8968, %v8197
  %v9033 = vsel %vm5852, %v8969, %v8199
  %v9034 = vsel %vm5852, %v8970, %v8201
  %v9035 = vsel %vm5852, %v8971, %v8203
  %v9036 = vsel %vm5852, %v8972, %v8205
  %v9037 = vsel %vm5852, %v8973, %v8207
  %v9038 = vsel %vm5852, %v8974, %v8209
  %v9039 = vsel %vm5852, %v8975, %v8211
  %v9040 = vsel %vm5852, %v8976, %v8213
  %v9041 = vsel %vm5852, %v8977, %v8215
  %v9042 = vsel %vm5852, %v8978, %v8217
  %v9043 = vsel %vm5852, %v8979, %v8219
  %v9044 = vsel %vm5852, %v8980, %v8221
  %v9045 = vsel %vm5852, %v8981, %v8223
  %v9046 = vsel %vm5852, %v8982, %v5038
  %v9047 = vsel %vm5852, %v8983, %v5040
  %v9048 = vsel %vm5852, %v8984, %v8225
  %v9049 = vsel %vm5852, %v8985, %v8227
  %v9050 = vsel %vm5852, %v8986, %v8229
  %v9051 = vsel %vm5852, %v8987, %v8231
  %v9052 = vsel %vm5852, %v8988, %v8233
  %v9053 = vsel %vm5852, %v8989, %v8235
  %v9054 = vsel %vm5852, %v8990, %v8237
  %v9055 = vsel %vm5852, %v8991, %v8239
  %v9056 = vsel %vm5852, %v8992, %v8241
  %v9057 = vsel %vm5852, %v8993, %v8243
  %v9058 = vsel %vm5852, %v8994, %v8245
  %v9059 = vsel %vm5852, %v8995, %v8247
  %v9060 = vsel %vm5852, %v8996, %v8249
  %v9061 = vsel %vm5852, %v8997, %v8251
  %v9062 = vsel %vm5852, %v8998, %v8253
  %v9063 = vsel %vm5852, %v8999, %v8255
  %v9064 = vsel %vm5852, %v9000, %v8257
  %v9065 = vsel %vm5852, %v9001, %v8259
  %v9066 = vsel %vm5852, %v9002, %v8261
  %v9067 = vsel %vm5852, %v9003, %v8263
  %v9068 = vsel %vm5852, %v9004, %v8265
  %v9069 = vsel %vm5852, %v9005, %v8267
  %v9070 = vsel %vm5852, %v9006, %v8269
  %v9071 = vsel %vm5852, %v9007, %v8271
  %v9072 = vsel %vm5852, %v9008, %v8273
  %v9073 = vsel %vm5852, %v9009, %v8275
  %v9074 = vsel %vm5852, %v9010, %v8277
  %v9075 = vsel %vm5852, %v9011, %v8279
  %v9076 = vsel %vm5852, %v9012, %v8281
  %v9077 = vsel %vm5852, %v9013, %v8283
  %v9078 = vsel %vm5852, %v9014, %v5038
  %v9079 = vsel %vm5852, %v9015, %v5040
  %v9080 = vsel %vm5917, %v9016, %v8345
  %v9081 = vsel %vm5917, %v9017, %v8347
  %v9082 = vsel %vm5917, %v9018, %v8349
  %v9083 = vsel %vm5917, %v9019, %v8351
  %v9084 = vsel %vm5917, %v9020, %v8353
  %v9085 = vsel %vm5917, %v9021, %v8355
  %v9086 = vsel %vm5917, %v9022, %v8357
  %v9087 = vsel %vm5917, %v9023, %v8359
  %v9088 = vsel %vm5917, %v9024, %v8361
  %v9089 = vsel %vm5917, %v9025, %v8363
  %v9090 = vsel %vm5917, %v9026, %v8365
  %v9091 = vsel %vm5917, %v9027, %v8367
  %v9092 = vsel %vm5917, %v9028, %v8369
  %v9093 = vsel %vm5917, %v9029, %v8371
  %v9094 = vsel %vm5917, %v9030, %v8373
  %v9095 = vsel %vm5917, %v9031, %v8375
  %v9096 = vsel %vm5917, %v9032, %v8377
  %v9097 = vsel %vm5917, %v9033, %v8379
  %v9098 = vsel %vm5917, %v9034, %v8381
  %v9099 = vsel %vm5917, %v9035, %v8383
  %v9100 = vsel %vm5917, %v9036, %v8385
  %v9101 = vsel %vm5917, %v9037, %v8387
  %v9102 = vsel %vm5917, %v9038, %v8389
  %v9103 = vsel %vm5917, %v9039, %v8391
  %v9104 = vsel %vm5917, %v9040, %v8393
  %v9105 = vsel %vm5917, %v9041, %v8395
  %v9106 = vsel %vm5917, %v9042, %v8397
  %v9107 = vsel %vm5917, %v9043, %v8399
  %v9108 = vsel %vm5917, %v9044, %v8401
  %v9109 = vsel %vm5917, %v9045, %v8403
  %v9110 = vsel %vm5917, %v9046, %v5224
  %v9111 = vsel %vm5917, %v9047, %v5226
  %v9112 = vsel %vm5917, %v9048, %v8405
  %v9113 = vsel %vm5917, %v9049, %v8407
  %v9114 = vsel %vm5917, %v9050, %v8409
  %v9115 = vsel %vm5917, %v9051, %v8411
  %v9116 = vsel %vm5917, %v9052, %v8413
  %v9117 = vsel %vm5917, %v9053, %v8415
  %v9118 = vsel %vm5917, %v9054, %v8417
  %v9119 = vsel %vm5917, %v9055, %v8419
  %v9120 = vsel %vm5917, %v9056, %v8421
  %v9121 = vsel %vm5917, %v9057, %v8423
  %v9122 = vsel %vm5917, %v9058, %v8425
  %v9123 = vsel %vm5917, %v9059, %v8427
  %v9124 = vsel %vm5917, %v9060, %v8429
  %v9125 = vsel %vm5917, %v9061, %v8431
  %v9126 = vsel %vm5917, %v9062, %v8433
  %v9127 = vsel %vm5917, %v9063, %v8435
  %v9128 = vsel %vm5917, %v9064, %v8437
  %v9129 = vsel %vm5917, %v9065, %v8439
  %v9130 = vsel %vm5917, %v9066, %v8441
  %v9131 = vsel %vm5917, %v9067, %v8443
  %v9132 = vsel %vm5917, %v9068, %v8445
  %v9133 = vsel %vm5917, %v9069, %v8447
  %v9134 = vsel %vm5917, %v9070, %v8449
  %v9135 = vsel %vm5917, %v9071, %v8451
  %v9136 = vsel %vm5917, %v9072, %v8453
  %v9137 = vsel %vm5917, %v9073, %v8455
  %v9138 = vsel %vm5917, %v9074, %v8457
  %v9139 = vsel %vm5917, %v9075, %v8459
  %v9140 = vsel %vm5917, %v9076, %v8461
  %v9141 = vsel %vm5917, %v9077, %v8463
  %v9142 = vsel %vm5917, %v9078, %v5224
  %v9143 = vsel %vm5917, %v9079, %v5226
  %v9144 = vsel %vm5982, %v9080, %v8525
  %v9145 = vsel %vm5982, %v9081, %v8527
  %v9146 = vsel %vm5982, %v9082, %v8529
  %v9147 = vsel %vm5982, %v9083, %v8531
  %v9148 = vsel %vm5982, %v9084, %v8533
  %v9149 = vsel %vm5982, %v9085, %v8535
  %v9150 = vsel %vm5982, %v9086, %v8537
  %v9151 = vsel %vm5982, %v9087, %v8539
  %v9152 = vsel %vm5982, %v9088, %v8541
  %v9153 = vsel %vm5982, %v9089, %v8543
  %v9154 = vsel %vm5982, %v9090, %v8545
  %v9155 = vsel %vm5982, %v9091, %v8547
  %v9156 = vsel %vm5982, %v9092, %v8549
  %v9157 = vsel %vm5982, %v9093, %v8551
  %v9158 = vsel %vm5982, %v9094, %v8553
  %v9159 = vsel %vm5982, %v9095, %v8555
  %v9160 = vsel %vm5982, %v9096, %v8557
  %v9161 = vsel %vm5982, %v9097, %v8559
  %v9162 = vsel %vm5982, %v9098, %v8561
  %v9163 = vsel %vm5982, %v9099, %v8563
  %v9164 = vsel %vm5982, %v9100, %v8565
  %v9165 = vsel %vm5982, %v9101, %v8567
  %v9166 = vsel %vm5982, %v9102, %v8569
  %v9167 = vsel %vm5982, %v9103, %v8571
  %v9168 = vsel %vm5982, %v9104, %v8573
  %v9169 = vsel %vm5982, %v9105, %v8575
  %v9170 = vsel %vm5982, %v9106, %v8577
  %v9171 = vsel %vm5982, %v9107, %v8579
  %v9172 = vsel %vm5982, %v9108, %v8581
  %v9173 = vsel %vm5982, %v9109, %v8583
  %v9174 = vsel %vm5982, %v9110, %v5410
  %v9175 = vsel %vm5982, %v9111, %v5412
  %v9176 = vsel %vm5982, %v9112, %v8585
  %v9177 = vsel %vm5982, %v9113, %v8587
  %v9178 = vsel %vm5982, %v9114, %v8589
  %v9179 = vsel %vm5982, %v9115, %v8591
  %v9180 = vsel %vm5982, %v9116, %v8593
  %v9181 = vsel %vm5982, %v9117, %v8595
  %v9182 = vsel %vm5982, %v9118, %v8597
  %v9183 = vsel %vm5982, %v9119, %v8599
  %v9184 = vsel %vm5982, %v9120, %v8601
  %v9185 = vsel %vm5982, %v9121, %v8603
  %v9186 = vsel %vm5982, %v9122, %v8605
  %v9187 = vsel %vm5982, %v9123, %v8607
  %v9188 = vsel %vm5982, %v9124, %v8609
  %v9189 = vsel %vm5982, %v9125, %v8611
  %v9190 = vsel %vm5982, %v9126, %v8613
  %v9191 = vsel %vm5982, %v9127, %v8615
  %v9192 = vsel %vm5982, %v9128, %v8617
  %v9193 = vsel %vm5982, %v9129, %v8619
  %v9194 = vsel %vm5982, %v9130, %v8621
  %v9195 = vsel %vm5982, %v9131, %v8623
  %v9196 = vsel %vm5982, %v9132, %v8625
  %v9197 = vsel %vm5982, %v9133, %v8627
  %v9198 = vsel %vm5982, %v9134, %v8629
  %v9199 = vsel %vm5982, %v9135, %v8631
  %v9200 = vsel %vm5982, %v9136, %v8633
  %v9201 = vsel %vm5982, %v9137, %v8635
  %v9202 = vsel %vm5982, %v9138, %v8637
  %v9203 = vsel %vm5982, %v9139, %v8639
  %v9204 = vsel %vm5982, %v9140, %v8641
  %v9205 = vsel %vm5982, %v9141, %v8643
  %v9206 = vsel %vm5982, %v9142, %v5410
  %v9207 = vsel %vm5982, %v9143, %v5412
  %v9209 = vperm.slane %v6525, 0
  %v9212 = vsel %vm6050, %v9144, 0
  %v9215 = vsel %vm6050, %v9145, 0
  %v9218 = vsel %vm6050, %v9146, 0
  %v9221 = vsel %vm6050, %v9147, 0
  %v9224 = vsel %vm6050, %v9148, 0
  %v9227 = vsel %vm6050, %v9149, 0
  %v9230 = vsel %vm6050, %v9150, 0
  %v9233 = vsel %vm6050, %v9151, 0
  %v9236 = vsel %vm6050, %v9152, 0
  %v9239 = vsel %vm6050, %v9153, 0
  %v9242 = vsel %vm6050, %v9154, 0
  %v9245 = vsel %vm6050, %v9155, 0
  %v9248 = vsel %vm6050, %v9156, 0
  %v9251 = vsel %vm6050, %v9157, 0
  %v9254 = vsel %vm6050, %v9158, 0
  %v9257 = vsel %vm6050, %v9159, 0
  %v9260 = vsel %vm6050, %v9160, 0
  %v9263 = vsel %vm6050, %v9161, 0
  %v9266 = vsel %vm6050, %v9162, 0
  %v9269 = vsel %vm6050, %v9163, 0
  %v9272 = vsel %vm6050, %v9164, 0
  %v9275 = vsel %vm6050, %v9165, 0
  %v9278 = vsel %vm6050, %v9166, 0
  %v9281 = vsel %vm6050, %v9167, 0
  %v9284 = vsel %vm6050, %v9168, 0
  %v9287 = vsel %vm6050, %v9169, 0
  %v9290 = vsel %vm6050, %v9170, 0
  %v9293 = vsel %vm6050, %v9171, 0
  %v9296 = vsel %vm6050, %v9172, 0
  %v9299 = vsel %vm6050, %v9173, 0
  %v9302 = vsel %vm6050, %v9174, 0
  %v9305 = vsel %vm6050, %v9175, 0
  %v9308 = vsel %vm6050, %v9176, 0
  %v9311 = vsel %vm6050, %v9177, 0
  %v9314 = vsel %vm6050, %v9178, 0
  %v9317 = vsel %vm6050, %v9179, 0
  %v9320 = vsel %vm6050, %v9180, 0
  %v9323 = vsel %vm6050, %v9181, 0
  %v9326 = vsel %vm6050, %v9182, 0
  %v9329 = vsel %vm6050, %v9183, 0
  %v9332 = vsel %vm6050, %v9184, 0
  %v9335 = vsel %vm6050, %v9185, 0
  %v9338 = vsel %vm6050, %v9186, 0
  %v9341 = vsel %vm6050, %v9187, 0
  %v9344 = vsel %vm6050, %v9188, 0
  %v9347 = vsel %vm6050, %v9189, 0
  %v9350 = vsel %vm6050, %v9190, 0
  %v9353 = vsel %vm6050, %v9191, 0
  %v9356 = vsel %vm6050, %v9192, 0
  %v9359 = vsel %vm6050, %v9193, 0
  %v9362 = vsel %vm6050, %v9194, 0
  %v9365 = vsel %vm6050, %v9195, 0
  %v9368 = vsel %vm6050, %v9196, 0
  %v9371 = vsel %vm6050, %v9197, 0
  %v9374 = vsel %vm6050, %v9198, 0
  %v9377 = vsel %vm6050, %v9199, 0
  %v9380 = vsel %vm6050, %v9200, 0
  %v9383 = vsel %vm6050, %v9201, 0
  %v9386 = vsel %vm6050, %v9202, 0
  %v9389 = vsel %vm6050, %v9203, 0
  %v9392 = vsel %vm6050, %v9204, 0
  %v9395 = vsel %vm6050, %v9205, 0
  %v9398 = vsel %vm6050, %v9206, 0
  %v9401 = vsel %vm6050, %v9207, 0
  %9403 = vmatpush.msra.mxu0 0.0
  %9404 = vmatpush.msra.mxu0 0.0
  %9405 = vmatpush.msra.mxu0 0.0
  %9406 = vmatpush.msra.mxu0 0.0
  %9407 = vmatpush.msra.mxu0 0.0
  %9408 = vmatpush.msra.mxu0 0.0
  %9409 = vmatpush.msra.mxu0 0.0
  %9410 = vmatpush.msra.mxu0 %v6524
  %9411 = vmatpush.msra.mxu0 %v6523
  %9412 = vmatpush.msra.mxu0 %v6522
  %9413 = vmatpush.msra.mxu0 %v6521
  %9414 = vmatpush.msra.mxu0 %v6520
  %9415 = vmatpush.msra.mxu0 %v6519
  %9416 = vmatpush.msra.mxu0 %v6518
  %9417 = vmatpush.msra.mxu0 %v6517
  %9418 = vmatpush.msra.mxu0 %v6516
  %9419 = vmatmul.f32.gmra.mxu0 %v9212
  %v9420 = vpop.f32.mrf.mxu0
  %v9421 = vadd.f32 %v9209, %v9420
  %9422 = vmatmul.f32.gmra.mxu0 %v9215
  %v9423 = vpop.f32.mrf.mxu0
  %v9424 = vadd.f32 %v9209, %v9423
  %9425 = vmatmul.f32.gmra.mxu0 %v9218
  %v9426 = vpop.f32.mrf.mxu0
  %v9427 = vadd.f32 %v9209, %v9426
  %9428 = vmatmul.f32.gmra.mxu0 %v9221
  %v9429 = vpop.f32.mrf.mxu0
  %v9430 = vadd.f32 %v9209, %v9429
  %9431 = vmatmul.f32.gmra.mxu0 %v9224
  %v9432 = vpop.f32.mrf.mxu0
  %v9433 = vadd.f32 %v9209, %v9432
  %9434 = vmatmul.f32.gmra.mxu0 %v9227
  %v9435 = vpop.f32.mrf.mxu0
  %v9436 = vadd.f32 %v9209, %v9435
  %9437 = vmatmul.f32.gmra.mxu0 %v9230
  %v9438 = vpop.f32.mrf.mxu0
  %v9439 = vadd.f32 %v9209, %v9438
  %9440 = vmatmul.f32.gmra.mxu0 %v9233
  %v9441 = vpop.f32.mrf.mxu0
  %v9442 = vadd.f32 %v9209, %v9441
  %9443 = vmatmul.f32.gmra.mxu0 %v9236
  %v9444 = vpop.f32.mrf.mxu0
  %v9445 = vadd.f32 %v9209, %v9444
  %9446 = vmatmul.f32.gmra.mxu0 %v9239
  %v9447 = vpop.f32.mrf.mxu0
  %v9448 = vadd.f32 %v9209, %v9447
  %9449 = vmatmul.f32.gmra.mxu0 %v9242
  %v9450 = vpop.f32.mrf.mxu0
  %v9451 = vadd.f32 %v9209, %v9450
  %9452 = vmatmul.f32.gmra.mxu0 %v9245
  %v9453 = vpop.f32.mrf.mxu0
  %v9454 = vadd.f32 %v9209, %v9453
  %9455 = vmatmul.f32.gmra.mxu0 %v9248
  %v9456 = vpop.f32.mrf.mxu0
  %v9457 = vadd.f32 %v9209, %v9456
  %9458 = vmatmul.f32.gmra.mxu0 %v9251
  %v9459 = vpop.f32.mrf.mxu0
  %v9460 = vadd.f32 %v9209, %v9459
  %9461 = vmatmul.f32.gmra.mxu0 %v9254
  %v9462 = vpop.f32.mrf.mxu0
  %v9463 = vadd.f32 %v9209, %v9462
  %9464 = vmatmul.f32.gmra.mxu0 %v9257
  %v9465 = vpop.f32.mrf.mxu0
  %v9466 = vadd.f32 %v9209, %v9465
  %9467 = vmatmul.f32.gmra.mxu0 %v9260
  %v9468 = vpop.f32.mrf.mxu0
  %v9469 = vadd.f32 %v9209, %v9468
  %9470 = vmatmul.f32.gmra.mxu0 %v9263
  %v9471 = vpop.f32.mrf.mxu0
  %v9472 = vadd.f32 %v9209, %v9471
  %9473 = vmatmul.f32.gmra.mxu0 %v9266
  %v9474 = vpop.f32.mrf.mxu0
  %v9475 = vadd.f32 %v9209, %v9474
  %9476 = vmatmul.f32.gmra.mxu0 %v9269
  %v9477 = vpop.f32.mrf.mxu0
  %v9478 = vadd.f32 %v9209, %v9477
  %9479 = vmatmul.f32.gmra.mxu0 %v9272
  %v9480 = vpop.f32.mrf.mxu0
  %v9481 = vadd.f32 %v9209, %v9480
  %9482 = vmatmul.f32.gmra.mxu0 %v9275
  %v9483 = vpop.f32.mrf.mxu0
  %v9484 = vadd.f32 %v9209, %v9483
  %9485 = vmatmul.f32.gmra.mxu0 %v9278
  %v9486 = vpop.f32.mrf.mxu0
  %v9487 = vadd.f32 %v9209, %v9486
  %9488 = vmatmul.f32.gmra.mxu0 %v9281
  %v9489 = vpop.f32.mrf.mxu0
  %v9490 = vadd.f32 %v9209, %v9489
  %9491 = vmatmul.f32.gmra.mxu0 %v9284
  %v9492 = vpop.f32.mrf.mxu0
  %v9493 = vadd.f32 %v9209, %v9492
  %9494 = vmatmul.f32.gmra.mxu0 %v9287
  %v9495 = vpop.f32.mrf.mxu0
  %v9496 = vadd.f32 %v9209, %v9495
  %9497 = vmatmul.f32.gmra.mxu0 %v9290
  %v9498 = vpop.f32.mrf.mxu0
  %v9499 = vadd.f32 %v9209, %v9498
  %9500 = vmatmul.f32.gmra.mxu0 %v9293
  %v9501 = vpop.f32.mrf.mxu0
  %v9502 = vadd.f32 %v9209, %v9501
  %9503 = vmatmul.f32.gmra.mxu0 %v9296
  %v9504 = vpop.f32.mrf.mxu0
  %v9505 = vadd.f32 %v9209, %v9504
  %9506 = vmatmul.f32.gmra.mxu0 %v9299
  %v9507 = vpop.f32.mrf.mxu0
  %v9508 = vadd.f32 %v9209, %v9507
  %9509 = vmatmul.f32.gmra.mxu0 %v9302
  %v9510 = vpop.f32.mrf.mxu0
  %v9511 = vadd.f32 %v9209, %v9510
  %9512 = vmatmul.f32.gmra.mxu0 %v9305
  %v9513 = vpop.f32.mrf.mxu0
  %v9514 = vadd.f32 %v9209, %v9513
  %9515 = vmatmul.f32.gmra.mxu0 %v9308
  %v9516 = vpop.f32.mrf.mxu0
  %v9517 = vadd.f32 %v9209, %v9516
  %9518 = vmatmul.f32.gmra.mxu0 %v9311
  %v9519 = vpop.f32.mrf.mxu0
  %v9520 = vadd.f32 %v9209, %v9519
  %9521 = vmatmul.f32.gmra.mxu0 %v9314
  %v9522 = vpop.f32.mrf.mxu0
  %v9523 = vadd.f32 %v9209, %v9522
  %9524 = vmatmul.f32.gmra.mxu0 %v9317
  %v9525 = vpop.f32.mrf.mxu0
  %v9526 = vadd.f32 %v9209, %v9525
  %9527 = vmatmul.f32.gmra.mxu0 %v9320
  %v9528 = vpop.f32.mrf.mxu0
  %v9529 = vadd.f32 %v9209, %v9528
  %9530 = vmatmul.f32.gmra.mxu0 %v9323
  %v9531 = vpop.f32.mrf.mxu0
  %v9532 = vadd.f32 %v9209, %v9531
  %9533 = vmatmul.f32.gmra.mxu0 %v9326
  %v9534 = vpop.f32.mrf.mxu0
  %v9535 = vadd.f32 %v9209, %v9534
  %9536 = vmatmul.f32.gmra.mxu0 %v9329
  %v9537 = vpop.f32.mrf.mxu0
  %v9538 = vadd.f32 %v9209, %v9537
  %9539 = vmatmul.f32.gmra.mxu0 %v9332
  %v9540 = vpop.f32.mrf.mxu0
  %v9541 = vadd.f32 %v9209, %v9540
  %9542 = vmatmul.f32.gmra.mxu0 %v9335
  %v9543 = vpop.f32.mrf.mxu0
  %v9544 = vadd.f32 %v9209, %v9543
  %9545 = vmatmul.f32.gmra.mxu0 %v9338
  %v9546 = vpop.f32.mrf.mxu0
  %v9547 = vadd.f32 %v9209, %v9546
  %9548 = vmatmul.f32.gmra.mxu0 %v9341
  %v9549 = vpop.f32.mrf.mxu0
  %v9550 = vadd.f32 %v9209, %v9549
  %9551 = vmatmul.f32.gmra.mxu0 %v9344
  %v9552 = vpop.f32.mrf.mxu0
  %v9553 = vadd.f32 %v9209, %v9552
  %9554 = vmatmul.f32.gmra.mxu0 %v9347
  %v9555 = vpop.f32.mrf.mxu0
  %v9556 = vadd.f32 %v9209, %v9555
  %9557 = vmatmul.f32.gmra.mxu0 %v9350
  %v9558 = vpop.f32.mrf.mxu0
  %v9559 = vadd.f32 %v9209, %v9558
  %9560 = vmatmul.f32.gmra.mxu0 %v9353
  %v9561 = vpop.f32.mrf.mxu0
  %v9562 = vadd.f32 %v9209, %v9561
  %9563 = vmatmul.f32.gmra.mxu0 %v9356
  %v9564 = vpop.f32.mrf.mxu0
  %v9565 = vadd.f32 %v9209, %v9564
  %9566 = vmatmul.f32.gmra.mxu0 %v9359
  %v9567 = vpop.f32.mrf.mxu0
  %v9568 = vadd.f32 %v9209, %v9567
  %9569 = vmatmul.f32.gmra.mxu0 %v9362
  %v9570 = vpop.f32.mrf.mxu0
  %v9571 = vadd.f32 %v9209, %v9570
  %9572 = vmatmul.f32.gmra.mxu0 %v9365
  %v9573 = vpop.f32.mrf.mxu0
  %v9574 = vadd.f32 %v9209, %v9573
  %9575 = vmatmul.f32.gmra.mxu0 %v9368
  %v9576 = vpop.f32.mrf.mxu0
  %v9577 = vadd.f32 %v9209, %v9576
  %9578 = vmatmul.f32.gmra.mxu0 %v9371
  %v9579 = vpop.f32.mrf.mxu0
  %v9580 = vadd.f32 %v9209, %v9579
  %9581 = vmatmul.f32.gmra.mxu0 %v9374
  %v9582 = vpop.f32.mrf.mxu0
  %v9583 = vadd.f32 %v9209, %v9582
  %9584 = vmatmul.f32.gmra.mxu0 %v9377
  %v9585 = vpop.f32.mrf.mxu0
  %v9586 = vadd.f32 %v9209, %v9585
  %9587 = vmatmul.f32.gmra.mxu0 %v9380
  %v9588 = vpop.f32.mrf.mxu0
  %v9589 = vadd.f32 %v9209, %v9588
  %9590 = vmatmul.f32.gmra.mxu0 %v9383
  %v9591 = vpop.f32.mrf.mxu0
  %v9592 = vadd.f32 %v9209, %v9591
  %9593 = vmatmul.f32.gmra.mxu0 %v9386
  %v9594 = vpop.f32.mrf.mxu0
  %v9595 = vadd.f32 %v9209, %v9594
  %9596 = vmatmul.f32.gmra.mxu0 %v9389
  %v9597 = vpop.f32.mrf.mxu0
  %v9598 = vadd.f32 %v9209, %v9597
  %9599 = vmatmul.f32.gmra.mxu0 %v9392
  %v9600 = vpop.f32.mrf.mxu0
  %v9601 = vadd.f32 %v9209, %v9600
  %9602 = vmatmul.f32.gmra.mxu0 %v9395
  %v9603 = vpop.f32.mrf.mxu0
  %v9604 = vadd.f32 %v9209, %v9603
  %9605 = vmatmul.f32.gmra.mxu0 %v9398
  %v9606 = vpop.f32.mrf.mxu0
  %v9607 = vadd.f32 %v9209, %v9606
  %9608 = vmatmul.f32.gmra.mxu0 %v9401
  %v9609 = vpop.f32.mrf.mxu0
  %v9610 = vadd.f32 %v9209, %v9609
  %9611 = vdwg.mxu0
  %v9612 = vmax.f32 %v9421, 0.0
  %v9613 = vmax.f32 %v9424, 0.0
  %v9614 = vmax.f32 %v9427, 0.0
  %v9615 = vmax.f32 %v9430, 0.0
  %v9616 = vmax.f32 %v9433, 0.0
  %v9617 = vmax.f32 %v9436, 0.0
  %v9618 = vmax.f32 %v9439, 0.0
  %v9619 = vmax.f32 %v9442, 0.0
  %v9620 = vmax.f32 %v9445, 0.0
  %v9621 = vmax.f32 %v9448, 0.0
  %v9622 = vmax.f32 %v9451, 0.0
  %v9623 = vmax.f32 %v9454, 0.0
  %v9624 = vmax.f32 %v9457, 0.0
  %v9625 = vmax.f32 %v9460, 0.0
  %v9626 = vmax.f32 %v9463, 0.0
  %v9627 = vmax.f32 %v9466, 0.0
  %v9628 = vmax.f32 %v9469, 0.0
  %v9629 = vmax.f32 %v9472, 0.0
  %v9630 = vmax.f32 %v9475, 0.0
  %v9631 = vmax.f32 %v9478, 0.0
  %v9632 = vmax.f32 %v9481, 0.0
  %v9633 = vmax.f32 %v9484, 0.0
  %v9634 = vmax.f32 %v9487, 0.0
  %v9635 = vmax.f32 %v9490, 0.0
  %v9636 = vmax.f32 %v9493, 0.0
  %v9637 = vmax.f32 %v9496, 0.0
  %v9638 = vmax.f32 %v9499, 0.0
  %v9639 = vmax.f32 %v9502, 0.0
  %v9640 = vmax.f32 %v9505, 0.0
  %v9641 = vmax.f32 %v9508, 0.0
  %v9642 = vmax.f32 %v9511, 0.0
  %v9643 = vmax.f32 %v9514, 0.0
  %v9644 = vmax.f32 %v9517, 0.0
  %v9645 = vmax.f32 %v9520, 0.0
  %v9646 = vmax.f32 %v9523, 0.0
  %v9647 = vmax.f32 %v9526, 0.0
  %v9648 = vmax.f32 %v9529, 0.0
  %v9649 = vmax.f32 %v9532, 0.0
  %v9650 = vmax.f32 %v9535, 0.0
  %v9651 = vmax.f32 %v9538, 0.0
  %v9652 = vmax.f32 %v9541, 0.0
  %v9653 = vmax.f32 %v9544, 0.0
  %v9654 = vmax.f32 %v9547, 0.0
  %v9655 = vmax.f32 %v9550, 0.0
  %v9656 = vmax.f32 %v9553, 0.0
  %v9657 = vmax.f32 %v9556, 0.0
  %v9658 = vmax.f32 %v9559, 0.0
  %v9659 = vmax.f32 %v9562, 0.0
  %v9660 = vmax.f32 %v9565, 0.0
  %v9661 = vmax.f32 %v9568, 0.0
  %v9662 = vmax.f32 %v9571, 0.0
  %v9663 = vmax.f32 %v9574, 0.0
  %v9664 = vmax.f32 %v9577, 0.0
  %v9665 = vmax.f32 %v9580, 0.0
  %v9666 = vmax.f32 %v9583, 0.0
  %v9667 = vmax.f32 %v9586, 0.0
  %v9668 = vmax.f32 %v9589, 0.0
  %v9669 = vmax.f32 %v9592, 0.0
  %v9670 = vmax.f32 %v9595, 0.0
  %v9671 = vmax.f32 %v9598, 0.0
  %v9672 = vmax.f32 %v9601, 0.0
  %v9673 = vmax.f32 %v9604, 0.0
  %v9674 = vmax.f32 %v9607, 0.0
  %v9675 = vmax.f32 %v9610, 0.0
  %v9676 = vlaneseq
  %v9677 = vshrl.u32 %v9676, 7
  %v9678 = vadd.s32 %v9677, 8
  %v9679 = vadd.s32 %v9677, 16
  %v9680 = vadd.s32 %v9677, 24
  %v9681 = vadd.s32 %v9677, 32
  %v9682 = vadd.s32 %v9677, 40
  %v9683 = vadd.s32 %v9677, 48
  %v9684 = vadd.s32 %v9677, 56
  %v9685 = vadd.s32 %v9677, 64
  %v9686 = vadd.s32 %v9677, 72
  %v9687 = vadd.s32 %v9677, 80
  %v9688 = vadd.s32 %v9677, 88
  %v9689 = vadd.s32 %v9677, 96
  %v9690 = vadd.s32 %v9677, 104
  %v9691 = vadd.s32 %v9677, 112
  %v9692 = vadd.s32 %v9677, 120
  %v9693 = vadd.s32 %v9677, 128
  %v9694 = vadd.s32 %v9677, 136
  %v9695 = vadd.s32 %v9677, 144
  %v9696 = vadd.s32 %v9677, 152
  %v9697 = vadd.s32 %v9677, 160
  %v9698 = vadd.s32 %v9677, 168
  %v9699 = vadd.s32 %v9677, 176
  %v9700 = vadd.s32 %v9677, 184
  %v9701 = vadd.s32 %v9677, 192
  %v9702 = vadd.s32 %v9677, 200
  %v9703 = vadd.s32 %v9677, 208
  %v9704 = vadd.s32 %v9677, 216
  %v9705 = vadd.s32 %v9677, 224
  %v9706 = vadd.s32 %v9677, 232
  %v9707 = vadd.s32 %v9677, 240
  %v9708 = vadd.s32 %v9677, 248
  %v9773 = vrot.slane %v9612, 1
  %v9774 = vrot.slane %v9613, 1
  %v9775 = vsel %vm486, %v9773, %v9774
  %v9776 = vrot.slane %v9614, 1
  %v9777 = vsel %vm486, %v9774, %v9776
  %v9778 = vrot.slane %v9615, 1
  %v9779 = vsel %vm486, %v9776, %v9778
  %v9780 = vrot.slane %v9616, 1
  %v9781 = vsel %vm486, %v9778, %v9780
  %v9782 = vrot.slane %v9617, 1
  %v9783 = vsel %vm486, %v9780, %v9782
  %v9784 = vrot.slane %v9618, 1
  %v9785 = vsel %vm486, %v9782, %v9784
  %v9786 = vrot.slane %v9619, 1
  %v9787 = vsel %vm486, %v9784, %v9786
  %v9788 = vrot.slane %v9620, 1
  %v9789 = vsel %vm486, %v9786, %v9788
  %v9790 = vrot.slane %v9621, 1
  %v9791 = vsel %vm486, %v9788, %v9790
  %v9792 = vrot.slane %v9622, 1
  %v9793 = vsel %vm486, %v9790, %v9792
  %v9794 = vrot.slane %v9623, 1
  %v9795 = vsel %vm486, %v9792, %v9794
  %v9796 = vrot.slane %v9624, 1
  %v9797 = vsel %vm486, %v9794, %v9796
  %v9798 = vrot.slane %v9625, 1
  %v9799 = vsel %vm486, %v9796, %v9798
  %v9800 = vrot.slane %v9626, 1
  %v9801 = vsel %vm486, %v9798, %v9800
  %v9802 = vrot.slane %v9627, 1
  %v9803 = vsel %vm486, %v9800, %v9802
  %v9804 = vrot.slane %v9628, 1
  %v9805 = vsel %vm486, %v9802, %v9804
  %v9806 = vrot.slane %v9629, 1
  %v9807 = vsel %vm486, %v9804, %v9806
  %v9808 = vrot.slane %v9630, 1
  %v9809 = vsel %vm486, %v9806, %v9808
  %v9810 = vrot.slane %v9631, 1
  %v9811 = vsel %vm486, %v9808, %v9810
  %v9812 = vrot.slane %v9632, 1
  %v9813 = vsel %vm486, %v9810, %v9812
  %v9814 = vrot.slane %v9633, 1
  %v9815 = vsel %vm486, %v9812, %v9814
  %v9816 = vrot.slane %v9634, 1
  %v9817 = vsel %vm486, %v9814, %v9816
  %v9818 = vrot.slane %v9635, 1
  %v9819 = vsel %vm486, %v9816, %v9818
  %v9820 = vrot.slane %v9636, 1
  %v9821 = vsel %vm486, %v9818, %v9820
  %v9822 = vrot.slane %v9637, 1
  %v9823 = vsel %vm486, %v9820, %v9822
  %v9824 = vrot.slane %v9638, 1
  %v9825 = vsel %vm486, %v9822, %v9824
  %v9826 = vrot.slane %v9639, 1
  %v9827 = vsel %vm486, %v9824, %v9826
  %v9828 = vrot.slane %v9640, 1
  %v9829 = vsel %vm486, %v9826, %v9828
  %v9830 = vrot.slane %v9641, 1
  %v9831 = vsel %vm486, %v9828, %v9830
  %v9832 = vrot.slane %v9642, 1
  %v9833 = vsel %vm486, %v9830, %v9832
  %v9834 = vrot.slane %v9643, 1
  %v9835 = vsel %vm486, %v9832, %v9834
  %v9836 = vrot.slane %v9644, 1
  %v9837 = vsel %vm486, %v9834, %v9836
  %v9838 = vrot.slane %v9645, 1
  %v9839 = vsel %vm486, %v9836, %v9838
  %v9840 = vrot.slane %v9646, 1
  %v9841 = vsel %vm486, %v9838, %v9840
  %v9842 = vrot.slane %v9647, 1
  %v9843 = vsel %vm486, %v9840, %v9842
  %v9844 = vrot.slane %v9648, 1
  %v9845 = vsel %vm486, %v9842, %v9844
  %v9846 = vrot.slane %v9649, 1
  %v9847 = vsel %vm486, %v9844, %v9846
  %v9848 = vrot.slane %v9650, 1
  %v9849 = vsel %vm486, %v9846, %v9848
  %v9850 = vrot.slane %v9651, 1
  %v9851 = vsel %vm486, %v9848, %v9850
  %v9852 = vrot.slane %v9652, 1
  %v9853 = vsel %vm486, %v9850, %v9852
  %v9854 = vrot.slane %v9653, 1
  %v9855 = vsel %vm486, %v9852, %v9854
  %v9856 = vrot.slane %v9654, 1
  %v9857 = vsel %vm486, %v9854, %v9856
  %v9858 = vrot.slane %v9655, 1
  %v9859 = vsel %vm486, %v9856, %v9858
  %v9860 = vrot.slane %v9656, 1
  %v9861 = vsel %vm486, %v9858, %v9860
  %v9862 = vrot.slane %v9657, 1
  %v9863 = vsel %vm486, %v9860, %v9862
  %v9864 = vrot.slane %v9658, 1
  %v9865 = vsel %vm486, %v9862, %v9864
  %v9866 = vrot.slane %v9659, 1
  %v9867 = vsel %vm486, %v9864, %v9866
  %v9868 = vrot.slane %v9660, 1
  %v9869 = vsel %vm486, %v9866, %v9868
  %v9870 = vrot.slane %v9661, 1
  %v9871 = vsel %vm486, %v9868, %v9870
  %v9872 = vrot.slane %v9662, 1
  %v9873 = vsel %vm486, %v9870, %v9872
  %v9874 = vrot.slane %v9663, 1
  %v9875 = vsel %vm486, %v9872, %v9874
  %v9876 = vrot.slane %v9664, 1
  %v9877 = vsel %vm486, %v9874, %v9876
  %v9878 = vrot.slane %v9665, 1
  %v9879 = vsel %vm486, %v9876, %v9878
  %v9880 = vrot.slane %v9666, 1
  %v9881 = vsel %vm486, %v9878, %v9880
  %v9882 = vrot.slane %v9667, 1
  %v9883 = vsel %vm486, %v9880, %v9882
  %v9884 = vrot.slane %v9668, 1
  %v9885 = vsel %vm486, %v9882, %v9884
  %v9886 = vrot.slane %v9669, 1
  %v9887 = vsel %vm486, %v9884, %v9886
  %v9888 = vrot.slane %v9670, 1
  %v9889 = vsel %vm486, %v9886, %v9888
  %v9890 = vrot.slane %v9671, 1
  %v9891 = vsel %vm486, %v9888, %v9890
  %v9892 = vrot.slane %v9672, 1
  %v9893 = vsel %vm486, %v9890, %v9892
  %v9894 = vrot.slane %v9673, 1
  %v9895 = vsel %vm486, %v9892, %v9894
  %v9896 = vrot.slane %v9674, 1
  %v9897 = vsel %vm486, %v9894, %v9896
  %v9898 = vrot.slane %v9675, 1
  %v9899 = vsel %vm486, %v9896, %v9898
  %v9965 = vsel %vm486, %v9898, %v9773
  %vm9966 = vcmp.ge.f32.partialorder %v9612, %v9775
  %vm9967 = vcmp.ge.f32.partialorder %v9613, %v9777
  %vm9968 = vcmp.ge.f32.partialorder %v9614, %v9779
  %vm9969 = vcmp.ge.f32.partialorder %v9615, %v9781
  %vm9970 = vcmp.ge.f32.partialorder %v9616, %v9783
  %vm9971 = vcmp.ge.f32.partialorder %v9617, %v9785
  %vm9972 = vcmp.ge.f32.partialorder %v9618, %v9787
  %vm9973 = vcmp.ge.f32.partialorder %v9619, %v9789
  %vm9974 = vcmp.ge.f32.partialorder %v9620, %v9791
  %vm9975 = vcmp.ge.f32.partialorder %v9621, %v9793
  %vm9976 = vcmp.ge.f32.partialorder %v9622, %v9795
  %vm9977 = vcmp.ge.f32.partialorder %v9623, %v9797
  %vm9978 = vcmp.ge.f32.partialorder %v9624, %v9799
  %vm9979 = vcmp.ge.f32.partialorder %v9625, %v9801
  %vm9980 = vcmp.ge.f32.partialorder %v9626, %v9803
  %vm9981 = vcmp.ge.f32.partialorder %v9627, %v9805
  %vm9982 = vcmp.ge.f32.partialorder %v9628, %v9807
  %vm9983 = vcmp.ge.f32.partialorder %v9629, %v9809
  %vm9984 = vcmp.ge.f32.partialorder %v9630, %v9811
  %vm9985 = vcmp.ge.f32.partialorder %v9631, %v9813
  %vm9986 = vcmp.ge.f32.partialorder %v9632, %v9815
  %vm9987 = vcmp.ge.f32.partialorder %v9633, %v9817
  %vm9988 = vcmp.ge.f32.partialorder %v9634, %v9819
  %vm9989 = vcmp.ge.f32.partialorder %v9635, %v9821
  %vm9990 = vcmp.ge.f32.partialorder %v9636, %v9823
  %vm9991 = vcmp.ge.f32.partialorder %v9637, %v9825
  %vm9992 = vcmp.ge.f32.partialorder %v9638, %v9827
  %vm9993 = vcmp.ge.f32.partialorder %v9639, %v9829
  %vm9994 = vcmp.ge.f32.partialorder %v9640, %v9831
  %vm9995 = vcmp.ge.f32.partialorder %v9641, %v9833
  %vm9996 = vcmp.ge.f32.partialorder %v9642, %v9835
  %vm9997 = vcmp.ge.f32.partialorder %v9643, %v9837
  %vm9998 = vcmp.ge.f32.partialorder %v9644, %v9839
  %vm9999 = vcmp.ge.f32.partialorder %v9645, %v9841
  %vm10000 = vcmp.ge.f32.partialorder %v9646, %v9843
  %vm10001 = vcmp.ge.f32.partialorder %v9647, %v9845
  %vm10002 = vcmp.ge.f32.partialorder %v9648, %v9847
  %vm10003 = vcmp.ge.f32.partialorder %v9649, %v9849
  %vm10004 = vcmp.ge.f32.partialorder %v9650, %v9851
  %vm10005 = vcmp.ge.f32.partialorder %v9651, %v9853
  %vm10006 = vcmp.ge.f32.partialorder %v9652, %v9855
  %vm10007 = vcmp.ge.f32.partialorder %v9653, %v9857
  %vm10008 = vcmp.ge.f32.partialorder %v9654, %v9859
  %vm10009 = vcmp.ge.f32.partialorder %v9655, %v9861
  %vm10010 = vcmp.ge.f32.partialorder %v9656, %v9863
  %vm10011 = vcmp.ge.f32.partialorder %v9657, %v9865
  %vm10012 = vcmp.ge.f32.partialorder %v9658, %v9867
  %vm10013 = vcmp.ge.f32.partialorder %v9659, %v9869
  %vm10014 = vcmp.ge.f32.partialorder %v9660, %v9871
  %vm10015 = vcmp.ge.f32.partialorder %v9661, %v9873
  %vm10016 = vcmp.ge.f32.partialorder %v9662, %v9875
  %vm10017 = vcmp.ge.f32.partialorder %v9663, %v9877
  %vm10018 = vcmp.ge.f32.partialorder %v9664, %v9879
  %vm10019 = vcmp.ge.f32.partialorder %v9665, %v9881
  %vm10020 = vcmp.ge.f32.partialorder %v9666, %v9883
  %vm10021 = vcmp.ge.f32.partialorder %v9667, %v9885
  %vm10022 = vcmp.ge.f32.partialorder %v9668, %v9887
  %vm10023 = vcmp.ge.f32.partialorder %v9669, %v9889
  %vm10024 = vcmp.ge.f32.partialorder %v9670, %v9891
  %vm10025 = vcmp.ge.f32.partialorder %v9671, %v9893
  %vm10026 = vcmp.ge.f32.partialorder %v9672, %v9895
  %vm10027 = vcmp.ge.f32.partialorder %v9673, %v9897
  %vm10028 = vcmp.ge.f32.partialorder %v9674, %v9899
  %vm10029 = vcmp.ge.f32.partialorder %v9675, %v9965
  %v10030 = vsel %vm9966, %v9612, %v9775
  %v10031 = vsel %vm9967, %v9613, %v9777
  %v10032 = vsel %vm9968, %v9614, %v9779
  %v10033 = vsel %vm9969, %v9615, %v9781
  %v10034 = vsel %vm9970, %v9616, %v9783
  %v10035 = vsel %vm9971, %v9617, %v9785
  %v10036 = vsel %vm9972, %v9618, %v9787
  %v10037 = vsel %vm9973, %v9619, %v9789
  %v10038 = vsel %vm9974, %v9620, %v9791
  %v10039 = vsel %vm9975, %v9621, %v9793
  %v10040 = vsel %vm9976, %v9622, %v9795
  %v10041 = vsel %vm9977, %v9623, %v9797
  %v10042 = vsel %vm9978, %v9624, %v9799
  %v10043 = vsel %vm9979, %v9625, %v9801
  %v10044 = vsel %vm9980, %v9626, %v9803
  %v10045 = vsel %vm9981, %v9627, %v9805
  %v10046 = vsel %vm9982, %v9628, %v9807
  %v10047 = vsel %vm9983, %v9629, %v9809
  %v10048 = vsel %vm9984, %v9630, %v9811
  %v10049 = vsel %vm9985, %v9631, %v9813
  %v10050 = vsel %vm9986, %v9632, %v9815
  %v10051 = vsel %vm9987, %v9633, %v9817
  %v10052 = vsel %vm9988, %v9634, %v9819
  %v10053 = vsel %vm9989, %v9635, %v9821
  %v10054 = vsel %vm9990, %v9636, %v9823
  %v10055 = vsel %vm9991, %v9637, %v9825
  %v10056 = vsel %vm9992, %v9638, %v9827
  %v10057 = vsel %vm9993, %v9639, %v9829
  %v10058 = vsel %vm9994, %v9640, %v9831
  %v10059 = vsel %vm9995, %v9641, %v9833
  %v10060 = vsel %vm9996, %v9642, %v9835
  %v10061 = vsel %vm9997, %v9643, %v9837
  %v10062 = vsel %vm9998, %v9644, %v9839
  %v10063 = vsel %vm9999, %v9645, %v9841
  %v10064 = vsel %vm10000, %v9646, %v9843
  %v10065 = vsel %vm10001, %v9647, %v9845
  %v10066 = vsel %vm10002, %v9648, %v9847
  %v10067 = vsel %vm10003, %v9649, %v9849
  %v10068 = vsel %vm10004, %v9650, %v9851
  %v10069 = vsel %vm10005, %v9651, %v9853
  %v10070 = vsel %vm10006, %v9652, %v9855
  %v10071 = vsel %vm10007, %v9653, %v9857
  %v10072 = vsel %vm10008, %v9654, %v9859
  %v10073 = vsel %vm10009, %v9655, %v9861
  %v10074 = vsel %vm10010, %v9656, %v9863
  %v10075 = vsel %vm10011, %v9657, %v9865
  %v10076 = vsel %vm10012, %v9658, %v9867
  %v10077 = vsel %vm10013, %v9659, %v9869
  %v10078 = vsel %vm10014, %v9660, %v9871
  %v10079 = vsel %vm10015, %v9661, %v9873
  %v10080 = vsel %vm10016, %v9662, %v9875
  %v10081 = vsel %vm10017, %v9663, %v9877
  %v10082 = vsel %vm10018, %v9664, %v9879
  %v10083 = vsel %vm10019, %v9665, %v9881
  %v10084 = vsel %vm10020, %v9666, %v9883
  %v10085 = vsel %vm10021, %v9667, %v9885
  %v10086 = vsel %vm10022, %v9668, %v9887
  %v10087 = vsel %vm10023, %v9669, %v9889
  %v10088 = vsel %vm10024, %v9670, %v9891
  %v10089 = vsel %vm10025, %v9671, %v9893
  %v10090 = vsel %vm10026, %v9672, %v9895
  %v10091 = vsel %vm10027, %v9673, %v9897
  %v10092 = vsel %vm10028, %v9674, %v9899
  %v10093 = vsel %vm10029, %v9675, %v9965
  %v10094 = vadd.s32 %v9677, 1
  %v10095 = vadd.s32 %v9678, 1
  %v10096 = vadd.s32 %v9679, 1
  %v10097 = vadd.s32 %v9680, 1
  %v10098 = vadd.s32 %v9681, 1
  %v10099 = vadd.s32 %v9682, 1
  %v10100 = vadd.s32 %v9683, 1
  %v10101 = vadd.s32 %v9684, 1
  %v10102 = vadd.s32 %v9685, 1
  %v10103 = vadd.s32 %v9686, 1
  %v10104 = vadd.s32 %v9687, 1
  %v10105 = vadd.s32 %v9688, 1
  %v10106 = vadd.s32 %v9689, 1
  %v10107 = vadd.s32 %v9690, 1
  %v10108 = vadd.s32 %v9691, 1
  %v10109 = vadd.s32 %v9692, 1
  %v10110 = vadd.s32 %v9693, 1
  %v10111 = vadd.s32 %v9694, 1
  %v10112 = vadd.s32 %v9695, 1
  %v10113 = vadd.s32 %v9696, 1
  %v10114 = vadd.s32 %v9697, 1
  %v10115 = vadd.s32 %v9698, 1
  %v10116 = vadd.s32 %v9699, 1
  %v10117 = vadd.s32 %v9700, 1
  %v10118 = vadd.s32 %v9701, 1
  %v10119 = vadd.s32 %v9702, 1
  %v10120 = vadd.s32 %v9703, 1
  %v10121 = vadd.s32 %v9704, 1
  %v10122 = vadd.s32 %v9705, 1
  %v10123 = vadd.s32 %v9706, 1
  %v10124 = vadd.s32 %v9707, 1
  %v10125 = vadd.s32 %v9708, 1
  %v10126 = vsel %vm9966, %v9677, %v10094
  %v10127 = vsel %vm9967, %v9678, %v10095
  %v10128 = vsel %vm9968, %v9679, %v10096
  %v10129 = vsel %vm9969, %v9680, %v10097
  %v10130 = vsel %vm9970, %v9681, %v10098
  %v10131 = vsel %vm9971, %v9682, %v10099
  %v10132 = vsel %vm9972, %v9683, %v10100
  %v10133 = vsel %vm9973, %v9684, %v10101
  %v10134 = vsel %vm9974, %v9685, %v10102
  %v10135 = vsel %vm9975, %v9686, %v10103
  %v10136 = vsel %vm9976, %v9687, %v10104
  %v10137 = vsel %vm9977, %v9688, %v10105
  %v10138 = vsel %vm9978, %v9689, %v10106
  %v10139 = vsel %vm9979, %v9690, %v10107
  %v10140 = vsel %vm9980, %v9691, %v10108
  %v10141 = vsel %vm9981, %v9692, %v10109
  %v10142 = vsel %vm9982, %v9693, %v10110
  %v10143 = vsel %vm9983, %v9694, %v10111
  %v10144 = vsel %vm9984, %v9695, %v10112
  %v10145 = vsel %vm9985, %v9696, %v10113
  %v10146 = vsel %vm9986, %v9697, %v10114
  %v10147 = vsel %vm9987, %v9698, %v10115
  %v10148 = vsel %vm9988, %v9699, %v10116
  %v10149 = vsel %vm9989, %v9700, %v10117
  %v10150 = vsel %vm9990, %v9701, %v10118
  %v10151 = vsel %vm9991, %v9702, %v10119
  %v10152 = vsel %vm9992, %v9703, %v10120
  %v10153 = vsel %vm9993, %v9704, %v10121
  %v10154 = vsel %vm9994, %v9705, %v10122
  %v10155 = vsel %vm9995, %v9706, %v10123
  %v10156 = vsel %vm9996, %v9707, %v10124
  %v10157 = vsel %vm9997, %v9708, %v10125
  %v10158 = vsel %vm9998, %v9677, %v10094
  %v10159 = vsel %vm9999, %v9678, %v10095
  %v10160 = vsel %vm10000, %v9679, %v10096
  %v10161 = vsel %vm10001, %v9680, %v10097
  %v10162 = vsel %vm10002, %v9681, %v10098
  %v10163 = vsel %vm10003, %v9682, %v10099
  %v10164 = vsel %vm10004, %v9683, %v10100
  %v10165 = vsel %vm10005, %v9684, %v10101
  %v10166 = vsel %vm10006, %v9685, %v10102
  %v10167 = vsel %vm10007, %v9686, %v10103
  %v10168 = vsel %vm10008, %v9687, %v10104
  %v10169 = vsel %vm10009, %v9688, %v10105
  %v10170 = vsel %vm10010, %v9689, %v10106
  %v10171 = vsel %vm10011, %v9690, %v10107
  %v10172 = vsel %vm10012, %v9691, %v10108
  %v10173 = vsel %vm10013, %v9692, %v10109
  %v10174 = vsel %vm10014, %v9693, %v10110
  %v10175 = vsel %vm10015, %v9694, %v10111
  %v10176 = vsel %vm10016, %v9695, %v10112
  %v10177 = vsel %vm10017, %v9696, %v10113
  %v10178 = vsel %vm10018, %v9697, %v10114
  %v10179 = vsel %vm10019, %v9698, %v10115
  %v10180 = vsel %vm10020, %v9699, %v10116
  %v10181 = vsel %vm10021, %v9700, %v10117
  %v10182 = vsel %vm10022, %v9701, %v10118
  %v10183 = vsel %vm10023, %v9702, %v10119
  %v10184 = vsel %vm10024, %v9703, %v10120
  %v10185 = vsel %vm10025, %v9704, %v10121
  %v10186 = vsel %vm10026, %v9705, %v10122
  %v10187 = vsel %vm10027, %v9706, %v10123
  %v10188 = vsel %vm10028, %v9707, %v10124
  %v10189 = vsel %vm10029, %v9708, %v10125
  %vm10190 = vcmp.ge.f32.partialorder %v10030, %v10032
  %vm10191 = vcmp.ge.f32.partialorder %v10031, %v10033
  %vm10192 = vcmp.ge.f32.partialorder %v10032, %v10034
  %vm10193 = vcmp.ge.f32.partialorder %v10033, %v10035
  %vm10194 = vcmp.ge.f32.partialorder %v10034, %v10036
  %vm10195 = vcmp.ge.f32.partialorder %v10035, %v10037
  %vm10196 = vcmp.ge.f32.partialorder %v10036, %v10038
  %vm10197 = vcmp.ge.f32.partialorder %v10037, %v10039
  %vm10198 = vcmp.ge.f32.partialorder %v10038, %v10040
  %vm10199 = vcmp.ge.f32.partialorder %v10039, %v10041
  %vm10200 = vcmp.ge.f32.partialorder %v10040, %v10042
  %vm10201 = vcmp.ge.f32.partialorder %v10041, %v10043
  %vm10202 = vcmp.ge.f32.partialorder %v10042, %v10044
  %vm10203 = vcmp.ge.f32.partialorder %v10043, %v10045
  %vm10204 = vcmp.ge.f32.partialorder %v10044, %v10046
  %vm10205 = vcmp.ge.f32.partialorder %v10045, %v10047
  %vm10206 = vcmp.ge.f32.partialorder %v10046, %v10048
  %vm10207 = vcmp.ge.f32.partialorder %v10047, %v10049
  %vm10208 = vcmp.ge.f32.partialorder %v10048, %v10050
  %vm10209 = vcmp.ge.f32.partialorder %v10049, %v10051
  %vm10210 = vcmp.ge.f32.partialorder %v10050, %v10052
  %vm10211 = vcmp.ge.f32.partialorder %v10051, %v10053
  %vm10212 = vcmp.ge.f32.partialorder %v10052, %v10054
  %vm10213 = vcmp.ge.f32.partialorder %v10053, %v10055
  %vm10214 = vcmp.ge.f32.partialorder %v10054, %v10056
  %vm10215 = vcmp.ge.f32.partialorder %v10055, %v10057
  %vm10216 = vcmp.ge.f32.partialorder %v10056, %v10058
  %vm10217 = vcmp.ge.f32.partialorder %v10057, %v10059
  %vm10218 = vcmp.ge.f32.partialorder %v10058, %v10060
  %vm10219 = vcmp.ge.f32.partialorder %v10059, %v10061
  %vm10220 = vcmp.ge.f32.partialorder %v10060, %v10062
  %vm10221 = vcmp.ge.f32.partialorder %v10061, %v10063
  %vm10222 = vcmp.ge.f32.partialorder %v10062, %v10064
  %vm10223 = vcmp.ge.f32.partialorder %v10063, %v10065
  %vm10224 = vcmp.ge.f32.partialorder %v10064, %v10066
  %vm10225 = vcmp.ge.f32.partialorder %v10065, %v10067
  %vm10226 = vcmp.ge.f32.partialorder %v10066, %v10068
  %vm10227 = vcmp.ge.f32.partialorder %v10067, %v10069
  %vm10228 = vcmp.ge.f32.partialorder %v10068, %v10070
  %vm10229 = vcmp.ge.f32.partialorder %v10069, %v10071
  %vm10230 = vcmp.ge.f32.partialorder %v10070, %v10072
  %vm10231 = vcmp.ge.f32.partialorder %v10071, %v10073
  %vm10232 = vcmp.ge.f32.partialorder %v10072, %v10074
  %vm10233 = vcmp.ge.f32.partialorder %v10073, %v10075
  %vm10234 = vcmp.ge.f32.partialorder %v10074, %v10076
  %vm10235 = vcmp.ge.f32.partialorder %v10075, %v10077
  %vm10236 = vcmp.ge.f32.partialorder %v10076, %v10078
  %vm10237 = vcmp.ge.f32.partialorder %v10077, %v10079
  %vm10238 = vcmp.ge.f32.partialorder %v10078, %v10080
  %vm10239 = vcmp.ge.f32.partialorder %v10079, %v10081
  %vm10240 = vcmp.ge.f32.partialorder %v10080, %v10082
  %vm10241 = vcmp.ge.f32.partialorder %v10081, %v10083
  %vm10242 = vcmp.ge.f32.partialorder %v10082, %v10084
  %vm10243 = vcmp.ge.f32.partialorder %v10083, %v10085
  %vm10244 = vcmp.ge.f32.partialorder %v10084, %v10086
  %vm10245 = vcmp.ge.f32.partialorder %v10085, %v10087
  %vm10246 = vcmp.ge.f32.partialorder %v10086, %v10088
  %vm10247 = vcmp.ge.f32.partialorder %v10087, %v10089
  %vm10248 = vcmp.ge.f32.partialorder %v10088, %v10090
  %vm10249 = vcmp.ge.f32.partialorder %v10089, %v10091
  %vm10250 = vcmp.ge.f32.partialorder %v10090, %v10092
  %vm10251 = vcmp.ge.f32.partialorder %v10091, %v10093
  %vm10252 = vcmp.ge.f32.partialorder %v10092, %v10030
  %vm10253 = vcmp.ge.f32.partialorder %v10093, %v10031
  %v10254 = vsel %vm10190, %v10030, %v10032
  %v10255 = vsel %vm10191, %v10031, %v10033
  %v10256 = vsel %vm10192, %v10032, %v10034
  %v10257 = vsel %vm10193, %v10033, %v10035
  %v10258 = vsel %vm10194, %v10034, %v10036
  %v10259 = vsel %vm10195, %v10035, %v10037
  %v10260 = vsel %vm10196, %v10036, %v10038
  %v10261 = vsel %vm10197, %v10037, %v10039
  %v10262 = vsel %vm10198, %v10038, %v10040
  %v10263 = vsel %vm10199, %v10039, %v10041
  %v10264 = vsel %vm10200, %v10040, %v10042
  %v10265 = vsel %vm10201, %v10041, %v10043
  %v10266 = vsel %vm10202, %v10042, %v10044
  %v10267 = vsel %vm10203, %v10043, %v10045
  %v10268 = vsel %vm10204, %v10044, %v10046
  %v10269 = vsel %vm10205, %v10045, %v10047
  %v10270 = vsel %vm10206, %v10046, %v10048
  %v10271 = vsel %vm10207, %v10047, %v10049
  %v10272 = vsel %vm10208, %v10048, %v10050
  %v10273 = vsel %vm10209, %v10049, %v10051
  %v10274 = vsel %vm10210, %v10050, %v10052
  %v10275 = vsel %vm10211, %v10051, %v10053
  %v10276 = vsel %vm10212, %v10052, %v10054
  %v10277 = vsel %vm10213, %v10053, %v10055
  %v10278 = vsel %vm10214, %v10054, %v10056
  %v10279 = vsel %vm10215, %v10055, %v10057
  %v10280 = vsel %vm10216, %v10056, %v10058
  %v10281 = vsel %vm10217, %v10057, %v10059
  %v10282 = vsel %vm10218, %v10058, %v10060
  %v10283 = vsel %vm10219, %v10059, %v10061
  %v10284 = vsel %vm10220, %v10060, %v10062
  %v10285 = vsel %vm10221, %v10061, %v10063
  %v10286 = vsel %vm10222, %v10062, %v10064
  %v10287 = vsel %vm10223, %v10063, %v10065
  %v10288 = vsel %vm10224, %v10064, %v10066
  %v10289 = vsel %vm10225, %v10065, %v10067
  %v10290 = vsel %vm10226, %v10066, %v10068
  %v10291 = vsel %vm10227, %v10067, %v10069
  %v10292 = vsel %vm10228, %v10068, %v10070
  %v10293 = vsel %vm10229, %v10069, %v10071
  %v10294 = vsel %vm10230, %v10070, %v10072
  %v10295 = vsel %vm10231, %v10071, %v10073
  %v10296 = vsel %vm10232, %v10072, %v10074
  %v10297 = vsel %vm10233, %v10073, %v10075
  %v10298 = vsel %vm10234, %v10074, %v10076
  %v10299 = vsel %vm10235, %v10075, %v10077
  %v10300 = vsel %vm10236, %v10076, %v10078
  %v10301 = vsel %vm10237, %v10077, %v10079
  %v10302 = vsel %vm10238, %v10078, %v10080
  %v10303 = vsel %vm10239, %v10079, %v10081
  %v10304 = vsel %vm10240, %v10080, %v10082
  %v10305 = vsel %vm10241, %v10081, %v10083
  %v10306 = vsel %vm10242, %v10082, %v10084
  %v10307 = vsel %vm10243, %v10083, %v10085
  %v10308 = vsel %vm10244, %v10084, %v10086
  %v10309 = vsel %vm10245, %v10085, %v10087
  %v10310 = vsel %vm10246, %v10086, %v10088
  %v10311 = vsel %vm10247, %v10087, %v10089
  %v10312 = vsel %vm10248, %v10088, %v10090
  %v10313 = vsel %vm10249, %v10089, %v10091
  %v10314 = vsel %vm10250, %v10090, %v10092
  %v10315 = vsel %vm10251, %v10091, %v10093
  %v10316 = vsel %vm10252, %v10092, %v10030
  %v10317 = vsel %vm10253, %v10093, %v10031
  %v10318 = vsel %vm10190, %v10126, %v10128
  %v10319 = vsel %vm10191, %v10127, %v10129
  %v10320 = vsel %vm10192, %v10128, %v10130
  %v10321 = vsel %vm10193, %v10129, %v10131
  %v10322 = vsel %vm10194, %v10130, %v10132
  %v10323 = vsel %vm10195, %v10131, %v10133
  %v10324 = vsel %vm10196, %v10132, %v10134
  %v10325 = vsel %vm10197, %v10133, %v10135
  %v10326 = vsel %vm10198, %v10134, %v10136
  %v10327 = vsel %vm10199, %v10135, %v10137
  %v10328 = vsel %vm10200, %v10136, %v10138
  %v10329 = vsel %vm10201, %v10137, %v10139
  %v10330 = vsel %vm10202, %v10138, %v10140
  %v10331 = vsel %vm10203, %v10139, %v10141
  %v10332 = vsel %vm10204, %v10140, %v10142
  %v10333 = vsel %vm10205, %v10141, %v10143
  %v10334 = vsel %vm10206, %v10142, %v10144
  %v10335 = vsel %vm10207, %v10143, %v10145
  %v10336 = vsel %vm10208, %v10144, %v10146
  %v10337 = vsel %vm10209, %v10145, %v10147
  %v10338 = vsel %vm10210, %v10146, %v10148
  %v10339 = vsel %vm10211, %v10147, %v10149
  %v10340 = vsel %vm10212, %v10148, %v10150
  %v10341 = vsel %vm10213, %v10149, %v10151
  %v10342 = vsel %vm10214, %v10150, %v10152
  %v10343 = vsel %vm10215, %v10151, %v10153
  %v10344 = vsel %vm10216, %v10152, %v10154
  %v10345 = vsel %vm10217, %v10153, %v10155
  %v10346 = vsel %vm10218, %v10154, %v10156
  %v10347 = vsel %vm10219, %v10155, %v10157
  %v10348 = vsel %vm10220, %v10156, %v10158
  %v10349 = vsel %vm10221, %v10157, %v10159
  %v10350 = vsel %vm10222, %v10158, %v10160
  %v10351 = vsel %vm10223, %v10159, %v10161
  %v10352 = vsel %vm10224, %v10160, %v10162
  %v10353 = vsel %vm10225, %v10161, %v10163
  %v10354 = vsel %vm10226, %v10162, %v10164
  %v10355 = vsel %vm10227, %v10163, %v10165
  %v10356 = vsel %vm10228, %v10164, %v10166
  %v10357 = vsel %vm10229, %v10165, %v10167
  %v10358 = vsel %vm10230, %v10166, %v10168
  %v10359 = vsel %vm10231, %v10167, %v10169
  %v10360 = vsel %vm10232, %v10168, %v10170
  %v10361 = vsel %vm10233, %v10169, %v10171
  %v10362 = vsel %vm10234, %v10170, %v10172
  %v10363 = vsel %vm10235, %v10171, %v10173
  %v10364 = vsel %vm10236, %v10172, %v10174
  %v10365 = vsel %vm10237, %v10173, %v10175
  %v10366 = vsel %vm10238, %v10174, %v10176
  %v10367 = vsel %vm10239, %v10175, %v10177
  %v10368 = vsel %vm10240, %v10176, %v10178
  %v10369 = vsel %vm10241, %v10177, %v10179
  %v10370 = vsel %vm10242, %v10178, %v10180
  %v10371 = vsel %vm10243, %v10179, %v10181
  %v10372 = vsel %vm10244, %v10180, %v10182
  %v10373 = vsel %vm10245, %v10181, %v10183
  %v10374 = vsel %vm10246, %v10182, %v10184
  %v10375 = vsel %vm10247, %v10183, %v10185
  %v10376 = vsel %vm10248, %v10184, %v10186
  %v10377 = vsel %vm10249, %v10185, %v10187
  %v10378 = vsel %vm10250, %v10186, %v10188
  %v10379 = vsel %vm10251, %v10187, %v10189
  %v10380 = vsel %vm10252, %v10188, %v10126
  %v10381 = vsel %vm10253, %v10189, %v10127
  %v10382 = vlaneseq
  %v10383 = vand.u32 %v10382, 127
  %v10384 = vadd.s32 %v10383, 128
  %v10385 = vadd.s32 %v10383, 256
  %v10386 = vadd.s32 %v10383, 384
  %v10387 = vmul.u32 %v9677, 2
  %v10388 = vadd.s32 %v10387, 32
  %v10389 = vadd.s32 %v10387, 64
  %v10390 = vadd.s32 %v10387, 96
  %v10391 = vadd.s32 %v10387, 128
  %v10392 = vadd.s32 %v10387, 160
  %v10393 = vadd.s32 %v10387, 192
  %v10394 = vadd.s32 %v10387, 224
  %v10395 = vadd.s32 %v10387, 256
  %v10396 = vadd.s32 %v10387, 288
  %v10397 = vadd.s32 %v10387, 320
  %v10398 = vadd.s32 %v10387, 352
  %v10399 = vadd.s32 %v10387, 384
  %v10400 = vadd.s32 %v10387, 416
  %v10401 = vadd.s32 %v10387, 448
  %v10402 = vadd.s32 %v10387, 480
  %vm10403 = vcmp.eq.s32.totalorder %v10383, %v10387
  %vm10404 = vcmp.eq.s32.totalorder %v10384, %v10387
  %vm10405 = vcmp.eq.s32.totalorder %v10385, %v10387
  %vm10406 = vcmp.eq.s32.totalorder %v10386, %v10387
  %vm10407 = vcmp.eq.s32.totalorder %v10383, %v10388
  %vm10408 = vcmp.eq.s32.totalorder %v10384, %v10388
  %vm10409 = vcmp.eq.s32.totalorder %v10385, %v10388
  %vm10410 = vcmp.eq.s32.totalorder %v10386, %v10388
  %vm10411 = vcmp.eq.s32.totalorder %v10383, %v10389
  %vm10412 = vcmp.eq.s32.totalorder %v10384, %v10389
  %vm10413 = vcmp.eq.s32.totalorder %v10385, %v10389
  %vm10414 = vcmp.eq.s32.totalorder %v10386, %v10389
  %vm10415 = vcmp.eq.s32.totalorder %v10383, %v10390
  %vm10416 = vcmp.eq.s32.totalorder %v10384, %v10390
  %vm10417 = vcmp.eq.s32.totalorder %v10385, %v10390
  %vm10418 = vcmp.eq.s32.totalorder %v10386, %v10390
  %vm10419 = vcmp.eq.s32.totalorder %v10383, %v10391
  %vm10420 = vcmp.eq.s32.totalorder %v10384, %v10391
  %vm10421 = vcmp.eq.s32.totalorder %v10385, %v10391
  %vm10422 = vcmp.eq.s32.totalorder %v10386, %v10391
  %vm10423 = vcmp.eq.s32.totalorder %v10383, %v10392
  %vm10424 = vcmp.eq.s32.totalorder %v10384, %v10392
  %vm10425 = vcmp.eq.s32.totalorder %v10385, %v10392
  %vm10426 = vcmp.eq.s32.totalorder %v10386, %v10392
  %vm10427 = vcmp.eq.s32.totalorder %v10383, %v10393
  %vm10428 = vcmp.eq.s32.totalorder %v10384, %v10393
  %vm10429 = vcmp.eq.s32.totalorder %v10385, %v10393
  %vm10430 = vcmp.eq.s32.totalorder %v10386, %v10393
  %vm10431 = vcmp.eq.s32.totalorder %v10383, %v10394
  %vm10432 = vcmp.eq.s32.totalorder %v10384, %v10394
  %vm10433 = vcmp.eq.s32.totalorder %v10385, %v10394
  %vm10434 = vcmp.eq.s32.totalorder %v10386, %v10394
  %vm10435 = vcmp.eq.s32.totalorder %v10383, %v10395
  %vm10436 = vcmp.eq.s32.totalorder %v10384, %v10395
  %vm10437 = vcmp.eq.s32.totalorder %v10385, %v10395
  %vm10438 = vcmp.eq.s32.totalorder %v10386, %v10395
  %vm10439 = vcmp.eq.s32.totalorder %v10383, %v10396
  %vm10440 = vcmp.eq.s32.totalorder %v10384, %v10396
  %vm10441 = vcmp.eq.s32.totalorder %v10385, %v10396
  %vm10442 = vcmp.eq.s32.totalorder %v10386, %v10396
  %vm10443 = vcmp.eq.s32.totalorder %v10383, %v10397
  %vm10444 = vcmp.eq.s32.totalorder %v10384, %v10397
  %vm10445 = vcmp.eq.s32.totalorder %v10385, %v10397
  %vm10446 = vcmp.eq.s32.totalorder %v10386, %v10397
  %vm10447 = vcmp.eq.s32.totalorder %v10383, %v10398
  %vm10448 = vcmp.eq.s32.totalorder %v10384, %v10398
  %vm10449 = vcmp.eq.s32.totalorder %v10385, %v10398
  %vm10450 = vcmp.eq.s32.totalorder %v10386, %v10398
  %vm10451 = vcmp.eq.s32.totalorder %v10383, %v10399
  %vm10452 = vcmp.eq.s32.totalorder %v10384, %v10399
  %vm10453 = vcmp.eq.s32.totalorder %v10385, %v10399
  %vm10454 = vcmp.eq.s32.totalorder %v10386, %v10399
  %vm10455 = vcmp.eq.s32.totalorder %v10383, %v10400
  %vm10456 = vcmp.eq.s32.totalorder %v10384, %v10400
  %vm10457 = vcmp.eq.s32.totalorder %v10385, %v10400
  %vm10458 = vcmp.eq.s32.totalorder %v10386, %v10400
  %vm10459 = vcmp.eq.s32.totalorder %v10383, %v10401
  %vm10460 = vcmp.eq.s32.totalorder %v10384, %v10401
  %vm10461 = vcmp.eq.s32.totalorder %v10385, %v10401
  %vm10462 = vcmp.eq.s32.totalorder %v10386, %v10401
  %vm10463 = vcmp.eq.s32.totalorder %v10383, %v10402
  %vm10464 = vcmp.eq.s32.totalorder %v10384, %v10402
  %vm10465 = vcmp.eq.s32.totalorder %v10385, %v10402
  %vm10466 = vcmp.eq.s32.totalorder %v10386, %v10402
  %v10467 = vsel %vm10403, 1, 0
  %v10468 = vsel %vm10404, 1, 0
  %v10469 = vsel %vm10405, 1, 0
  %v10470 = vsel %vm10406, 1, 0
  %v10471 = vsel %vm10407, 1, 0
  %v10472 = vsel %vm10408, 1, 0
  %v10473 = vsel %vm10409, 1, 0
  %v10474 = vsel %vm10410, 1, 0
  %v10475 = vsel %vm10411, 1, 0
  %v10476 = vsel %vm10412, 1, 0
  %v10477 = vsel %vm10413, 1, 0
  %v10478 = vsel %vm10414, 1, 0
  %v10479 = vsel %vm10415, 1, 0
  %v10480 = vsel %vm10416, 1, 0
  %v10481 = vsel %vm10417, 1, 0
  %v10482 = vsel %vm10418, 1, 0
  %v10483 = vsel %vm10419, 1, 0
  %v10484 = vsel %vm10420, 1, 0
  %v10485 = vsel %vm10421, 1, 0
  %v10486 = vsel %vm10422, 1, 0
  %v10487 = vsel %vm10423, 1, 0
  %v10488 = vsel %vm10424, 1, 0
  %v10489 = vsel %vm10425, 1, 0
  %v10490 = vsel %vm10426, 1, 0
  %v10491 = vsel %vm10427, 1, 0
  %v10492 = vsel %vm10428, 1, 0
  %v10493 = vsel %vm10429, 1, 0
  %v10494 = vsel %vm10430, 1, 0
  %v10495 = vsel %vm10431, 1, 0
  %v10496 = vsel %vm10432, 1, 0
  %v10497 = vsel %vm10433, 1, 0
  %v10498 = vsel %vm10434, 1, 0
  %v10499 = vsel %vm10435, 1, 0
  %v10500 = vsel %vm10436, 1, 0
  %v10501 = vsel %vm10437, 1, 0
  %v10502 = vsel %vm10438, 1, 0
  %v10503 = vsel %vm10439, 1, 0
  %v10504 = vsel %vm10440, 1, 0
  %v10505 = vsel %vm10441, 1, 0
  %v10506 = vsel %vm10442, 1, 0
  %v10507 = vsel %vm10443, 1, 0
  %v10508 = vsel %vm10444, 1, 0
  %v10509 = vsel %vm10445, 1, 0
  %v10510 = vsel %vm10446, 1, 0
  %v10511 = vsel %vm10447, 1, 0
  %v10512 = vsel %vm10448, 1, 0
  %v10513 = vsel %vm10449, 1, 0
  %v10514 = vsel %vm10450, 1, 0
  %v10515 = vsel %vm10451, 1, 0
  %v10516 = vsel %vm10452, 1, 0
  %v10517 = vsel %vm10453, 1, 0
  %v10518 = vsel %vm10454, 1, 0
  %v10519 = vsel %vm10455, 1, 0
  %v10520 = vsel %vm10456, 1, 0
  %v10521 = vsel %vm10457, 1, 0
  %v10522 = vsel %vm10458, 1, 0
  %v10523 = vsel %vm10459, 1, 0
  %v10524 = vsel %vm10460, 1, 0
  %v10525 = vsel %vm10461, 1, 0
  %v10526 = vsel %vm10462, 1, 0
  %v10527 = vsel %vm10463, 1, 0
  %v10528 = vsel %vm10464, 1, 0
  %v10529 = vsel %vm10465, 1, 0
  %v10530 = vsel %vm10466, 1, 0
  %v10531 = vcvt.s32.f32 %v10467
  %v10532 = vcvt.s32.f32 %v10468
  %v10533 = vcvt.s32.f32 %v10469
  %v10534 = vcvt.s32.f32 %v10470
  %v10535 = vcvt.s32.f32 %v10471
  %v10536 = vcvt.s32.f32 %v10472
  %v10537 = vcvt.s32.f32 %v10473
  %v10538 = vcvt.s32.f32 %v10474
  %v10539 = vcvt.s32.f32 %v10475
  %v10540 = vcvt.s32.f32 %v10476
  %v10541 = vcvt.s32.f32 %v10477
  %v10542 = vcvt.s32.f32 %v10478
  %v10543 = vcvt.s32.f32 %v10479
  %v10544 = vcvt.s32.f32 %v10480
  %v10545 = vcvt.s32.f32 %v10481
  %v10546 = vcvt.s32.f32 %v10482
  %v10547 = vcvt.s32.f32 %v10483
  %v10548 = vcvt.s32.f32 %v10484
  %v10549 = vcvt.s32.f32 %v10485
  %v10550 = vcvt.s32.f32 %v10486
  %v10551 = vcvt.s32.f32 %v10487
  %v10552 = vcvt.s32.f32 %v10488
  %v10553 = vcvt.s32.f32 %v10489
  %v10554 = vcvt.s32.f32 %v10490
  %v10555 = vcvt.s32.f32 %v10491
  %v10556 = vcvt.s32.f32 %v10492
  %v10557 = vcvt.s32.f32 %v10493
  %v10558 = vcvt.s32.f32 %v10494
  %v10559 = vcvt.s32.f32 %v10495
  %v10560 = vcvt.s32.f32 %v10496
  %v10561 = vcvt.s32.f32 %v10497
  %v10562 = vcvt.s32.f32 %v10498
  %v10563 = vcvt.s32.f32 %v10499
  %v10564 = vcvt.s32.f32 %v10500
  %v10565 = vcvt.s32.f32 %v10501
  %v10566 = vcvt.s32.f32 %v10502
  %v10567 = vcvt.s32.f32 %v10503
  %v10568 = vcvt.s32.f32 %v10504
  %v10569 = vcvt.s32.f32 %v10505
  %v10570 = vcvt.s32.f32 %v10506
  %v10571 = vcvt.s32.f32 %v10507
  %v10572 = vcvt.s32.f32 %v10508
  %v10573 = vcvt.s32.f32 %v10509
  %v10574 = vcvt.s32.f32 %v10510
  %v10575 = vcvt.s32.f32 %v10511
  %v10576 = vcvt.s32.f32 %v10512
  %v10577 = vcvt.s32.f32 %v10513
  %v10578 = vcvt.s32.f32 %v10514
  %v10579 = vcvt.s32.f32 %v10515
  %v10580 = vcvt.s32.f32 %v10516
  %v10581 = vcvt.s32.f32 %v10517
  %v10582 = vcvt.s32.f32 %v10518
  %v10583 = vcvt.s32.f32 %v10519
  %v10584 = vcvt.s32.f32 %v10520
  %v10585 = vcvt.s32.f32 %v10521
  %v10586 = vcvt.s32.f32 %v10522
  %v10587 = vcvt.s32.f32 %v10523
  %v10588 = vcvt.s32.f32 %v10524
  %v10589 = vcvt.s32.f32 %v10525
  %v10590 = vcvt.s32.f32 %v10526
  %v10591 = vcvt.s32.f32 %v10527
  %v10592 = vcvt.s32.f32 %v10528
  %v10593 = vcvt.s32.f32 %v10529
  %v10594 = vcvt.s32.f32 %v10530
  %10595 = vmatpush.msra.mxu0 %v10269
  %10596 = vmatpush.msra.mxu0 %v10268
  %10597 = vmatpush.msra.mxu0 %v10267
  %10598 = vmatpush.msra.mxu0 %v10266
  %10599 = vmatpush.msra.mxu0 %v10265
  %10600 = vmatpush.msra.mxu0 %v10264
  %10601 = vmatpush.msra.mxu0 %v10263
  %10602 = vmatpush.msra.mxu0 %v10262
  %10603 = vmatpush.msra.mxu0 %v10261
  %10604 = vmatpush.msra.mxu0 %v10260
  %10605 = vmatpush.msra.mxu0 %v10259
  %10606 = vmatpush.msra.mxu0 %v10258
  %10607 = vmatpush.msra.mxu0 %v10257
  %10608 = vmatpush.msra.mxu0 %v10256
  %10609 = vmatpush.msra.mxu0 %v10255
  %10610 = vmatpush.msra.mxu0 %v10254
  %10611 = vmatmul.f32.gmra.mxu0 %v10531
  %v10612 = vpop.f32.mrf.mxu0
  %v10613 = vadd.f32 0.0, %v10612
  %10614 = vmatmul.f32.gmra.mxu0 %v10535
  %v10615 = vpop.f32.mrf.mxu0
  %v10616 = vadd.f32 0.0, %v10615
  %10617 = vmatmul.f32.gmra.mxu0 %v10539
  %v10618 = vpop.f32.mrf.mxu0
  %v10619 = vadd.f32 0.0, %v10618
  %10620 = vmatmul.f32.gmra.mxu0 %v10543
  %v10621 = vpop.f32.mrf.mxu0
  %v10622 = vadd.f32 0.0, %v10621
  %10623 = vmatmul.f32.gmra.mxu0 %v10547
  %v10624 = vpop.f32.mrf.mxu0
  %v10625 = vadd.f32 0.0, %v10624
  %10626 = vmatmul.f32.gmra.mxu0 %v10551
  %v10627 = vpop.f32.mrf.mxu0
  %v10628 = vadd.f32 0.0, %v10627
  %10629 = vmatmul.f32.gmra.mxu0 %v10555
  %v10630 = vpop.f32.mrf.mxu0
  %v10631 = vadd.f32 0.0, %v10630
  %10632 = vmatmul.f32.gmra.mxu0 %v10559
  %v10633 = vpop.f32.mrf.mxu0
  %v10634 = vadd.f32 0.0, %v10633
  %10635 = vmatmul.f32.gmra.mxu0 %v10563
  %v10636 = vpop.f32.mrf.mxu0
  %v10637 = vadd.f32 0.0, %v10636
  %10638 = vmatmul.f32.gmra.mxu0 %v10567
  %v10639 = vpop.f32.mrf.mxu0
  %v10640 = vadd.f32 0.0, %v10639
  %10641 = vmatmul.f32.gmra.mxu0 %v10571
  %v10642 = vpop.f32.mrf.mxu0
  %v10643 = vadd.f32 0.0, %v10642
  %10644 = vmatmul.f32.gmra.mxu0 %v10575
  %v10645 = vpop.f32.mrf.mxu0
  %v10646 = vadd.f32 0.0, %v10645
  %10647 = vmatmul.f32.gmra.mxu0 %v10579
  %v10648 = vpop.f32.mrf.mxu0
  %v10649 = vadd.f32 0.0, %v10648
  %10650 = vmatmul.f32.gmra.mxu0 %v10583
  %v10651 = vpop.f32.mrf.mxu0
  %v10652 = vadd.f32 0.0, %v10651
  %10653 = vmatmul.f32.gmra.mxu0 %v10587
  %v10654 = vpop.f32.mrf.mxu0
  %v10655 = vadd.f32 0.0, %v10654
  %10656 = vmatmul.f32.gmra.mxu0 %v10591
  %v10657 = vpop.f32.mrf.mxu0
  %v10658 = vadd.f32 0.0, %v10657
  %10659 = vdwg.mxu0
  %10660 = vmatpush.msra.mxu0 %v10285
  %10661 = vmatpush.msra.mxu0 %v10284
  %10662 = vmatpush.msra.mxu0 %v10283
  %10663 = vmatpush.msra.mxu0 %v10282
  %10664 = vmatpush.msra.mxu0 %v10281
  %10665 = vmatpush.msra.mxu0 %v10280
  %10666 = vmatpush.msra.mxu0 %v10279
  %10667 = vmatpush.msra.mxu0 %v10278
  %10668 = vmatpush.msra.mxu0 %v10277
  %10669 = vmatpush.msra.mxu0 %v10276
  %10670 = vmatpush.msra.mxu0 %v10275
  %10671 = vmatpush.msra.mxu0 %v10274
  %10672 = vmatpush.msra.mxu0 %v10273
  %10673 = vmatpush.msra.mxu0 %v10272
  %10674 = vmatpush.msra.mxu0 %v10271
  %10675 = vmatpush.msra.mxu0 %v10270
  %10676 = vmatmul.f32.gmra.mxu0 %v10532
  %v10677 = vpop.f32.mrf.mxu0
  %v10678 = vadd.f32 %v10613, %v10677
  %10679 = vmatmul.f32.gmra.mxu0 %v10536
  %v10680 = vpop.f32.mrf.mxu0
  %v10681 = vadd.f32 %v10616, %v10680
  %10682 = vmatmul.f32.gmra.mxu0 %v10540
  %v10683 = vpop.f32.mrf.mxu0
  %v10684 = vadd.f32 %v10619, %v10683
  %10685 = vmatmul.f32.gmra.mxu0 %v10544
  %v10686 = vpop.f32.mrf.mxu0
  %v10687 = vadd.f32 %v10622, %v10686
  %10688 = vmatmul.f32.gmra.mxu0 %v10548
  %v10689 = vpop.f32.mrf.mxu0
  %v10690 = vadd.f32 %v10625, %v10689
  %10691 = vmatmul.f32.gmra.mxu0 %v10552
  %v10692 = vpop.f32.mrf.mxu0
  %v10693 = vadd.f32 %v10628, %v10692
  %10694 = vmatmul.f32.gmra.mxu0 %v10556
  %v10695 = vpop.f32.mrf.mxu0
  %v10696 = vadd.f32 %v10631, %v10695
  %10697 = vmatmul.f32.gmra.mxu0 %v10560
  %v10698 = vpop.f32.mrf.mxu0
  %v10699 = vadd.f32 %v10634, %v10698
  %10700 = vmatmul.f32.gmra.mxu0 %v10564
  %v10701 = vpop.f32.mrf.mxu0
  %v10702 = vadd.f32 %v10637, %v10701
  %10703 = vmatmul.f32.gmra.mxu0 %v10568
  %v10704 = vpop.f32.mrf.mxu0
  %v10705 = vadd.f32 %v10640, %v10704
  %10706 = vmatmul.f32.gmra.mxu0 %v10572
  %v10707 = vpop.f32.mrf.mxu0
  %v10708 = vadd.f32 %v10643, %v10707
  %10709 = vmatmul.f32.gmra.mxu0 %v10576
  %v10710 = vpop.f32.mrf.mxu0
  %v10711 = vadd.f32 %v10646, %v10710
  %10712 = vmatmul.f32.gmra.mxu0 %v10580
  %v10713 = vpop.f32.mrf.mxu0
  %v10714 = vadd.f32 %v10649, %v10713
  %10715 = vmatmul.f32.gmra.mxu0 %v10584
  %v10716 = vpop.f32.mrf.mxu0
  %v10717 = vadd.f32 %v10652, %v10716
  %10718 = vmatmul.f32.gmra.mxu0 %v10588
  %v10719 = vpop.f32.mrf.mxu0
  %v10720 = vadd.f32 %v10655, %v10719
  %10721 = vmatmul.f32.gmra.mxu0 %v10592
  %v10722 = vpop.f32.mrf.mxu0
  %v10723 = vadd.f32 %v10658, %v10722
  %10724 = vdwg.mxu0
  %10725 = vmatpush.msra.mxu0 %v10301
  %10726 = vmatpush.msra.mxu0 %v10300
  %10727 = vmatpush.msra.mxu0 %v10299
  %10728 = vmatpush.msra.mxu0 %v10298
  %10729 = vmatpush.msra.mxu0 %v10297
  %10730 = vmatpush.msra.mxu0 %v10296
  %10731 = vmatpush.msra.mxu0 %v10295
  %10732 = vmatpush.msra.mxu0 %v10294
  %10733 = vmatpush.msra.mxu0 %v10293
  %10734 = vmatpush.msra.mxu0 %v10292
  %10735 = vmatpush.msra.mxu0 %v10291
  %10736 = vmatpush.msra.mxu0 %v10290
  %10737 = vmatpush.msra.mxu0 %v10289
  %10738 = vmatpush.msra.mxu0 %v10288
  %10739 = vmatpush.msra.mxu0 %v10287
  %10740 = vmatpush.msra.mxu0 %v10286
  %10741 = vmatmul.f32.gmra.mxu0 %v10533
  %v10742 = vpop.f32.mrf.mxu0
  %v10743 = vadd.f32 %v10678, %v10742
  %10744 = vmatmul.f32.gmra.mxu0 %v10537
  %v10745 = vpop.f32.mrf.mxu0
  %v10746 = vadd.f32 %v10681, %v10745
  %10747 = vmatmul.f32.gmra.mxu0 %v10541
  %v10748 = vpop.f32.mrf.mxu0
  %v10749 = vadd.f32 %v10684, %v10748
  %10750 = vmatmul.f32.gmra.mxu0 %v10545
  %v10751 = vpop.f32.mrf.mxu0
  %v10752 = vadd.f32 %v10687, %v10751
  %10753 = vmatmul.f32.gmra.mxu0 %v10549
  %v10754 = vpop.f32.mrf.mxu0
  %v10755 = vadd.f32 %v10690, %v10754
  %10756 = vmatmul.f32.gmra.mxu0 %v10553
  %v10757 = vpop.f32.mrf.mxu0
  %v10758 = vadd.f32 %v10693, %v10757
  %10759 = vmatmul.f32.gmra.mxu0 %v10557
  %v10760 = vpop.f32.mrf.mxu0
  %v10761 = vadd.f32 %v10696, %v10760
  %10762 = vmatmul.f32.gmra.mxu0 %v10561
  %v10763 = vpop.f32.mrf.mxu0
  %v10764 = vadd.f32 %v10699, %v10763
  %10765 = vmatmul.f32.gmra.mxu0 %v10565
  %v10766 = vpop.f32.mrf.mxu0
  %v10767 = vadd.f32 %v10702, %v10766
  %10768 = vmatmul.f32.gmra.mxu0 %v10569
  %v10769 = vpop.f32.mrf.mxu0
  %v10770 = vadd.f32 %v10705, %v10769
  %10771 = vmatmul.f32.gmra.mxu0 %v10573
  %v10772 = vpop.f32.mrf.mxu0
  %v10773 = vadd.f32 %v10708, %v10772
  %10774 = vmatmul.f32.gmra.mxu0 %v10577
  %v10775 = vpop.f32.mrf.mxu0
  %v10776 = vadd.f32 %v10711, %v10775
  %10777 = vmatmul.f32.gmra.mxu0 %v10581
  %v10778 = vpop.f32.mrf.mxu0
  %v10779 = vadd.f32 %v10714, %v10778
  %10780 = vmatmul.f32.gmra.mxu0 %v10585
  %v10781 = vpop.f32.mrf.mxu0
  %v10782 = vadd.f32 %v10717, %v10781
  %10783 = vmatmul.f32.gmra.mxu0 %v10589
  %v10784 = vpop.f32.mrf.mxu0
  %v10785 = vadd.f32 %v10720, %v10784
  %10786 = vmatmul.f32.gmra.mxu0 %v10593
  %v10787 = vpop.f32.mrf.mxu0
  %v10788 = vadd.f32 %v10723, %v10787
  %10789 = vdwg.mxu0
  %10790 = vmatpush.msra.mxu0 %v10317
  %10791 = vmatpush.msra.mxu0 %v10316
  %10792 = vmatpush.msra.mxu0 %v10315
  %10793 = vmatpush.msra.mxu0 %v10314
  %10794 = vmatpush.msra.mxu0 %v10313
  %10795 = vmatpush.msra.mxu0 %v10312
  %10796 = vmatpush.msra.mxu0 %v10311
  %10797 = vmatpush.msra.mxu0 %v10310
  %10798 = vmatpush.msra.mxu0 %v10309
  %10799 = vmatpush.msra.mxu0 %v10308
  %10800 = vmatpush.msra.mxu0 %v10307
  %10801 = vmatpush.msra.mxu0 %v10306
  %10802 = vmatpush.msra.mxu0 %v10305
  %10803 = vmatpush.msra.mxu0 %v10304
  %10804 = vmatpush.msra.mxu0 %v10303
  %10805 = vmatpush.msra.mxu0 %v10302
  %10806 = vmatmul.f32.gmra.mxu0 %v10534
  %v10807 = vpop.f32.mrf.mxu0
  %v10808 = vadd.f32 %v10743, %v10807
  %10809 = vmatmul.f32.gmra.mxu0 %v10538
  %v10810 = vpop.f32.mrf.mxu0
  %v10811 = vadd.f32 %v10746, %v10810
  %10812 = vmatmul.f32.gmra.mxu0 %v10542
  %v10813 = vpop.f32.mrf.mxu0
  %v10814 = vadd.f32 %v10749, %v10813
  %10815 = vmatmul.f32.gmra.mxu0 %v10546
  %v10816 = vpop.f32.mrf.mxu0
  %v10817 = vadd.f32 %v10752, %v10816
  %10818 = vmatmul.f32.gmra.mxu0 %v10550
  %v10819 = vpop.f32.mrf.mxu0
  %v10820 = vadd.f32 %v10755, %v10819
  %10821 = vmatmul.f32.gmra.mxu0 %v10554
  %v10822 = vpop.f32.mrf.mxu0
  %v10823 = vadd.f32 %v10758, %v10822
  %10824 = vmatmul.f32.gmra.mxu0 %v10558
  %v10825 = vpop.f32.mrf.mxu0
  %v10826 = vadd.f32 %v10761, %v10825
  %10827 = vmatmul.f32.gmra.mxu0 %v10562
  %v10828 = vpop.f32.mrf.mxu0
  %v10829 = vadd.f32 %v10764, %v10828
  %10830 = vmatmul.f32.gmra.mxu0 %v10566
  %v10831 = vpop.f32.mrf.mxu0
  %v10832 = vadd.f32 %v10767, %v10831
  %10833 = vmatmul.f32.gmra.mxu0 %v10570
  %v10834 = vpop.f32.mrf.mxu0
  %v10835 = vadd.f32 %v10770, %v10834
  %10836 = vmatmul.f32.gmra.mxu0 %v10574
  %v10837 = vpop.f32.mrf.mxu0
  %v10838 = vadd.f32 %v10773, %v10837
  %10839 = vmatmul.f32.gmra.mxu0 %v10578
  %v10840 = vpop.f32.mrf.mxu0
  %v10841 = vadd.f32 %v10776, %v10840
  %10842 = vmatmul.f32.gmra.mxu0 %v10582
  %v10843 = vpop.f32.mrf.mxu0
  %v10844 = vadd.f32 %v10779, %v10843
  %10845 = vmatmul.f32.gmra.mxu0 %v10586
  %v10846 = vpop.f32.mrf.mxu0
  %v10847 = vadd.f32 %v10782, %v10846
  %10848 = vmatmul.f32.gmra.mxu0 %v10590
  %v10849 = vpop.f32.mrf.mxu0
  %v10850 = vadd.f32 %v10785, %v10849
  %10851 = vmatmul.f32.gmra.mxu0 %v10594
  %v10852 = vpop.f32.mrf.mxu0
  %v10853 = vadd.f32 %v10788, %v10852
  %10854 = vdwg.mxu0
  %v10855 = vcvt.s32.f32 %v10318
  %v10856 = vcvt.s32.f32 %v10319
  %v10857 = vcvt.s32.f32 %v10320
  %v10858 = vcvt.s32.f32 %v10321
  %v10859 = vcvt.s32.f32 %v10322
  %v10860 = vcvt.s32.f32 %v10323
  %v10861 = vcvt.s32.f32 %v10324
  %v10862 = vcvt.s32.f32 %v10325
  %v10863 = vcvt.s32.f32 %v10326
  %v10864 = vcvt.s32.f32 %v10327
  %v10865 = vcvt.s32.f32 %v10328
  %v10866 = vcvt.s32.f32 %v10329
  %v10867 = vcvt.s32.f32 %v10330
  %v10868 = vcvt.s32.f32 %v10331
  %v10869 = vcvt.s32.f32 %v10332
  %v10870 = vcvt.s32.f32 %v10333
  %v10871 = vcvt.s32.f32 %v10334
  %v10872 = vcvt.s32.f32 %v10335
  %v10873 = vcvt.s32.f32 %v10336
  %v10874 = vcvt.s32.f32 %v10337
  %v10875 = vcvt.s32.f32 %v10338
  %v10876 = vcvt.s32.f32 %v10339
  %v10877 = vcvt.s32.f32 %v10340
  %v10878 = vcvt.s32.f32 %v10341
  %v10879 = vcvt.s32.f32 %v10342
  %v10880 = vcvt.s32.f32 %v10343
  %v10881 = vcvt.s32.f32 %v10344
  %v10882 = vcvt.s32.f32 %v10345
  %v10883 = vcvt.s32.f32 %v10346
  %v10884 = vcvt.s32.f32 %v10347
  %v10885 = vcvt.s32.f32 %v10348
  %v10886 = vcvt.s32.f32 %v10349
  %v10887 = vcvt.s32.f32 %v10350
  %v10888 = vcvt.s32.f32 %v10351
  %v10889 = vcvt.s32.f32 %v10352
  %v10890 = vcvt.s32.f32 %v10353
  %v10891 = vcvt.s32.f32 %v10354
  %v10892 = vcvt.s32.f32 %v10355
  %v10893 = vcvt.s32.f32 %v10356
  %v10894 = vcvt.s32.f32 %v10357
  %v10895 = vcvt.s32.f32 %v10358
  %v10896 = vcvt.s32.f32 %v10359
  %v10897 = vcvt.s32.f32 %v10360
  %v10898 = vcvt.s32.f32 %v10361
  %v10899 = vcvt.s32.f32 %v10362
  %v10900 = vcvt.s32.f32 %v10363
  %v10901 = vcvt.s32.f32 %v10364
  %v10902 = vcvt.s32.f32 %v10365
  %v10903 = vcvt.s32.f32 %v10366
  %v10904 = vcvt.s32.f32 %v10367
  %v10905 = vcvt.s32.f32 %v10368
  %v10906 = vcvt.s32.f32 %v10369
  %v10907 = vcvt.s32.f32 %v10370
  %v10908 = vcvt.s32.f32 %v10371
  %v10909 = vcvt.s32.f32 %v10372
  %v10910 = vcvt.s32.f32 %v10373
  %v10911 = vcvt.s32.f32 %v10374
  %v10912 = vcvt.s32.f32 %v10375
  %v10913 = vcvt.s32.f32 %v10376
  %v10914 = vcvt.s32.f32 %v10377
  %v10915 = vcvt.s32.f32 %v10378
  %v10916 = vcvt.s32.f32 %v10379
  %v10917 = vcvt.s32.f32 %v10380
  %v10918 = vcvt.s32.f32 %v10381
  %10919 = vst.msk [vmem:[%s7] sm:$0xff] %vm2391, %v10808
  %10920 = vst.msk [vmem:[%s7 + $0x8] sm:$0xff] %vm2391, %v10811
  %10921 = vst.msk [vmem:[%s7 + $0x10] sm:$0xff] %vm2391, %v10814
  %10922 = vst.msk [vmem:[%s7 + $0x18] sm:$0xff] %vm2391, %v10817
  %10923 = vst.msk [vmem:[%s7 + $0x20] sm:$0xff] %vm2391, %v10820
  %10924 = vst.msk [vmem:[%s7 + $0x28] sm:$0xff] %vm2391, %v10823
  %10925 = vst.msk [vmem:[%s7 + $0x30] sm:$0xff] %vm2391, %v10826
  %10926 = vst.msk [vmem:[%s7 + $0x38] sm:$0xff] %vm2391, %v10829
  %10927 = vst.msk [vmem:[%s7 + $0x40] sm:$0xff] %vm2391, %v10832
  %10928 = vst.msk [vmem:[%s7 + $0x48] sm:$0xff] %vm2391, %v10835
  %10929 = vst.msk [vmem:[%s7 + $0x50] sm:$0xff] %vm2391, %v10838
  %10930 = vst.msk [vmem:[%s7 + $0x58] sm:$0xff] %vm2391, %v10841
  %10931 = vst.msk [vmem:[%s7 + $0x60] sm:$0xff] %vm2391, %v10844
  %10932 = vst.msk [vmem:[%s7 + $0x68] sm:$0xff] %vm2391, %v10847
  %10933 = vst.msk [vmem:[%s7 + $0x70] sm:$0xff] %vm2391, %v10850
  %10934 = vst.msk [vmem:[%s7 + $0x78] sm:$0xff] %vm2391, %v10853
  %10935 = vmatpush.msra.mxu0 %v10870
  %10936 = vmatpush.msra.mxu0 %v10869
  %10937 = vmatpush.msra.mxu0 %v10868
  %10938 = vmatpush.msra.mxu0 %v10867
  %10939 = vmatpush.msra.mxu0 %v10866
  %10940 = vmatpush.msra.mxu0 %v10865
  %10941 = vmatpush.msra.mxu0 %v10864
  %10942 = vmatpush.msra.mxu0 %v10863
  %10943 = vmatpush.msra.mxu0 %v10862
  %10944 = vmatpush.msra.mxu0 %v10861
  %10945 = vmatpush.msra.mxu0 %v10860
  %10946 = vmatpush.msra.mxu0 %v10859
  %10947 = vmatpush.msra.mxu0 %v10858
  %10948 = vmatpush.msra.mxu0 %v10857
  %10949 = vmatpush.msra.mxu0 %v10856
  %10950 = vmatpush.msra.mxu0 %v10855
  %10951 = vmatmul.f32.gmra.mxu0 %v10531
  %v10952 = vpop.f32.mrf.mxu0
  %v10953 = vadd.f32 0.5, %v10952
  %10954 = vmatmul.f32.gmra.mxu0 %v10535
  %v10955 = vpop.f32.mrf.mxu0
  %v10956 = vadd.f32 0.5, %v10955
  %10957 = vmatmul.f32.gmra.mxu0 %v10539
  %v10958 = vpop.f32.mrf.mxu0
  %v10959 = vadd.f32 0.5, %v10958
  %10960 = vmatmul.f32.gmra.mxu0 %v10543
  %v10961 = vpop.f32.mrf.mxu0
  %v10962 = vadd.f32 0.5, %v10961
  %10963 = vmatmul.f32.gmra.mxu0 %v10547
  %v10964 = vpop.f32.mrf.mxu0
  %v10965 = vadd.f32 0.5, %v10964
  %10966 = vmatmul.f32.gmra.mxu0 %v10551
  %v10967 = vpop.f32.mrf.mxu0
  %v10968 = vadd.f32 0.5, %v10967
  %10969 = vmatmul.f32.gmra.mxu0 %v10555
  %v10970 = vpop.f32.mrf.mxu0
  %v10971 = vadd.f32 0.5, %v10970
  %10972 = vmatmul.f32.gmra.mxu0 %v10559
  %v10973 = vpop.f32.mrf.mxu0
  %v10974 = vadd.f32 0.5, %v10973
  %10975 = vmatmul.f32.gmra.mxu0 %v10563
  %v10976 = vpop.f32.mrf.mxu0
  %v10977 = vadd.f32 0.5, %v10976
  %10978 = vmatmul.f32.gmra.mxu0 %v10567
  %v10979 = vpop.f32.mrf.mxu0
  %v10980 = vadd.f32 0.5, %v10979
  %10981 = vmatmul.f32.gmra.mxu0 %v10571
  %v10982 = vpop.f32.mrf.mxu0
  %v10983 = vadd.f32 0.5, %v10982
  %10984 = vmatmul.f32.gmra.mxu0 %v10575
  %v10985 = vpop.f32.mrf.mxu0
  %v10986 = vadd.f32 0.5, %v10985
  %10987 = vmatmul.f32.gmra.mxu0 %v10579
  %v10988 = vpop.f32.mrf.mxu0
  %v10989 = vadd.f32 0.5, %v10988
  %10990 = vmatmul.f32.gmra.mxu0 %v10583
  %v10991 = vpop.f32.mrf.mxu0
  %v10992 = vadd.f32 0.5, %v10991
  %10993 = vmatmul.f32.gmra.mxu0 %v10587
  %v10994 = vpop.f32.mrf.mxu0
  %v10995 = vadd.f32 0.5, %v10994
  %10996 = vmatmul.f32.gmra.mxu0 %v10591
  %v10997 = vpop.f32.mrf.mxu0
  %v10998 = vadd.f32 0.5, %v10997
  %10999 = vdwg.mxu0
  %11000 = vmatpush.msra.mxu0 %v10886
  %11001 = vmatpush.msra.mxu0 %v10885
  %11002 = vmatpush.msra.mxu0 %v10884
  %11003 = vmatpush.msra.mxu0 %v10883
  %11004 = vmatpush.msra.mxu0 %v10882
  %11005 = vmatpush.msra.mxu0 %v10881
  %11006 = vmatpush.msra.mxu0 %v10880
  %11007 = vmatpush.msra.mxu0 %v10879
  %11008 = vmatpush.msra.mxu0 %v10878
  %11009 = vmatpush.msra.mxu0 %v10877
  %11010 = vmatpush.msra.mxu0 %v10876
  %11011 = vmatpush.msra.mxu0 %v10875
  %11012 = vmatpush.msra.mxu0 %v10874
  %11013 = vmatpush.msra.mxu0 %v10873
  %11014 = vmatpush.msra.mxu0 %v10872
  %11015 = vmatpush.msra.mxu0 %v10871
  %11016 = vmatmul.f32.gmra.mxu0 %v10532
  %v11017 = vpop.f32.mrf.mxu0
  %v11018 = vadd.f32 %v10953, %v11017
  %11019 = vmatmul.f32.gmra.mxu0 %v10536
  %v11020 = vpop.f32.mrf.mxu0
  %v11021 = vadd.f32 %v10956, %v11020
  %11022 = vmatmul.f32.gmra.mxu0 %v10540
  %v11023 = vpop.f32.mrf.mxu0
  %v11024 = vadd.f32 %v10959, %v11023
  %11025 = vmatmul.f32.gmra.mxu0 %v10544
  %v11026 = vpop.f32.mrf.mxu0
  %v11027 = vadd.f32 %v10962, %v11026
  %11028 = vmatmul.f32.gmra.mxu0 %v10548
  %v11029 = vpop.f32.mrf.mxu0
  %v11030 = vadd.f32 %v10965, %v11029
  %11031 = vmatmul.f32.gmra.mxu0 %v10552
  %v11032 = vpop.f32.mrf.mxu0
  %v11033 = vadd.f32 %v10968, %v11032
  %11034 = vmatmul.f32.gmra.mxu0 %v10556
  %v11035 = vpop.f32.mrf.mxu0
  %v11036 = vadd.f32 %v10971, %v11035
  %11037 = vmatmul.f32.gmra.mxu0 %v10560
  %v11038 = vpop.f32.mrf.mxu0
  %v11039 = vadd.f32 %v10974, %v11038
  %11040 = vmatmul.f32.gmra.mxu0 %v10564
  %v11041 = vpop.f32.mrf.mxu0
  %v11042 = vadd.f32 %v10977, %v11041
  %11043 = vmatmul.f32.gmra.mxu0 %v10568
  %v11044 = vpop.f32.mrf.mxu0
  %v11045 = vadd.f32 %v10980, %v11044
  %11046 = vmatmul.f32.gmra.mxu0 %v10572
  %v11047 = vpop.f32.mrf.mxu0
  %v11048 = vadd.f32 %v10983, %v11047
  %11049 = vmatmul.f32.gmra.mxu0 %v10576
  %v11050 = vpop.f32.mrf.mxu0
  %v11051 = vadd.f32 %v10986, %v11050
  %11052 = vmatmul.f32.gmra.mxu0 %v10580
  %v11053 = vpop.f32.mrf.mxu0
  %v11054 = vadd.f32 %v10989, %v11053
  %11055 = vmatmul.f32.gmra.mxu0 %v10584
  %v11056 = vpop.f32.mrf.mxu0
  %v11057 = vadd.f32 %v10992, %v11056
  %11058 = vmatmul.f32.gmra.mxu0 %v10588
  %v11059 = vpop.f32.mrf.mxu0
  %v11060 = vadd.f32 %v10995, %v11059
  %11061 = vmatmul.f32.gmra.mxu0 %v10592
  %v11062 = vpop.f32.mrf.mxu0
  %v11063 = vadd.f32 %v10998, %v11062
  %11064 = vdwg.mxu0
  %11065 = vmatpush.msra.mxu0 %v10902
  %11066 = vmatpush.msra.mxu0 %v10901
  %11067 = vmatpush.msra.mxu0 %v10900
  %11068 = vmatpush.msra.mxu0 %v10899
  %11069 = vmatpush.msra.mxu0 %v10898
  %11070 = vmatpush.msra.mxu0 %v10897
  %11071 = vmatpush.msra.mxu0 %v10896
  %11072 = vmatpush.msra.mxu0 %v10895
  %11073 = vmatpush.msra.mxu0 %v10894
  %11074 = vmatpush.msra.mxu0 %v10893
  %11075 = vmatpush.msra.mxu0 %v10892
  %11076 = vmatpush.msra.mxu0 %v10891
  %11077 = vmatpush.msra.mxu0 %v10890
  %11078 = vmatpush.msra.mxu0 %v10889
  %11079 = vmatpush.msra.mxu0 %v10888
  %11080 = vmatpush.msra.mxu0 %v10887
  %11081 = vmatmul.f32.gmra.mxu0 %v10533
  %v11082 = vpop.f32.mrf.mxu0
  %v11083 = vadd.f32 %v11018, %v11082
  %11084 = vmatmul.f32.gmra.mxu0 %v10537
  %v11085 = vpop.f32.mrf.mxu0
  %v11086 = vadd.f32 %v11021, %v11085
  %11087 = vmatmul.f32.gmra.mxu0 %v10541
  %v11088 = vpop.f32.mrf.mxu0
  %v11089 = vadd.f32 %v11024, %v11088
  %11090 = vmatmul.f32.gmra.mxu0 %v10545
  %v11091 = vpop.f32.mrf.mxu0
  %v11092 = vadd.f32 %v11027, %v11091
  %11093 = vmatmul.f32.gmra.mxu0 %v10549
  %v11094 = vpop.f32.mrf.mxu0
  %v11095 = vadd.f32 %v11030, %v11094
  %11096 = vmatmul.f32.gmra.mxu0 %v10553
  %v11097 = vpop.f32.mrf.mxu0
  %v11098 = vadd.f32 %v11033, %v11097
  %11099 = vmatmul.f32.gmra.mxu0 %v10557
  %v11100 = vpop.f32.mrf.mxu0
  %v11101 = vadd.f32 %v11036, %v11100
  %11102 = vmatmul.f32.gmra.mxu0 %v10561
  %v11103 = vpop.f32.mrf.mxu0
  %v11104 = vadd.f32 %v11039, %v11103
  %11105 = vmatmul.f32.gmra.mxu0 %v10565
  %v11106 = vpop.f32.mrf.mxu0
  %v11107 = vadd.f32 %v11042, %v11106
  %11108 = vmatmul.f32.gmra.mxu0 %v10569
  %v11109 = vpop.f32.mrf.mxu0
  %v11110 = vadd.f32 %v11045, %v11109
  %11111 = vmatmul.f32.gmra.mxu0 %v10573
  %v11112 = vpop.f32.mrf.mxu0
  %v11113 = vadd.f32 %v11048, %v11112
  %11114 = vmatmul.f32.gmra.mxu0 %v10577
  %v11115 = vpop.f32.mrf.mxu0
  %v11116 = vadd.f32 %v11051, %v11115
  %11117 = vmatmul.f32.gmra.mxu0 %v10581
  %v11118 = vpop.f32.mrf.mxu0
  %v11119 = vadd.f32 %v11054, %v11118
  %11120 = vmatmul.f32.gmra.mxu0 %v10585
  %v11121 = vpop.f32.mrf.mxu0
  %v11122 = vadd.f32 %v11057, %v11121
  %11123 = vmatmul.f32.gmra.mxu0 %v10589
  %v11124 = vpop.f32.mrf.mxu0
  %v11125 = vadd.f32 %v11060, %v11124
  %11126 = vmatmul.f32.gmra.mxu0 %v10593
  %v11127 = vpop.f32.mrf.mxu0
  %v11128 = vadd.f32 %v11063, %v11127
  %11129 = vdwg.mxu0
  %11130 = vmatpush.msra.mxu0 %v10918
  %11131 = vmatpush.msra.mxu0 %v10917
  %11132 = vmatpush.msra.mxu0 %v10916
  %11133 = vmatpush.msra.mxu0 %v10915
  %11134 = vmatpush.msra.mxu0 %v10914
  %11135 = vmatpush.msra.mxu0 %v10913
  %11136 = vmatpush.msra.mxu0 %v10912
  %11137 = vmatpush.msra.mxu0 %v10911
  %11138 = vmatpush.msra.mxu0 %v10910
  %11139 = vmatpush.msra.mxu0 %v10909
  %11140 = vmatpush.msra.mxu0 %v10908
  %11141 = vmatpush.msra.mxu0 %v10907
  %11142 = vmatpush.msra.mxu0 %v10906
  %11143 = vmatpush.msra.mxu0 %v10905
  %11144 = vmatpush.msra.mxu0 %v10904
  %11145 = vmatpush.msra.mxu0 %v10903
  %11146 = vmatmul.f32.gmra.mxu0 %v10534
  %v11147 = vpop.f32.mrf.mxu0
  %v11148 = vadd.f32 %v11083, %v11147
  %11149 = vmatmul.f32.gmra.mxu0 %v10538
  %v11150 = vpop.f32.mrf.mxu0
  %v11151 = vadd.f32 %v11086, %v11150
  %11152 = vmatmul.f32.gmra.mxu0 %v10542
  %v11153 = vpop.f32.mrf.mxu0
  %v11154 = vadd.f32 %v11089, %v11153
  %11155 = vmatmul.f32.gmra.mxu0 %v10546
  %v11156 = vpop.f32.mrf.mxu0
  %v11157 = vadd.f32 %v11092, %v11156
  %11158 = vmatmul.f32.gmra.mxu0 %v10550
  %v11159 = vpop.f32.mrf.mxu0
  %v11160 = vadd.f32 %v11095, %v11159
  %11161 = vmatmul.f32.gmra.mxu0 %v10554
  %v11162 = vpop.f32.mrf.mxu0
  %v11163 = vadd.f32 %v11098, %v11162
  %11164 = vmatmul.f32.gmra.mxu0 %v10558
  %v11165 = vpop.f32.mrf.mxu0
  %v11166 = vadd.f32 %v11101, %v11165
  %11167 = vmatmul.f32.gmra.mxu0 %v10562
  %v11168 = vpop.f32.mrf.mxu0
  %v11169 = vadd.f32 %v11104, %v11168
  %11170 = vmatmul.f32.gmra.mxu0 %v10566
  %v11171 = vpop.f32.mrf.mxu0
  %v11172 = vadd.f32 %v11107, %v11171
  %11173 = vmatmul.f32.gmra.mxu0 %v10570
  %v11174 = vpop.f32.mrf.mxu0
  %v11175 = vadd.f32 %v11110, %v11174
  %11176 = vmatmul.f32.gmra.mxu0 %v10574
  %v11177 = vpop.f32.mrf.mxu0
  %v11178 = vadd.f32 %v11113, %v11177
  %11179 = vmatmul.f32.gmra.mxu0 %v10578
  %v11180 = vpop.f32.mrf.mxu0
  %v11181 = vadd.f32 %v11116, %v11180
  %11182 = vmatmul.f32.gmra.mxu0 %v10582
  %v11183 = vpop.f32.mrf.mxu0
  %v11184 = vadd.f32 %v11119, %v11183
  %11185 = vmatmul.f32.gmra.mxu0 %v10586
  %v11186 = vpop.f32.mrf.mxu0
  %v11187 = vadd.f32 %v11122, %v11186
  %11188 = vmatmul.f32.gmra.mxu0 %v10590
  %v11189 = vpop.f32.mrf.mxu0
  %v11190 = vadd.f32 %v11125, %v11189
  %11191 = vmatmul.f32.gmra.mxu0 %v10594
  %v11192 = vpop.f32.mrf.mxu0
  %v11193 = vadd.f32 %v11128, %v11192
  %11194 = vdwg.mxu0
  %v11195 = vcvt.f32.s32.to.zero.pseudo %v11148
  %v11196 = vcvt.f32.s32.to.zero.pseudo %v11151
  %v11197 = vcvt.f32.s32.to.zero.pseudo %v11154
  %v11198 = vcvt.f32.s32.to.zero.pseudo %v11157
  %v11199 = vcvt.f32.s32.to.zero.pseudo %v11160
  %v11200 = vcvt.f32.s32.to.zero.pseudo %v11163
  %v11201 = vcvt.f32.s32.to.zero.pseudo %v11166
  %v11202 = vcvt.f32.s32.to.zero.pseudo %v11169
  %v11203 = vcvt.f32.s32.to.zero.pseudo %v11172
  %v11204 = vcvt.f32.s32.to.zero.pseudo %v11175
  %v11205 = vcvt.f32.s32.to.zero.pseudo %v11178
  %v11206 = vcvt.f32.s32.to.zero.pseudo %v11181
  %v11207 = vcvt.f32.s32.to.zero.pseudo %v11184
  %v11208 = vcvt.f32.s32.to.zero.pseudo %v11187
  %v11209 = vcvt.f32.s32.to.zero.pseudo %v11190
  %v11210 = vcvt.f32.s32.to.zero.pseudo %v11193
  %11211 = vst.msk [vmem:[%s8] sm:$0xff] %vm2391, %v11195
  %11212 = vst.msk [vmem:[%s8 + $0x8] sm:$0xff] %vm2391, %v11196
  %11213 = vst.msk [vmem:[%s8 + $0x10] sm:$0xff] %vm2391, %v11197
  %11214 = vst.msk [vmem:[%s8 + $0x18] sm:$0xff] %vm2391, %v11198
  %11215 = vst.msk [vmem:[%s8 + $0x20] sm:$0xff] %vm2391, %v11199
  %11216 = vst.msk [vmem:[%s8 + $0x28] sm:$0xff] %vm2391, %v11200
  %11217 = vst.msk [vmem:[%s8 + $0x30] sm:$0xff] %vm2391, %v11201
  %11218 = vst.msk [vmem:[%s8 + $0x38] sm:$0xff] %vm2391, %v11202
  %11219 = vst.msk [vmem:[%s8 + $0x40] sm:$0xff] %vm2391, %v11203
  %11220 = vst.msk [vmem:[%s8 + $0x48] sm:$0xff] %vm2391, %v11204
  %11221 = vst.msk [vmem:[%s8 + $0x50] sm:$0xff] %vm2391, %v11205
  %11222 = vst.msk [vmem:[%s8 + $0x58] sm:$0xff] %vm2391, %v11206
  %11223 = vst.msk [vmem:[%s8 + $0x60] sm:$0xff] %vm2391, %v11207
  %11224 = vst.msk [vmem:[%s8 + $0x68] sm:$0xff] %vm2391, %v11208
  %11225 = vst.msk [vmem:[%s8 + $0x70] sm:$0xff] %vm2391, %v11209
  %11226 = vst.msk [vmem:[%s8 + $0x78] sm:$0xff] %vm2391, %v11210
  // Predicated region
  $region30: #{tpu_custom_call.1} parent=0 // pred_check
    _
  $region31: #{tpu_custom_call.1} parent=0 // pred_check_branch
    %11228 = sbr.rel (0) target = $region33
  $region32: #{tpu_custom_call.1} parent=0 // pred_region
    _
  $region33: #{tpu_custom_call.1} parent=0 // pred_fallthru
    _
  // Predicated region
  $region34: #{tpu_custom_call.1} parent=0 // pred_check
    _
  $region35: #{tpu_custom_call.1} parent=0 // pred_check_branch
    %11230 = sbr.rel (0) target = $region37
  $region36: #{tpu_custom_call.1} parent=0 // pred_region
    _
  $region37: #{tpu_custom_call.1} parent=0 // pred_fallthru
    _
  // Predicated region
  $region38: #{tpu_custom_call.1} parent=0 // pred_check
    _
  $region39: #{tpu_custom_call.1} parent=0 // pred_check_branch
    %11232 = sbr.rel (0) target = $region41
  $region40: #{tpu_custom_call.1} parent=0 // pred_region
    _
  $region41: #{tpu_custom_call.1} parent=0 // pred_fallthru
    _
  // Predicated region
  $region42: #{tpu_custom_call.1} parent=0 // pred_check
    _
  $region43: #{tpu_custom_call.1} parent=0 // pred_check_branch
    %11234 = sbr.rel (0) target = $region45
  $region44: #{tpu_custom_call.1} parent=0 // pred_region
    _
  $region45: #{tpu_custom_call.1} parent=0 // pred_fallthru
    _

</llo_original>
